<compile_context>
chip_gen: v7x
topology: tpu7x:2x2x1
jax: 0.10.0
libtpu: 0.0.40
codegen_flags: <defaults>
</compile_context>

<pallas_src>
import functools

import numpy as np

import jax
import jax.numpy as jnp
from jax.experimental import pallas as pl
from jax.experimental.pallas import tpu as pltpu

_BN_EPS = 1e-5


def _vmem_limit_bytes():
    # ~60% of physical VMEM (v5e/v6e: ~77 MiB, v7x: ~38 MiB); conservative fallback.
    try:
        cap = pltpu.get_tpu_info().vmem_capacity_bytes
        return int(max(32 * 1024 * 1024, min(0.6 * cap, 100 * 1024 * 1024)))
    except Exception:
        return 48 * 1024 * 1024


_COMPILER_PARAMS = pltpu.CompilerParams(
    dimension_semantics=("parallel",),      # every grid here is 1-D & independent
    vmem_limit_bytes=_vmem_limit_bytes(),
)


def _pick_row_tile(m, cap=1024):
    """Largest tile <= cap that divides m and is a multiple of 8 (keeps the BN
    partial-sum tiles exact: no partial last tile).  Falls back to the full m."""
    t = min(cap, m)
    t -= t % 8
    while t >= 8:
        if m % t == 0:
            return t
        t -= 8
    return m


# ---------------------------------------------------------------------------
# K1: complex 1x1 conv (Gauss 3-matmul) + BN partial statistics
# ---------------------------------------------------------------------------

def _conv1x1_head_kernel(xr_ref, xi_ref, wr_ref, wi_ref, ws_ref, y_ref, st_ref):
    ar = xr_ref[...]                                           # (TM, Cin) bf16
    ai = xi_ref[...]
    rr = jnp.dot(ar, wr_ref[...], preferred_element_type=jnp.float32)
    ii = jnp.dot(ai, wi_ref[...], preferred_element_type=jnp.float32)
    sm = jnp.dot(ar + ai, ws_ref[...], preferred_element_type=jnp.float32)
    yr = rr - ii                                               # Re (f32)
    yi = sm - rr - ii                                          # Im (f32)
    c = yr.shape[1]
    y_ref[:, :c] = yr.astype(y_ref.dtype)                      # packed [Re|Im] bf16
    y_ref[:, c:] = yi.astype(y_ref.dtype)
    st_ref[...] = jnp.concatenate(
        [jnp.sum(yr, axis=0, keepdims=True),
         jnp.sum(yr * yr, axis=0, keepdims=True),
         jnp.sum(yi, axis=0, keepdims=True),
         jnp.sum(yi * yi, axis=0, keepdims=True)], axis=0)[None]


def _conv1x1_head(xr, xi, wr, wi, ws):
    m, cin = xr.shape
    cout = wr.shape[1]
    tm = _pick_row_tile(m)
    nt = m // tm
    act = pl.BlockSpec((tm, cin), lambda i: (i, 0))
    wgt = pl.BlockSpec((cin, cout), lambda i: (0, 0))           # VMEM-resident
    return pl.pallas_call(
        _conv1x1_head_kernel,
        grid=(nt,),
        in_specs=[act, act, wgt, wgt, wgt],
        out_specs=(pl.BlockSpec((tm, 2 * cout), lambda i: (i, 0)),
                   pl.BlockSpec((1, 4, cout), lambda i: (i, 0, 0))),
        out_shape=(jax.ShapeDtypeStruct((m, 2 * cout), jnp.bfloat16),
                   jax.ShapeDtypeStruct((nt, 4, cout), jnp.float32)),
        compiler_params=_COMPILER_PARAMS,
    )(xr, xi, wr, wi, ws)


# ---------------------------------------------------------------------------
# K2: 3x3 complex conv fused with BN1+CPReLU on load + BN partial statistics
# ---------------------------------------------------------------------------

def _conv3x3_fused_kernel(h, w, a_ref, ss_ref, msk_ref, wr_ref, wi_ref, ws_ref,
                          y_ref, st_ref):
    wp = w + 2
    l_out = h * wp
    cin = wr_ref.shape[1]
    cout = wr_ref.shape[2]

    a = a_ref[0].astype(jnp.float32)                           # (L_in, 2*Cin)
    imask = msk_ref[:, 0:1]                                    # 1 inside the image
    omask = msk_ref[:l_out, 1:2]                               # 1 at valid output cols

    # normalize-on-load (BN1 scale/shift + PReLU), then zero the conv padding halo
    zr = a[:, :cin] * ss_ref[0:1, :] + ss_ref[1:2, :]
    zi = a[:, cin:] * ss_ref[3:4, :] + ss_ref[4:5, :]
    zr = jnp.where(zr >= 0.0, zr, ss_ref[2:3, :] * zr) * imask
    zi = jnp.where(zi >= 0.0, zi, ss_ref[5:6, :] * zi) * imask
    ar = zr.astype(jnp.bfloat16)
    ai = zi.astype(jnp.bfloat16)
    a_s = (zr + zi).astype(jnp.bfloat16)                       # hoisted out of taps

    rr = jnp.zeros((l_out, cout), jnp.float32)
    ii = jnp.zeros((l_out, cout), jnp.float32)
    sm = jnp.zeros((l_out, cout), jnp.float32)
    for t in range(9):                                         # static unroll, 27 matmuls
        off = (t // 3) * wp + (t % 3)
        rr = rr + jnp.dot(ar[off:off + l_out], wr_ref[t],
                          preferred_element_type=jnp.float32)
        ii = ii + jnp.dot(ai[off:off + l_out], wi_ref[t],
                          preferred_element_type=jnp.float32)
        sm = sm + jnp.dot(a_s[off:off + l_out], ws_ref[t],
                          preferred_element_type=jnp.float32)
    yr = rr - ii
    yi = sm - rr - ii

    # BN partial sums over valid (non-halo) output columns only
    yrm = yr * omask
    yim = yi * omask
    st_ref[...] = jnp.concatenate(
        [jnp.sum(yrm, axis=0, keepdims=True),
         jnp.sum(yrm * yr, axis=0, keepdims=True),
         jnp.sum(yim, axis=0, keepdims=True),
         jnp.sum(yim * yi, axis=0, keepdims=True)], axis=0)[None]

    # store cropped (no W-halo) packed bf16 rows straight from the kernel
    for r in range(h):
        src = slice(r * wp, r * wp + w)
        dst = slice(r * w, (r + 1) * w)
        y_ref[0, dst, :cout] = yr[src].astype(y_ref.dtype)
        y_ref[0, dst, cout:] = yi[src].astype(y_ref.dtype)


def _conv3x3_fused(a_pad, ss, wr, wi, ws, h, w):
    """a_pad: (N, (H+3)*(W+2), 2*Cin) bf16, zero-padded packed conv1 output."""
    n, l_in, cin2 = a_pad.shape
    cin = cin2 // 2
    cout = wr.shape[2]
    wp = w + 2
    l_out = h * wp

    q = np.arange(l_in)
    prow, col = q // wp, q % wp
    interior = ((prow >= 1) & (prow <= h) & (col >= 1) & (col <= w)).astype(np.float32)
    out_valid = np.zeros((l_in,), np.float32)
    out_valid[:l_out] = ((q[:l_out] % wp) < w).astype(np.float32)
    masks = jnp.asarray(np.stack([interior, out_valid], axis=1))   # (L_in, 2) f32

    act = pl.BlockSpec((1, l_in, cin2), lambda i: (i, 0, 0))
    ssb = pl.BlockSpec((6, cin), lambda i: (0, 0))
    mkb = pl.BlockSpec((l_in, 2), lambda i: (0, 0))
    wgt = pl.BlockSpec((9, cin, cout), lambda i: (0, 0, 0))        # VMEM-resident

    return pl.pallas_call(
        functools.partial(_conv3x3_fused_kernel, h, w),
        grid=(n,),
        in_specs=[act, ssb, mkb, wgt, wgt, wgt],
        out_specs=(pl.BlockSpec((1, h * w, 2 * cout), lambda i: (i, 0, 0)),
                   pl.BlockSpec((1, 4, cout), lambda i: (i, 0, 0))),
        out_shape=(jax.ShapeDtypeStruct((n, h * w, 2 * cout), jnp.bfloat16),
                   jax.ShapeDtypeStruct((n, 4, cout), jnp.float32)),
        compiler_params=_COMPILER_PARAMS,
    )(a_pad, ss, masks, wr, wi, ws)


# ---------------------------------------------------------------------------
# K3: 1x1 complex conv fused with BN2+CPReLU on load + BN partial statistics
# ---------------------------------------------------------------------------

def _conv1x1_fused_kernel(a_ref, ss_ref, wr_ref, wi_ref, ws_ref, y_ref, st_ref):
    cin = wr_ref.shape[0]
    a = a_ref[...].astype(jnp.float32)                          # (TM, 2*Cin)
    zr = a[:, :cin] * ss_ref[0:1, :] + ss_ref[1:2, :]
    zi = a[:, cin:] * ss_ref[3:4, :] + ss_ref[4:5, :]
    zr = jnp.where(zr >= 0.0, zr, ss_ref[2:3, :] * zr)
    zi = jnp.where(zi >= 0.0, zi, ss_ref[5:6, :] * zi)
    ar = zr.astype(jnp.bfloat16)
    ai = zi.astype(jnp.bfloat16)
    a_s = (zr + zi).astype(jnp.bfloat16)
    rr = jnp.dot(ar, wr_ref[...], preferred_element_type=jnp.float32)
    ii = jnp.dot(ai, wi_ref[...], preferred_element_type=jnp.float32)
    sm = jnp.dot(a_s, ws_ref[...], preferred_element_type=jnp.float32)
    yr = rr - ii
    yi = sm - rr - ii
    c = yr.shape[1]
    y_ref[:, :c] = yr.astype(y_ref.dtype)
    y_ref[:, c:] = yi.astype(y_ref.dtype)
    st_ref[...] = jnp.concatenate(
        [jnp.sum(yr, axis=0, keepdims=True),
         jnp.sum(yr * yr, axis=0, keepdims=True),
         jnp.sum(yi, axis=0, keepdims=True),
         jnp.sum(yi * yi, axis=0, keepdims=True)], axis=0)[None]


def _conv1x1_fused(a, ss, wr, wi, ws):
    m, cin2 = a.shape
    cin = cin2 // 2
    cout = wr.shape[1]
    tm = _pick_row_tile(m)
    nt = m // tm
    act = pl.BlockSpec((tm, cin2), lambda i: (i, 0))
    ssb = pl.BlockSpec((6, cin), lambda i: (0, 0))
    wgt = pl.BlockSpec((cin, cout), lambda i: (0, 0))
    return pl.pallas_call(
        _conv1x1_fused_kernel,
        grid=(nt,),
        in_specs=[act, ssb, wgt, wgt, wgt],
        out_specs=(pl.BlockSpec((tm, 2 * cout), lambda i: (i, 0)),
                   pl.BlockSpec((1, 4, cout), lambda i: (i, 0, 0))),
        out_shape=(jax.ShapeDtypeStruct((m, 2 * cout), jnp.bfloat16),
                   jax.ShapeDtypeStruct((nt, 4, cout), jnp.float32)),
        compiler_params=_COMPILER_PARAMS,
    )(a, ss, wr, wi, ws)


# ---------------------------------------------------------------------------
# K4: BN3 + identity residual + CPReLU
# ---------------------------------------------------------------------------

def _bn_res_prelu_kernel(y_ref, idr_ref, idi_ref, ss_ref, or_ref, oi_ref):
    c = or_ref.shape[1]
    y = y_ref[...].astype(jnp.float32)                          # (TM, 2*C) bf16 load
    zr = y[:, :c] * ss_ref[0:1, :] + ss_ref[1:2, :] + idr_ref[...]
    zi = y[:, c:] * ss_ref[3:4, :] + ss_ref[4:5, :] + idi_ref[...]
    or_ref[...] = jnp.where(zr >= 0.0, zr, ss_ref[2:3, :] * zr)
    oi_ref[...] = jnp.where(zi >= 0.0, zi, ss_ref[5:6, :] * zi)


def _bn_res_prelu(y, idr, idi, ss):
    m, c2 = y.shape
    c = c2 // 2
    tm = _pick_row_tile(m, cap=2048)
    nt = m // tm
    return pl.pallas_call(
        _bn_res_prelu_kernel,
        grid=(nt,),
        in_specs=[pl.BlockSpec((tm, c2), lambda i: (i, 0)),
                  pl.BlockSpec((tm, c), lambda i: (i, 0)),
                  pl.BlockSpec((tm, c), lambda i: (i, 0)),
                  pl.BlockSpec((6, c), lambda i: (0, 0))],
        out_specs=(pl.BlockSpec((tm, c), lambda i: (i, 0)),
                   pl.BlockSpec((tm, c), lambda i: (i, 0))),
        out_shape=(jax.ShapeDtypeStruct((m, c), jnp.float32),
                   jax.ShapeDtypeStruct((m, c), jnp.float32)),
        compiler_params=_COMPILER_PARAMS,
    )(y, idr, idi, ss)


# ---------------------------------------------------------------------------
# Tiny XLA glue: fold per-tile BN partial sums into a (6, C) scale/shift/alpha table
# ---------------------------------------------------------------------------

def _bn_prelu_table(stats, gamma, beta, alpha, count):
    s = jnp.sum(stats.astype(jnp.float32), axis=0)              # (4, C)
    inv_n = 1.0 / float(count)
    mean_r, mean_i = s[0] * inv_n, s[2] * inv_n
    var_r = jnp.maximum(s[1] * inv_n - mean_r * mean_r, 0.0)    # biased variance
    var_i = jnp.maximum(s[3] * inv_n - mean_i * mean_i, 0.0)
    sc_r = gamma[0] * jax.lax.rsqrt(var_r + _BN_EPS)
    sc_i = gamma[1] * jax.lax.rsqrt(var_i + _BN_EPS)
    sh_r = beta[0] - mean_r * sc_r
    sh_i = beta[1] - mean_i * sc_i
    c = sc_r.shape[0]
    a_r = jnp.broadcast_to(alpha[0], (c,))
    a_i = jnp.broadcast_to(alpha[1], (c,))
    # rows: [scale_r, shift_r, alpha_r, scale_i, shift_i, alpha_i]
    return jnp.stack([sc_r, sh_r, a_r, sc_i, sh_i, a_i], axis=0)


# ---------------------------------------------------------------------------
# Bottleneck forward
# ---------------------------------------------------------------------------

def bottleneck_forward(x_r, x_i, params):
    """Complex Bottleneck forward.  x_r / x_i: (N, C, H, W) float32 (NCHW)."""
    n, cin, hh, ww = x_r.shape
    m = n * hh * ww
    width = params["w1_r"].shape[1]
    out_ch = params["w3_r"].shape[1]
    alpha = params["prelu_alpha"]

    def to_flat(t):  # channels onto the 128-lane axis
        return jnp.transpose(t, (0, 2, 3, 1)).reshape(m, t.shape[1])

    xr_f = to_flat(x_r)                       # f32 residual
    xi_f = to_flat(x_i)
    xr_bf = xr_f.astype(jnp.bfloat16)         # bf16 MXU operands
    xi_bf = xi_f.astype(jnp.bfloat16)

    # ---- stage 1: complex 1x1 conv + BN1 stats ------------------------------
    y1, st1 = _conv1x1_head(xr_bf, xi_bf,
                            params["w1_r"], params["w1_i"], params["w1_s"])
    ss1 = _bn_prelu_table(st1, params["bn1_gamma"], params["bn1_beta"], alpha, m)

    # single bf16 zero-pad of the packed raw conv1 output (flat padded layout with
    # 2 extra trailing rows so every 3x3 tap slice stays in bounds)
    wp = ww + 2
    y1p = jnp.pad(y1.reshape(n, hh, ww, 2 * width),
                  ((0, 0), (1, 2), (1, 1), (0, 0)))
    y1p = y1p.reshape(n, (hh + 3) * wp, 2 * width)

    # ---- stage 2: (BN1+CPReLU fused on load) 3x3 complex conv + BN2 stats ----
    y2, st2 = _conv3x3_fused(y1p, ss1,
                             params["w2_r"], params["w2_i"], params["w2_s"], hh, ww)
    ss2 = _bn_prelu_table(st2, params["bn2_gamma"], params["bn2_beta"], alpha, m)
    y2 = y2.reshape(m, 2 * width)

    # ---- stage 3: (BN2+CPReLU fused on load) 1x1 complex conv + BN3 stats ----
    y3, st3 = _conv1x1_fused(y2, ss2,
                             params["w3_r"], params["w3_i"], params["w3_s"])
    ss3 = _bn_prelu_table(st3, params["bn3_gamma"], params["bn3_beta"], alpha, m)

    # ---- final: BN3 + identity residual + CPReLU -----------------------------
    or_f, oi_f = _bn_res_prelu(y3, xr_f, xi_f, ss3)

    def to_nchw(t):
        return jnp.transpose(t.reshape(n, hh, ww, out_ch), (0, 3, 1, 2))

    return to_nchw(or_f), to_nchw(oi_f)


def init_params(key, inplanes, planes, base_width=64, groups=1):
    """Deterministic synthetic parameters matching the module's shapes."""
    width = int(planes * (base_width / 64.0)) * groups
    out_ch = planes * 4                        # expansion = 4
    ks = jax.random.split(key, 12)

    def w(k, shape, scale=0.1):
        return (scale * jax.random.normal(k, shape)).astype(jnp.float32)

    w1_r, w1_i = w(ks[0], (inplanes, width)), w(ks[1], (inplanes, width))
    # 3x3 weights laid out (tap = ky*3+kx, Cin, Cout)
    w2_r, w2_i = w(ks[2], (9, width, width)), w(ks[3], (9, width, width))
    w3_r, w3_i = w(ks[4], (width, out_ch)), w(ks[5], (width, out_ch))

    def bf(a):
        return a.astype(jnp.bfloat16)

    return {
        # Conv biases omitted on purpose: a per-channel constant cancels exactly
        # under the training-mode (batch-stat) BatchNorm following every conv.
        "w1_r": bf(w1_r), "w1_i": bf(w1_i), "w1_s": bf(w1_r + w1_i),
        "w2_r": bf(w2_r), "w2_i": bf(w2_i), "w2_s": bf(w2_r + w2_i),
        "w3_r": bf(w3_r), "w3_i": bf(w3_i), "w3_s": bf(w3_r + w3_i),
        # BN affine params, row 0 = real-part BN, row 1 = imag-part BN
        "bn1_gamma": 1.0 + w(ks[6], (2, width)),
        "bn1_beta": w(ks[7], (2, width)),
        "bn2_gamma": 1.0 + w(ks[8], (2, width)),
        "bn2_beta": w(ks[9], (2, width)),
        "bn3_gamma": 1.0 + w(ks[10], (2, out_ch)),
        "bn3_beta": w(ks[11], (2, out_ch)),
        # CPReLU slopes [real, imag] (PyTorch PReLU default init 0.25), shared module
        "prelu_alpha": jnp.array([0.25, 0.25], jnp.float32),
    }


# ---------------------------------------------------------------------------
# Pure-JAX f32 reference (same semantics) for a tolerance check
# ---------------------------------------------------------------------------

def _reference_forward(x_r, x_i, params):
    n, cin, hh, ww = x_r.shape
    m = n * hh * ww
    width = params["w1_r"].shape[1]
    out_ch = params["w3_r"].shape[1]
    a_re = params["prelu_alpha"][0]
    a_im = params["prelu_alpha"][1]
    hi = jax.lax.Precision.HIGHEST
    f32 = jnp.float32

    def prelu(y, a):
        return jnp.where(y >= 0, y, a * y)

    def bn(y, gamma, beta):
        mean = jnp.mean(y, axis=0)
        var = jnp.mean(jnp.square(y - mean), axis=0)
        return (y - mean) * (gamma * jax.lax.rsqrt(var + _BN_EPS)) + beta

    def c1x1(zr, zi, wr, wi):
        wr, wi = wr.astype(f32), wi.astype(f32)
        return (jnp.dot(zr, wr, precision=hi) - jnp.dot(zi, wi, precision=hi),
                jnp.dot(zi, wr, precision=hi) + jnp.dot(zr, wi, precision=hi))

    def c3x3(zr, zi, wr, wi):
        wr = wr.astype(f32).reshape(3, 3, width, width)
        wi = wi.astype(f32).reshape(3, 3, width, width)
        dn = ("NHWC", "HWIO", "NHWC")
        conv = lambda a, k: jax.lax.conv_general_dilated(
            a, k, (1, 1), "SAME", dimension_numbers=dn, precision=hi)
        return conv(zr, wr) - conv(zi, wi), conv(zi, wr) + conv(zr, wi)

    xr = jnp.transpose(x_r, (0, 2, 3, 1)).reshape(m, cin)
    xi = jnp.transpose(x_i, (0, 2, 3, 1)).reshape(m, cin)

    yr, yi = c1x1(xr, xi, params["w1_r"], params["w1_i"])
    yr = prelu(bn(yr, params["bn1_gamma"][0], params["bn1_beta"][0]), a_re)
    yi = prelu(bn(yi, params["bn1_gamma"][1], params["bn1_beta"][1]), a_im)

    yr, yi = c3x3(yr.reshape(n, hh, ww, width), yi.reshape(n, hh, ww, width),
                  params["w2_r"], params["w2_i"])
    yr = yr.reshape(m, width)
    yi = yi.reshape(m, width)
    yr = prelu(bn(yr, params["bn2_gamma"][0], params["bn2_beta"][0]), a_re)
    yi = prelu(bn(yi, params["bn2_gamma"][1], params["bn2_beta"][1]), a_im)

    yr, yi = c1x1(yr, yi, params["w3_r"], params["w3_i"])
    yr = prelu(bn(yr, params["bn3_gamma"][0], params["bn3_beta"][0]) + xr, a_re)
    yi = prelu(bn(yi, params["bn3_gamma"][1], params["bn3_beta"][1]) + xi, a_im)

    def to_nchw(t):
        return jnp.transpose(t.reshape(n, hh, ww, out_ch), (0, 3, 1, 2))

    return to_nchw(yr), to_nchw(yi)


if __name__ == "__main__":
    key = jax.random.PRNGKey(0)
    n, inplanes, planes, hh, ww = 2, 32, 8, 8, 8   # inplanes == planes*4 -> identity skip
    kx_r, kx_i, kp = jax.random.split(key, 3)
    x_r = jax.random.normal(kx_r, (n, inplanes, hh, ww), jnp.float32)
    x_i = jax.random.normal(kx_i, (n, inplanes, hh, ww), jnp.float32)
    params = init_params(kp, inplanes, planes)

    fwd = jax.jit(bottleneck_forward)
    out_r, out_i = fwd(x_r, x_i, params)
    jax.block_until_ready((out_r, out_i))

    assert out_r.shape == (n, planes * 4, hh, ww) and out_i.shape == out_r.shape
    assert bool(jnp.all(jnp.isfinite(out_r))) and bool(jnp.all(jnp.isfinite(out_i)))

    ref_r, ref_i = _reference_forward(x_r, x_i, params)
    max_err = max(float(jnp.max(jnp.abs(out_r - ref_r))),
                  float(jnp.max(jnp.abs(out_i - ref_i))))
    mean_err = max(float(jnp.mean(jnp.abs(out_r - ref_r))),
                   float(jnp.mean(jnp.abs(out_i - ref_i))))
    assert max_err < 0.35, f"kernel vs reference max abs err too large: {max_err}"
    assert mean_err < 0.05, f"kernel vs reference mean abs err too large: {mean_err}"

    print("KERNEL_OK")
</pallas_src>

<mosaic_0001>
module attributes {stable_mosaic.version = 11 : i64} {
  func.func @_conv1x1_head_kernel(%arg0: i32, %arg1: memref<128x32xbf16, #tpu.memory_space<vmem>>, %arg2: memref<128x32xbf16, #tpu.memory_space<vmem>>, %arg3: memref<32x8xbf16, #tpu.memory_space<vmem>>, %arg4: memref<32x8xbf16, #tpu.memory_space<vmem>>, %arg5: memref<32x8xbf16, #tpu.memory_space<vmem>>, %arg6: memref<128x16xbf16, #tpu.memory_space<vmem>>, %arg7: memref<1x4x8xf32, #tpu.memory_space<vmem>>) attributes {dimension_semantics = [#tpu.dimension_semantics<parallel>], iteration_bounds = array<i64: 1>, scalar_prefetch = 0 : i64, scratch_operands = 0 : i64, tpu.core_type = #tpu.core_type<tc>, window_params = [{transform_indices = @transform_0, window_bounds = array<i64: 128, 32>}, {transform_indices = @transform_1, window_bounds = array<i64: 128, 32>}, {pipeline_mode = #tpu.pipeline_mode<synchronous>, transform_indices = @transform_2, window_bounds = array<i64: 32, 8>}, {pipeline_mode = #tpu.pipeline_mode<synchronous>, transform_indices = @transform_3, window_bounds = array<i64: 32, 8>}, {pipeline_mode = #tpu.pipeline_mode<synchronous>, transform_indices = @transform_4, window_bounds = array<i64: 32, 8>}, {transform_indices = @transform_5, window_bounds = array<i64: 128, 16>}, {transform_indices = @transform_6, window_bounds = array<i64: 1, 4, 8>}]} {
    %c0 = arith.constant 0 : index
    %c0_0 = arith.constant 0 : index
    %0 = vector.load %arg1[%c0, %c0_0] : memref<128x32xbf16, #tpu.memory_space<vmem>>, vector<128x32xbf16>
    %c0_1 = arith.constant 0 : index
    %c0_2 = arith.constant 0 : index
    %1 = vector.load %arg2[%c0_1, %c0_2] : memref<128x32xbf16, #tpu.memory_space<vmem>>, vector<128x32xbf16>
    %c0_3 = arith.constant 0 : index
    %c0_4 = arith.constant 0 : index
    %2 = vector.load %arg3[%c0_3, %c0_4] : memref<32x8xbf16, #tpu.memory_space<vmem>>, vector<32x8xbf16>
    %cst = arith.constant dense<0.000000e+00> : vector<128x8xf32>
    %3 = tpu.matmul %0, %2, %cst {dimension_numbers = #tpu.dot_dimension_numbers<[1], [0], [0], [1], [0, 0, 1, 1], [], []>} : vector<128x32xbf16>, vector<32x8xbf16>, vector<128x8xf32> -> vector<128x8xf32>
    %c0_5 = arith.constant 0 : index
    %c0_6 = arith.constant 0 : index
    %4 = vector.load %arg4[%c0_5, %c0_6] : memref<32x8xbf16, #tpu.memory_space<vmem>>, vector<32x8xbf16>
    %cst_7 = arith.constant dense<0.000000e+00> : vector<128x8xf32>
    %5 = tpu.matmul %1, %4, %cst_7 {dimension_numbers = #tpu.dot_dimension_numbers<[1], [0], [0], [1], [0, 0, 1, 1], [], []>} : vector<128x32xbf16>, vector<32x8xbf16>, vector<128x8xf32> -> vector<128x8xf32>
    %6 = arith.addf %0, %1 : vector<128x32xbf16>
    %c0_8 = arith.constant 0 : index
    %c0_9 = arith.constant 0 : index
    %7 = vector.load %arg5[%c0_8, %c0_9] : memref<32x8xbf16, #tpu.memory_space<vmem>>, vector<32x8xbf16>
    %cst_10 = arith.constant dense<0.000000e+00> : vector<128x8xf32>
    %8 = tpu.matmul %6, %7, %cst_10 {dimension_numbers = #tpu.dot_dimension_numbers<[1], [0], [0], [1], [0, 0, 1, 1], [], []>} : vector<128x32xbf16>, vector<32x8xbf16>, vector<128x8xf32> -> vector<128x8xf32>
    %9 = arith.subf %3, %5 : vector<128x8xf32>
    %10 = arith.subf %8, %3 : vector<128x8xf32>
    %11 = arith.subf %10, %5 : vector<128x8xf32>
    %12 = arith.truncf %9 : vector<128x8xf32> to vector<128x8xbf16>
    %c0_11 = arith.constant 0 : index
    %c0_12 = arith.constant 0 : index
    %13 = vector.load %arg6[%c0_11, %c0_12] : memref<128x16xbf16, #tpu.memory_space<vmem>>, vector<128x8xbf16>
    tpu.vector_store %arg6[%c0_11, %c0_12], %12 {strides = array<i32>} : memref<128x16xbf16, #tpu.memory_space<vmem>>, vector<128x8xbf16>,
    %14 = arith.truncf %11 : vector<128x8xf32> to vector<128x8xbf16>
    %c0_13 = arith.constant 0 : index
    %c8 = arith.constant 8 : index
    %15 = vector.load %arg6[%c0_13, %c8] : memref<128x16xbf16, #tpu.memory_space<vmem>>, vector<128x8xbf16>
    tpu.vector_store %arg6[%c0_13, %c8], %14 {strides = array<i32>} : memref<128x16xbf16, #tpu.memory_space<vmem>>, vector<128x8xbf16>,
    %cst_14 = arith.constant dense<0.000000e+00> : vector<8xf32>
    %16 = vector.multi_reduction <add>, %9, %cst_14 [0] : vector<128x8xf32> to vector<8xf32>
    %17 = vector.shape_cast %16 : vector<8xf32> to vector<1x8xf32>
    %18 = arith.mulf %9, %9 : vector<128x8xf32>
    %cst_15 = arith.constant dense<0.000000e+00> : vector<8xf32>
    %19 = vector.multi_reduction <add>, %18, %cst_15 [0] : vector<128x8xf32> to vector<8xf32>
    %20 = vector.shape_cast %19 : vector<8xf32> to vector<1x8xf32>
    %cst_16 = arith.constant dense<0.000000e+00> : vector<8xf32>
    %21 = vector.multi_reduction <add>, %11, %cst_16 [0] : vector<128x8xf32> to vector<8xf32>
    %22 = vector.shape_cast %21 : vector<8xf32> to vector<1x8xf32>
    %23 = arith.mulf %11, %11 : vector<128x8xf32>
    %cst_17 = arith.constant dense<0.000000e+00> : vector<8xf32>
    %24 = vector.multi_reduction <add>, %23, %cst_17 [0] : vector<128x8xf32> to vector<8xf32>
    %25 = vector.shape_cast %24 : vector<8xf32> to vector<1x8xf32>
    %26 = tpu.concatenate %17, %20, %22, %25 in 0 : vector<1x8xf32>, vector<1x8xf32>, vector<1x8xf32>, vector<1x8xf32> -> vector<4x8xf32>
    %27 = vector.shape_cast %26 : vector<4x8xf32> to vector<1x4x8xf32>
    %c0_18 = arith.constant 0 : index
    %c0_19 = arith.constant 0 : index
    %c0_20 = arith.constant 0 : index
    %28 = vector.load %arg7[%c0_18, %c0_19, %c0_20] : memref<1x4x8xf32, #tpu.memory_space<vmem>>, vector<1x4x8xf32>
    tpu.vector_store %arg7[%c0_18, %c0_19, %c0_20], %27 {strides = array<i32>} : memref<1x4x8xf32, #tpu.memory_space<vmem>>, vector<1x4x8xf32>,
    return
  }
  func.func @transform_0(%arg0: i32) -> (i32, i32) {
    %c0_i32 = arith.constant 0 : i32
    %c0_i32_0 = arith.constant 0 : i32
    return %arg0, %c0_i32 : i32, i32
  }
  func.func @transform_1(%arg0: i32) -> (i32, i32) {
    %c0_i32 = arith.constant 0 : i32
    %c0_i32_0 = arith.constant 0 : i32
    return %arg0, %c0_i32 : i32, i32
  }
  func.func @transform_2(%arg0: i32) -> (i32, i32) {
    %c0_i32 = arith.constant 0 : i32
    %c0_i32_0 = arith.constant 0 : i32
    %c0_i32_1 = arith.constant 0 : i32
    return %c0_i32, %c0_i32_0 : i32, i32
  }
  func.func @transform_3(%arg0: i32) -> (i32, i32) {
    %c0_i32 = arith.constant 0 : i32
    %c0_i32_0 = arith.constant 0 : i32
    %c0_i32_1 = arith.constant 0 : i32
    return %c0_i32, %c0_i32_0 : i32, i32
  }
  func.func @transform_4(%arg0: i32) -> (i32, i32) {
    %c0_i32 = arith.constant 0 : i32
    %c0_i32_0 = arith.constant 0 : i32
    %c0_i32_1 = arith.constant 0 : i32
    return %c0_i32, %c0_i32_0 : i32, i32
  }
  func.func @transform_5(%arg0: i32) -> (i32, i32) {
    %c0_i32 = arith.constant 0 : i32
    %c0_i32_0 = arith.constant 0 : i32
    return %arg0, %c0_i32 : i32, i32
  }
  func.func @transform_6(%arg0: i32) -> (i32, i32, i32) {
    %c0_i32 = arith.constant 0 : i32
    %c0_i32_0 = arith.constant 0 : i32
    %c0_i32_1 = arith.constant 0 : i32
    return %arg0, %c0_i32, %c0_i32_0 : i32, i32, i32
  }
}

module attributes {stable_mosaic.version = 11 : i64} {
  func.func @_conv3x3_fused_kernel(%arg0: i32, %arg1: memref<1x110x16xbf16, #tpu.memory_space<vmem>>, %arg2: memref<6x8xf32, #tpu.memory_space<vmem>>, %arg3: memref<110x2xf32, #tpu.memory_space<vmem>>, %arg4: memref<9x8x8xbf16, #tpu.memory_space<vmem>>, %arg5: memref<9x8x8xbf16, #tpu.memory_space<vmem>>, %arg6: memref<9x8x8xbf16, #tpu.memory_space<vmem>>, %arg7: memref<1x64x16xbf16, #tpu.memory_space<vmem>>, %arg8: memref<1x4x8xf32, #tpu.memory_space<vmem>>) attributes {dimension_semantics = [#tpu.dimension_semantics<parallel>], iteration_bounds = array<i64: 2>, scalar_prefetch = 0 : i64, scratch_operands = 0 : i64, tpu.core_type = #tpu.core_type<tc>, window_params = [{transform_indices = @transform_0, window_bounds = array<i64: 1, 110, 16>}, {pipeline_mode = #tpu.pipeline_mode<synchronous>, transform_indices = @transform_1, window_bounds = array<i64: 6, 8>}, {pipeline_mode = #tpu.pipeline_mode<synchronous>, transform_indices = @transform_2, window_bounds = array<i64: 110, 2>}, {pipeline_mode = #tpu.pipeline_mode<synchronous>, transform_indices = @transform_3, window_bounds = array<i64: 9, 8, 8>}, {pipeline_mode = #tpu.pipeline_mode<synchronous>, transform_indices = @transform_4, window_bounds = array<i64: 9, 8, 8>}, {pipeline_mode = #tpu.pipeline_mode<synchronous>, transform_indices = @transform_5, window_bounds = array<i64: 9, 8, 8>}, {transform_indices = @transform_6, window_bounds = array<i64: 1, 64, 16>}, {transform_indices = @transform_7, window_bounds = array<i64: 1, 4, 8>}]} {
    %c0 = arith.constant 0 : index
    %c0_0 = arith.constant 0 : index
    %c0_1 = arith.constant 0 : index
    %0 = vector.load %arg1[%c0, %c0_0, %c0_1] : memref<1x110x16xbf16, #tpu.memory_space<vmem>>, vector<1x110x16xbf16>
    %1 = vector.shape_cast %0 : vector<1x110x16xbf16> to vector<110x16xbf16>
    %2 = arith.extf %1 : vector<110x16xbf16> to vector<110x16xf32>
    %c0_2 = arith.constant 0 : index
    %c0_3 = arith.constant 0 : index
    %3 = vector.load %arg3[%c0_2, %c0_3] : memref<110x2xf32, #tpu.memory_space<vmem>>, vector<110x1xf32>
    %c0_4 = arith.constant 0 : index
    %c1 = arith.constant 1 : index
    %4 = vector.load %arg3[%c0_4, %c1] : memref<110x2xf32, #tpu.memory_space<vmem>>, vector<80x1xf32>
    %5 = vector.extract_strided_slice %2 {offsets = [0, 0], sizes = [110, 8], strides = [1, 1]} : vector<110x16xf32> to vector<110x8xf32>
    %c0_5 = arith.constant 0 : index
    %c0_6 = arith.constant 0 : index
    %6 = vector.load %arg2[%c0_5, %c0_6] : memref<6x8xf32, #tpu.memory_space<vmem>>, vector<1x8xf32>
    %7 = vector.broadcast %6 : vector<1x8xf32> to vector<110x8xf32>
    %8 = arith.mulf %5, %7 : vector<110x8xf32>
    %c1_7 = arith.constant 1 : index
    %c0_8 = arith.constant 0 : index
    %9 = vector.load %arg2[%c1_7, %c0_8] : memref<6x8xf32, #tpu.memory_space<vmem>>, vector<1x8xf32>
    %10 = vector.broadcast %9 : vector<1x8xf32> to vector<110x8xf32>
    %11 = arith.addf %8, %10 : vector<110x8xf32>
    %12 = vector.extract_strided_slice %2 {offsets = [0, 8], sizes = [110, 8], strides = [1, 1]} : vector<110x16xf32> to vector<110x8xf32>
    %c3 = arith.constant 3 : index
    %c0_9 = arith.constant 0 : index
    %13 = vector.load %arg2[%c3, %c0_9] : memref<6x8xf32, #tpu.memory_space<vmem>>, vector<1x8xf32>
    %14 = vector.broadcast %13 : vector<1x8xf32> to vector<110x8xf32>
    %15 = arith.mulf %12, %14 : vector<110x8xf32>
    %c4 = arith.constant 4 : index
    %c0_10 = arith.constant 0 : index
    %16 = vector.load %arg2[%c4, %c0_10] : memref<6x8xf32, #tpu.memory_space<vmem>>, vector<1x8xf32>
    %17 = vector.broadcast %16 : vector<1x8xf32> to vector<110x8xf32>
    %18 = arith.addf %15, %17 : vector<110x8xf32>
    %cst = arith.constant 0.000000e+00 : f32
    %19 = vector.broadcast %cst : f32 to vector<110x8xf32>
    %20 = arith.cmpf oge, %11, %19 : vector<110x8xf32>
    %c2 = arith.constant 2 : index
    %c0_11 = arith.constant 0 : index
    %21 = vector.load %arg2[%c2, %c0_11] : memref<6x8xf32, #tpu.memory_space<vmem>>, vector<1x8xf32>
    %22 = vector.broadcast %21 : vector<1x8xf32> to vector<110x8xf32>
    %23 = arith.mulf %22, %11 : vector<110x8xf32>
    %24 = arith.select %20, %11, %23 : vector<110x8xi1>, vector<110x8xf32>
    %25 = vector.broadcast %3 : vector<110x1xf32> to vector<110x8xf32>
    %26 = arith.mulf %24, %25 : vector<110x8xf32>
    %cst_12 = arith.constant 0.000000e+00 : f32
    %27 = vector.broadcast %cst_12 : f32 to vector<110x8xf32>
    %28 = arith.cmpf oge, %18, %27 : vector<110x8xf32>
    %c5 = arith.constant 5 : index
    %c0_13 = arith.constant 0 : index
    %29 = vector.load %arg2[%c5, %c0_13] : memref<6x8xf32, #tpu.memory_space<vmem>>, vector<1x8xf32>
    %30 = vector.broadcast %29 : vector<1x8xf32> to vector<110x8xf32>
    %31 = arith.mulf %30, %18 : vector<110x8xf32>
    %32 = arith.select %28, %18, %31 : vector<110x8xi1>, vector<110x8xf32>
    %33 = vector.broadcast %3 : vector<110x1xf32> to vector<110x8xf32>
    %34 = arith.mulf %32, %33 : vector<110x8xf32>
    %35 = arith.truncf %26 : vector<110x8xf32> to vector<110x8xbf16>
    %36 = arith.truncf %34 : vector<110x8xf32> to vector<110x8xbf16>
    %37 = arith.addf %26, %34 : vector<110x8xf32>
    %38 = arith.truncf %37 : vector<110x8xf32> to vector<110x8xbf16>
    %cst_14 = arith.constant 0.000000e+00 : f32
    %39 = vector.broadcast %cst_14 : f32 to vector<80x8xf32>
    %cst_15 = arith.constant 0.000000e+00 : f32
    %40 = vector.broadcast %cst_15 : f32 to vector<80x8xf32>
    %cst_16 = arith.constant 0.000000e+00 : f32
    %41 = vector.broadcast %cst_16 : f32 to vector<80x8xf32>
    %42 = vector.extract_strided_slice %35 {offsets = [0, 0], sizes = [80, 8], strides = [1, 1]} : vector<110x8xbf16> to vector<80x8xbf16>
    %c0_17 = arith.constant 0 : index
    %c0_18 = arith.constant 0 : index
    %c0_19 = arith.constant 0 : index
    %43 = vector.load %arg4[%c0_17, %c0_18, %c0_19] : memref<9x8x8xbf16, #tpu.memory_space<vmem>>, vector<1x8x8xbf16>
    %44 = vector.shape_cast %43 : vector<1x8x8xbf16> to vector<8x8xbf16>
    %cst_20 = arith.constant dense<0.000000e+00> : vector<80x8xf32>
    %45 = tpu.matmul %42, %44, %cst_20 {dimension_numbers = #tpu.dot_dimension_numbers<[1], [0], [0], [1], [0, 0, 1, 1], [], []>} : vector<80x8xbf16>, vector<8x8xbf16>, vector<80x8xf32> -> vector<80x8xf32>
    %46 = arith.addf %39, %45 : vector<80x8xf32>
    %47 = vector.extract_strided_slice %36 {offsets = [0, 0], sizes = [80, 8], strides = [1, 1]} : vector<110x8xbf16> to vector<80x8xbf16>
    %c0_21 = arith.constant 0 : index
    %c0_22 = arith.constant 0 : index
    %c0_23 = arith.constant 0 : index
    %48 = vector.load %arg5[%c0_21, %c0_22, %c0_23] : memref<9x8x8xbf16, #tpu.memory_space<vmem>>, vector<1x8x8xbf16>
    %49 = vector.shape_cast %48 : vector<1x8x8xbf16> to vector<8x8xbf16>
    %cst_24 = arith.constant dense<0.000000e+00> : vector<80x8xf32>
    %50 = tpu.matmul %47, %49, %cst_24 {dimension_numbers = #tpu.dot_dimension_numbers<[1], [0], [0], [1], [0, 0, 1, 1], [], []>} : vector<80x8xbf16>, vector<8x8xbf16>, vector<80x8xf32> -> vector<80x8xf32>
    %51 = arith.addf %40, %50 : vector<80x8xf32>
    %52 = vector.extract_strided_slice %38 {offsets = [0, 0], sizes = [80, 8], strides = [1, 1]} : vector<110x8xbf16> to vector<80x8xbf16>
    %c0_25 = arith.constant 0 : index
    %c0_26 = arith.constant 0 : index
    %c0_27 = arith.constant 0 : index
    %53 = vector.load %arg6[%c0_25, %c0_26, %c0_27] : memref<9x8x8xbf16, #tpu.memory_space<vmem>>, vector<1x8x8xbf16>
    %54 = vector.shape_cast %53 : vector<1x8x8xbf16> to vector<8x8xbf16>
    %cst_28 = arith.constant dense<0.000000e+00> : vector<80x8xf32>
    %55 = tpu.matmul %52, %54, %cst_28 {dimension_numbers = #tpu.dot_dimension_numbers<[1], [0], [0], [1], [0, 0, 1, 1], [], []>} : vector<80x8xbf16>, vector<8x8xbf16>, vector<80x8xf32> -> vector<80x8xf32>
    %56 = arith.addf %41, %55 : vector<80x8xf32>
    %57 = vector.extract_strided_slice %35 {offsets = [1, 0], sizes = [80, 8], strides = [1, 1]} : vector<110x8xbf16> to vector<80x8xbf16>
    %c1_29 = arith.constant 1 : index
    %c0_30 = arith.constant 0 : index
    %c0_31 = arith.constant 0 : index
    %58 = vector.load %arg4[%c1_29, %c0_30, %c0_31] : memref<9x8x8xbf16, #tpu.memory_space<vmem>>, vector<1x8x8xbf16>
    %59 = vector.shape_cast %58 : vector<1x8x8xbf16> to vector<8x8xbf16>
    %cst_32 = arith.constant dense<0.000000e+00> : vector<80x8xf32>
    %60 = tpu.matmul %57, %59, %cst_32 {dimension_numbers = #tpu.dot_dimension_numbers<[1], [0], [0], [1], [0, 0, 1, 1], [], []>} : vector<80x8xbf16>, vector<8x8xbf16>, vector<80x8xf32> -> vector<80x8xf32>
    %61 = arith.addf %46, %60 : vector<80x8xf32>
    %62 = vector.extract_strided_slice %36 {offsets = [1, 0], sizes = [80, 8], strides = [1, 1]} : vector<110x8xbf16> to vector<80x8xbf16>
    %c1_33 = arith.constant 1 : index
    %c0_34 = arith.constant 0 : index
    %c0_35 = arith.constant 0 : index
    %63 = vector.load %arg5[%c1_33, %c0_34, %c0_35] : memref<9x8x8xbf16, #tpu.memory_space<vmem>>, vector<1x8x8xbf16>
    %64 = vector.shape_cast %63 : vector<1x8x8xbf16> to vector<8x8xbf16>
    %cst_36 = arith.constant dense<0.000000e+00> : vector<80x8xf32>
    %65 = tpu.matmul %62, %64, %cst_36 {dimension_numbers = #tpu.dot_dimension_numbers<[1], [0], [0], [1], [0, 0, 1, 1], [], []>} : vector<80x8xbf16>, vector<8x8xbf16>, vector<80x8xf32> -> vector<80x8xf32>
    %66 = arith.addf %51, %65 : vector<80x8xf32>
    %67 = vector.extract_strided_slice %38 {offsets = [1, 0], sizes = [80, 8], strides = [1, 1]} : vector<110x8xbf16> to vector<80x8xbf16>
    %c1_37 = arith.constant 1 : index
    %c0_38 = arith.constant 0 : index
    %c0_39 = arith.constant 0 : index
    %68 = vector.load %arg6[%c1_37, %c0_38, %c0_39] : memref<9x8x8xbf16, #tpu.memory_space<vmem>>, vector<1x8x8xbf16>
    %69 = vector.shape_cast %68 : vector<1x8x8xbf16> to vector<8x8xbf16>
    %cst_40 = arith.constant dense<0.000000e+00> : vector<80x8xf32>
    %70 = tpu.matmul %67, %69, %cst_40 {dimension_numbers = #tpu.dot_dimension_numbers<[1], [0], [0], [1], [0, 0, 1, 1], [], []>} : vector<80x8xbf16>, vector<8x8xbf16>, vector<80x8xf32> -> vector<80x8xf32>
    %71 = arith.addf %56, %70 : vector<80x8xf32>
    %72 = vector.extract_strided_slice %35 {offsets = [2, 0], sizes = [80, 8], strides = [1, 1]} : vector<110x8xbf16> to vector<80x8xbf16>
    %c2_41 = arith.constant 2 : index
    %c0_42 = arith.constant 0 : index
    %c0_43 = arith.constant 0 : index
    %73 = vector.load %arg4[%c2_41, %c0_42, %c0_43] : memref<9x8x8xbf16, #tpu.memory_space<vmem>>, vector<1x8x8xbf16>
    %74 = vector.shape_cast %73 : vector<1x8x8xbf16> to vector<8x8xbf16>
    %cst_44 = arith.constant dense<0.000000e+00> : vector<80x8xf32>
    %75 = tpu.matmul %72, %74, %cst_44 {dimension_numbers = #tpu.dot_dimension_numbers<[1], [0], [0], [1], [0, 0, 1, 1], [], []>} : vector<80x8xbf16>, vector<8x8xbf16>, vector<80x8xf32> -> vector<80x8xf32>
    %76 = arith.addf %61, %75 : vector<80x8xf32>
    %77 = vector.extract_strided_slice %36 {offsets = [2, 0], sizes = [80, 8], strides = [1, 1]} : vector<110x8xbf16> to vector<80x8xbf16>
    %c2_45 = arith.constant 2 : index
    %c0_46 = arith.constant 0 : index
    %c0_47 = arith.constant 0 : index
    %78 = vector.load %arg5[%c2_45, %c0_46, %c0_47] : memref<9x8x8xbf16, #tpu.memory_space<vmem>>, vector<1x8x8xbf16>
    %79 = vector.shape_cast %78 : vector<1x8x8xbf16> to vector<8x8xbf16>
    %cst_48 = arith.constant dense<0.000000e+00> : vector<80x8xf32>
    %80 = tpu.matmul %77, %79, %cst_48 {dimension_numbers = #tpu.dot_dimension_numbers<[1], [0], [0], [1], [0, 0, 1, 1], [], []>} : vector<80x8xbf16>, vector<8x8xbf16>, vector<80x8xf32> -> vector<80x8xf32>
    %81 = arith.addf %66, %80 : vector<80x8xf32>
    %82 = vector.extract_strided_slice %38 {offsets = [2, 0], sizes = [80, 8], strides = [1, 1]} : vector<110x8xbf16> to vector<80x8xbf16>
    %c2_49 = arith.constant 2 : index
    %c0_50 = arith.constant 0 : index
    %c0_51 = arith.constant 0 : index
    %83 = vector.load %arg6[%c2_49, %c0_50, %c0_51] : memref<9x8x8xbf16, #tpu.memory_space<vmem>>, vector<1x8x8xbf16>
    %84 = vector.shape_cast %83 : vector<1x8x8xbf16> to vector<8x8xbf16>
    %cst_52 = arith.constant dense<0.000000e+00> : vector<80x8xf32>
    %85 = tpu.matmul %82, %84, %cst_52 {dimension_numbers = #tpu.dot_dimension_numbers<[1], [0], [0], [1], [0, 0, 1, 1], [], []>} : vector<80x8xbf16>, vector<8x8xbf16>, vector<80x8xf32> -> vector<80x8xf32>
    %86 = arith.addf %71, %85 : vector<80x8xf32>
    %87 = vector.extract_strided_slice %35 {offsets = [10, 0], sizes = [80, 8], strides = [1, 1]} : vector<110x8xbf16> to vector<80x8xbf16>
    %c3_53 = arith.constant 3 : index
    %c0_54 = arith.constant 0 : index
    %c0_55 = arith.constant 0 : index
    %88 = vector.load %arg4[%c3_53, %c0_54, %c0_55] : memref<9x8x8xbf16, #tpu.memory_space<vmem>>, vector<1x8x8xbf16>
    %89 = vector.shape_cast %88 : vector<1x8x8xbf16> to vector<8x8xbf16>
    %cst_56 = arith.constant dense<0.000000e+00> : vector<80x8xf32>
    %90 = tpu.matmul %87, %89, %cst_56 {dimension_numbers = #tpu.dot_dimension_numbers<[1], [0], [0], [1], [0, 0, 1, 1], [], []>} : vector<80x8xbf16>, vector<8x8xbf16>, vector<80x8xf32> -> vector<80x8xf32>
    %91 = arith.addf %76, %90 : vector<80x8xf32>
    %92 = vector.extract_strided_slice %36 {offsets = [10, 0], sizes = [80, 8], strides = [1, 1]} : vector<110x8xbf16> to vector<80x8xbf16>
    %c3_57 = arith.constant 3 : index
    %c0_58 = arith.constant 0 : index
    %c0_59 = arith.constant 0 : index
    %93 = vector.load %arg5[%c3_57, %c0_58, %c0_59] : memref<9x8x8xbf16, #tpu.memory_space<vmem>>, vector<1x8x8xbf16>
    %94 = vector.shape_cast %93 : vector<1x8x8xbf16> to vector<8x8xbf16>
    %cst_60 = arith.constant dense<0.000000e+00> : vector<80x8xf32>
    %95 = tpu.matmul %92, %94, %cst_60 {dimension_numbers = #tpu.dot_dimension_numbers<[1], [0], [0], [1], [0, 0, 1, 1], [], []>} : vector<80x8xbf16>, vector<8x8xbf16>, vector<80x8xf32> -> vector<80x8xf32>
    %96 = arith.addf %81, %95 : vector<80x8xf32>
    %97 = vector.extract_strided_slice %38 {offsets = [10, 0], sizes = [80, 8], strides = [1, 1]} : vector<110x8xbf16> to vector<80x8xbf16>
    %c3_61 = arith.constant 3 : index
    %c0_62 = arith.constant 0 : index
    %c0_63 = arith.constant 0 : index
    %98 = vector.load %arg6[%c3_61, %c0_62, %c0_63] : memref<9x8x8xbf16, #tpu.memory_space<vmem>>, vector<1x8x8xbf16>
    %99 = vector.shape_cast %98 : vector<1x8x8xbf16> to vector<8x8xbf16>
    %cst_64 = arith.constant dense<0.000000e+00> : vector<80x8xf32>
    %100 = tpu.matmul %97, %99, %cst_64 {dimension_numbers = #tpu.dot_dimension_numbers<[1], [0], [0], [1], [0, 0, 1, 1], [], []>} : vector<80x8xbf16>, vector<8x8xbf16>, vector<80x8xf32> -> vector<80x8xf32>
    %101 = arith.addf %86, %100 : vector<80x8xf32>
    %102 = vector.extract_strided_slice %35 {offsets = [11, 0], sizes = [80, 8], strides = [1, 1]} : vector<110x8xbf16> to vector<80x8xbf16>
    %c4_65 = arith.constant 4 : index
    %c0_66 = arith.constant 0 : index
    %c0_67 = arith.constant 0 : index
    %103 = vector.load %arg4[%c4_65, %c0_66, %c0_67] : memref<9x8x8xbf16, #tpu.memory_space<vmem>>, vector<1x8x8xbf16>
    %104 = vector.shape_cast %103 : vector<1x8x8xbf16> to vector<8x8xbf16>
    %cst_68 = arith.constant dense<0.000000e+00> : vector<80x8xf32>
    %105 = tpu.matmul %102, %104, %cst_68 {dimension_numbers = #tpu.dot_dimension_numbers<[1], [0], [0], [1], [0, 0, 1, 1], [], []>} : vector<80x8xbf16>, vector<8x8xbf16>, vector<80x8xf32> -> vector<80x8xf32>
    %106 = arith.addf %91, %105 : vector<80x8xf32>
    %107 = vector.extract_strided_slice %36 {offsets = [11, 0], sizes = [80, 8], strides = [1, 1]} : vector<110x8xbf16> to vector<80x8xbf16>
    %c4_69 = arith.constant 4 : index
    %c0_70 = arith.constant 0 : index
    %c0_71 = arith.constant 0 : index
    %108 = vector.load %arg5[%c4_69, %c0_70, %c0_71] : memref<9x8x8xbf16, #tpu.memory_space<vmem>>, vector<1x8x8xbf16>
    %109 = vector.shape_cast %108 : vector<1x8x8xbf16> to vector<8x8xbf16>
    %cst_72 = arith.constant dense<0.000000e+00> : vector<80x8xf32>
    %110 = tpu.matmul %107, %109, %cst_72 {dimension_numbers = #tpu.dot_dimension_numbers<[1], [0], [0], [1], [0, 0, 1, 1], [], []>} : vector<80x8xbf16>, vector<8x8xbf16>, vector<80x8xf32> -> vector<80x8xf32>
    %111 = arith.addf %96, %110 : vector<80x8xf32>
    %112 = vector.extract_strided_slice %38 {offsets = [11, 0], sizes = [80, 8], strides = [1, 1]} : vector<110x8xbf16> to vector<80x8xbf16>
    %c4_73 = arith.constant 4 : index
    %c0_74 = arith.constant 0 : index
    %c0_75 = arith.constant 0 : index
    %113 = vector.load %arg6[%c4_73, %c0_74, %c0_75] : memref<9x8x8xbf16, #tpu.memory_space<vmem>>, vector<1x8x8xbf16>
    %114 = vector.shape_cast %113 : vector<1x8x8xbf16> to vector<8x8xbf16>
    %cst_76 = arith.constant dense<0.000000e+00> : vector<80x8xf32>
    %115 = tpu.matmul %112, %114, %cst_76 {dimension_numbers = #tpu.dot_dimension_numbers<[1], [0], [0], [1], [0, 0, 1, 1], [], []>} : vector<80x8xbf16>, vector<8x8xbf16>, vector<80x8xf32> -> vector<80x8xf32>
    %116 = arith.addf %101, %115 : vector<80x8xf32>
    %117 = vector.extract_strided_slice %35 {offsets = [12, 0], sizes = [80, 8], strides = [1, 1]} : vector<110x8xbf16> to vector<80x8xbf16>
    %c5_77 = arith.constant 5 : index
    %c0_78 = arith.constant 0 : index
    %c0_79 = arith.constant 0 : index
    %118 = vector.load %arg4[%c5_77, %c0_78, %c0_79] : memref<9x8x8xbf16, #tpu.memory_space<vmem>>, vector<1x8x8xbf16>
    %119 = vector.shape_cast %118 : vector<1x8x8xbf16> to vector<8x8xbf16>
    %cst_80 = arith.constant dense<0.000000e+00> : vector<80x8xf32>
    %120 = tpu.matmul %117, %119, %cst_80 {dimension_numbers = #tpu.dot_dimension_numbers<[1], [0], [0], [1], [0, 0, 1, 1], [], []>} : vector<80x8xbf16>, vector<8x8xbf16>, vector<80x8xf32> -> vector<80x8xf32>
    %121 = arith.addf %106, %120 : vector<80x8xf32>
    %122 = vector.extract_strided_slice %36 {offsets = [12, 0], sizes = [80, 8], strides = [1, 1]} : vector<110x8xbf16> to vector<80x8xbf16>
    %c5_81 = arith.constant 5 : index
    %c0_82 = arith.constant 0 : index
    %c0_83 = arith.constant 0 : index
    %123 = vector.load %arg5[%c5_81, %c0_82, %c0_83] : memref<9x8x8xbf16, #tpu.memory_space<vmem>>, vector<1x8x8xbf16>
    %124 = vector.shape_cast %123 : vector<1x8x8xbf16> to vector<8x8xbf16>
    %cst_84 = arith.constant dense<0.000000e+00> : vector<80x8xf32>
    %125 = tpu.matmul %122, %124, %cst_84 {dimension_numbers = #tpu.dot_dimension_numbers<[1], [0], [0], [1], [0, 0, 1, 1], [], []>} : vector<80x8xbf16>, vector<8x8xbf16>, vector<80x8xf32> -> vector<80x8xf32>
    %126 = arith.addf %111, %125 : vector<80x8xf32>
    %127 = vector.extract_strided_slice %38 {offsets = [12, 0], sizes = [80, 8], strides = [1, 1]} : vector<110x8xbf16> to vector<80x8xbf16>
    %c5_85 = arith.constant 5 : index
    %c0_86 = arith.constant 0 : index
    %c0_87 = arith.constant 0 : index
    %128 = vector.load %arg6[%c5_85, %c0_86, %c0_87] : memref<9x8x8xbf16, #tpu.memory_space<vmem>>, vector<1x8x8xbf16>
    %129 = vector.shape_cast %128 : vector<1x8x8xbf16> to vector<8x8xbf16>
    %cst_88 = arith.constant dense<0.000000e+00> : vector<80x8xf32>
    %130 = tpu.matmul %127, %129, %cst_88 {dimension_numbers = #tpu.dot_dimension_numbers<[1], [0], [0], [1], [0, 0, 1, 1], [], []>} : vector<80x8xbf16>, vector<8x8xbf16>, vector<80x8xf32> -> vector<80x8xf32>
    %131 = arith.addf %116, %130 : vector<80x8xf32>
    %132 = vector.extract_strided_slice %35 {offsets = [20, 0], sizes = [80, 8], strides = [1, 1]} : vector<110x8xbf16> to vector<80x8xbf16>
    %c6 = arith.constant 6 : index
    %c0_89 = arith.constant 0 : index
    %c0_90 = arith.constant 0 : index
    %133 = vector.load %arg4[%c6, %c0_89, %c0_90] : memref<9x8x8xbf16, #tpu.memory_space<vmem>>, vector<1x8x8xbf16>
    %134 = vector.shape_cast %133 : vector<1x8x8xbf16> to vector<8x8xbf16>
    %cst_91 = arith.constant dense<0.000000e+00> : vector<80x8xf32>
    %135 = tpu.matmul %132, %134, %cst_91 {dimension_numbers = #tpu.dot_dimension_numbers<[1], [0], [0], [1], [0, 0, 1, 1], [], []>} : vector<80x8xbf16>, vector<8x8xbf16>, vector<80x8xf32> -> vector<80x8xf32>
    %136 = arith.addf %121, %135 : vector<80x8xf32>
    %137 = vector.extract_strided_slice %36 {offsets = [20, 0], sizes = [80, 8], strides = [1, 1]} : vector<110x8xbf16> to vector<80x8xbf16>
    %c6_92 = arith.constant 6 : index
    %c0_93 = arith.constant 0 : index
    %c0_94 = arith.constant 0 : index
    %138 = vector.load %arg5[%c6_92, %c0_93, %c0_94] : memref<9x8x8xbf16, #tpu.memory_space<vmem>>, vector<1x8x8xbf16>
    %139 = vector.shape_cast %138 : vector<1x8x8xbf16> to vector<8x8xbf16>
    %cst_95 = arith.constant dense<0.000000e+00> : vector<80x8xf32>
    %140 = tpu.matmul %137, %139, %cst_95 {dimension_numbers = #tpu.dot_dimension_numbers<[1], [0], [0], [1], [0, 0, 1, 1], [], []>} : vector<80x8xbf16>, vector<8x8xbf16>, vector<80x8xf32> -> vector<80x8xf32>
    %141 = arith.addf %126, %140 : vector<80x8xf32>
    %142 = vector.extract_strided_slice %38 {offsets = [20, 0], sizes = [80, 8], strides = [1, 1]} : vector<110x8xbf16> to vector<80x8xbf16>
    %c6_96 = arith.constant 6 : index
    %c0_97 = arith.constant 0 : index
    %c0_98 = arith.constant 0 : index
    %143 = vector.load %arg6[%c6_96, %c0_97, %c0_98] : memref<9x8x8xbf16, #tpu.memory_space<vmem>>, vector<1x8x8xbf16>
    %144 = vector.shape_cast %143 : vector<1x8x8xbf16> to vector<8x8xbf16>
    %cst_99 = arith.constant dense<0.000000e+00> : vector<80x8xf32>
    %145 = tpu.matmul %142, %144, %cst_99 {dimension_numbers = #tpu.dot_dimension_numbers<[1], [0], [0], [1], [0, 0, 1, 1], [], []>} : vector<80x8xbf16>, vector<8x8xbf16>, vector<80x8xf32> -> vector<80x8xf32>
    %146 = arith.addf %131, %145 : vector<80x8xf32>
    %147 = vector.extract_strided_slice %35 {offsets = [21, 0], sizes = [80, 8], strides = [1, 1]} : vector<110x8xbf16> to vector<80x8xbf16>
    %c7 = arith.constant 7 : index
    %c0_100 = arith.constant 0 : index
    %c0_101 = arith.constant 0 : index
    %148 = vector.load %arg4[%c7, %c0_100, %c0_101] : memref<9x8x8xbf16, #tpu.memory_space<vmem>>, vector<1x8x8xbf16>
    %149 = vector.shape_cast %148 : vector<1x8x8xbf16> to vector<8x8xbf16>
    %cst_102 = arith.constant dense<0.000000e+00> : vector<80x8xf32>
    %150 = tpu.matmul %147, %149, %cst_102 {dimension_numbers = #tpu.dot_dimension_numbers<[1], [0], [0], [1], [0, 0, 1, 1], [], []>} : vector<80x8xbf16>, vector<8x8xbf16>, vector<80x8xf32> -> vector<80x8xf32>
    %151 = arith.addf %136, %150 : vector<80x8xf32>
    %152 = vector.extract_strided_slice %36 {offsets = [21, 0], sizes = [80, 8], strides = [1, 1]} : vector<110x8xbf16> to vector<80x8xbf16>
    %c7_103 = arith.constant 7 : index
    %c0_104 = arith.constant 0 : index
    %c0_105 = arith.constant 0 : index
    %153 = vector.load %arg5[%c7_103, %c0_104, %c0_105] : memref<9x8x8xbf16, #tpu.memory_space<vmem>>, vector<1x8x8xbf16>
    %154 = vector.shape_cast %153 : vector<1x8x8xbf16> to vector<8x8xbf16>
    %cst_106 = arith.constant dense<0.000000e+00> : vector<80x8xf32>
    %155 = tpu.matmul %152, %154, %cst_106 {dimension_numbers = #tpu.dot_dimension_numbers<[1], [0], [0], [1], [0, 0, 1, 1], [], []>} : vector<80x8xbf16>, vector<8x8xbf16>, vector<80x8xf32> -> vector<80x8xf32>
    %156 = arith.addf %141, %155 : vector<80x8xf32>
    %157 = vector.extract_strided_slice %38 {offsets = [21, 0], sizes = [80, 8], strides = [1, 1]} : vector<110x8xbf16> to vector<80x8xbf16>
    %c7_107 = arith.constant 7 : index
    %c0_108 = arith.constant 0 : index
    %c0_109 = arith.constant 0 : index
    %158 = vector.load %arg6[%c7_107, %c0_108, %c0_109] : memref<9x8x8xbf16, #tpu.memory_space<vmem>>, vector<1x8x8xbf16>
    %159 = vector.shape_cast %158 : vector<1x8x8xbf16> to vector<8x8xbf16>
    %cst_110 = arith.constant dense<0.000000e+00> : vector<80x8xf32>
    %160 = tpu.matmul %157, %159, %cst_110 {dimension_numbers = #tpu.dot_dimension_numbers<[1], [0], [0], [1], [0, 0, 1, 1], [], []>} : vector<80x8xbf16>, vector<8x8xbf16>, vector<80x8xf32> -> vector<80x8xf32>
    %161 = arith.addf %146, %160 : vector<80x8xf32>
    %162 = vector.extract_strided_slice %35 {offsets = [22, 0], sizes = [80, 8], strides = [1, 1]} : vector<110x8xbf16> to vector<80x8xbf16>
    %c8 = arith.constant 8 : index
    %c0_111 = arith.constant 0 : index
    %c0_112 = arith.constant 0 : index
    %163 = vector.load %arg4[%c8, %c0_111, %c0_112] : memref<9x8x8xbf16, #tpu.memory_space<vmem>>, vector<1x8x8xbf16>
    %164 = vector.shape_cast %163 : vector<1x8x8xbf16> to vector<8x8xbf16>
    %cst_113 = arith.constant dense<0.000000e+00> : vector<80x8xf32>
    %165 = tpu.matmul %162, %164, %cst_113 {dimension_numbers = #tpu.dot_dimension_numbers<[1], [0], [0], [1], [0, 0, 1, 1], [], []>} : vector<80x8xbf16>, vector<8x8xbf16>, vector<80x8xf32> -> vector<80x8xf32>
    %166 = arith.addf %151, %165 : vector<80x8xf32>
    %167 = vector.extract_strided_slice %36 {offsets = [22, 0], sizes = [80, 8], strides = [1, 1]} : vector<110x8xbf16> to vector<80x8xbf16>
    %c8_114 = arith.constant 8 : index
    %c0_115 = arith.constant 0 : index
    %c0_116 = arith.constant 0 : index
    %168 = vector.load %arg5[%c8_114, %c0_115, %c0_116] : memref<9x8x8xbf16, #tpu.memory_space<vmem>>, vector<1x8x8xbf16>
    %169 = vector.shape_cast %168 : vector<1x8x8xbf16> to vector<8x8xbf16>
    %cst_117 = arith.constant dense<0.000000e+00> : vector<80x8xf32>
    %170 = tpu.matmul %167, %169, %cst_117 {dimension_numbers = #tpu.dot_dimension_numbers<[1], [0], [0], [1], [0, 0, 1, 1], [], []>} : vector<80x8xbf16>, vector<8x8xbf16>, vector<80x8xf32> -> vector<80x8xf32>
    %171 = arith.addf %156, %170 : vector<80x8xf32>
    %172 = vector.extract_strided_slice %38 {offsets = [22, 0], sizes = [80, 8], strides = [1, 1]} : vector<110x8xbf16> to vector<80x8xbf16>
    %c8_118 = arith.constant 8 : index
    %c0_119 = arith.constant 0 : index
    %c0_120 = arith.constant 0 : index
    %173 = vector.load %arg6[%c8_118, %c0_119, %c0_120] : memref<9x8x8xbf16, #tpu.memory_space<vmem>>, vector<1x8x8xbf16>
    %174 = vector.shape_cast %173 : vector<1x8x8xbf16> to vector<8x8xbf16>
    %cst_121 = arith.constant dense<0.000000e+00> : vector<80x8xf32>
    %175 = tpu.matmul %172, %174, %cst_121 {dimension_numbers = #tpu.dot_dimension_numbers<[1], [0], [0], [1], [0, 0, 1, 1], [], []>} : vector<80x8xbf16>, vector<8x8xbf16>, vector<80x8xf32> -> vector<80x8xf32>
    %176 = arith.addf %161, %175 : vector<80x8xf32>
    %177 = arith.subf %166, %171 : vector<80x8xf32>
    %178 = arith.subf %176, %166 : vector<80x8xf32>
    %179 = arith.subf %178, %171 : vector<80x8xf32>
    %180 = vector.broadcast %4 : vector<80x1xf32> to vector<80x8xf32>
    %181 = arith.mulf %177, %180 : vector<80x8xf32>
    %182 = vector.broadcast %4 : vector<80x1xf32> to vector<80x8xf32>
    %183 = arith.mulf %179, %182 : vector<80x8xf32>
    %cst_122 = arith.constant dense<0.000000e+00> : vector<8xf32>
    %184 = vector.multi_reduction <add>, %181, %cst_122 [0] : vector<80x8xf32> to vector<8xf32>
    %185 = vector.shape_cast %184 : vector<8xf32> to vector<1x8xf32>
    %186 = arith.mulf %181, %177 : vector<80x8xf32>
    %cst_123 = arith.constant dense<0.000000e+00> : vector<8xf32>
    %187 = vector.multi_reduction <add>, %186, %cst_123 [0] : vector<80x8xf32> to vector<8xf32>
    %188 = vector.shape_cast %187 : vector<8xf32> to vector<1x8xf32>
    %cst_124 = arith.constant dense<0.000000e+00> : vector<8xf32>
    %189 = vector.multi_reduction <add>, %183, %cst_124 [0] : vector<80x8xf32> to vector<8xf32>
    %190 = vector.shape_cast %189 : vector<8xf32> to vector<1x8xf32>
    %191 = arith.mulf %183, %179 : vector<80x8xf32>
    %cst_125 = arith.constant dense<0.000000e+00> : vector<8xf32>
    %192 = vector.multi_reduction <add>, %191, %cst_125 [0] : vector<80x8xf32> to vector<8xf32>
    %193 = vector.shape_cast %192 : vector<8xf32> to vector<1x8xf32>
    %194 = tpu.concatenate %185, %188, %190, %193 in 0 : vector<1x8xf32>, vector<1x8xf32>, vector<1x8xf32>, vector<1x8xf32> -> vector<4x8xf32>
    %195 = vector.shape_cast %194 : vector<4x8xf32> to vector<1x4x8xf32>
    %c0_126 = arith.constant 0 : index
    %c0_127 = arith.constant 0 : index
    %c0_128 = arith.constant 0 : index
    %196 = vector.load %arg8[%c0_126, %c0_127, %c0_128] : memref<1x4x8xf32, #tpu.memory_space<vmem>>, vector<1x4x8xf32>
    tpu.vector_store %arg8[%c0_126, %c0_127, %c0_128], %195 {strides = array<i32>} : memref<1x4x8xf32, #tpu.memory_space<vmem>>, vector<1x4x8xf32>,
    %197 = vector.extract_strided_slice %177 {offsets = [0, 0], sizes = [8, 8], strides = [1, 1]} : vector<80x8xf32> to vector<8x8xf32>
    %198 = arith.truncf %197 : vector<8x8xf32> to vector<8x8xbf16>
    %c0_129 = arith.constant 0 : index
    %c0_130 = arith.constant 0 : index
    %c0_131 = arith.constant 0 : index
    %199 = vector.load %arg7[%c0_129, %c0_130, %c0_131] : memref<1x64x16xbf16, #tpu.memory_space<vmem>>, vector<1x8x8xbf16>
    %200 = vector.shape_cast %199 : vector<1x8x8xbf16> to vector<8x8xbf16>
    %201 = vector.shape_cast %198 : vector<8x8xbf16> to vector<1x8x8xbf16>
    tpu.vector_store %arg7[%c0_129, %c0_130, %c0_131], %201 {strides = array<i32>} : memref<1x64x16xbf16, #tpu.memory_space<vmem>>, vector<1x8x8xbf16>,
    %202 = vector.extract_strided_slice %179 {offsets = [0, 0], sizes = [8, 8], strides = [1, 1]} : vector<80x8xf32> to vector<8x8xf32>
    %203 = arith.truncf %202 : vector<8x8xf32> to vector<8x8xbf16>
    %c0_132 = arith.constant 0 : index
    %c0_133 = arith.constant 0 : index
    %c8_134 = arith.constant 8 : index
    %204 = vector.load %arg7[%c0_132, %c0_133, %c8_134] : memref<1x64x16xbf16, #tpu.memory_space<vmem>>, vector<1x8x8xbf16>
    %205 = vector.shape_cast %204 : vector<1x8x8xbf16> to vector<8x8xbf16>
    %206 = vector.shape_cast %203 : vector<8x8xbf16> to vector<1x8x8xbf16>
    tpu.vector_store %arg7[%c0_132, %c0_133, %c8_134], %206 {strides = array<i32>} : memref<1x64x16xbf16, #tpu.memory_space<vmem>>, vector<1x8x8xbf16>,
    %207 = vector.extract_strided_slice %177 {offsets = [10, 0], sizes = [8, 8], strides = [1, 1]} : vector<80x8xf32> to vector<8x8xf32>
    %208 = arith.truncf %207 : vector<8x8xf32> to vector<8x8xbf16>
    %c0_135 = arith.constant 0 : index
    %c8_136 = arith.constant 8 : index
    %c0_137 = arith.constant 0 : index
    %209 = vector.load %arg7[%c0_135, %c8_136, %c0_137] : memref<1x64x16xbf16, #tpu.memory_space<vmem>>, vector<1x8x8xbf16>
    %210 = vector.shape_cast %209 : vector<1x8x8xbf16> to vector<8x8xbf16>
    %211 = vector.shape_cast %208 : vector<8x8xbf16> to vector<1x8x8xbf16>
    tpu.vector_store %arg7[%c0_135, %c8_136, %c0_137], %211 {strides = array<i32>} : memref<1x64x16xbf16, #tpu.memory_space<vmem>>, vector<1x8x8xbf16>,
    %212 = vector.extract_strided_slice %179 {offsets = [10, 0], sizes = [8, 8], strides = [1, 1]} : vector<80x8xf32> to vector<8x8xf32>
    %213 = arith.truncf %212 : vector<8x8xf32> to vector<8x8xbf16>
    %c0_138 = arith.constant 0 : index
    %c8_139 = arith.constant 8 : index
    %c8_140 = arith.constant 8 : index
    %214 = vector.load %arg7[%c0_138, %c8_139, %c8_140] : memref<1x64x16xbf16, #tpu.memory_space<vmem>>, vector<1x8x8xbf16>
    %215 = vector.shape_cast %214 : vector<1x8x8xbf16> to vector<8x8xbf16>
    %216 = vector.shape_cast %213 : vector<8x8xbf16> to vector<1x8x8xbf16>
    tpu.vector_store %arg7[%c0_138, %c8_139, %c8_140], %216 {strides = array<i32>} : memref<1x64x16xbf16, #tpu.memory_space<vmem>>, vector<1x8x8xbf16>,
    %217 = vector.extract_strided_slice %177 {offsets = [20, 0], sizes = [8, 8], strides = [1, 1]} : vector<80x8xf32> to vector<8x8xf32>
    %218 = arith.truncf %217 : vector<8x8xf32> to vector<8x8xbf16>
    %c0_141 = arith.constant 0 : index
    %c16 = arith.constant 16 : index
    %c0_142 = arith.constant 0 : index
    %219 = vector.load %arg7[%c0_141, %c16, %c0_142] : memref<1x64x16xbf16, #tpu.memory_space<vmem>>, vector<1x8x8xbf16>
    %220 = vector.shape_cast %219 : vector<1x8x8xbf16> to vector<8x8xbf16>
    %221 = vector.shape_cast %218 : vector<8x8xbf16> to vector<1x8x8xbf16>
    tpu.vector_store %arg7[%c0_141, %c16, %c0_142], %221 {strides = array<i32>} : memref<1x64x16xbf16, #tpu.memory_space<vmem>>, vector<1x8x8xbf16>,
    %222 = vector.extract_strided_slice %179 {offsets = [20, 0], sizes = [8, 8], strides = [1, 1]} : vector<80x8xf32> to vector<8x8xf32>
    %223 = arith.truncf %222 : vector<8x8xf32> to vector<8x8xbf16>
    %c0_143 = arith.constant 0 : index
    %c16_144 = arith.constant 16 : index
    %c8_145 = arith.constant 8 : index
    %224 = vector.load %arg7[%c0_143, %c16_144, %c8_145] : memref<1x64x16xbf16, #tpu.memory_space<vmem>>, vector<1x8x8xbf16>
    %225 = vector.shape_cast %224 : vector<1x8x8xbf16> to vector<8x8xbf16>
    %226 = vector.shape_cast %223 : vector<8x8xbf16> to vector<1x8x8xbf16>
    tpu.vector_store %arg7[%c0_143, %c16_144, %c8_145], %226 {strides = array<i32>} : memref<1x64x16xbf16, #tpu.memory_space<vmem>>, vector<1x8x8xbf16>,
    %227 = vector.extract_strided_slice %177 {offsets = [30, 0], sizes = [8, 8], strides = [1, 1]} : vector<80x8xf32> to vector<8x8xf32>
    %228 = arith.truncf %227 : vector<8x8xf32> to vector<8x8xbf16>
    %c0_146 = arith.constant 0 : index
    %c24 = arith.constant 24 : index
    %c0_147 = arith.constant 0 : index
    %229 = vector.load %arg7[%c0_146, %c24, %c0_147] : memref<1x64x16xbf16, #tpu.memory_space<vmem>>, vector<1x8x8xbf16>
    %230 = vector.shape_cast %229 : vector<1x8x8xbf16> to vector<8x8xbf16>
    %231 = vector.shape_cast %228 : vector<8x8xbf16> to vector<1x8x8xbf16>
    tpu.vector_store %arg7[%c0_146, %c24, %c0_147], %231 {strides = array<i32>} : memref<1x64x16xbf16, #tpu.memory_space<vmem>>, vector<1x8x8xbf16>,
    %232 = vector.extract_strided_slice %179 {offsets = [30, 0], sizes = [8, 8], strides = [1, 1]} : vector<80x8xf32> to vector<8x8xf32>
    %233 = arith.truncf %232 : vector<8x8xf32> to vector<8x8xbf16>
    %c0_148 = arith.constant 0 : index
    %c24_149 = arith.constant 24 : index
    %c8_150 = arith.constant 8 : index
    %234 = vector.load %arg7[%c0_148, %c24_149, %c8_150] : memref<1x64x16xbf16, #tpu.memory_space<vmem>>, vector<1x8x8xbf16>
    %235 = vector.shape_cast %234 : vector<1x8x8xbf16> to vector<8x8xbf16>
    %236 = vector.shape_cast %233 : vector<8x8xbf16> to vector<1x8x8xbf16>
    tpu.vector_store %arg7[%c0_148, %c24_149, %c8_150], %236 {strides = array<i32>} : memref<1x64x16xbf16, #tpu.memory_space<vmem>>, vector<1x8x8xbf16>,
    %237 = vector.extract_strided_slice %177 {offsets = [40, 0], sizes = [8, 8], strides = [1, 1]} : vector<80x8xf32> to vector<8x8xf32>
    %238 = arith.truncf %237 : vector<8x8xf32> to vector<8x8xbf16>
    %c0_151 = arith.constant 0 : index
    %c32 = arith.constant 32 : index
    %c0_152 = arith.constant 0 : index
    %239 = vector.load %arg7[%c0_151, %c32, %c0_152] : memref<1x64x16xbf16, #tpu.memory_space<vmem>>, vector<1x8x8xbf16>
    %240 = vector.shape_cast %239 : vector<1x8x8xbf16> to vector<8x8xbf16>
    %241 = vector.shape_cast %238 : vector<8x8xbf16> to vector<1x8x8xbf16>
    tpu.vector_store %arg7[%c0_151, %c32, %c0_152], %241 {strides = array<i32>} : memref<1x64x16xbf16, #tpu.memory_space<vmem>>, vector<1x8x8xbf16>,
    %242 = vector.extract_strided_slice %179 {offsets = [40, 0], sizes = [8, 8], strides = [1, 1]} : vector<80x8xf32> to vector<8x8xf32>
    %243 = arith.truncf %242 : vector<8x8xf32> to vector<8x8xbf16>
    %c0_153 = arith.constant 0 : index
    %c32_154 = arith.constant 32 : index
    %c8_155 = arith.constant 8 : index
    %244 = vector.load %arg7[%c0_153, %c32_154, %c8_155] : memref<1x64x16xbf16, #tpu.memory_space<vmem>>, vector<1x8x8xbf16>
    %245 = vector.shape_cast %244 : vector<1x8x8xbf16> to vector<8x8xbf16>
    %246 = vector.shape_cast %243 : vector<8x8xbf16> to vector<1x8x8xbf16>
    tpu.vector_store %arg7[%c0_153, %c32_154, %c8_155], %246 {strides = array<i32>} : memref<1x64x16xbf16, #tpu.memory_space<vmem>>, vector<1x8x8xbf16>,
    %247 = vector.extract_strided_slice %177 {offsets = [50, 0], sizes = [8, 8], strides = [1, 1]} : vector<80x8xf32> to vector<8x8xf32>
    %248 = arith.truncf %247 : vector<8x8xf32> to vector<8x8xbf16>
    %c0_156 = arith.constant 0 : index
    %c40 = arith.constant 40 : index
    %c0_157 = arith.constant 0 : index
    %249 = vector.load %arg7[%c0_156, %c40, %c0_157] : memref<1x64x16xbf16, #tpu.memory_space<vmem>>, vector<1x8x8xbf16>
    %250 = vector.shape_cast %249 : vector<1x8x8xbf16> to vector<8x8xbf16>
    %251 = vector.shape_cast %248 : vector<8x8xbf16> to vector<1x8x8xbf16>
    tpu.vector_store %arg7[%c0_156, %c40, %c0_157], %251 {strides = array<i32>} : memref<1x64x16xbf16, #tpu.memory_space<vmem>>, vector<1x8x8xbf16>,
    %252 = vector.extract_strided_slice %179 {offsets = [50, 0], sizes = [8, 8], strides = [1, 1]} : vector<80x8xf32> to vector<8x8xf32>
    %253 = arith.truncf %252 : vector<8x8xf32> to vector<8x8xbf16>
    %c0_158 = arith.constant 0 : index
    %c40_159 = arith.constant 40 : index
    %c8_160 = arith.constant 8 : index
    %254 = vector.load %arg7[%c0_158, %c40_159, %c8_160] : memref<1x64x16xbf16, #tpu.memory_space<vmem>>, vector<1x8x8xbf16>
    %255 = vector.shape_cast %254 : vector<1x8x8xbf16> to vector<8x8xbf16>
    %256 = vector.shape_cast %253 : vector<8x8xbf16> to vector<1x8x8xbf16>
    tpu.vector_store %arg7[%c0_158, %c40_159, %c8_160], %256 {strides = array<i32>} : memref<1x64x16xbf16, #tpu.memory_space<vmem>>, vector<1x8x8xbf16>,
    %257 = vector.extract_strided_slice %177 {offsets = [60, 0], sizes = [8, 8], strides = [1, 1]} : vector<80x8xf32> to vector<8x8xf32>
    %258 = arith.truncf %257 : vector<8x8xf32> to vector<8x8xbf16>
    %c0_161 = arith.constant 0 : index
    %c48 = arith.constant 48 : index
    %c0_162 = arith.constant 0 : index
    %259 = vector.load %arg7[%c0_161, %c48, %c0_162] : memref<1x64x16xbf16, #tpu.memory_space<vmem>>, vector<1x8x8xbf16>
    %260 = vector.shape_cast %259 : vector<1x8x8xbf16> to vector<8x8xbf16>
    %261 = vector.shape_cast %258 : vector<8x8xbf16> to vector<1x8x8xbf16>
    tpu.vector_store %arg7[%c0_161, %c48, %c0_162], %261 {strides = array<i32>} : memref<1x64x16xbf16, #tpu.memory_space<vmem>>, vector<1x8x8xbf16>,
    %262 = vector.extract_strided_slice %179 {offsets = [60, 0], sizes = [8, 8], strides = [1, 1]} : vector<80x8xf32> to vector<8x8xf32>
    %263 = arith.truncf %262 : vector<8x8xf32> to vector<8x8xbf16>
    %c0_163 = arith.constant 0 : index
    %c48_164 = arith.constant 48 : index
    %c8_165 = arith.constant 8 : index
    %264 = vector.load %arg7[%c0_163, %c48_164, %c8_165] : memref<1x64x16xbf16, #tpu.memory_space<vmem>>, vector<1x8x8xbf16>
    %265 = vector.shape_cast %264 : vector<1x8x8xbf16> to vector<8x8xbf16>
    %266 = vector.shape_cast %263 : vector<8x8xbf16> to vector<1x8x8xbf16>
    tpu.vector_store %arg7[%c0_163, %c48_164, %c8_165], %266 {strides = array<i32>} : memref<1x64x16xbf16, #tpu.memory_space<vmem>>, vector<1x8x8xbf16>,
    %267 = vector.extract_strided_slice %177 {offsets = [70, 0], sizes = [8, 8], strides = [1, 1]} : vector<80x8xf32> to vector<8x8xf32>
    %268 = arith.truncf %267 : vector<8x8xf32> to vector<8x8xbf16>
    %c0_166 = arith.constant 0 : index
    %c56 = arith.constant 56 : index
    %c0_167 = arith.constant 0 : index
    %269 = vector.load %arg7[%c0_166, %c56, %c0_167] : memref<1x64x16xbf16, #tpu.memory_space<vmem>>, vector<1x8x8xbf16>
    %270 = vector.shape_cast %269 : vector<1x8x8xbf16> to vector<8x8xbf16>
    %271 = vector.shape_cast %268 : vector<8x8xbf16> to vector<1x8x8xbf16>
    tpu.vector_store %arg7[%c0_166, %c56, %c0_167], %271 {strides = array<i32>} : memref<1x64x16xbf16, #tpu.memory_space<vmem>>, vector<1x8x8xbf16>,
    %272 = vector.extract_strided_slice %179 {offsets = [70, 0], sizes = [8, 8], strides = [1, 1]} : vector<80x8xf32> to vector<8x8xf32>
    %273 = arith.truncf %272 : vector<8x8xf32> to vector<8x8xbf16>
    %c0_168 = arith.constant 0 : index
    %c56_169 = arith.constant 56 : index
    %c8_170 = arith.constant 8 : index
    %274 = vector.load %arg7[%c0_168, %c56_169, %c8_170] : memref<1x64x16xbf16, #tpu.memory_space<vmem>>, vector<1x8x8xbf16>
    %275 = vector.shape_cast %274 : vector<1x8x8xbf16> to vector<8x8xbf16>
    %276 = vector.shape_cast %273 : vector<8x8xbf16> to vector<1x8x8xbf16>
    tpu.vector_store %arg7[%c0_168, %c56_169, %c8_170], %276 {strides = array<i32>} : memref<1x64x16xbf16, #tpu.memory_space<vmem>>, vector<1x8x8xbf16>,
    return
  }
  func.func @transform_0(%arg0: i32) -> (i32, i32, i32) {
    %c0_i32 = arith.constant 0 : i32
    %c0_i32_0 = arith.constant 0 : i32
    %c0_i32_1 = arith.constant 0 : i32
    return %arg0, %c0_i32, %c0_i32_0 : i32, i32, i32
  }
  func.func @transform_1(%arg0: i32) -> (i32, i32) {
    %c0_i32 = arith.constant 0 : i32
    %c0_i32_0 = arith.constant 0 : i32
    %c0_i32_1 = arith.constant 0 : i32
    return %c0_i32, %c0_i32_0 : i32, i32
  }
  func.func @transform_2(%arg0: i32) -> (i32, i32) {
    %c0_i32 = arith.constant 0 : i32
    %c0_i32_0 = arith.constant 0 : i32
    %c0_i32_1 = arith.constant 0 : i32
    return %c0_i32, %c0_i32_0 : i32, i32
  }
  func.func @transform_3(%arg0: i32) -> (i32, i32, i32) {
    %c0_i32 = arith.constant 0 : i32
    %c0_i32_0 = arith.constant 0 : i32
    %c0_i32_1 = arith.constant 0 : i32
    %c0_i32_2 = arith.constant 0 : i32
    return %c0_i32, %c0_i32_0, %c0_i32_1 : i32, i32, i32
  }
  func.func @transform_4(%arg0: i32) -> (i32, i32, i32) {
    %c0_i32 = arith.constant 0 : i32
    %c0_i32_0 = arith.constant 0 : i32
    %c0_i32_1 = arith.constant 0 : i32
    %c0_i32_2 = arith.constant 0 : i32
    return %c0_i32, %c0_i32_0, %c0_i32_1 : i32, i32, i32
  }
  func.func @transform_5(%arg0: i32) -> (i32, i32, i32) {
    %c0_i32 = arith.constant 0 : i32
    %c0_i32_0 = arith.constant 0 : i32
    %c0_i32_1 = arith.constant 0 : i32
    %c0_i32_2 = arith.constant 0 : i32
    return %c0_i32, %c0_i32_0, %c0_i32_1 : i32, i32, i32
  }
  func.func @transform_6(%arg0: i32) -> (i32, i32, i32) {
    %c0_i32 = arith.constant 0 : i32
    %c0_i32_0 = arith.constant 0 : i32
    %c0_i32_1 = arith.constant 0 : i32
    return %arg0, %c0_i32, %c0_i32_0 : i32, i32, i32
  }
  func.func @transform_7(%arg0: i32) -> (i32, i32, i32) {
    %c0_i32 = arith.constant 0 : i32
    %c0_i32_0 = arith.constant 0 : i32
    %c0_i32_1 = arith.constant 0 : i32
    return %arg0, %c0_i32, %c0_i32_0 : i32, i32, i32
  }
}

module attributes {stable_mosaic.version = 11 : i64} {
  func.func @_conv1x1_fused_kernel(%arg0: i32, %arg1: memref<128x16xbf16, #tpu.memory_space<vmem>>, %arg2: memref<6x8xf32, #tpu.memory_space<vmem>>, %arg3: memref<8x32xbf16, #tpu.memory_space<vmem>>, %arg4: memref<8x32xbf16, #tpu.memory_space<vmem>>, %arg5: memref<8x32xbf16, #tpu.memory_space<vmem>>, %arg6: memref<128x64xbf16, #tpu.memory_space<vmem>>, %arg7: memref<1x4x32xf32, #tpu.memory_space<vmem>>) attributes {dimension_semantics = [#tpu.dimension_semantics<parallel>], iteration_bounds = array<i64: 1>, scalar_prefetch = 0 : i64, scratch_operands = 0 : i64, tpu.core_type = #tpu.core_type<tc>, window_params = [{transform_indices = @transform_0, window_bounds = array<i64: 128, 16>}, {pipeline_mode = #tpu.pipeline_mode<synchronous>, transform_indices = @transform_1, window_bounds = array<i64: 6, 8>}, {pipeline_mode = #tpu.pipeline_mode<synchronous>, transform_indices = @transform_2, window_bounds = array<i64: 8, 32>}, {pipeline_mode = #tpu.pipeline_mode<synchronous>, transform_indices = @transform_3, window_bounds = array<i64: 8, 32>}, {pipeline_mode = #tpu.pipeline_mode<synchronous>, transform_indices = @transform_4, window_bounds = array<i64: 8, 32>}, {transform_indices = @transform_5, window_bounds = array<i64: 128, 64>}, {transform_indices = @transform_6, window_bounds = array<i64: 1, 4, 32>}]} {
    %c0 = arith.constant 0 : index
    %c0_0 = arith.constant 0 : index
    %0 = vector.load %arg1[%c0, %c0_0] : memref<128x16xbf16, #tpu.memory_space<vmem>>, vector<128x16xbf16>
    %1 = arith.extf %0 : vector<128x16xbf16> to vector<128x16xf32>
    %2 = vector.extract_strided_slice %1 {offsets = [0, 0], sizes = [128, 8], strides = [1, 1]} : vector<128x16xf32> to vector<128x8xf32>
    %c0_1 = arith.constant 0 : index
    %c0_2 = arith.constant 0 : index
    %3 = vector.load %arg2[%c0_1, %c0_2] : memref<6x8xf32, #tpu.memory_space<vmem>>, vector<1x8xf32>
    %4 = vector.broadcast %3 : vector<1x8xf32> to vector<128x8xf32>
    %5 = arith.mulf %2, %4 : vector<128x8xf32>
    %c1 = arith.constant 1 : index
    %c0_3 = arith.constant 0 : index
    %6 = vector.load %arg2[%c1, %c0_3] : memref<6x8xf32, #tpu.memory_space<vmem>>, vector<1x8xf32>
    %7 = vector.broadcast %6 : vector<1x8xf32> to vector<128x8xf32>
    %8 = arith.addf %5, %7 : vector<128x8xf32>
    %9 = vector.extract_strided_slice %1 {offsets = [0, 8], sizes = [128, 8], strides = [1, 1]} : vector<128x16xf32> to vector<128x8xf32>
    %c3 = arith.constant 3 : index
    %c0_4 = arith.constant 0 : index
    %10 = vector.load %arg2[%c3, %c0_4] : memref<6x8xf32, #tpu.memory_space<vmem>>, vector<1x8xf32>
    %11 = vector.broadcast %10 : vector<1x8xf32> to vector<128x8xf32>
    %12 = arith.mulf %9, %11 : vector<128x8xf32>
    %c4 = arith.constant 4 : index
    %c0_5 = arith.constant 0 : index
    %13 = vector.load %arg2[%c4, %c0_5] : memref<6x8xf32, #tpu.memory_space<vmem>>, vector<1x8xf32>
    %14 = vector.broadcast %13 : vector<1x8xf32> to vector<128x8xf32>
    %15 = arith.addf %12, %14 : vector<128x8xf32>
    %cst = arith.constant 0.000000e+00 : f32
    %16 = vector.broadcast %cst : f32 to vector<128x8xf32>
    %17 = arith.cmpf oge, %8, %16 : vector<128x8xf32>
    %c2 = arith.constant 2 : index
    %c0_6 = arith.constant 0 : index
    %18 = vector.load %arg2[%c2, %c0_6] : memref<6x8xf32, #tpu.memory_space<vmem>>, vector<1x8xf32>
    %19 = vector.broadcast %18 : vector<1x8xf32> to vector<128x8xf32>
    %20 = arith.mulf %19, %8 : vector<128x8xf32>
    %21 = arith.select %17, %8, %20 : vector<128x8xi1>, vector<128x8xf32>
    %cst_7 = arith.constant 0.000000e+00 : f32
    %22 = vector.broadcast %cst_7 : f32 to vector<128x8xf32>
    %23 = arith.cmpf oge, %15, %22 : vector<128x8xf32>
    %c5 = arith.constant 5 : index
    %c0_8 = arith.constant 0 : index
    %24 = vector.load %arg2[%c5, %c0_8] : memref<6x8xf32, #tpu.memory_space<vmem>>, vector<1x8xf32>
    %25 = vector.broadcast %24 : vector<1x8xf32> to vector<128x8xf32>
    %26 = arith.mulf %25, %15 : vector<128x8xf32>
    %27 = arith.select %23, %15, %26 : vector<128x8xi1>, vector<128x8xf32>
    %28 = arith.truncf %21 : vector<128x8xf32> to vector<128x8xbf16>
    %29 = arith.truncf %27 : vector<128x8xf32> to vector<128x8xbf16>
    %30 = arith.addf %21, %27 : vector<128x8xf32>
    %31 = arith.truncf %30 : vector<128x8xf32> to vector<128x8xbf16>
    %c0_9 = arith.constant 0 : index
    %c0_10 = arith.constant 0 : index
    %32 = vector.load %arg3[%c0_9, %c0_10] : memref<8x32xbf16, #tpu.memory_space<vmem>>, vector<8x32xbf16>
    %cst_11 = arith.constant dense<0.000000e+00> : vector<128x32xf32>
    %33 = tpu.matmul %28, %32, %cst_11 {dimension_numbers = #tpu.dot_dimension_numbers<[1], [0], [0], [1], [0, 0, 1, 1], [], []>} : vector<128x8xbf16>, vector<8x32xbf16>, vector<128x32xf32> -> vector<128x32xf32>
    %c0_12 = arith.constant 0 : index
    %c0_13 = arith.constant 0 : index
    %34 = vector.load %arg4[%c0_12, %c0_13] : memref<8x32xbf16, #tpu.memory_space<vmem>>, vector<8x32xbf16>
    %cst_14 = arith.constant dense<0.000000e+00> : vector<128x32xf32>
    %35 = tpu.matmul %29, %34, %cst_14 {dimension_numbers = #tpu.dot_dimension_numbers<[1], [0], [0], [1], [0, 0, 1, 1], [], []>} : vector<128x8xbf16>, vector<8x32xbf16>, vector<128x32xf32> -> vector<128x32xf32>
    %c0_15 = arith.constant 0 : index
    %c0_16 = arith.constant 0 : index
    %36 = vector.load %arg5[%c0_15, %c0_16] : memref<8x32xbf16, #tpu.memory_space<vmem>>, vector<8x32xbf16>
    %cst_17 = arith.constant dense<0.000000e+00> : vector<128x32xf32>
    %37 = tpu.matmul %31, %36, %cst_17 {dimension_numbers = #tpu.dot_dimension_numbers<[1], [0], [0], [1], [0, 0, 1, 1], [], []>} : vector<128x8xbf16>, vector<8x32xbf16>, vector<128x32xf32> -> vector<128x32xf32>
    %38 = arith.subf %33, %35 : vector<128x32xf32>
    %39 = arith.subf %37, %33 : vector<128x32xf32>
    %40 = arith.subf %39, %35 : vector<128x32xf32>
    %41 = arith.truncf %38 : vector<128x32xf32> to vector<128x32xbf16>
    %c0_18 = arith.constant 0 : index
    %c0_19 = arith.constant 0 : index
    %42 = vector.load %arg6[%c0_18, %c0_19] : memref<128x64xbf16, #tpu.memory_space<vmem>>, vector<128x32xbf16>
    tpu.vector_store %arg6[%c0_18, %c0_19], %41 {strides = array<i32>} : memref<128x64xbf16, #tpu.memory_space<vmem>>, vector<128x32xbf16>,
    %43 = arith.truncf %40 : vector<128x32xf32> to vector<128x32xbf16>
    %c0_20 = arith.constant 0 : index
    %c32 = arith.constant 32 : index
    %44 = vector.load %arg6[%c0_20, %c32] : memref<128x64xbf16, #tpu.memory_space<vmem>>, vector<128x32xbf16>
    tpu.vector_store %arg6[%c0_20, %c32], %43 {strides = array<i32>} : memref<128x64xbf16, #tpu.memory_space<vmem>>, vector<128x32xbf16>,
    %cst_21 = arith.constant dense<0.000000e+00> : vector<32xf32>
    %45 = vector.multi_reduction <add>, %38, %cst_21 [0] : vector<128x32xf32> to vector<32xf32>
    %46 = vector.shape_cast %45 : vector<32xf32> to vector<1x32xf32>
    %47 = arith.mulf %38, %38 : vector<128x32xf32>
    %cst_22 = arith.constant dense<0.000000e+00> : vector<32xf32>
    %48 = vector.multi_reduction <add>, %47, %cst_22 [0] : vector<128x32xf32> to vector<32xf32>
    %49 = vector.shape_cast %48 : vector<32xf32> to vector<1x32xf32>
    %cst_23 = arith.constant dense<0.000000e+00> : vector<32xf32>
    %50 = vector.multi_reduction <add>, %40, %cst_23 [0] : vector<128x32xf32> to vector<32xf32>
    %51 = vector.shape_cast %50 : vector<32xf32> to vector<1x32xf32>
    %52 = arith.mulf %40, %40 : vector<128x32xf32>
    %cst_24 = arith.constant dense<0.000000e+00> : vector<32xf32>
    %53 = vector.multi_reduction <add>, %52, %cst_24 [0] : vector<128x32xf32> to vector<32xf32>
    %54 = vector.shape_cast %53 : vector<32xf32> to vector<1x32xf32>
    %55 = tpu.concatenate %46, %49, %51, %54 in 0 : vector<1x32xf32>, vector<1x32xf32>, vector<1x32xf32>, vector<1x32xf32> -> vector<4x32xf32>
    %56 = vector.shape_cast %55 : vector<4x32xf32> to vector<1x4x32xf32>
    %c0_25 = arith.constant 0 : index
    %c0_26 = arith.constant 0 : index
    %c0_27 = arith.constant 0 : index
    %57 = vector.load %arg7[%c0_25, %c0_26, %c0_27] : memref<1x4x32xf32, #tpu.memory_space<vmem>>, vector<1x4x32xf32>
    tpu.vector_store %arg7[%c0_25, %c0_26, %c0_27], %56 {strides = array<i32>} : memref<1x4x32xf32, #tpu.memory_space<vmem>>, vector<1x4x32xf32>,
    return
  }
  func.func @transform_0(%arg0: i32) -> (i32, i32) {
    %c0_i32 = arith.constant 0 : i32
    %c0_i32_0 = arith.constant 0 : i32
    return %arg0, %c0_i32 : i32, i32
  }
  func.func @transform_1(%arg0: i32) -> (i32, i32) {
    %c0_i32 = arith.constant 0 : i32
    %c0_i32_0 = arith.constant 0 : i32
    %c0_i32_1 = arith.constant 0 : i32
    return %c0_i32, %c0_i32_0 : i32, i32
  }
  func.func @transform_2(%arg0: i32) -> (i32, i32) {
    %c0_i32 = arith.constant 0 : i32
    %c0_i32_0 = arith.constant 0 : i32
    %c0_i32_1 = arith.constant 0 : i32
    return %c0_i32, %c0_i32_0 : i32, i32
  }
  func.func @transform_3(%arg0: i32) -> (i32, i32) {
    %c0_i32 = arith.constant 0 : i32
    %c0_i32_0 = arith.constant 0 : i32
    %c0_i32_1 = arith.constant 0 : i32
    return %c0_i32, %c0_i32_0 : i32, i32
  }
  func.func @transform_4(%arg0: i32) -> (i32, i32) {
    %c0_i32 = arith.constant 0 : i32
    %c0_i32_0 = arith.constant 0 : i32
    %c0_i32_1 = arith.constant 0 : i32
    return %c0_i32, %c0_i32_0 : i32, i32
  }
  func.func @transform_5(%arg0: i32) -> (i32, i32) {
    %c0_i32 = arith.constant 0 : i32
    %c0_i32_0 = arith.constant 0 : i32
    return %arg0, %c0_i32 : i32, i32
  }
  func.func @transform_6(%arg0: i32) -> (i32, i32, i32) {
    %c0_i32 = arith.constant 0 : i32
    %c0_i32_0 = arith.constant 0 : i32
    %c0_i32_1 = arith.constant 0 : i32
    return %arg0, %c0_i32, %c0_i32_0 : i32, i32, i32
  }
}

module attributes {stable_mosaic.version = 11 : i64} {
  func.func @_bn_res_prelu_kernel(%arg0: i32, %arg1: memref<128x64xbf16, #tpu.memory_space<vmem>>, %arg2: memref<128x32xf32, #tpu.memory_space<vmem>>, %arg3: memref<128x32xf32, #tpu.memory_space<vmem>>, %arg4: memref<6x32xf32, #tpu.memory_space<vmem>>, %arg5: memref<128x32xf32, #tpu.memory_space<vmem>>, %arg6: memref<128x32xf32, #tpu.memory_space<vmem>>) attributes {dimension_semantics = [#tpu.dimension_semantics<parallel>], iteration_bounds = array<i64: 1>, scalar_prefetch = 0 : i64, scratch_operands = 0 : i64, tpu.core_type = #tpu.core_type<tc>, window_params = [{transform_indices = @transform_0, window_bounds = array<i64: 128, 64>}, {transform_indices = @transform_1, window_bounds = array<i64: 128, 32>}, {transform_indices = @transform_2, window_bounds = array<i64: 128, 32>}, {pipeline_mode = #tpu.pipeline_mode<synchronous>, transform_indices = @transform_3, window_bounds = array<i64: 6, 32>}, {transform_indices = @transform_4, window_bounds = array<i64: 128, 32>}, {transform_indices = @transform_5, window_bounds = array<i64: 128, 32>}]} {
    %c0 = arith.constant 0 : index
    %c0_0 = arith.constant 0 : index
    %0 = vector.load %arg1[%c0, %c0_0] : memref<128x64xbf16, #tpu.memory_space<vmem>>, vector<128x64xbf16>
    %1 = arith.extf %0 : vector<128x64xbf16> to vector<128x64xf32>
    %2 = vector.extract_strided_slice %1 {offsets = [0, 0], sizes = [128, 32], strides = [1, 1]} : vector<128x64xf32> to vector<128x32xf32>
    %c0_1 = arith.constant 0 : index
    %c0_2 = arith.constant 0 : index
    %3 = vector.load %arg4[%c0_1, %c0_2] : memref<6x32xf32, #tpu.memory_space<vmem>>, vector<1x32xf32>
    %4 = vector.broadcast %3 : vector<1x32xf32> to vector<128x32xf32>
    %5 = arith.mulf %2, %4 : vector<128x32xf32>
    %c1 = arith.constant 1 : index
    %c0_3 = arith.constant 0 : index
    %6 = vector.load %arg4[%c1, %c0_3] : memref<6x32xf32, #tpu.memory_space<vmem>>, vector<1x32xf32>
    %7 = vector.broadcast %6 : vector<1x32xf32> to vector<128x32xf32>
    %8 = arith.addf %5, %7 : vector<128x32xf32>
    %c0_4 = arith.constant 0 : index
    %c0_5 = arith.constant 0 : index
    %9 = vector.load %arg2[%c0_4, %c0_5] : memref<128x32xf32, #tpu.memory_space<vmem>>, vector<128x32xf32>
    %10 = arith.addf %8, %9 : vector<128x32xf32>
    %11 = vector.extract_strided_slice %1 {offsets = [0, 32], sizes = [128, 32], strides = [1, 1]} : vector<128x64xf32> to vector<128x32xf32>
    %c3 = arith.constant 3 : index
    %c0_6 = arith.constant 0 : index
    %12 = vector.load %arg4[%c3, %c0_6] : memref<6x32xf32, #tpu.memory_space<vmem>>, vector<1x32xf32>
    %13 = vector.broadcast %12 : vector<1x32xf32> to vector<128x32xf32>
    %14 = arith.mulf %11, %13 : vector<128x32xf32>
    %c4 = arith.constant 4 : index
    %c0_7 = arith.constant 0 : index
    %15 = vector.load %arg4[%c4, %c0_7] : memref<6x32xf32, #tpu.memory_space<vmem>>, vector<1x32xf32>
    %16 = vector.broadcast %15 : vector<1x32xf32> to vector<128x32xf32>
    %17 = arith.addf %14, %16 : vector<128x32xf32>
    %c0_8 = arith.constant 0 : index
    %c0_9 = arith.constant 0 : index
    %18 = vector.load %arg3[%c0_8, %c0_9] : memref<128x32xf32, #tpu.memory_space<vmem>>, vector<128x32xf32>
    %19 = arith.addf %17, %18 : vector<128x32xf32>
    %cst = arith.constant 0.000000e+00 : f32
    %20 = vector.broadcast %cst : f32 to vector<128x32xf32>
    %21 = arith.cmpf oge, %10, %20 : vector<128x32xf32>
    %c2 = arith.constant 2 : index
    %c0_10 = arith.constant 0 : index
    %22 = vector.load %arg4[%c2, %c0_10] : memref<6x32xf32, #tpu.memory_space<vmem>>, vector<1x32xf32>
    %23 = vector.broadcast %22 : vector<1x32xf32> to vector<128x32xf32>
    %24 = arith.mulf %23, %10 : vector<128x32xf32>
    %25 = arith.select %21, %10, %24 : vector<128x32xi1>, vector<128x32xf32>
    %c0_11 = arith.constant 0 : index
    %c0_12 = arith.constant 0 : index
    %26 = vector.load %arg5[%c0_11, %c0_12] : memref<128x32xf32, #tpu.memory_space<vmem>>, vector<128x32xf32>
    tpu.vector_store %arg5[%c0_11, %c0_12], %25 {strides = array<i32>} : memref<128x32xf32, #tpu.memory_space<vmem>>, vector<128x32xf32>,
    %cst_13 = arith.constant 0.000000e+00 : f32
    %27 = vector.broadcast %cst_13 : f32 to vector<128x32xf32>
    %28 = arith.cmpf oge, %19, %27 : vector<128x32xf32>
    %c5 = arith.constant 5 : index
    %c0_14 = arith.constant 0 : index
    %29 = vector.load %arg4[%c5, %c0_14] : memref<6x32xf32, #tpu.memory_space<vmem>>, vector<1x32xf32>
    %30 = vector.broadcast %29 : vector<1x32xf32> to vector<128x32xf32>
    %31 = arith.mulf %30, %19 : vector<128x32xf32>
    %32 = arith.select %28, %19, %31 : vector<128x32xi1>, vector<128x32xf32>
    %c0_15 = arith.constant 0 : index
    %c0_16 = arith.constant 0 : index
    %33 = vector.load %arg6[%c0_15, %c0_16] : memref<128x32xf32, #tpu.memory_space<vmem>>, vector<128x32xf32>
    tpu.vector_store %arg6[%c0_15, %c0_16], %32 {strides = array<i32>} : memref<128x32xf32, #tpu.memory_space<vmem>>, vector<128x32xf32>,
    return
  }
  func.func @transform_0(%arg0: i32) -> (i32, i32) {
    %c0_i32 = arith.constant 0 : i32
    %c0_i32_0 = arith.constant 0 : i32
    return %arg0, %c0_i32 : i32, i32
  }
  func.func @transform_1(%arg0: i32) -> (i32, i32) {
    %c0_i32 = arith.constant 0 : i32
    %c0_i32_0 = arith.constant 0 : i32
    return %arg0, %c0_i32 : i32, i32
  }
  func.func @transform_2(%arg0: i32) -> (i32, i32) {
    %c0_i32 = arith.constant 0 : i32
    %c0_i32_0 = arith.constant 0 : i32
    return %arg0, %c0_i32 : i32, i32
  }
  func.func @transform_3(%arg0: i32) -> (i32, i32) {
    %c0_i32 = arith.constant 0 : i32
    %c0_i32_0 = arith.constant 0 : i32
    %c0_i32_1 = arith.constant 0 : i32
    return %c0_i32, %c0_i32_0 : i32, i32
  }
  func.func @transform_4(%arg0: i32) -> (i32, i32) {
    %c0_i32 = arith.constant 0 : i32
    %c0_i32_0 = arith.constant 0 : i32
    return %arg0, %c0_i32 : i32, i32
  }
  func.func @transform_5(%arg0: i32) -> (i32, i32) {
    %c0_i32 = arith.constant 0 : i32
    %c0_i32_0 = arith.constant 0 : i32
    return %arg0, %c0_i32 : i32, i32
  }
}

</mosaic_0001>

<llo_original>
// kernel: bottleneck_forward.4
$region0: #{bottleneck_forward.4}
  #allocation0 [shape = 'u32[]', space=smem, size = 0x4, offset = 0x4, fixed_abs, tag = 'smem constant byte address 0x4 - core index']
  #allocation1 [shape = 'u32[144,128]{1,0:T(1,128)}', space=vmem, size = 0x12000, scoped, tag = 'internal scratch']
  %s0 = inlined_call_operand.vmem [shape: bf16[128,32], index: 0, kind: input, shape index: {}]
  %s1 = inlined_call_operand.vmem [shape: bf16[128,32], index: 1, kind: input, shape index: {}]
  %s2 = inlined_call_operand.vmem [shape: bf16[32,8], index: 2, kind: input, shape index: {}]
  %s3 = inlined_call_operand.vmem [shape: bf16[32,8], index: 3, kind: input, shape index: {}]
  %s4 = inlined_call_operand.vmem [shape: bf16[32,8], index: 4, kind: input, shape index: {}]
  %s5 = inlined_call_operand.vmem [shape: bf16[128,16], index: 5, kind: output, shape index: {0}]
  %s6 = inlined_call_operand.vmem [shape: f32[1,4,8], index: 6, kind: output, shape index: {1}]
  %7 = xla_tuple %s5, %s6
  %s8 = sld [smem:[#allocation0]]
  $region38: #{bottleneck_forward.4} parent=0
    _
  %s10 = ssub.s32 1, %s8
  %s11 = scalar_select 0, %s10, %s8
  // Predicated region
  $region2: #{bottleneck_forward.4} parent=0 // pred_check
    _
  $region3: #{bottleneck_forward.4} parent=0 // pred_check_branch
    %13 = sbr.rel (0) target = $region5
  $region4: #{bottleneck_forward.4} parent=0 // pred_region
    _
  $region5: #{bottleneck_forward.4} parent=0 // pred_fallthru
    _
  // Predicated region
  $region6: #{bottleneck_forward.4} parent=0 // pred_check
    _
  $region7: #{bottleneck_forward.4} parent=0 // pred_check_branch
    %15 = sbr.rel (0) target = $region9
  $region8: #{bottleneck_forward.4} parent=0 // pred_region
    _
  $region9: #{bottleneck_forward.4} parent=0 // pred_fallthru
    _
  // Predicated region
  $region10: #{bottleneck_forward.4} parent=0 // pred_check
    _
  $region11: #{bottleneck_forward.4} parent=0 // pred_check_branch
    %17 = sbr.rel (0) target = $region13
  $region12: #{bottleneck_forward.4} parent=0 // pred_region
    _
  $region13: #{bottleneck_forward.4} parent=0 // pred_fallthru
    _
  // Predicated region
  $region14: #{bottleneck_forward.4} parent=0 // pred_check
    _
  $region15: #{bottleneck_forward.4} parent=0 // pred_check_branch
    %19 = sbr.rel (0) target = $region17
  $region16: #{bottleneck_forward.4} parent=0 // pred_region
    _
  $region17: #{bottleneck_forward.4} parent=0 // pred_fallthru
    _
  // Predicated region
  $region18: #{bottleneck_forward.4} parent=0 // pred_check
    _
  $region19: #{bottleneck_forward.4} parent=0 // pred_check_branch
    %21 = sbr.rel (0) target = $region21
  $region20: #{bottleneck_forward.4} parent=0 // pred_region
    _
  $region21: #{bottleneck_forward.4} parent=0 // pred_fallthru
    _
  %v23 = vld [vmem:[%s0] sm:$0xf]
  %v24 = vld [vmem:[%s0 + $0x4] sm:$0xf]
  %v25 = vld [vmem:[%s0 + $0x8] sm:$0xf]
  %v26 = vld [vmem:[%s0 + $0xc] sm:$0xf]
  %v27 = vld [vmem:[%s0 + $0x10] sm:$0xf]
  %v28 = vld [vmem:[%s0 + $0x14] sm:$0xf]
  %v29 = vld [vmem:[%s0 + $0x18] sm:$0xf]
  %v30 = vld [vmem:[%s0 + $0x1c] sm:$0xf]
  %v31 = vld [vmem:[%s0 + $0x20] sm:$0xf]
  %v32 = vld [vmem:[%s0 + $0x24] sm:$0xf]
  %v33 = vld [vmem:[%s0 + $0x28] sm:$0xf]
  %v34 = vld [vmem:[%s0 + $0x2c] sm:$0xf]
  %v35 = vld [vmem:[%s0 + $0x30] sm:$0xf]
  %v36 = vld [vmem:[%s0 + $0x34] sm:$0xf]
  %v37 = vld [vmem:[%s0 + $0x38] sm:$0xf]
  %v38 = vld [vmem:[%s0 + $0x3c] sm:$0xf]
  %v39 = vld [vmem:[%s1] sm:$0xf]
  %v40 = vld [vmem:[%s1 + $0x4] sm:$0xf]
  %v41 = vld [vmem:[%s1 + $0x8] sm:$0xf]
  %v42 = vld [vmem:[%s1 + $0xc] sm:$0xf]
  %v43 = vld [vmem:[%s1 + $0x10] sm:$0xf]
  %v44 = vld [vmem:[%s1 + $0x14] sm:$0xf]
  %v45 = vld [vmem:[%s1 + $0x18] sm:$0xf]
  %v46 = vld [vmem:[%s1 + $0x1c] sm:$0xf]
  %v47 = vld [vmem:[%s1 + $0x20] sm:$0xf]
  %v48 = vld [vmem:[%s1 + $0x24] sm:$0xf]
  %v49 = vld [vmem:[%s1 + $0x28] sm:$0xf]
  %v50 = vld [vmem:[%s1 + $0x2c] sm:$0xf]
  %v51 = vld [vmem:[%s1 + $0x30] sm:$0xf]
  %v52 = vld [vmem:[%s1 + $0x34] sm:$0xf]
  %v53 = vld [vmem:[%s1 + $0x38] sm:$0xf]
  %v54 = vld [vmem:[%s1 + $0x3c] sm:$0xf]
  %v55 = vld [vmem:[%s2] sm:$0xf]
  %v56 = vld [vmem:[%s2 + $0x4] sm:$0xf]
  %v57 = vld [vmem:[%s2 + $0x8] sm:$0xf]
  %v58 = vld [vmem:[%s2 + $0xc] sm:$0xf]
  %v75 = vunpack.c.l.b16 %v23
  %v76 = vunpack.c.l.b16 %v24
  %v77 = vunpack.c.l.b16 %v25
  %v78 = vunpack.c.l.b16 %v26
  %v79 = vunpack.c.l.b16 %v27
  %v80 = vunpack.c.l.b16 %v28
  %v81 = vunpack.c.l.b16 %v29
  %v82 = vunpack.c.l.b16 %v30
  %v83 = vunpack.c.l.b16 %v31
  %v84 = vunpack.c.l.b16 %v32
  %v85 = vunpack.c.l.b16 %v33
  %v86 = vunpack.c.l.b16 %v34
  %v87 = vunpack.c.l.b16 %v35
  %v88 = vunpack.c.l.b16 %v36
  %v89 = vunpack.c.l.b16 %v37
  %v90 = vunpack.c.l.b16 %v38
  %v91 = vpack.c.b16 %v76, %v75
  %v92 = vpack.c.b16 %v78, %v77
  %v93 = vpack.c.b16 %v80, %v79
  %v94 = vpack.c.b16 %v82, %v81
  %v95 = vpack.c.b16 %v84, %v83
  %v96 = vpack.c.b16 %v86, %v85
  %v97 = vpack.c.b16 %v88, %v87
  %v98 = vpack.c.b16 %v90, %v89
  %v103 = vunpack.c.l.b16 %v55
  %v104 = vunpack.c.l.b16 %v56
  %v105 = vunpack.c.l.b16 %v57
  %v106 = vunpack.c.l.b16 %v58
  %v107 = vpack.c.b16 %v104, %v103
  %v108 = vpack.c.b16 %v106, %v105
  %vm111 = vcmask 261120
  %v113 = vsel %vm111, %v91, 0
  %v116 = vsel %vm111, %v92, 0
  %v119 = vsel %vm111, %v93, 0
  %v122 = vsel %vm111, %v94, 0
  %v125 = vsel %vm111, %v95, 0
  %v128 = vsel %vm111, %v96, 0
  %v131 = vsel %vm111, %v97, 0
  %v134 = vsel %vm111, %v98, 0
  %136 = vmatprep.subr.bf16.mxu0 0
  %137 = vmatpush1.bf16.msra.mxu0 %v107
  %138 = vmatprep.subr.bf16.mxu0 0
  %139 = vmatpush1.bf16.msra.mxu0 %v108
  %140 = vmatprep.subr.bf16.mxu0 0
  %141 = vmatpush1.bf16.msra.mxu0 0
  %142 = vmatprep.subr.bf16.mxu0 0
  %143 = vmatpush1.bf16.msra.mxu0 0
  %144 = vmatprep.subr.bf16.mxu0 0
  %145 = vmatpush1.bf16.msra.mxu0 0
  %146 = vmatprep.subr.bf16.mxu0 0
  %147 = vmatpush1.bf16.msra.mxu0 0
  %148 = vmatprep.subr.bf16.mxu0 0
  %149 = vmatpush1.bf16.msra.mxu0 0
  %150 = vmatprep.subr.bf16.mxu0 0
  %151 = vmatpush1.bf16.msra.mxu0 0
  %152 = vmatprep.subr.bf16.mxu0 0
  %153 = vmatpush1.bf16.msra.mxu0 0
  %154 = vmatprep.subr.bf16.mxu0 0
  %155 = vmatpush1.bf16.msra.mxu0 0
  %156 = vmatprep.subr.bf16.mxu0 0
  %157 = vmatpush1.bf16.msra.mxu0 0
  %158 = vmatprep.subr.bf16.mxu0 0
  %159 = vmatpush1.bf16.msra.mxu0 0
  %160 = vmatprep.subr.bf16.mxu0 0
  %161 = vmatpush1.bf16.msra.mxu0 0
  %162 = vmatprep.subr.bf16.mxu0 0
  %163 = vmatpush1.bf16.msra.mxu0 0
  %164 = vmatprep.subr.bf16.mxu0 0
  %165 = vmatpush1.bf16.msra.mxu0 0
  %166 = vmatprep.subr.bf16.mxu0 0
  %167 = vmatpush1.bf16.msra.mxu0 0
  %168 = vmatprep.mubr.bf16.mxu0 0
  %169 = vmatmul.mubr.bf16.gmra.mrb[0].mxu0 %v113
  %v170 = vpop.f32.mrb[0].mxu0
  %v171 = vadd.f32 0.0, %v170
  %v172 = vpop.f32.mrb[0].mxu0
  %v173 = vpop.f32.mrb[0].mxu0
  %v174 = vadd.f32 0.0, %v173
  %v175 = vpop.f32.mrb[0].mxu0
  %176 = vmatprep.mubr.bf16.mxu0 0
  %177 = vmatmul.mubr.bf16.gmra.mrb[0].mxu0 %v116
  %v178 = vpop.f32.mrb[0].mxu0
  %v179 = vadd.f32 0.0, %v178
  %v180 = vpop.f32.mrb[0].mxu0
  %v181 = vpop.f32.mrb[0].mxu0
  %v182 = vadd.f32 0.0, %v181
  %v183 = vpop.f32.mrb[0].mxu0
  %184 = vmatprep.mubr.bf16.mxu0 0
  %185 = vmatmul.mubr.bf16.gmra.mrb[0].mxu0 %v119
  %v186 = vpop.f32.mrb[0].mxu0
  %v187 = vadd.f32 0.0, %v186
  %v188 = vpop.f32.mrb[0].mxu0
  %v189 = vpop.f32.mrb[0].mxu0
  %v190 = vadd.f32 0.0, %v189
  %v191 = vpop.f32.mrb[0].mxu0
  %192 = vmatprep.mubr.bf16.mxu0 0
  %193 = vmatmul.mubr.bf16.gmra.mrb[0].mxu0 %v122
  %v194 = vpop.f32.mrb[0].mxu0
  %v195 = vadd.f32 0.0, %v194
  %v196 = vpop.f32.mrb[0].mxu0
  %v197 = vpop.f32.mrb[0].mxu0
  %v198 = vadd.f32 0.0, %v197
  %v199 = vpop.f32.mrb[0].mxu0
  %200 = vmatprep.mubr.bf16.mxu0 0
  %201 = vmatmul.mubr.bf16.gmra.mrb[0].mxu0 %v125
  %v202 = vpop.f32.mrb[0].mxu0
  %v203 = vadd.f32 0.0, %v202
  %v204 = vpop.f32.mrb[0].mxu0
  %v205 = vpop.f32.mrb[0].mxu0
  %v206 = vadd.f32 0.0, %v205
  %v207 = vpop.f32.mrb[0].mxu0
  %208 = vmatprep.mubr.bf16.mxu0 0
  %209 = vmatmul.mubr.bf16.gmra.mrb[0].mxu0 %v128
  %v210 = vpop.f32.mrb[0].mxu0
  %v211 = vadd.f32 0.0, %v210
  %v212 = vpop.f32.mrb[0].mxu0
  %v213 = vpop.f32.mrb[0].mxu0
  %v214 = vadd.f32 0.0, %v213
  %v215 = vpop.f32.mrb[0].mxu0
  %216 = vmatprep.mubr.bf16.mxu0 0
  %217 = vmatmul.mubr.bf16.gmra.mrb[0].mxu0 %v131
  %v218 = vpop.f32.mrb[0].mxu0
  %v219 = vadd.f32 0.0, %v218
  %v220 = vpop.f32.mrb[0].mxu0
  %v221 = vpop.f32.mrb[0].mxu0
  %v222 = vadd.f32 0.0, %v221
  %v223 = vpop.f32.mrb[0].mxu0
  %224 = vmatprep.mubr.bf16.mxu0 0
  %225 = vmatmul.mubr.bf16.gmra.mrb[0].mxu0 %v134
  %v226 = vpop.f32.mrb[0].mxu0
  %v227 = vadd.f32 0.0, %v226
  %v228 = vpop.f32.mrb[0].mxu0
  %v229 = vpop.f32.mrb[0].mxu0
  %v230 = vadd.f32 0.0, %v229
  %v231 = vpop.f32.mrb[0].mxu0
  %232 = vdwg.mxu0
  %v233 = vld [vmem:[%s3] sm:$0xf]
  %v234 = vld [vmem:[%s3 + $0x4] sm:$0xf]
  %v235 = vld [vmem:[%s3 + $0x8] sm:$0xf]
  %v236 = vld [vmem:[%s3 + $0xc] sm:$0xf]
  %v253 = vunpack.c.l.b16 %v39
  %v254 = vunpack.c.l.b16 %v40
  %v255 = vunpack.c.l.b16 %v41
  %v256 = vunpack.c.l.b16 %v42
  %v257 = vunpack.c.l.b16 %v43
  %v258 = vunpack.c.l.b16 %v44
  %v259 = vunpack.c.l.b16 %v45
  %v260 = vunpack.c.l.b16 %v46
  %v261 = vunpack.c.l.b16 %v47
  %v262 = vunpack.c.l.b16 %v48
  %v263 = vunpack.c.l.b16 %v49
  %v264 = vunpack.c.l.b16 %v50
  %v265 = vunpack.c.l.b16 %v51
  %v266 = vunpack.c.l.b16 %v52
  %v267 = vunpack.c.l.b16 %v53
  %v268 = vunpack.c.l.b16 %v54
  %v269 = vpack.c.b16 %v254, %v253
  %v270 = vpack.c.b16 %v256, %v255
  %v271 = vpack.c.b16 %v258, %v257
  %v272 = vpack.c.b16 %v260, %v259
  %v273 = vpack.c.b16 %v262, %v261
  %v274 = vpack.c.b16 %v264, %v263
  %v275 = vpack.c.b16 %v266, %v265
  %v276 = vpack.c.b16 %v268, %v267
  %v281 = vunpack.c.l.b16 %v233
  %v282 = vunpack.c.l.b16 %v234
  %v283 = vunpack.c.l.b16 %v235
  %v284 = vunpack.c.l.b16 %v236
  %v285 = vpack.c.b16 %v282, %v281
  %v286 = vpack.c.b16 %v284, %v283
  %v290 = vsel %vm111, %v269, 0
  %v293 = vsel %vm111, %v270, 0
  %v296 = vsel %vm111, %v271, 0
  %v299 = vsel %vm111, %v272, 0
  %v302 = vsel %vm111, %v273, 0
  %v305 = vsel %vm111, %v274, 0
  %v308 = vsel %vm111, %v275, 0
  %v311 = vsel %vm111, %v276, 0
  %313 = vmatprep.subr.bf16.mxu0 0
  %314 = vmatpush1.bf16.msra.mxu0 %v285
  %315 = vmatprep.subr.bf16.mxu0 0
  %316 = vmatpush1.bf16.msra.mxu0 %v286
  %317 = vmatprep.subr.bf16.mxu0 0
  %318 = vmatpush1.bf16.msra.mxu0 0
  %319 = vmatprep.subr.bf16.mxu0 0
  %320 = vmatpush1.bf16.msra.mxu0 0
  %321 = vmatprep.subr.bf16.mxu0 0
  %322 = vmatpush1.bf16.msra.mxu0 0
  %323 = vmatprep.subr.bf16.mxu0 0
  %324 = vmatpush1.bf16.msra.mxu0 0
  %325 = vmatprep.subr.bf16.mxu0 0
  %326 = vmatpush1.bf16.msra.mxu0 0
  %327 = vmatprep.subr.bf16.mxu0 0
  %328 = vmatpush1.bf16.msra.mxu0 0
  %329 = vmatprep.subr.bf16.mxu0 0
  %330 = vmatpush1.bf16.msra.mxu0 0
  %331 = vmatprep.subr.bf16.mxu0 0
  %332 = vmatpush1.bf16.msra.mxu0 0
  %333 = vmatprep.subr.bf16.mxu0 0
  %334 = vmatpush1.bf16.msra.mxu0 0
  %335 = vmatprep.subr.bf16.mxu0 0
  %336 = vmatpush1.bf16.msra.mxu0 0
  %337 = vmatprep.subr.bf16.mxu0 0
  %338 = vmatpush1.bf16.msra.mxu0 0
  %339 = vmatprep.subr.bf16.mxu0 0
  %340 = vmatpush1.bf16.msra.mxu0 0
  %341 = vmatprep.subr.bf16.mxu0 0
  %342 = vmatpush1.bf16.msra.mxu0 0
  %343 = vmatprep.subr.bf16.mxu0 0
  %344 = vmatpush1.bf16.msra.mxu0 0
  %345 = vmatprep.mubr.bf16.mxu0 0
  %346 = vmatmul.mubr.bf16.gmra.mrb[0].mxu0 %v290
  %v347 = vpop.f32.mrb[0].mxu0
  %v348 = vadd.f32 0.0, %v347
  %v349 = vpop.f32.mrb[0].mxu0
  %v350 = vpop.f32.mrb[0].mxu0
  %v351 = vadd.f32 0.0, %v350
  %v352 = vpop.f32.mrb[0].mxu0
  %353 = vmatprep.mubr.bf16.mxu0 0
  %354 = vmatmul.mubr.bf16.gmra.mrb[0].mxu0 %v293
  %v355 = vpop.f32.mrb[0].mxu0
  %v356 = vadd.f32 0.0, %v355
  %v357 = vpop.f32.mrb[0].mxu0
  %v358 = vpop.f32.mrb[0].mxu0
  %v359 = vadd.f32 0.0, %v358
  %v360 = vpop.f32.mrb[0].mxu0
  %361 = vmatprep.mubr.bf16.mxu0 0
  %362 = vmatmul.mubr.bf16.gmra.mrb[0].mxu0 %v296
  %v363 = vpop.f32.mrb[0].mxu0
  %v364 = vadd.f32 0.0, %v363
  %v365 = vpop.f32.mrb[0].mxu0
  %v366 = vpop.f32.mrb[0].mxu0
  %v367 = vadd.f32 0.0, %v366
  %v368 = vpop.f32.mrb[0].mxu0
  %369 = vmatprep.mubr.bf16.mxu0 0
  %370 = vmatmul.mubr.bf16.gmra.mrb[0].mxu0 %v299
  %v371 = vpop.f32.mrb[0].mxu0
  %v372 = vadd.f32 0.0, %v371
  %v373 = vpop.f32.mrb[0].mxu0
  %v374 = vpop.f32.mrb[0].mxu0
  %v375 = vadd.f32 0.0, %v374
  %v376 = vpop.f32.mrb[0].mxu0
  %377 = vmatprep.mubr.bf16.mxu0 0
  %378 = vmatmul.mubr.bf16.gmra.mrb[0].mxu0 %v302
  %v379 = vpop.f32.mrb[0].mxu0
  %v380 = vadd.f32 0.0, %v379
  %v381 = vpop.f32.mrb[0].mxu0
  %v382 = vpop.f32.mrb[0].mxu0
  %v383 = vadd.f32 0.0, %v382
  %v384 = vpop.f32.mrb[0].mxu0
  %385 = vmatprep.mubr.bf16.mxu0 0
  %386 = vmatmul.mubr.bf16.gmra.mrb[0].mxu0 %v305
  %v387 = vpop.f32.mrb[0].mxu0
  %v388 = vadd.f32 0.0, %v387
  %v389 = vpop.f32.mrb[0].mxu0
  %v390 = vpop.f32.mrb[0].mxu0
  %v391 = vadd.f32 0.0, %v390
  %v392 = vpop.f32.mrb[0].mxu0
  %393 = vmatprep.mubr.bf16.mxu0 0
  %394 = vmatmul.mubr.bf16.gmra.mrb[0].mxu0 %v308
  %v395 = vpop.f32.mrb[0].mxu0
  %v396 = vadd.f32 0.0, %v395
  %v397 = vpop.f32.mrb[0].mxu0
  %v398 = vpop.f32.mrb[0].mxu0
  %v399 = vadd.f32 0.0, %v398
  %v400 = vpop.f32.mrb[0].mxu0
  %401 = vmatprep.mubr.bf16.mxu0 0
  %402 = vmatmul.mubr.bf16.gmra.mrb[0].mxu0 %v311
  %v403 = vpop.f32.mrb[0].mxu0
  %v404 = vadd.f32 0.0, %v403
  %v405 = vpop.f32.mrb[0].mxu0
  %v406 = vpop.f32.mrb[0].mxu0
  %v407 = vadd.f32 0.0, %v406
  %v408 = vpop.f32.mrb[0].mxu0
  %409 = vdwg.mxu0
  %v410 = vadd.bf16 %v23, %v39
  %v411 = vadd.bf16 %v24, %v40
  %v412 = vadd.bf16 %v25, %v41
  %v413 = vadd.bf16 %v26, %v42
  %v414 = vadd.bf16 %v27, %v43
  %v415 = vadd.bf16 %v28, %v44
  %v416 = vadd.bf16 %v29, %v45
  %v417 = vadd.bf16 %v30, %v46
  %v418 = vadd.bf16 %v31, %v47
  %v419 = vadd.bf16 %v32, %v48
  %v420 = vadd.bf16 %v33, %v49
  %v421 = vadd.bf16 %v34, %v50
  %v422 = vadd.bf16 %v35, %v51
  %v423 = vadd.bf16 %v36, %v52
  %v424 = vadd.bf16 %v37, %v53
  %v425 = vadd.bf16 %v38, %v54
  %v426 = vld [vmem:[%s4] sm:$0xf]
  %v427 = vld [vmem:[%s4 + $0x4] sm:$0xf]
  %v428 = vld [vmem:[%s4 + $0x8] sm:$0xf]
  %v429 = vld [vmem:[%s4 + $0xc] sm:$0xf]
  %v446 = vunpack.c.l.b16 %v410
  %v447 = vunpack.c.l.b16 %v411
  %v448 = vunpack.c.l.b16 %v412
  %v449 = vunpack.c.l.b16 %v413
  %v450 = vunpack.c.l.b16 %v414
  %v451 = vunpack.c.l.b16 %v415
  %v452 = vunpack.c.l.b16 %v416
  %v453 = vunpack.c.l.b16 %v417
  %v454 = vunpack.c.l.b16 %v418
  %v455 = vunpack.c.l.b16 %v419
  %v456 = vunpack.c.l.b16 %v420
  %v457 = vunpack.c.l.b16 %v421
  %v458 = vunpack.c.l.b16 %v422
  %v459 = vunpack.c.l.b16 %v423
  %v460 = vunpack.c.l.b16 %v424
  %v461 = vunpack.c.l.b16 %v425
  %v462 = vpack.c.b16 %v447, %v446
  %v463 = vpack.c.b16 %v449, %v448
  %v464 = vpack.c.b16 %v451, %v450
  %v465 = vpack.c.b16 %v453, %v452
  %v466 = vpack.c.b16 %v455, %v454
  %v467 = vpack.c.b16 %v457, %v456
  %v468 = vpack.c.b16 %v459, %v458
  %v469 = vpack.c.b16 %v461, %v460
  %v474 = vunpack.c.l.b16 %v426
  %v475 = vunpack.c.l.b16 %v427
  %v476 = vunpack.c.l.b16 %v428
  %v477 = vunpack.c.l.b16 %v429
  %v478 = vpack.c.b16 %v475, %v474
  %v479 = vpack.c.b16 %v477, %v476
  %v483 = vsel %vm111, %v462, 0
  %v486 = vsel %vm111, %v463, 0
  %v489 = vsel %vm111, %v464, 0
  %v492 = vsel %vm111, %v465, 0
  %v495 = vsel %vm111, %v466, 0
  %v498 = vsel %vm111, %v467, 0
  %v501 = vsel %vm111, %v468, 0
  %v504 = vsel %vm111, %v469, 0
  %506 = vmatprep.subr.bf16.mxu0 0
  %507 = vmatpush1.bf16.msra.mxu0 %v478
  %508 = vmatprep.subr.bf16.mxu0 0
  %509 = vmatpush1.bf16.msra.mxu0 %v479
  %510 = vmatprep.subr.bf16.mxu0 0
  %511 = vmatpush1.bf16.msra.mxu0 0
  %512 = vmatprep.subr.bf16.mxu0 0
  %513 = vmatpush1.bf16.msra.mxu0 0
  %514 = vmatprep.subr.bf16.mxu0 0
  %515 = vmatpush1.bf16.msra.mxu0 0
  %516 = vmatprep.subr.bf16.mxu0 0
  %517 = vmatpush1.bf16.msra.mxu0 0
  %518 = vmatprep.subr.bf16.mxu0 0
  %519 = vmatpush1.bf16.msra.mxu0 0
  %520 = vmatprep.subr.bf16.mxu0 0
  %521 = vmatpush1.bf16.msra.mxu0 0
  %522 = vmatprep.subr.bf16.mxu0 0
  %523 = vmatpush1.bf16.msra.mxu0 0
  %524 = vmatprep.subr.bf16.mxu0 0
  %525 = vmatpush1.bf16.msra.mxu0 0
  %526 = vmatprep.subr.bf16.mxu0 0
  %527 = vmatpush1.bf16.msra.mxu0 0
  %528 = vmatprep.subr.bf16.mxu0 0
  %529 = vmatpush1.bf16.msra.mxu0 0
  %530 = vmatprep.subr.bf16.mxu0 0
  %531 = vmatpush1.bf16.msra.mxu0 0
  %532 = vmatprep.subr.bf16.mxu0 0
  %533 = vmatpush1.bf16.msra.mxu0 0
  %534 = vmatprep.subr.bf16.mxu0 0
  %535 = vmatpush1.bf16.msra.mxu0 0
  %536 = vmatprep.subr.bf16.mxu0 0
  %537 = vmatpush1.bf16.msra.mxu0 0
  %538 = vmatprep.mubr.bf16.mxu0 0
  %539 = vmatmul.mubr.bf16.gmra.mrb[0].mxu0 %v483
  %v540 = vpop.f32.mrb[0].mxu0
  %v541 = vadd.f32 0.0, %v540
  %v542 = vpop.f32.mrb[0].mxu0
  %v543 = vpop.f32.mrb[0].mxu0
  %v544 = vadd.f32 0.0, %v543
  %v545 = vpop.f32.mrb[0].mxu0
  %546 = vmatprep.mubr.bf16.mxu0 0
  %547 = vmatmul.mubr.bf16.gmra.mrb[0].mxu0 %v486
  %v548 = vpop.f32.mrb[0].mxu0
  %v549 = vadd.f32 0.0, %v548
  %v550 = vpop.f32.mrb[0].mxu0
  %v551 = vpop.f32.mrb[0].mxu0
  %v552 = vadd.f32 0.0, %v551
  %v553 = vpop.f32.mrb[0].mxu0
  %554 = vmatprep.mubr.bf16.mxu0 0
  %555 = vmatmul.mubr.bf16.gmra.mrb[0].mxu0 %v489
  %v556 = vpop.f32.mrb[0].mxu0
  %v557 = vadd.f32 0.0, %v556
  %v558 = vpop.f32.mrb[0].mxu0
  %v559 = vpop.f32.mrb[0].mxu0
  %v560 = vadd.f32 0.0, %v559
  %v561 = vpop.f32.mrb[0].mxu0
  %562 = vmatprep.mubr.bf16.mxu0 0
  %563 = vmatmul.mubr.bf16.gmra.mrb[0].mxu0 %v492
  %v564 = vpop.f32.mrb[0].mxu0
  %v565 = vadd.f32 0.0, %v564
  %v566 = vpop.f32.mrb[0].mxu0
  %v567 = vpop.f32.mrb[0].mxu0
  %v568 = vadd.f32 0.0, %v567
  %v569 = vpop.f32.mrb[0].mxu0
  %570 = vmatprep.mubr.bf16.mxu0 0
  %571 = vmatmul.mubr.bf16.gmra.mrb[0].mxu0 %v495
  %v572 = vpop.f32.mrb[0].mxu0
  %v573 = vadd.f32 0.0, %v572
  %v574 = vpop.f32.mrb[0].mxu0
  %v575 = vpop.f32.mrb[0].mxu0
  %v576 = vadd.f32 0.0, %v575
  %v577 = vpop.f32.mrb[0].mxu0
  %578 = vmatprep.mubr.bf16.mxu0 0
  %579 = vmatmul.mubr.bf16.gmra.mrb[0].mxu0 %v498
  %v580 = vpop.f32.mrb[0].mxu0
  %v581 = vadd.f32 0.0, %v580
  %v582 = vpop.f32.mrb[0].mxu0
  %v583 = vpop.f32.mrb[0].mxu0
  %v584 = vadd.f32 0.0, %v583
  %v585 = vpop.f32.mrb[0].mxu0
  %586 = vmatprep.mubr.bf16.mxu0 0
  %587 = vmatmul.mubr.bf16.gmra.mrb[0].mxu0 %v501
  %v588 = vpop.f32.mrb[0].mxu0
  %v589 = vadd.f32 0.0, %v588
  %v590 = vpop.f32.mrb[0].mxu0
  %v591 = vpop.f32.mrb[0].mxu0
  %v592 = vadd.f32 0.0, %v591
  %v593 = vpop.f32.mrb[0].mxu0
  %594 = vmatprep.mubr.bf16.mxu0 0
  %595 = vmatmul.mubr.bf16.gmra.mrb[0].mxu0 %v504
  %v596 = vpop.f32.mrb[0].mxu0
  %v597 = vadd.f32 0.0, %v596
  %v598 = vpop.f32.mrb[0].mxu0
  %v599 = vpop.f32.mrb[0].mxu0
  %v600 = vadd.f32 0.0, %v599
  %v601 = vpop.f32.mrb[0].mxu0
  %602 = vdwg.mxu0
  %v603 = vsub.f32 %v171, %v348
  %v604 = vsub.f32 %v174, %v351
  %v605 = vsub.f32 %v179, %v356
  %v606 = vsub.f32 %v182, %v359
  %v607 = vsub.f32 %v187, %v364
  %v608 = vsub.f32 %v190, %v367
  %v609 = vsub.f32 %v195, %v372
  %v610 = vsub.f32 %v198, %v375
  %v611 = vsub.f32 %v203, %v380
  %v612 = vsub.f32 %v206, %v383
  %v613 = vsub.f32 %v211, %v388
  %v614 = vsub.f32 %v214, %v391
  %v615 = vsub.f32 %v219, %v396
  %v616 = vsub.f32 %v222, %v399
  %v617 = vsub.f32 %v227, %v404
  %v618 = vsub.f32 %v230, %v407
  %v619 = vsub.f32 %v541, %v171
  %v620 = vsub.f32 %v544, %v174
  %v621 = vsub.f32 %v549, %v179
  %v622 = vsub.f32 %v552, %v182
  %v623 = vsub.f32 %v557, %v187
  %v624 = vsub.f32 %v560, %v190
  %v625 = vsub.f32 %v565, %v195
  %v626 = vsub.f32 %v568, %v198
  %v627 = vsub.f32 %v573, %v203
  %v628 = vsub.f32 %v576, %v206
  %v629 = vsub.f32 %v581, %v211
  %v630 = vsub.f32 %v584, %v214
  %v631 = vsub.f32 %v589, %v219
  %v632 = vsub.f32 %v592, %v222
  %v633 = vsub.f32 %v597, %v227
  %v634 = vsub.f32 %v600, %v230
  %v635 = vsub.f32 %v619, %v348
  %v636 = vsub.f32 %v620, %v351
  %v637 = vsub.f32 %v621, %v356
  %v638 = vsub.f32 %v622, %v359
  %v639 = vsub.f32 %v623, %v364
  %v640 = vsub.f32 %v624, %v367
  %v641 = vsub.f32 %v625, %v372
  %v642 = vsub.f32 %v626, %v375
  %v643 = vsub.f32 %v627, %v380
  %v644 = vsub.f32 %v628, %v383
  %v645 = vsub.f32 %v629, %v388
  %v646 = vsub.f32 %v630, %v391
  %v647 = vsub.f32 %v631, %v396
  %v648 = vsub.f32 %v632, %v399
  %v649 = vsub.f32 %v633, %v404
  %v650 = vsub.f32 %v634, %v407
  %v651 = vpack.c.bf16 %v604, %v603
  %v652 = vpack.c.bf16 %v606, %v605
  %v653 = vpack.c.bf16 %v608, %v607
  %v654 = vpack.c.bf16 %v610, %v609
  %v655 = vpack.c.bf16 %v612, %v611
  %v656 = vpack.c.bf16 %v614, %v613
  %v657 = vpack.c.bf16 %v616, %v615
  %v658 = vpack.c.bf16 %v618, %v617
  %v667 = vunpack.c.l.b16 %v651
  %v668 = vunpack.c.h.b16 %v651
  %v669 = vunpack.c.l.b16 %v652
  %v670 = vunpack.c.h.b16 %v652
  %v671 = vunpack.c.l.b16 %v653
  %v672 = vunpack.c.h.b16 %v653
  %v673 = vunpack.c.l.b16 %v654
  %v674 = vunpack.c.h.b16 %v654
  %v675 = vunpack.c.l.b16 %v655
  %v676 = vunpack.c.h.b16 %v655
  %v677 = vunpack.c.l.b16 %v656
  %v678 = vunpack.c.h.b16 %v656
  %v679 = vunpack.c.l.b16 %v657
  %v680 = vunpack.c.h.b16 %v657
  %v681 = vunpack.c.l.b16 %v658
  %v682 = vunpack.c.h.b16 %v658
  %v683 = vpack.c.b16 %v667, %v667
  %v684 = vpack.c.b16 %v668, %v668
  %v685 = vpack.c.b16 %v669, %v669
  %v686 = vpack.c.b16 %v670, %v670
  %v687 = vpack.c.b16 %v671, %v671
  %v688 = vpack.c.b16 %v672, %v672
  %v689 = vpack.c.b16 %v673, %v673
  %v690 = vpack.c.b16 %v674, %v674
  %v691 = vpack.c.b16 %v675, %v675
  %v692 = vpack.c.b16 %v676, %v676
  %v693 = vpack.c.b16 %v677, %v677
  %v694 = vpack.c.b16 %v678, %v678
  %v695 = vpack.c.b16 %v679, %v679
  %v696 = vpack.c.b16 %v680, %v680
  %v697 = vpack.c.b16 %v681, %v681
  %v698 = vpack.c.b16 %v682, %v682
  %vm715 = vcmask 60416
  %716 = vst.msk [vmem:[%s5] sm:$0xf] %vm715, %v683
  %717 = vst.msk [vmem:[%s5 + $0x4] sm:$0xf] %vm715, %v684
  %718 = vst.msk [vmem:[%s5 + $0x8] sm:$0xf] %vm715, %v685
  %719 = vst.msk [vmem:[%s5 + $0xc] sm:$0xf] %vm715, %v686
  %720 = vst.msk [vmem:[%s5 + $0x10] sm:$0xf] %vm715, %v687
  %721 = vst.msk [vmem:[%s5 + $0x14] sm:$0xf] %vm715, %v688
  %722 = vst.msk [vmem:[%s5 + $0x18] sm:$0xf] %vm715, %v689
  %723 = vst.msk [vmem:[%s5 + $0x1c] sm:$0xf] %vm715, %v690
  %724 = vst.msk [vmem:[%s5 + $0x20] sm:$0xf] %vm715, %v691
  %725 = vst.msk [vmem:[%s5 + $0x24] sm:$0xf] %vm715, %v692
  %726 = vst.msk [vmem:[%s5 + $0x28] sm:$0xf] %vm715, %v693
  %727 = vst.msk [vmem:[%s5 + $0x2c] sm:$0xf] %vm715, %v694
  %728 = vst.msk [vmem:[%s5 + $0x30] sm:$0xf] %vm715, %v695
  %729 = vst.msk [vmem:[%s5 + $0x34] sm:$0xf] %vm715, %v696
  %730 = vst.msk [vmem:[%s5 + $0x38] sm:$0xf] %vm715, %v697
  %731 = vst.msk [vmem:[%s5 + $0x3c] sm:$0xf] %vm715, %v698
  %v732 = vpack.c.bf16 %v636, %v635
  %v733 = vpack.c.bf16 %v638, %v637
  %v734 = vpack.c.bf16 %v640, %v639
  %v735 = vpack.c.bf16 %v642, %v641
  %v736 = vpack.c.bf16 %v644, %v643
  %v737 = vpack.c.bf16 %v646, %v645
  %v738 = vpack.c.bf16 %v648, %v647
  %v739 = vpack.c.bf16 %v650, %v649
  %v748 = vunpack.c.l.b16 %v732
  %v749 = vunpack.c.h.b16 %v732
  %v750 = vunpack.c.l.b16 %v733
  %v751 = vunpack.c.h.b16 %v733
  %v752 = vunpack.c.l.b16 %v734
  %v753 = vunpack.c.h.b16 %v734
  %v754 = vunpack.c.l.b16 %v735
  %v755 = vunpack.c.h.b16 %v735
  %v756 = vunpack.c.l.b16 %v736
  %v757 = vunpack.c.h.b16 %v736
  %v758 = vunpack.c.l.b16 %v737
  %v759 = vunpack.c.h.b16 %v737
  %v760 = vunpack.c.l.b16 %v738
  %v761 = vunpack.c.h.b16 %v738
  %v762 = vunpack.c.l.b16 %v739
  %v763 = vunpack.c.h.b16 %v739
  %v764 = vpack.c.b16 %v748, %v748
  %v765 = vpack.c.b16 %v749, %v749
  %v766 = vpack.c.b16 %v750, %v750
  %v767 = vpack.c.b16 %v751, %v751
  %v768 = vpack.c.b16 %v752, %v752
  %v769 = vpack.c.b16 %v753, %v753
  %v770 = vpack.c.b16 %v754, %v754
  %v771 = vpack.c.b16 %v755, %v755
  %v772 = vpack.c.b16 %v756, %v756
  %v773 = vpack.c.b16 %v757, %v757
  %v774 = vpack.c.b16 %v758, %v758
  %v775 = vpack.c.b16 %v759, %v759
  %v776 = vpack.c.b16 %v760, %v760
  %v777 = vpack.c.b16 %v761, %v761
  %v778 = vpack.c.b16 %v762, %v762
  %v779 = vpack.c.b16 %v763, %v763
  %780 = vrot.lane.b32.xlu0 %v764, 8
  %v781 = vpop.permute.xlu0 %780
  %782 = vrot.lane.b32.xlu0 %v765, 8
  %v783 = vpop.permute.xlu0 %782
  %784 = vrot.lane.b32.xlu0 %v766, 8
  %v785 = vpop.permute.xlu0 %784
  %786 = vrot.lane.b32.xlu0 %v767, 8
  %v787 = vpop.permute.xlu0 %786
  %788 = vrot.lane.b32.xlu0 %v768, 8
  %v789 = vpop.permute.xlu0 %788
  %790 = vrot.lane.b32.xlu0 %v769, 8
  %v791 = vpop.permute.xlu0 %790
  %792 = vrot.lane.b32.xlu0 %v770, 8
  %v793 = vpop.permute.xlu0 %792
  %794 = vrot.lane.b32.xlu0 %v771, 8
  %v795 = vpop.permute.xlu0 %794
  %796 = vrot.lane.b32.xlu0 %v772, 8
  %v797 = vpop.permute.xlu0 %796
  %798 = vrot.lane.b32.xlu0 %v773, 8
  %v799 = vpop.permute.xlu0 %798
  %800 = vrot.lane.b32.xlu0 %v774, 8
  %v801 = vpop.permute.xlu0 %800
  %802 = vrot.lane.b32.xlu0 %v775, 8
  %v803 = vpop.permute.xlu0 %802
  %804 = vrot.lane.b32.xlu0 %v776, 8
  %v805 = vpop.permute.xlu0 %804
  %806 = vrot.lane.b32.xlu0 %v777, 8
  %v807 = vpop.permute.xlu0 %806
  %808 = vrot.lane.b32.xlu0 %v778, 8
  %v809 = vpop.permute.xlu0 %808
  %810 = vrot.lane.b32.xlu0 %v779, 8
  %v811 = vpop.permute.xlu0 %810
  %vm828 = vcmask 126016
  %829 = vst.msk [vmem:[%s5] sm:$0xf] %vm828, %v781
  %830 = vst.msk [vmem:[%s5 + $0x4] sm:$0xf] %vm828, %v783
  %831 = vst.msk [vmem:[%s5 + $0x8] sm:$0xf] %vm828, %v785
  %832 = vst.msk [vmem:[%s5 + $0xc] sm:$0xf] %vm828, %v787
  %833 = vst.msk [vmem:[%s5 + $0x10] sm:$0xf] %vm828, %v789
  %834 = vst.msk [vmem:[%s5 + $0x14] sm:$0xf] %vm828, %v791
  %835 = vst.msk [vmem:[%s5 + $0x18] sm:$0xf] %vm828, %v793
  %836 = vst.msk [vmem:[%s5 + $0x1c] sm:$0xf] %vm828, %v795
  %837 = vst.msk [vmem:[%s5 + $0x20] sm:$0xf] %vm828, %v797
  %838 = vst.msk [vmem:[%s5 + $0x24] sm:$0xf] %vm828, %v799
  %839 = vst.msk [vmem:[%s5 + $0x28] sm:$0xf] %vm828, %v801
  %840 = vst.msk [vmem:[%s5 + $0x2c] sm:$0xf] %vm828, %v803
  %841 = vst.msk [vmem:[%s5 + $0x30] sm:$0xf] %vm828, %v805
  %842 = vst.msk [vmem:[%s5 + $0x34] sm:$0xf] %vm828, %v807
  %843 = vst.msk [vmem:[%s5 + $0x38] sm:$0xf] %vm828, %v809
  %844 = vst.msk [vmem:[%s5 + $0x3c] sm:$0xf] %vm828, %v811
  %vm845 = vcmask 64512
  %v846 = vsel %vm845, %v603, 0.0
  %v847 = vsel %vm845, %v604, 0.0
  %v848 = vadd.f32 %v846, %v847
  %v849 = vsel %vm845, %v605, 0.0
  %v850 = vadd.f32 %v848, %v849
  %v851 = vsel %vm845, %v606, 0.0
  %v852 = vadd.f32 %v850, %v851
  %v853 = vsel %vm845, %v607, 0.0
  %v854 = vadd.f32 %v852, %v853
  %v855 = vsel %vm845, %v608, 0.0
  %v856 = vadd.f32 %v854, %v855
  %v857 = vsel %vm845, %v609, 0.0
  %v858 = vadd.f32 %v856, %v857
  %v859 = vsel %vm845, %v610, 0.0
  %v860 = vadd.f32 %v858, %v859
  %v861 = vsel %vm845, %v611, 0.0
  %v862 = vadd.f32 %v860, %v861
  %v863 = vsel %vm845, %v612, 0.0
  %v864 = vadd.f32 %v862, %v863
  %v865 = vsel %vm845, %v613, 0.0
  %v866 = vadd.f32 %v864, %v865
  %v867 = vsel %vm845, %v614, 0.0
  %v868 = vadd.f32 %v866, %v867
  %v869 = vsel %vm845, %v615, 0.0
  %v870 = vadd.f32 %v868, %v869
  %v871 = vsel %vm845, %v616, 0.0
  %v872 = vadd.f32 %v870, %v871
  %v873 = vsel %vm845, %v617, 0.0
  %v874 = vadd.f32 %v872, %v873
  %v875 = vsel %vm845, %v618, 0.0
  %v876 = vadd.f32 %v874, %v875
  %v877 = vrot.slane %v876, 4
  %v878 = vadd.f32 %v876, %v877
  %v879 = vrot.slane %v878, 2
  %v880 = vadd.f32 %v878, %v879
  %v881 = vrot.slane %v880, 1
  %v882 = vadd.f32 %v880, %v881
  %v883 = vmul.f32 %v603, %v603
  %v884 = vmul.f32 %v604, %v604
  %v885 = vmul.f32 %v605, %v605
  %v886 = vmul.f32 %v606, %v606
  %v887 = vmul.f32 %v607, %v607
  %v888 = vmul.f32 %v608, %v608
  %v889 = vmul.f32 %v609, %v609
  %v890 = vmul.f32 %v610, %v610
  %v891 = vmul.f32 %v611, %v611
  %v892 = vmul.f32 %v612, %v612
  %v893 = vmul.f32 %v613, %v613
  %v894 = vmul.f32 %v614, %v614
  %v895 = vmul.f32 %v615, %v615
  %v896 = vmul.f32 %v616, %v616
  %v897 = vmul.f32 %v617, %v617
  %v898 = vmul.f32 %v618, %v618
  %v899 = vsel %vm845, %v883, 0.0
  %v900 = vsel %vm845, %v884, 0.0
  %v901 = vadd.f32 %v899, %v900
  %v902 = vsel %vm845, %v885, 0.0
  %v903 = vadd.f32 %v901, %v902
  %v904 = vsel %vm845, %v886, 0.0
  %v905 = vadd.f32 %v903, %v904
  %v906 = vsel %vm845, %v887, 0.0
  %v907 = vadd.f32 %v905, %v906
  %v908 = vsel %vm845, %v888, 0.0
  %v909 = vadd.f32 %v907, %v908
  %v910 = vsel %vm845, %v889, 0.0
  %v911 = vadd.f32 %v909, %v910
  %v912 = vsel %vm845, %v890, 0.0
  %v913 = vadd.f32 %v911, %v912
  %v914 = vsel %vm845, %v891, 0.0
  %v915 = vadd.f32 %v913, %v914
  %v916 = vsel %vm845, %v892, 0.0
  %v917 = vadd.f32 %v915, %v916
  %v918 = vsel %vm845, %v893, 0.0
  %v919 = vadd.f32 %v917, %v918
  %v920 = vsel %vm845, %v894, 0.0
  %v921 = vadd.f32 %v919, %v920
  %v922 = vsel %vm845, %v895, 0.0
  %v923 = vadd.f32 %v921, %v922
  %v924 = vsel %vm845, %v896, 0.0
  %v925 = vadd.f32 %v923, %v924
  %v926 = vsel %vm845, %v897, 0.0
  %v927 = vadd.f32 %v925, %v926
  %v928 = vsel %vm845, %v898, 0.0
  %v929 = vadd.f32 %v927, %v928
  %v930 = vrot.slane %v929, 4
  %v931 = vadd.f32 %v929, %v930
  %v932 = vrot.slane %v931, 2
  %v933 = vadd.f32 %v931, %v932
  %v934 = vrot.slane %v933, 1
  %v935 = vadd.f32 %v933, %v934
  %v936 = vsel %vm845, %v635, 0.0
  %v937 = vsel %vm845, %v636, 0.0
  %v938 = vadd.f32 %v936, %v937
  %v939 = vsel %vm845, %v637, 0.0
  %v940 = vadd.f32 %v938, %v939
  %v941 = vsel %vm845, %v638, 0.0
  %v942 = vadd.f32 %v940, %v941
  %v943 = vsel %vm845, %v639, 0.0
  %v944 = vadd.f32 %v942, %v943
  %v945 = vsel %vm845, %v640, 0.0
  %v946 = vadd.f32 %v944, %v945
  %v947 = vsel %vm845, %v641, 0.0
  %v948 = vadd.f32 %v946, %v947
  %v949 = vsel %vm845, %v642, 0.0
  %v950 = vadd.f32 %v948, %v949
  %v951 = vsel %vm845, %v643, 0.0
  %v952 = vadd.f32 %v950, %v951
  %v953 = vsel %vm845, %v644, 0.0
  %v954 = vadd.f32 %v952, %v953
  %v955 = vsel %vm845, %v645, 0.0
  %v956 = vadd.f32 %v954, %v955
  %v957 = vsel %vm845, %v646, 0.0
  %v958 = vadd.f32 %v956, %v957
  %v959 = vsel %vm845, %v647, 0.0
  %v960 = vadd.f32 %v958, %v959
  %v961 = vsel %vm845, %v648, 0.0
  %v962 = vadd.f32 %v960, %v961
  %v963 = vsel %vm845, %v649, 0.0
  %v964 = vadd.f32 %v962, %v963
  %v965 = vsel %vm845, %v650, 0.0
  %v966 = vadd.f32 %v964, %v965
  %v967 = vrot.slane %v966, 4
  %v968 = vadd.f32 %v966, %v967
  %v969 = vrot.slane %v968, 2
  %v970 = vadd.f32 %v968, %v969
  %v971 = vrot.slane %v970, 1
  %v972 = vadd.f32 %v970, %v971
  %v973 = vmul.f32 %v635, %v635
  %v974 = vmul.f32 %v636, %v636
  %v975 = vmul.f32 %v637, %v637
  %v976 = vmul.f32 %v638, %v638
  %v977 = vmul.f32 %v639, %v639
  %v978 = vmul.f32 %v640, %v640
  %v979 = vmul.f32 %v641, %v641
  %v980 = vmul.f32 %v642, %v642
  %v981 = vmul.f32 %v643, %v643
  %v982 = vmul.f32 %v644, %v644
  %v983 = vmul.f32 %v645, %v645
  %v984 = vmul.f32 %v646, %v646
  %v985 = vmul.f32 %v647, %v647
  %v986 = vmul.f32 %v648, %v648
  %v987 = vmul.f32 %v649, %v649
  %v988 = vmul.f32 %v650, %v650
  %v989 = vsel %vm845, %v973, 0.0
  %v990 = vsel %vm845, %v974, 0.0
  %v991 = vadd.f32 %v989, %v990
  %v992 = vsel %vm845, %v975, 0.0
  %v993 = vadd.f32 %v991, %v992
  %v994 = vsel %vm845, %v976, 0.0
  %v995 = vadd.f32 %v993, %v994
  %v996 = vsel %vm845, %v977, 0.0
  %v997 = vadd.f32 %v995, %v996
  %v998 = vsel %vm845, %v978, 0.0
  %v999 = vadd.f32 %v997, %v998
  %v1000 = vsel %vm845, %v979, 0.0
  %v1001 = vadd.f32 %v999, %v1000
  %v1002 = vsel %vm845, %v980, 0.0
  %v1003 = vadd.f32 %v1001, %v1002
  %v1004 = vsel %vm845, %v981, 0.0
  %v1005 = vadd.f32 %v1003, %v1004
  %v1006 = vsel %vm845, %v982, 0.0
  %v1007 = vadd.f32 %v1005, %v1006
  %v1008 = vsel %vm845, %v983, 0.0
  %v1009 = vadd.f32 %v1007, %v1008
  %v1010 = vsel %vm845, %v984, 0.0
  %v1011 = vadd.f32 %v1009, %v1010
  %v1012 = vsel %vm845, %v985, 0.0
  %v1013 = vadd.f32 %v1011, %v1012
  %v1014 = vsel %vm845, %v986, 0.0
  %v1015 = vadd.f32 %v1013, %v1014
  %v1016 = vsel %vm845, %v987, 0.0
  %v1017 = vadd.f32 %v1015, %v1016
  %v1018 = vsel %vm845, %v988, 0.0
  %v1019 = vadd.f32 %v1017, %v1018
  %v1020 = vrot.slane %v1019, 4
  %v1021 = vadd.f32 %v1019, %v1020
  %v1022 = vrot.slane %v1021, 2
  %v1023 = vadd.f32 %v1021, %v1022
  %v1024 = vrot.slane %v1023, 1
  %v1025 = vadd.f32 %v1023, %v1024
  %vm1026 = vcmask 1040384
  %v1027 = vsel %vm1026, %v882, %v935
  %vm1028 = vcmask 1041408
  %v1029 = vsel %vm1028, %v1027, %v972
  %vm1030 = vcmask 1042432
  %v1031 = vsel %vm1030, %v1029, %v1025
  %1032 = vst.msk [vmem:[%s6] sm:$0xf] %vm715, %v1031
  // Predicated region
  $region22: #{bottleneck_forward.4} parent=0 // pred_check
    _
  $region23: #{bottleneck_forward.4} parent=0 // pred_check_branch
    %1034 = sbr.rel (0) target = $region25
  $region24: #{bottleneck_forward.4} parent=0 // pred_region
    _
  $region25: #{bottleneck_forward.4} parent=0 // pred_fallthru
    _
  // Predicated region
  $region26: #{bottleneck_forward.4} parent=0 // pred_check
    _
  $region27: #{bottleneck_forward.4} parent=0 // pred_check_branch
    %1036 = sbr.rel (0) target = $region29
  $region28: #{bottleneck_forward.4} parent=0 // pred_region
    _
  $region29: #{bottleneck_forward.4} parent=0 // pred_fallthru
    _
  // Predicated region
  $region30: #{bottleneck_forward.4} parent=0 // pred_check
    _
  $region31: #{bottleneck_forward.4} parent=0 // pred_check_branch
    %1038 = sbr.rel (0) target = $region33
  $region32: #{bottleneck_forward.4} parent=0 // pred_region
    _
  $region33: #{bottleneck_forward.4} parent=0 // pred_fallthru
    _
  // Predicated region
  $region34: #{bottleneck_forward.4} parent=0 // pred_check
    _
  $region35: #{bottleneck_forward.4} parent=0 // pred_check_branch
    %1040 = sbr.rel (0) target = $region37
  $region36: #{bottleneck_forward.4} parent=0 // pred_region
    _
  $region37: #{bottleneck_forward.4} parent=0 // pred_fallthru
    _

// kernel: bottleneck_forward.6
$region0: #{bottleneck_forward.6}
  #allocation0 [shape = 'u32[]', space=smem, size = 0x4, offset = 0x4, fixed_abs, tag = 'smem constant byte address 0x4 - core index']
  #allocation1 [shape = 'u32[144,128]{1,0:T(1,128)}', space=vmem, size = 0x12000, scoped, tag = 'internal scratch']
  %s0 = inlined_call_operand.vmem [shape: bf16[128,16], index: 0, kind: input, shape index: {}]
  %s1 = inlined_call_operand.vmem [shape: f32[6,8], index: 1, kind: input, shape index: {}]
  %s2 = inlined_call_operand.vmem [shape: bf16[8,32], index: 2, kind: input, shape index: {}]
  %s3 = inlined_call_operand.vmem [shape: bf16[8,32], index: 3, kind: input, shape index: {}]
  %s4 = inlined_call_operand.vmem [shape: bf16[8,32], index: 4, kind: input, shape index: {}]
  %s5 = inlined_call_operand.vmem [shape: bf16[128,64], index: 5, kind: output, shape index: {0}]
  %s6 = inlined_call_operand.vmem [shape: f32[1,4,32], index: 6, kind: output, shape index: {1}]
  %7 = xla_tuple %s5, %s6
  %s8 = sld [smem:[#allocation0]]
  $region38: #{bottleneck_forward.6} parent=0
    _
  %s10 = ssub.s32 1, %s8
  %s11 = scalar_select 0, %s10, %s8
  // Predicated region
  $region2: #{bottleneck_forward.6} parent=0 // pred_check
    _
  $region3: #{bottleneck_forward.6} parent=0 // pred_check_branch
    %13 = sbr.rel (0) target = $region5
  $region4: #{bottleneck_forward.6} parent=0 // pred_region
    _
  $region5: #{bottleneck_forward.6} parent=0 // pred_fallthru
    _
  // Predicated region
  $region6: #{bottleneck_forward.6} parent=0 // pred_check
    _
  $region7: #{bottleneck_forward.6} parent=0 // pred_check_branch
    %15 = sbr.rel (0) target = $region9
  $region8: #{bottleneck_forward.6} parent=0 // pred_region
    _
  $region9: #{bottleneck_forward.6} parent=0 // pred_fallthru
    _
  // Predicated region
  $region10: #{bottleneck_forward.6} parent=0 // pred_check
    _
  $region11: #{bottleneck_forward.6} parent=0 // pred_check_branch
    %17 = sbr.rel (0) target = $region13
  $region12: #{bottleneck_forward.6} parent=0 // pred_region
    _
  $region13: #{bottleneck_forward.6} parent=0 // pred_fallthru
    _
  // Predicated region
  $region14: #{bottleneck_forward.6} parent=0 // pred_check
    _
  $region15: #{bottleneck_forward.6} parent=0 // pred_check_branch
    %19 = sbr.rel (0) target = $region17
  $region16: #{bottleneck_forward.6} parent=0 // pred_region
    _
  $region17: #{bottleneck_forward.6} parent=0 // pred_fallthru
    _
  // Predicated region
  $region18: #{bottleneck_forward.6} parent=0 // pred_check
    _
  $region19: #{bottleneck_forward.6} parent=0 // pred_check_branch
    %21 = sbr.rel (0) target = $region21
  $region20: #{bottleneck_forward.6} parent=0 // pred_region
    _
  $region21: #{bottleneck_forward.6} parent=0 // pred_fallthru
    _
  %v23 = vld [vmem:[%s0] sm:$0xf]
  %v24 = vld [vmem:[%s0 + $0x4] sm:$0xf]
  %v25 = vld [vmem:[%s0 + $0x8] sm:$0xf]
  %v26 = vld [vmem:[%s0 + $0xc] sm:$0xf]
  %v27 = vld [vmem:[%s0 + $0x10] sm:$0xf]
  %v28 = vld [vmem:[%s0 + $0x14] sm:$0xf]
  %v29 = vld [vmem:[%s0 + $0x18] sm:$0xf]
  %v30 = vld [vmem:[%s0 + $0x1c] sm:$0xf]
  %v31 = vld [vmem:[%s0 + $0x20] sm:$0xf]
  %v32 = vld [vmem:[%s0 + $0x24] sm:$0xf]
  %v33 = vld [vmem:[%s0 + $0x28] sm:$0xf]
  %v34 = vld [vmem:[%s0 + $0x2c] sm:$0xf]
  %v35 = vld [vmem:[%s0 + $0x30] sm:$0xf]
  %v36 = vld [vmem:[%s0 + $0x34] sm:$0xf]
  %v37 = vld [vmem:[%s0 + $0x38] sm:$0xf]
  %v38 = vld [vmem:[%s0 + $0x3c] sm:$0xf]
  %v39 = vunpack.c.l.bf16 %v23
  %v40 = vunpack.c.l.bf16 %v24
  %v41 = vunpack.c.l.bf16 %v25
  %v42 = vunpack.c.l.bf16 %v26
  %v43 = vunpack.c.l.bf16 %v27
  %v44 = vunpack.c.l.bf16 %v28
  %v45 = vunpack.c.l.bf16 %v29
  %v46 = vunpack.c.l.bf16 %v30
  %v47 = vunpack.c.l.bf16 %v31
  %v48 = vunpack.c.l.bf16 %v32
  %v49 = vunpack.c.l.bf16 %v33
  %v50 = vunpack.c.l.bf16 %v34
  %v51 = vunpack.c.l.bf16 %v35
  %v52 = vunpack.c.l.bf16 %v36
  %v53 = vunpack.c.l.bf16 %v37
  %v54 = vunpack.c.l.bf16 %v38
  %v55 = vld [vmem:[%s1] sm:$0x1]
  %v56 = vlaneseq
  %v57 = vshrl.u32 %v56, 7
  %v58 = vsub.s32 0, %v57
  %v59 = vrot.slane %v55, %v58
  %v60 = vmul.f32 %v39, %v59
  %v61 = vmul.f32 %v40, %v59
  %v62 = vmul.f32 %v41, %v59
  %v63 = vmul.f32 %v42, %v59
  %v64 = vmul.f32 %v43, %v59
  %v65 = vmul.f32 %v44, %v59
  %v66 = vmul.f32 %v45, %v59
  %v67 = vmul.f32 %v46, %v59
  %v68 = vmul.f32 %v47, %v59
  %v69 = vmul.f32 %v48, %v59
  %v70 = vmul.f32 %v49, %v59
  %v71 = vmul.f32 %v50, %v59
  %v72 = vmul.f32 %v51, %v59
  %v73 = vmul.f32 %v52, %v59
  %v74 = vmul.f32 %v53, %v59
  %v75 = vmul.f32 %v54, %v59
  %v76 = vld [vmem:[%s1 + $0x1] sm:$0x1]
  %v77 = vlaneseq
  %v78 = vshrl.u32 %v77, 7
  %v79 = vsub.s32 0, %v78
  %v80 = vrot.slane %v76, %v79
  %v81 = vadd.f32 %v60, %v80
  %v82 = vadd.f32 %v61, %v80
  %v83 = vadd.f32 %v62, %v80
  %v84 = vadd.f32 %v63, %v80
  %v85 = vadd.f32 %v64, %v80
  %v86 = vadd.f32 %v65, %v80
  %v87 = vadd.f32 %v66, %v80
  %v88 = vadd.f32 %v67, %v80
  %v89 = vadd.f32 %v68, %v80
  %v90 = vadd.f32 %v69, %v80
  %v91 = vadd.f32 %v70, %v80
  %v92 = vadd.f32 %v71, %v80
  %v93 = vadd.f32 %v72, %v80
  %v94 = vadd.f32 %v73, %v80
  %v95 = vadd.f32 %v74, %v80
  %v96 = vadd.f32 %v75, %v80
  %v97 = vld [vmem:[%s1 + $0x3] sm:$0x1]
  %v98 = vlaneseq
  %v99 = vshrl.u32 %v98, 7
  %v100 = vsub.s32 0, %v99
  %v101 = vrot.slane %v97, %v100
  %103 = vrot.lane.b32.xlu0 %v101, 8
  %v104 = vpop.permute.xlu0 %103
  %v106 = vmul.f32 %v39, %v104
  %v107 = vmul.f32 %v40, %v104
  %v108 = vmul.f32 %v41, %v104
  %v109 = vmul.f32 %v42, %v104
  %v110 = vmul.f32 %v43, %v104
  %v111 = vmul.f32 %v44, %v104
  %v112 = vmul.f32 %v45, %v104
  %v113 = vmul.f32 %v46, %v104
  %v114 = vmul.f32 %v47, %v104
  %v115 = vmul.f32 %v48, %v104
  %v116 = vmul.f32 %v49, %v104
  %v117 = vmul.f32 %v50, %v104
  %v118 = vmul.f32 %v51, %v104
  %v119 = vmul.f32 %v52, %v104
  %v120 = vmul.f32 %v53, %v104
  %v121 = vmul.f32 %v54, %v104
  %v122 = vld [vmem:[%s1 + $0x4] sm:$0x1]
  %v123 = vlaneseq
  %v124 = vshrl.u32 %v123, 7
  %v125 = vsub.s32 0, %v124
  %v126 = vrot.slane %v122, %v125
  %128 = vrot.lane.b32.xlu0 %v126, 8
  %v129 = vpop.permute.xlu0 %128
  %v131 = vadd.f32 %v106, %v129
  %v132 = vadd.f32 %v107, %v129
  %v133 = vadd.f32 %v108, %v129
  %v134 = vadd.f32 %v109, %v129
  %v135 = vadd.f32 %v110, %v129
  %v136 = vadd.f32 %v111, %v129
  %v137 = vadd.f32 %v112, %v129
  %v138 = vadd.f32 %v113, %v129
  %v139 = vadd.f32 %v114, %v129
  %v140 = vadd.f32 %v115, %v129
  %v141 = vadd.f32 %v116, %v129
  %v142 = vadd.f32 %v117, %v129
  %v143 = vadd.f32 %v118, %v129
  %v144 = vadd.f32 %v119, %v129
  %v145 = vadd.f32 %v120, %v129
  %v146 = vadd.f32 %v121, %v129
  %vm147 = vcmp.ge.f32.partialorder %v81, 0.0
  %vm148 = vcmp.ge.f32.partialorder %v82, 0.0
  %vm149 = vcmp.ge.f32.partialorder %v83, 0.0
  %vm150 = vcmp.ge.f32.partialorder %v84, 0.0
  %vm151 = vcmp.ge.f32.partialorder %v85, 0.0
  %vm152 = vcmp.ge.f32.partialorder %v86, 0.0
  %vm153 = vcmp.ge.f32.partialorder %v87, 0.0
  %vm154 = vcmp.ge.f32.partialorder %v88, 0.0
  %vm155 = vcmp.ge.f32.partialorder %v89, 0.0
  %vm156 = vcmp.ge.f32.partialorder %v90, 0.0
  %vm157 = vcmp.ge.f32.partialorder %v91, 0.0
  %vm158 = vcmp.ge.f32.partialorder %v92, 0.0
  %vm159 = vcmp.ge.f32.partialorder %v93, 0.0
  %vm160 = vcmp.ge.f32.partialorder %v94, 0.0
  %vm161 = vcmp.ge.f32.partialorder %v95, 0.0
  %vm162 = vcmp.ge.f32.partialorder %v96, 0.0
  %v163 = vld [vmem:[%s1 + $0x2] sm:$0x1]
  %v164 = vlaneseq
  %v165 = vshrl.u32 %v164, 7
  %v166 = vsub.s32 0, %v165
  %v167 = vrot.slane %v163, %v166
  %v168 = vmul.f32 %v167, %v81
  %v169 = vmul.f32 %v167, %v82
  %v170 = vmul.f32 %v167, %v83
  %v171 = vmul.f32 %v167, %v84
  %v172 = vmul.f32 %v167, %v85
  %v173 = vmul.f32 %v167, %v86
  %v174 = vmul.f32 %v167, %v87
  %v175 = vmul.f32 %v167, %v88
  %v176 = vmul.f32 %v167, %v89
  %v177 = vmul.f32 %v167, %v90
  %v178 = vmul.f32 %v167, %v91
  %v179 = vmul.f32 %v167, %v92
  %v180 = vmul.f32 %v167, %v93
  %v181 = vmul.f32 %v167, %v94
  %v182 = vmul.f32 %v167, %v95
  %v183 = vmul.f32 %v167, %v96
  %v184 = vsel %vm147, %v81, %v168
  %v185 = vsel %vm148, %v82, %v169
  %v186 = vsel %vm149, %v83, %v170
  %v187 = vsel %vm150, %v84, %v171
  %v188 = vsel %vm151, %v85, %v172
  %v189 = vsel %vm152, %v86, %v173
  %v190 = vsel %vm153, %v87, %v174
  %v191 = vsel %vm154, %v88, %v175
  %v192 = vsel %vm155, %v89, %v176
  %v193 = vsel %vm156, %v90, %v177
  %v194 = vsel %vm157, %v91, %v178
  %v195 = vsel %vm158, %v92, %v179
  %v196 = vsel %vm159, %v93, %v180
  %v197 = vsel %vm160, %v94, %v181
  %v198 = vsel %vm161, %v95, %v182
  %v199 = vsel %vm162, %v96, %v183
  %vm200 = vcmp.ge.f32.partialorder %v131, 0.0
  %vm201 = vcmp.ge.f32.partialorder %v132, 0.0
  %vm202 = vcmp.ge.f32.partialorder %v133, 0.0
  %vm203 = vcmp.ge.f32.partialorder %v134, 0.0
  %vm204 = vcmp.ge.f32.partialorder %v135, 0.0
  %vm205 = vcmp.ge.f32.partialorder %v136, 0.0
  %vm206 = vcmp.ge.f32.partialorder %v137, 0.0
  %vm207 = vcmp.ge.f32.partialorder %v138, 0.0
  %vm208 = vcmp.ge.f32.partialorder %v139, 0.0
  %vm209 = vcmp.ge.f32.partialorder %v140, 0.0
  %vm210 = vcmp.ge.f32.partialorder %v141, 0.0
  %vm211 = vcmp.ge.f32.partialorder %v142, 0.0
  %vm212 = vcmp.ge.f32.partialorder %v143, 0.0
  %vm213 = vcmp.ge.f32.partialorder %v144, 0.0
  %vm214 = vcmp.ge.f32.partialorder %v145, 0.0
  %vm215 = vcmp.ge.f32.partialorder %v146, 0.0
  %v216 = vld [vmem:[%s1 + $0x5] sm:$0x1]
  %v217 = vlaneseq
  %v218 = vshrl.u32 %v217, 7
  %v219 = vsub.s32 0, %v218
  %v220 = vrot.slane %v216, %v219
  %237 = vrot.lane.b32.xlu0 %v131, 120
  %v238 = vpop.permute.xlu0 %237
  %239 = vrot.lane.b32.xlu0 %v132, 120
  %v240 = vpop.permute.xlu0 %239
  %241 = vrot.lane.b32.xlu0 %v133, 120
  %v242 = vpop.permute.xlu0 %241
  %243 = vrot.lane.b32.xlu0 %v134, 120
  %v244 = vpop.permute.xlu0 %243
  %245 = vrot.lane.b32.xlu0 %v135, 120
  %v246 = vpop.permute.xlu0 %245
  %247 = vrot.lane.b32.xlu0 %v136, 120
  %v248 = vpop.permute.xlu0 %247
  %249 = vrot.lane.b32.xlu0 %v137, 120
  %v250 = vpop.permute.xlu0 %249
  %251 = vrot.lane.b32.xlu0 %v138, 120
  %v252 = vpop.permute.xlu0 %251
  %253 = vrot.lane.b32.xlu0 %v139, 120
  %v254 = vpop.permute.xlu0 %253
  %255 = vrot.lane.b32.xlu0 %v140, 120
  %v256 = vpop.permute.xlu0 %255
  %257 = vrot.lane.b32.xlu0 %v141, 120
  %v258 = vpop.permute.xlu0 %257
  %259 = vrot.lane.b32.xlu0 %v142, 120
  %v260 = vpop.permute.xlu0 %259
  %261 = vrot.lane.b32.xlu0 %v143, 120
  %v262 = vpop.permute.xlu0 %261
  %263 = vrot.lane.b32.xlu0 %v144, 120
  %v264 = vpop.permute.xlu0 %263
  %265 = vrot.lane.b32.xlu0 %v145, 120
  %v266 = vpop.permute.xlu0 %265
  %267 = vrot.lane.b32.xlu0 %v146, 120
  %v268 = vpop.permute.xlu0 %267
  %v285 = vmul.f32 %v220, %v238
  %v286 = vmul.f32 %v220, %v240
  %v287 = vmul.f32 %v220, %v242
  %v288 = vmul.f32 %v220, %v244
  %v289 = vmul.f32 %v220, %v246
  %v290 = vmul.f32 %v220, %v248
  %v291 = vmul.f32 %v220, %v250
  %v292 = vmul.f32 %v220, %v252
  %v293 = vmul.f32 %v220, %v254
  %v294 = vmul.f32 %v220, %v256
  %v295 = vmul.f32 %v220, %v258
  %v296 = vmul.f32 %v220, %v260
  %v297 = vmul.f32 %v220, %v262
  %v298 = vmul.f32 %v220, %v264
  %v299 = vmul.f32 %v220, %v266
  %v300 = vmul.f32 %v220, %v268
  %317 = vrot.lane.b32.xlu0 %v285, 8
  %v318 = vpop.permute.xlu0 %317
  %319 = vrot.lane.b32.xlu0 %v286, 8
  %v320 = vpop.permute.xlu0 %319
  %321 = vrot.lane.b32.xlu0 %v287, 8
  %v322 = vpop.permute.xlu0 %321
  %323 = vrot.lane.b32.xlu0 %v288, 8
  %v324 = vpop.permute.xlu0 %323
  %325 = vrot.lane.b32.xlu0 %v289, 8
  %v326 = vpop.permute.xlu0 %325
  %327 = vrot.lane.b32.xlu0 %v290, 8
  %v328 = vpop.permute.xlu0 %327
  %329 = vrot.lane.b32.xlu0 %v291, 8
  %v330 = vpop.permute.xlu0 %329
  %331 = vrot.lane.b32.xlu0 %v292, 8
  %v332 = vpop.permute.xlu0 %331
  %333 = vrot.lane.b32.xlu0 %v293, 8
  %v334 = vpop.permute.xlu0 %333
  %335 = vrot.lane.b32.xlu0 %v294, 8
  %v336 = vpop.permute.xlu0 %335
  %337 = vrot.lane.b32.xlu0 %v295, 8
  %v338 = vpop.permute.xlu0 %337
  %339 = vrot.lane.b32.xlu0 %v296, 8
  %v340 = vpop.permute.xlu0 %339
  %341 = vrot.lane.b32.xlu0 %v297, 8
  %v342 = vpop.permute.xlu0 %341
  %343 = vrot.lane.b32.xlu0 %v298, 8
  %v344 = vpop.permute.xlu0 %343
  %345 = vrot.lane.b32.xlu0 %v299, 8
  %v346 = vpop.permute.xlu0 %345
  %347 = vrot.lane.b32.xlu0 %v300, 8
  %v348 = vpop.permute.xlu0 %347
  %v365 = vsel %vm200, %v131, %v318
  %v366 = vsel %vm201, %v132, %v320
  %v367 = vsel %vm202, %v133, %v322
  %v368 = vsel %vm203, %v134, %v324
  %v369 = vsel %vm204, %v135, %v326
  %v370 = vsel %vm205, %v136, %v328
  %v371 = vsel %vm206, %v137, %v330
  %v372 = vsel %vm207, %v138, %v332
  %v373 = vsel %vm208, %v139, %v334
  %v374 = vsel %vm209, %v140, %v336
  %v375 = vsel %vm210, %v141, %v338
  %v376 = vsel %vm211, %v142, %v340
  %v377 = vsel %vm212, %v143, %v342
  %v378 = vsel %vm213, %v144, %v344
  %v379 = vsel %vm214, %v145, %v346
  %v380 = vsel %vm215, %v146, %v348
  %v381 = vpack.c.bf16 %v185, %v184
  %v382 = vpack.c.bf16 %v187, %v186
  %v383 = vpack.c.bf16 %v189, %v188
  %v384 = vpack.c.bf16 %v191, %v190
  %v385 = vpack.c.bf16 %v193, %v192
  %v386 = vpack.c.bf16 %v195, %v194
  %v387 = vpack.c.bf16 %v197, %v196
  %v388 = vpack.c.bf16 %v199, %v198
  %v389 = vpack.c.bf16 %v366, %v365
  %v390 = vpack.c.bf16 %v368, %v367
  %v391 = vpack.c.bf16 %v370, %v369
  %v392 = vpack.c.bf16 %v372, %v371
  %v393 = vpack.c.bf16 %v374, %v373
  %v394 = vpack.c.bf16 %v376, %v375
  %v395 = vpack.c.bf16 %v378, %v377
  %v396 = vpack.c.bf16 %v380, %v379
  %413 = vrot.lane.b32.xlu0 %v365, 120
  %v414 = vpop.permute.xlu0 %413
  %415 = vrot.lane.b32.xlu0 %v366, 120
  %v416 = vpop.permute.xlu0 %415
  %417 = vrot.lane.b32.xlu0 %v367, 120
  %v418 = vpop.permute.xlu0 %417
  %419 = vrot.lane.b32.xlu0 %v368, 120
  %v420 = vpop.permute.xlu0 %419
  %421 = vrot.lane.b32.xlu0 %v369, 120
  %v422 = vpop.permute.xlu0 %421
  %423 = vrot.lane.b32.xlu0 %v370, 120
  %v424 = vpop.permute.xlu0 %423
  %425 = vrot.lane.b32.xlu0 %v371, 120
  %v426 = vpop.permute.xlu0 %425
  %427 = vrot.lane.b32.xlu0 %v372, 120
  %v428 = vpop.permute.xlu0 %427
  %429 = vrot.lane.b32.xlu0 %v373, 120
  %v430 = vpop.permute.xlu0 %429
  %431 = vrot.lane.b32.xlu0 %v374, 120
  %v432 = vpop.permute.xlu0 %431
  %433 = vrot.lane.b32.xlu0 %v375, 120
  %v434 = vpop.permute.xlu0 %433
  %435 = vrot.lane.b32.xlu0 %v376, 120
  %v436 = vpop.permute.xlu0 %435
  %437 = vrot.lane.b32.xlu0 %v377, 120
  %v438 = vpop.permute.xlu0 %437
  %439 = vrot.lane.b32.xlu0 %v378, 120
  %v440 = vpop.permute.xlu0 %439
  %441 = vrot.lane.b32.xlu0 %v379, 120
  %v442 = vpop.permute.xlu0 %441
  %443 = vrot.lane.b32.xlu0 %v380, 120
  %v444 = vpop.permute.xlu0 %443
  %v461 = vadd.f32 %v184, %v414
  %v462 = vadd.f32 %v185, %v416
  %v463 = vadd.f32 %v186, %v418
  %v464 = vadd.f32 %v187, %v420
  %v465 = vadd.f32 %v188, %v422
  %v466 = vadd.f32 %v189, %v424
  %v467 = vadd.f32 %v190, %v426
  %v468 = vadd.f32 %v191, %v428
  %v469 = vadd.f32 %v192, %v430
  %v470 = vadd.f32 %v193, %v432
  %v471 = vadd.f32 %v194, %v434
  %v472 = vadd.f32 %v195, %v436
  %v473 = vadd.f32 %v196, %v438
  %v474 = vadd.f32 %v197, %v440
  %v475 = vadd.f32 %v198, %v442
  %v476 = vadd.f32 %v199, %v444
  %v477 = vpack.c.bf16 %v462, %v461
  %v478 = vpack.c.bf16 %v464, %v463
  %v479 = vpack.c.bf16 %v466, %v465
  %v480 = vpack.c.bf16 %v468, %v467
  %v481 = vpack.c.bf16 %v470, %v469
  %v482 = vpack.c.bf16 %v472, %v471
  %v483 = vpack.c.bf16 %v474, %v473
  %v484 = vpack.c.bf16 %v476, %v475
  %v485 = vld [vmem:[%s2] sm:$0xf]
  %vm486 = vcmask 64512
  %v488 = vsel %vm486, %v381, 0
  %v491 = vsel %vm486, %v382, 0
  %v494 = vsel %vm486, %v383, 0
  %v497 = vsel %vm486, %v384, 0
  %v500 = vsel %vm486, %v385, 0
  %v503 = vsel %vm486, %v386, 0
  %v506 = vsel %vm486, %v387, 0
  %v509 = vsel %vm486, %v388, 0
  %vm511 = vcmask 1043456
  %v513 = vsel %vm511, %v485, 0
  %515 = vmatprep.subr.bf16.mxu0 0
  %516 = vmatpush1.bf16.msra.mxu0 %v513
  %517 = vmatprep.subr.bf16.mxu0 0
  %518 = vmatpush1.bf16.msra.mxu0 0
  %519 = vmatprep.subr.bf16.mxu0 0
  %520 = vmatpush1.bf16.msra.mxu0 0
  %521 = vmatprep.subr.bf16.mxu0 0
  %522 = vmatpush1.bf16.msra.mxu0 0
  %523 = vmatprep.subr.bf16.mxu0 0
  %524 = vmatpush1.bf16.msra.mxu0 0
  %525 = vmatprep.subr.bf16.mxu0 0
  %526 = vmatpush1.bf16.msra.mxu0 0
  %527 = vmatprep.subr.bf16.mxu0 0
  %528 = vmatpush1.bf16.msra.mxu0 0
  %529 = vmatprep.subr.bf16.mxu0 0
  %530 = vmatpush1.bf16.msra.mxu0 0
  %531 = vmatprep.subr.bf16.mxu0 0
  %532 = vmatpush1.bf16.msra.mxu0 0
  %533 = vmatprep.subr.bf16.mxu0 0
  %534 = vmatpush1.bf16.msra.mxu0 0
  %535 = vmatprep.subr.bf16.mxu0 0
  %536 = vmatpush1.bf16.msra.mxu0 0
  %537 = vmatprep.subr.bf16.mxu0 0
  %538 = vmatpush1.bf16.msra.mxu0 0
  %539 = vmatprep.subr.bf16.mxu0 0
  %540 = vmatpush1.bf16.msra.mxu0 0
  %541 = vmatprep.subr.bf16.mxu0 0
  %542 = vmatpush1.bf16.msra.mxu0 0
  %543 = vmatprep.subr.bf16.mxu0 0
  %544 = vmatpush1.bf16.msra.mxu0 0
  %545 = vmatprep.subr.bf16.mxu0 0
  %546 = vmatpush1.bf16.msra.mxu0 0
  %547 = vmatprep.mubr.bf16.mxu0 0
  %548 = vmatmul.mubr.bf16.gmra.mrb[0].mxu0 %v488
  %v549 = vpop.f32.mrb[0].mxu0
  %v550 = vadd.f32 0.0, %v549
  %v551 = vpop.f32.mrb[0].mxu0
  %v552 = vpop.f32.mrb[0].mxu0
  %v553 = vadd.f32 0.0, %v552
  %v554 = vpop.f32.mrb[0].mxu0
  %555 = vmatprep.mubr.bf16.mxu0 0
  %556 = vmatmul.mubr.bf16.gmra.mrb[0].mxu0 %v491
  %v557 = vpop.f32.mrb[0].mxu0
  %v558 = vadd.f32 0.0, %v557
  %v559 = vpop.f32.mrb[0].mxu0
  %v560 = vpop.f32.mrb[0].mxu0
  %v561 = vadd.f32 0.0, %v560
  %v562 = vpop.f32.mrb[0].mxu0
  %563 = vmatprep.mubr.bf16.mxu0 0
  %564 = vmatmul.mubr.bf16.gmra.mrb[0].mxu0 %v494
  %v565 = vpop.f32.mrb[0].mxu0
  %v566 = vadd.f32 0.0, %v565
  %v567 = vpop.f32.mrb[0].mxu0
  %v568 = vpop.f32.mrb[0].mxu0
  %v569 = vadd.f32 0.0, %v568
  %v570 = vpop.f32.mrb[0].mxu0
  %571 = vmatprep.mubr.bf16.mxu0 0
  %572 = vmatmul.mubr.bf16.gmra.mrb[0].mxu0 %v497
  %v573 = vpop.f32.mrb[0].mxu0
  %v574 = vadd.f32 0.0, %v573
  %v575 = vpop.f32.mrb[0].mxu0
  %v576 = vpop.f32.mrb[0].mxu0
  %v577 = vadd.f32 0.0, %v576
  %v578 = vpop.f32.mrb[0].mxu0
  %579 = vmatprep.mubr.bf16.mxu0 0
  %580 = vmatmul.mubr.bf16.gmra.mrb[0].mxu0 %v500
  %v581 = vpop.f32.mrb[0].mxu0
  %v582 = vadd.f32 0.0, %v581
  %v583 = vpop.f32.mrb[0].mxu0
  %v584 = vpop.f32.mrb[0].mxu0
  %v585 = vadd.f32 0.0, %v584
  %v586 = vpop.f32.mrb[0].mxu0
  %587 = vmatprep.mubr.bf16.mxu0 0
  %588 = vmatmul.mubr.bf16.gmra.mrb[0].mxu0 %v503
  %v589 = vpop.f32.mrb[0].mxu0
  %v590 = vadd.f32 0.0, %v589
  %v591 = vpop.f32.mrb[0].mxu0
  %v592 = vpop.f32.mrb[0].mxu0
  %v593 = vadd.f32 0.0, %v592
  %v594 = vpop.f32.mrb[0].mxu0
  %595 = vmatprep.mubr.bf16.mxu0 0
  %596 = vmatmul.mubr.bf16.gmra.mrb[0].mxu0 %v506
  %v597 = vpop.f32.mrb[0].mxu0
  %v598 = vadd.f32 0.0, %v597
  %v599 = vpop.f32.mrb[0].mxu0
  %v600 = vpop.f32.mrb[0].mxu0
  %v601 = vadd.f32 0.0, %v600
  %v602 = vpop.f32.mrb[0].mxu0
  %603 = vmatprep.mubr.bf16.mxu0 0
  %604 = vmatmul.mubr.bf16.gmra.mrb[0].mxu0 %v509
  %v605 = vpop.f32.mrb[0].mxu0
  %v606 = vadd.f32 0.0, %v605
  %v607 = vpop.f32.mrb[0].mxu0
  %v608 = vpop.f32.mrb[0].mxu0
  %v609 = vadd.f32 0.0, %v608
  %v610 = vpop.f32.mrb[0].mxu0
  %611 = vdwg.mxu0
  %v612 = vld [vmem:[%s3] sm:$0xf]
  %621 = vrot.lane.b32.xlu0 %v389, 120
  %v622 = vpop.permute.xlu0 %621
  %623 = vrot.lane.b32.xlu0 %v390, 120
  %v624 = vpop.permute.xlu0 %623
  %625 = vrot.lane.b32.xlu0 %v391, 120
  %v626 = vpop.permute.xlu0 %625
  %627 = vrot.lane.b32.xlu0 %v392, 120
  %v628 = vpop.permute.xlu0 %627
  %629 = vrot.lane.b32.xlu0 %v393, 120
  %v630 = vpop.permute.xlu0 %629
  %631 = vrot.lane.b32.xlu0 %v394, 120
  %v632 = vpop.permute.xlu0 %631
  %633 = vrot.lane.b32.xlu0 %v395, 120
  %v634 = vpop.permute.xlu0 %633
  %635 = vrot.lane.b32.xlu0 %v396, 120
  %v636 = vpop.permute.xlu0 %635
  %v638 = vsel %vm486, %v622, 0
  %v641 = vsel %vm486, %v624, 0
  %v644 = vsel %vm486, %v626, 0
  %v647 = vsel %vm486, %v628, 0
  %v650 = vsel %vm486, %v630, 0
  %v653 = vsel %vm486, %v632, 0
  %v656 = vsel %vm486, %v634, 0
  %v659 = vsel %vm486, %v636, 0
  %v662 = vsel %vm511, %v612, 0
  %664 = vmatprep.subr.bf16.mxu0 0
  %665 = vmatpush1.bf16.msra.mxu0 %v662
  %666 = vmatprep.subr.bf16.mxu0 0
  %667 = vmatpush1.bf16.msra.mxu0 0
  %668 = vmatprep.subr.bf16.mxu0 0
  %669 = vmatpush1.bf16.msra.mxu0 0
  %670 = vmatprep.subr.bf16.mxu0 0
  %671 = vmatpush1.bf16.msra.mxu0 0
  %672 = vmatprep.subr.bf16.mxu0 0
  %673 = vmatpush1.bf16.msra.mxu0 0
  %674 = vmatprep.subr.bf16.mxu0 0
  %675 = vmatpush1.bf16.msra.mxu0 0
  %676 = vmatprep.subr.bf16.mxu0 0
  %677 = vmatpush1.bf16.msra.mxu0 0
  %678 = vmatprep.subr.bf16.mxu0 0
  %679 = vmatpush1.bf16.msra.mxu0 0
  %680 = vmatprep.subr.bf16.mxu0 0
  %681 = vmatpush1.bf16.msra.mxu0 0
  %682 = vmatprep.subr.bf16.mxu0 0
  %683 = vmatpush1.bf16.msra.mxu0 0
  %684 = vmatprep.subr.bf16.mxu0 0
  %685 = vmatpush1.bf16.msra.mxu0 0
  %686 = vmatprep.subr.bf16.mxu0 0
  %687 = vmatpush1.bf16.msra.mxu0 0
  %688 = vmatprep.subr.bf16.mxu0 0
  %689 = vmatpush1.bf16.msra.mxu0 0
  %690 = vmatprep.subr.bf16.mxu0 0
  %691 = vmatpush1.bf16.msra.mxu0 0
  %692 = vmatprep.subr.bf16.mxu0 0
  %693 = vmatpush1.bf16.msra.mxu0 0
  %694 = vmatprep.subr.bf16.mxu0 0
  %695 = vmatpush1.bf16.msra.mxu0 0
  %696 = vmatprep.mubr.bf16.mxu0 0
  %697 = vmatmul.mubr.bf16.gmra.mrb[0].mxu0 %v638
  %v698 = vpop.f32.mrb[0].mxu0
  %v699 = vadd.f32 0.0, %v698
  %v700 = vpop.f32.mrb[0].mxu0
  %v701 = vpop.f32.mrb[0].mxu0
  %v702 = vadd.f32 0.0, %v701
  %v703 = vpop.f32.mrb[0].mxu0
  %704 = vmatprep.mubr.bf16.mxu0 0
  %705 = vmatmul.mubr.bf16.gmra.mrb[0].mxu0 %v641
  %v706 = vpop.f32.mrb[0].mxu0
  %v707 = vadd.f32 0.0, %v706
  %v708 = vpop.f32.mrb[0].mxu0
  %v709 = vpop.f32.mrb[0].mxu0
  %v710 = vadd.f32 0.0, %v709
  %v711 = vpop.f32.mrb[0].mxu0
  %712 = vmatprep.mubr.bf16.mxu0 0
  %713 = vmatmul.mubr.bf16.gmra.mrb[0].mxu0 %v644
  %v714 = vpop.f32.mrb[0].mxu0
  %v715 = vadd.f32 0.0, %v714
  %v716 = vpop.f32.mrb[0].mxu0
  %v717 = vpop.f32.mrb[0].mxu0
  %v718 = vadd.f32 0.0, %v717
  %v719 = vpop.f32.mrb[0].mxu0
  %720 = vmatprep.mubr.bf16.mxu0 0
  %721 = vmatmul.mubr.bf16.gmra.mrb[0].mxu0 %v647
  %v722 = vpop.f32.mrb[0].mxu0
  %v723 = vadd.f32 0.0, %v722
  %v724 = vpop.f32.mrb[0].mxu0
  %v725 = vpop.f32.mrb[0].mxu0
  %v726 = vadd.f32 0.0, %v725
  %v727 = vpop.f32.mrb[0].mxu0
  %728 = vmatprep.mubr.bf16.mxu0 0
  %729 = vmatmul.mubr.bf16.gmra.mrb[0].mxu0 %v650
  %v730 = vpop.f32.mrb[0].mxu0
  %v731 = vadd.f32 0.0, %v730
  %v732 = vpop.f32.mrb[0].mxu0
  %v733 = vpop.f32.mrb[0].mxu0
  %v734 = vadd.f32 0.0, %v733
  %v735 = vpop.f32.mrb[0].mxu0
  %736 = vmatprep.mubr.bf16.mxu0 0
  %737 = vmatmul.mubr.bf16.gmra.mrb[0].mxu0 %v653
  %v738 = vpop.f32.mrb[0].mxu0
  %v739 = vadd.f32 0.0, %v738
  %v740 = vpop.f32.mrb[0].mxu0
  %v741 = vpop.f32.mrb[0].mxu0
  %v742 = vadd.f32 0.0, %v741
  %v743 = vpop.f32.mrb[0].mxu0
  %744 = vmatprep.mubr.bf16.mxu0 0
  %745 = vmatmul.mubr.bf16.gmra.mrb[0].mxu0 %v656
  %v746 = vpop.f32.mrb[0].mxu0
  %v747 = vadd.f32 0.0, %v746
  %v748 = vpop.f32.mrb[0].mxu0
  %v749 = vpop.f32.mrb[0].mxu0
  %v750 = vadd.f32 0.0, %v749
  %v751 = vpop.f32.mrb[0].mxu0
  %752 = vmatprep.mubr.bf16.mxu0 0
  %753 = vmatmul.mubr.bf16.gmra.mrb[0].mxu0 %v659
  %v754 = vpop.f32.mrb[0].mxu0
  %v755 = vadd.f32 0.0, %v754
  %v756 = vpop.f32.mrb[0].mxu0
  %v757 = vpop.f32.mrb[0].mxu0
  %v758 = vadd.f32 0.0, %v757
  %v759 = vpop.f32.mrb[0].mxu0
  %760 = vdwg.mxu0
  %v761 = vld [vmem:[%s4] sm:$0xf]
  %v763 = vsel %vm486, %v477, 0
  %v766 = vsel %vm486, %v478, 0
  %v769 = vsel %vm486, %v479, 0
  %v772 = vsel %vm486, %v480, 0
  %v775 = vsel %vm486, %v481, 0
  %v778 = vsel %vm486, %v482, 0
  %v781 = vsel %vm486, %v483, 0
  %v784 = vsel %vm486, %v484, 0
  %v787 = vsel %vm511, %v761, 0
  %789 = vmatprep.subr.bf16.mxu0 0
  %790 = vmatpush1.bf16.msra.mxu0 %v787
  %791 = vmatprep.subr.bf16.mxu0 0
  %792 = vmatpush1.bf16.msra.mxu0 0
  %793 = vmatprep.subr.bf16.mxu0 0
  %794 = vmatpush1.bf16.msra.mxu0 0
  %795 = vmatprep.subr.bf16.mxu0 0
  %796 = vmatpush1.bf16.msra.mxu0 0
  %797 = vmatprep.subr.bf16.mxu0 0
  %798 = vmatpush1.bf16.msra.mxu0 0
  %799 = vmatprep.subr.bf16.mxu0 0
  %800 = vmatpush1.bf16.msra.mxu0 0
  %801 = vmatprep.subr.bf16.mxu0 0
  %802 = vmatpush1.bf16.msra.mxu0 0
  %803 = vmatprep.subr.bf16.mxu0 0
  %804 = vmatpush1.bf16.msra.mxu0 0
  %805 = vmatprep.subr.bf16.mxu0 0
  %806 = vmatpush1.bf16.msra.mxu0 0
  %807 = vmatprep.subr.bf16.mxu0 0
  %808 = vmatpush1.bf16.msra.mxu0 0
  %809 = vmatprep.subr.bf16.mxu0 0
  %810 = vmatpush1.bf16.msra.mxu0 0
  %811 = vmatprep.subr.bf16.mxu0 0
  %812 = vmatpush1.bf16.msra.mxu0 0
  %813 = vmatprep.subr.bf16.mxu0 0
  %814 = vmatpush1.bf16.msra.mxu0 0
  %815 = vmatprep.subr.bf16.mxu0 0
  %816 = vmatpush1.bf16.msra.mxu0 0
  %817 = vmatprep.subr.bf16.mxu0 0
  %818 = vmatpush1.bf16.msra.mxu0 0
  %819 = vmatprep.subr.bf16.mxu0 0
  %820 = vmatpush1.bf16.msra.mxu0 0
  %821 = vmatprep.mubr.bf16.mxu0 0
  %822 = vmatmul.mubr.bf16.gmra.mrb[0].mxu0 %v763
  %v823 = vpop.f32.mrb[0].mxu0
  %v824 = vadd.f32 0.0, %v823
  %v825 = vpop.f32.mrb[0].mxu0
  %v826 = vpop.f32.mrb[0].mxu0
  %v827 = vadd.f32 0.0, %v826
  %v828 = vpop.f32.mrb[0].mxu0
  %829 = vmatprep.mubr.bf16.mxu0 0
  %830 = vmatmul.mubr.bf16.gmra.mrb[0].mxu0 %v766
  %v831 = vpop.f32.mrb[0].mxu0
  %v832 = vadd.f32 0.0, %v831
  %v833 = vpop.f32.mrb[0].mxu0
  %v834 = vpop.f32.mrb[0].mxu0
  %v835 = vadd.f32 0.0, %v834
  %v836 = vpop.f32.mrb[0].mxu0
  %837 = vmatprep.mubr.bf16.mxu0 0
  %838 = vmatmul.mubr.bf16.gmra.mrb[0].mxu0 %v769
  %v839 = vpop.f32.mrb[0].mxu0
  %v840 = vadd.f32 0.0, %v839
  %v841 = vpop.f32.mrb[0].mxu0
  %v842 = vpop.f32.mrb[0].mxu0
  %v843 = vadd.f32 0.0, %v842
  %v844 = vpop.f32.mrb[0].mxu0
  %845 = vmatprep.mubr.bf16.mxu0 0
  %846 = vmatmul.mubr.bf16.gmra.mrb[0].mxu0 %v772
  %v847 = vpop.f32.mrb[0].mxu0
  %v848 = vadd.f32 0.0, %v847
  %v849 = vpop.f32.mrb[0].mxu0
  %v850 = vpop.f32.mrb[0].mxu0
  %v851 = vadd.f32 0.0, %v850
  %v852 = vpop.f32.mrb[0].mxu0
  %853 = vmatprep.mubr.bf16.mxu0 0
  %854 = vmatmul.mubr.bf16.gmra.mrb[0].mxu0 %v775
  %v855 = vpop.f32.mrb[0].mxu0
  %v856 = vadd.f32 0.0, %v855
  %v857 = vpop.f32.mrb[0].mxu0
  %v858 = vpop.f32.mrb[0].mxu0
  %v859 = vadd.f32 0.0, %v858
  %v860 = vpop.f32.mrb[0].mxu0
  %861 = vmatprep.mubr.bf16.mxu0 0
  %862 = vmatmul.mubr.bf16.gmra.mrb[0].mxu0 %v778
  %v863 = vpop.f32.mrb[0].mxu0
  %v864 = vadd.f32 0.0, %v863
  %v865 = vpop.f32.mrb[0].mxu0
  %v866 = vpop.f32.mrb[0].mxu0
  %v867 = vadd.f32 0.0, %v866
  %v868 = vpop.f32.mrb[0].mxu0
  %869 = vmatprep.mubr.bf16.mxu0 0
  %870 = vmatmul.mubr.bf16.gmra.mrb[0].mxu0 %v781
  %v871 = vpop.f32.mrb[0].mxu0
  %v872 = vadd.f32 0.0, %v871
  %v873 = vpop.f32.mrb[0].mxu0
  %v874 = vpop.f32.mrb[0].mxu0
  %v875 = vadd.f32 0.0, %v874
  %v876 = vpop.f32.mrb[0].mxu0
  %877 = vmatprep.mubr.bf16.mxu0 0
  %878 = vmatmul.mubr.bf16.gmra.mrb[0].mxu0 %v784
  %v879 = vpop.f32.mrb[0].mxu0
  %v880 = vadd.f32 0.0, %v879
  %v881 = vpop.f32.mrb[0].mxu0
  %v882 = vpop.f32.mrb[0].mxu0
  %v883 = vadd.f32 0.0, %v882
  %v884 = vpop.f32.mrb[0].mxu0
  %885 = vdwg.mxu0
  %v886 = vsub.f32 %v550, %v699
  %v887 = vsub.f32 %v553, %v702
  %v888 = vsub.f32 %v558, %v707
  %v889 = vsub.f32 %v561, %v710
  %v890 = vsub.f32 %v566, %v715
  %v891 = vsub.f32 %v569, %v718
  %v892 = vsub.f32 %v574, %v723
  %v893 = vsub.f32 %v577, %v726
  %v894 = vsub.f32 %v582, %v731
  %v895 = vsub.f32 %v585, %v734
  %v896 = vsub.f32 %v590, %v739
  %v897 = vsub.f32 %v593, %v742
  %v898 = vsub.f32 %v598, %v747
  %v899 = vsub.f32 %v601, %v750
  %v900 = vsub.f32 %v606, %v755
  %v901 = vsub.f32 %v609, %v758
  %v902 = vsub.f32 %v824, %v550
  %v903 = vsub.f32 %v827, %v553
  %v904 = vsub.f32 %v832, %v558
  %v905 = vsub.f32 %v835, %v561
  %v906 = vsub.f32 %v840, %v566
  %v907 = vsub.f32 %v843, %v569
  %v908 = vsub.f32 %v848, %v574
  %v909 = vsub.f32 %v851, %v577
  %v910 = vsub.f32 %v856, %v582
  %v911 = vsub.f32 %v859, %v585
  %v912 = vsub.f32 %v864, %v590
  %v913 = vsub.f32 %v867, %v593
  %v914 = vsub.f32 %v872, %v598
  %v915 = vsub.f32 %v875, %v601
  %v916 = vsub.f32 %v880, %v606
  %v917 = vsub.f32 %v883, %v609
  %v918 = vsub.f32 %v902, %v699
  %v919 = vsub.f32 %v903, %v702
  %v920 = vsub.f32 %v904, %v707
  %v921 = vsub.f32 %v905, %v710
  %v922 = vsub.f32 %v906, %v715
  %v923 = vsub.f32 %v907, %v718
  %v924 = vsub.f32 %v908, %v723
  %v925 = vsub.f32 %v909, %v726
  %v926 = vsub.f32 %v910, %v731
  %v927 = vsub.f32 %v911, %v734
  %v928 = vsub.f32 %v912, %v739
  %v929 = vsub.f32 %v913, %v742
  %v930 = vsub.f32 %v914, %v747
  %v931 = vsub.f32 %v915, %v750
  %v932 = vsub.f32 %v916, %v755
  %v933 = vsub.f32 %v917, %v758
  %v934 = vpack.c.bf16 %v887, %v886
  %v935 = vpack.c.bf16 %v889, %v888
  %v936 = vpack.c.bf16 %v891, %v890
  %v937 = vpack.c.bf16 %v893, %v892
  %v938 = vpack.c.bf16 %v895, %v894
  %v939 = vpack.c.bf16 %v897, %v896
  %v940 = vpack.c.bf16 %v899, %v898
  %v941 = vpack.c.bf16 %v901, %v900
  %v950 = vunpack.c.l.b16 %v934
  %v951 = vunpack.c.h.b16 %v934
  %v952 = vunpack.c.l.b16 %v935
  %v953 = vunpack.c.h.b16 %v935
  %v954 = vunpack.c.l.b16 %v936
  %v955 = vunpack.c.h.b16 %v936
  %v956 = vunpack.c.l.b16 %v937
  %v957 = vunpack.c.h.b16 %v937
  %v958 = vunpack.c.l.b16 %v938
  %v959 = vunpack.c.h.b16 %v938
  %v960 = vunpack.c.l.b16 %v939
  %v961 = vunpack.c.h.b16 %v939
  %v962 = vunpack.c.l.b16 %v940
  %v963 = vunpack.c.h.b16 %v940
  %v964 = vunpack.c.l.b16 %v941
  %v965 = vunpack.c.h.b16 %v941
  %v966 = vpack.c.b16 %v950, %v950
  %v967 = vpack.c.b16 %v951, %v951
  %v968 = vpack.c.b16 %v952, %v952
  %v969 = vpack.c.b16 %v953, %v953
  %v970 = vpack.c.b16 %v954, %v954
  %v971 = vpack.c.b16 %v955, %v955
  %v972 = vpack.c.b16 %v956, %v956
  %v973 = vpack.c.b16 %v957, %v957
  %v974 = vpack.c.b16 %v958, %v958
  %v975 = vpack.c.b16 %v959, %v959
  %v976 = vpack.c.b16 %v960, %v960
  %v977 = vpack.c.b16 %v961, %v961
  %v978 = vpack.c.b16 %v962, %v962
  %v979 = vpack.c.b16 %v963, %v963
  %v980 = vpack.c.b16 %v964, %v964
  %v981 = vpack.c.b16 %v965, %v965
  %vm998 = vcmask 257024
  %999 = vst.msk [vmem:[%s5] sm:$0xf] %vm998, %v966
  %1000 = vst.msk [vmem:[%s5 + $0x4] sm:$0xf] %vm998, %v967
  %1001 = vst.msk [vmem:[%s5 + $0x8] sm:$0xf] %vm998, %v968
  %1002 = vst.msk [vmem:[%s5 + $0xc] sm:$0xf] %vm998, %v969
  %1003 = vst.msk [vmem:[%s5 + $0x10] sm:$0xf] %vm998, %v970
  %1004 = vst.msk [vmem:[%s5 + $0x14] sm:$0xf] %vm998, %v971
  %1005 = vst.msk [vmem:[%s5 + $0x18] sm:$0xf] %vm998, %v972
  %1006 = vst.msk [vmem:[%s5 + $0x1c] sm:$0xf] %vm998, %v973
  %1007 = vst.msk [vmem:[%s5 + $0x20] sm:$0xf] %vm998, %v974
  %1008 = vst.msk [vmem:[%s5 + $0x24] sm:$0xf] %vm998, %v975
  %1009 = vst.msk [vmem:[%s5 + $0x28] sm:$0xf] %vm998, %v976
  %1010 = vst.msk [vmem:[%s5 + $0x2c] sm:$0xf] %vm998, %v977
  %1011 = vst.msk [vmem:[%s5 + $0x30] sm:$0xf] %vm998, %v978
  %1012 = vst.msk [vmem:[%s5 + $0x34] sm:$0xf] %vm998, %v979
  %1013 = vst.msk [vmem:[%s5 + $0x38] sm:$0xf] %vm998, %v980
  %1014 = vst.msk [vmem:[%s5 + $0x3c] sm:$0xf] %vm998, %v981
  %v1015 = vpack.c.bf16 %v919, %v918
  %v1016 = vpack.c.bf16 %v921, %v920
  %v1017 = vpack.c.bf16 %v923, %v922
  %v1018 = vpack.c.bf16 %v925, %v924
  %v1019 = vpack.c.bf16 %v927, %v926
  %v1020 = vpack.c.bf16 %v929, %v928
  %v1021 = vpack.c.bf16 %v931, %v930
  %v1022 = vpack.c.bf16 %v933, %v932
  %v1031 = vunpack.c.l.b16 %v1015
  %v1032 = vunpack.c.h.b16 %v1015
  %v1033 = vunpack.c.l.b16 %v1016
  %v1034 = vunpack.c.h.b16 %v1016
  %v1035 = vunpack.c.l.b16 %v1017
  %v1036 = vunpack.c.h.b16 %v1017
  %v1037 = vunpack.c.l.b16 %v1018
  %v1038 = vunpack.c.h.b16 %v1018
  %v1039 = vunpack.c.l.b16 %v1019
  %v1040 = vunpack.c.h.b16 %v1019
  %v1041 = vunpack.c.l.b16 %v1020
  %v1042 = vunpack.c.h.b16 %v1020
  %v1043 = vunpack.c.l.b16 %v1021
  %v1044 = vunpack.c.h.b16 %v1021
  %v1045 = vunpack.c.l.b16 %v1022
  %v1046 = vunpack.c.h.b16 %v1022
  %v1047 = vpack.c.b16 %v1031, %v1031
  %v1048 = vpack.c.b16 %v1032, %v1032
  %v1049 = vpack.c.b16 %v1033, %v1033
  %v1050 = vpack.c.b16 %v1034, %v1034
  %v1051 = vpack.c.b16 %v1035, %v1035
  %v1052 = vpack.c.b16 %v1036, %v1036
  %v1053 = vpack.c.b16 %v1037, %v1037
  %v1054 = vpack.c.b16 %v1038, %v1038
  %v1055 = vpack.c.b16 %v1039, %v1039
  %v1056 = vpack.c.b16 %v1040, %v1040
  %v1057 = vpack.c.b16 %v1041, %v1041
  %v1058 = vpack.c.b16 %v1042, %v1042
  %v1059 = vpack.c.b16 %v1043, %v1043
  %v1060 = vpack.c.b16 %v1044, %v1044
  %v1061 = vpack.c.b16 %v1045, %v1045
  %v1062 = vpack.c.b16 %v1046, %v1046
  %1063 = vrot.lane.b32.xlu0 %v1047, 32
  %v1064 = vpop.permute.xlu0 %1063
  %1065 = vrot.lane.b32.xlu0 %v1048, 32
  %v1066 = vpop.permute.xlu0 %1065
  %1067 = vrot.lane.b32.xlu0 %v1049, 32
  %v1068 = vpop.permute.xlu0 %1067
  %1069 = vrot.lane.b32.xlu0 %v1050, 32
  %v1070 = vpop.permute.xlu0 %1069
  %1071 = vrot.lane.b32.xlu0 %v1051, 32
  %v1072 = vpop.permute.xlu0 %1071
  %1073 = vrot.lane.b32.xlu0 %v1052, 32
  %v1074 = vpop.permute.xlu0 %1073
  %1075 = vrot.lane.b32.xlu0 %v1053, 32
  %v1076 = vpop.permute.xlu0 %1075
  %1077 = vrot.lane.b32.xlu0 %v1054, 32
  %v1078 = vpop.permute.xlu0 %1077
  %1079 = vrot.lane.b32.xlu0 %v1055, 32
  %v1080 = vpop.permute.xlu0 %1079
  %1081 = vrot.lane.b32.xlu0 %v1056, 32
  %v1082 = vpop.permute.xlu0 %1081
  %1083 = vrot.lane.b32.xlu0 %v1057, 32
  %v1084 = vpop.permute.xlu0 %1083
  %1085 = vrot.lane.b32.xlu0 %v1058, 32
  %v1086 = vpop.permute.xlu0 %1085
  %1087 = vrot.lane.b32.xlu0 %v1059, 32
  %v1088 = vpop.permute.xlu0 %1087
  %1089 = vrot.lane.b32.xlu0 %v1060, 32
  %v1090 = vpop.permute.xlu0 %1089
  %1091 = vrot.lane.b32.xlu0 %v1061, 32
  %v1092 = vpop.permute.xlu0 %1091
  %1093 = vrot.lane.b32.xlu0 %v1062, 32
  %v1094 = vpop.permute.xlu0 %1093
  %vm1111 = vcmask 519424
  %1112 = vst.msk [vmem:[%s5] sm:$0xf] %vm1111, %v1064
  %1113 = vst.msk [vmem:[%s5 + $0x4] sm:$0xf] %vm1111, %v1066
  %1114 = vst.msk [vmem:[%s5 + $0x8] sm:$0xf] %vm1111, %v1068
  %1115 = vst.msk [vmem:[%s5 + $0xc] sm:$0xf] %vm1111, %v1070
  %1116 = vst.msk [vmem:[%s5 + $0x10] sm:$0xf] %vm1111, %v1072
  %1117 = vst.msk [vmem:[%s5 + $0x14] sm:$0xf] %vm1111, %v1074
  %1118 = vst.msk [vmem:[%s5 + $0x18] sm:$0xf] %vm1111, %v1076
  %1119 = vst.msk [vmem:[%s5 + $0x1c] sm:$0xf] %vm1111, %v1078
  %1120 = vst.msk [vmem:[%s5 + $0x20] sm:$0xf] %vm1111, %v1080
  %1121 = vst.msk [vmem:[%s5 + $0x24] sm:$0xf] %vm1111, %v1082
  %1122 = vst.msk [vmem:[%s5 + $0x28] sm:$0xf] %vm1111, %v1084
  %1123 = vst.msk [vmem:[%s5 + $0x2c] sm:$0xf] %vm1111, %v1086
  %1124 = vst.msk [vmem:[%s5 + $0x30] sm:$0xf] %vm1111, %v1088
  %1125 = vst.msk [vmem:[%s5 + $0x34] sm:$0xf] %vm1111, %v1090
  %1126 = vst.msk [vmem:[%s5 + $0x38] sm:$0xf] %vm1111, %v1092
  %1127 = vst.msk [vmem:[%s5 + $0x3c] sm:$0xf] %vm1111, %v1094
  %vm1128 = vcmask 261120
  %v1129 = vsel %vm1128, %v886, 0.0
  %v1130 = vsel %vm1128, %v887, 0.0
  %v1131 = vadd.f32 %v1129, %v1130
  %v1132 = vsel %vm1128, %v888, 0.0
  %v1133 = vadd.f32 %v1131, %v1132
  %v1134 = vsel %vm1128, %v889, 0.0
  %v1135 = vadd.f32 %v1133, %v1134
  %v1136 = vsel %vm1128, %v890, 0.0
  %v1137 = vadd.f32 %v1135, %v1136
  %v1138 = vsel %vm1128, %v891, 0.0
  %v1139 = vadd.f32 %v1137, %v1138
  %v1140 = vsel %vm1128, %v892, 0.0
  %v1141 = vadd.f32 %v1139, %v1140
  %v1142 = vsel %vm1128, %v893, 0.0
  %v1143 = vadd.f32 %v1141, %v1142
  %v1144 = vsel %vm1128, %v894, 0.0
  %v1145 = vadd.f32 %v1143, %v1144
  %v1146 = vsel %vm1128, %v895, 0.0
  %v1147 = vadd.f32 %v1145, %v1146
  %v1148 = vsel %vm1128, %v896, 0.0
  %v1149 = vadd.f32 %v1147, %v1148
  %v1150 = vsel %vm1128, %v897, 0.0
  %v1151 = vadd.f32 %v1149, %v1150
  %v1152 = vsel %vm1128, %v898, 0.0
  %v1153 = vadd.f32 %v1151, %v1152
  %v1154 = vsel %vm1128, %v899, 0.0
  %v1155 = vadd.f32 %v1153, %v1154
  %v1156 = vsel %vm1128, %v900, 0.0
  %v1157 = vadd.f32 %v1155, %v1156
  %v1158 = vsel %vm1128, %v901, 0.0
  %v1159 = vadd.f32 %v1157, %v1158
  %v1160 = vrot.slane %v1159, 4
  %v1161 = vadd.f32 %v1159, %v1160
  %v1162 = vrot.slane %v1161, 2
  %v1163 = vadd.f32 %v1161, %v1162
  %v1164 = vrot.slane %v1163, 1
  %v1165 = vadd.f32 %v1163, %v1164
  %v1166 = vmul.f32 %v886, %v886
  %v1167 = vmul.f32 %v887, %v887
  %v1168 = vmul.f32 %v888, %v888
  %v1169 = vmul.f32 %v889, %v889
  %v1170 = vmul.f32 %v890, %v890
  %v1171 = vmul.f32 %v891, %v891
  %v1172 = vmul.f32 %v892, %v892
  %v1173 = vmul.f32 %v893, %v893
  %v1174 = vmul.f32 %v894, %v894
  %v1175 = vmul.f32 %v895, %v895
  %v1176 = vmul.f32 %v896, %v896
  %v1177 = vmul.f32 %v897, %v897
  %v1178 = vmul.f32 %v898, %v898
  %v1179 = vmul.f32 %v899, %v899
  %v1180 = vmul.f32 %v900, %v900
  %v1181 = vmul.f32 %v901, %v901
  %v1182 = vsel %vm1128, %v1166, 0.0
  %v1183 = vsel %vm1128, %v1167, 0.0
  %v1184 = vadd.f32 %v1182, %v1183
  %v1185 = vsel %vm1128, %v1168, 0.0
  %v1186 = vadd.f32 %v1184, %v1185
  %v1187 = vsel %vm1128, %v1169, 0.0
  %v1188 = vadd.f32 %v1186, %v1187
  %v1189 = vsel %vm1128, %v1170, 0.0
  %v1190 = vadd.f32 %v1188, %v1189
  %v1191 = vsel %vm1128, %v1171, 0.0
  %v1192 = vadd.f32 %v1190, %v1191
  %v1193 = vsel %vm1128, %v1172, 0.0
  %v1194 = vadd.f32 %v1192, %v1193
  %v1195 = vsel %vm1128, %v1173, 0.0
  %v1196 = vadd.f32 %v1194, %v1195
  %v1197 = vsel %vm1128, %v1174, 0.0
  %v1198 = vadd.f32 %v1196, %v1197
  %v1199 = vsel %vm1128, %v1175, 0.0
  %v1200 = vadd.f32 %v1198, %v1199
  %v1201 = vsel %vm1128, %v1176, 0.0
  %v1202 = vadd.f32 %v1200, %v1201
  %v1203 = vsel %vm1128, %v1177, 0.0
  %v1204 = vadd.f32 %v1202, %v1203
  %v1205 = vsel %vm1128, %v1178, 0.0
  %v1206 = vadd.f32 %v1204, %v1205
  %v1207 = vsel %vm1128, %v1179, 0.0
  %v1208 = vadd.f32 %v1206, %v1207
  %v1209 = vsel %vm1128, %v1180, 0.0
  %v1210 = vadd.f32 %v1208, %v1209
  %v1211 = vsel %vm1128, %v1181, 0.0
  %v1212 = vadd.f32 %v1210, %v1211
  %v1213 = vrot.slane %v1212, 4
  %v1214 = vadd.f32 %v1212, %v1213
  %v1215 = vrot.slane %v1214, 2
  %v1216 = vadd.f32 %v1214, %v1215
  %v1217 = vrot.slane %v1216, 1
  %v1218 = vadd.f32 %v1216, %v1217
  %v1219 = vsel %vm1128, %v918, 0.0
  %v1220 = vsel %vm1128, %v919, 0.0
  %v1221 = vadd.f32 %v1219, %v1220
  %v1222 = vsel %vm1128, %v920, 0.0
  %v1223 = vadd.f32 %v1221, %v1222
  %v1224 = vsel %vm1128, %v921, 0.0
  %v1225 = vadd.f32 %v1223, %v1224
  %v1226 = vsel %vm1128, %v922, 0.0
  %v1227 = vadd.f32 %v1225, %v1226
  %v1228 = vsel %vm1128, %v923, 0.0
  %v1229 = vadd.f32 %v1227, %v1228
  %v1230 = vsel %vm1128, %v924, 0.0
  %v1231 = vadd.f32 %v1229, %v1230
  %v1232 = vsel %vm1128, %v925, 0.0
  %v1233 = vadd.f32 %v1231, %v1232
  %v1234 = vsel %vm1128, %v926, 0.0
  %v1235 = vadd.f32 %v1233, %v1234
  %v1236 = vsel %vm1128, %v927, 0.0
  %v1237 = vadd.f32 %v1235, %v1236
  %v1238 = vsel %vm1128, %v928, 0.0
  %v1239 = vadd.f32 %v1237, %v1238
  %v1240 = vsel %vm1128, %v929, 0.0
  %v1241 = vadd.f32 %v1239, %v1240
  %v1242 = vsel %vm1128, %v930, 0.0
  %v1243 = vadd.f32 %v1241, %v1242
  %v1244 = vsel %vm1128, %v931, 0.0
  %v1245 = vadd.f32 %v1243, %v1244
  %v1246 = vsel %vm1128, %v932, 0.0
  %v1247 = vadd.f32 %v1245, %v1246
  %v1248 = vsel %vm1128, %v933, 0.0
  %v1249 = vadd.f32 %v1247, %v1248
  %v1250 = vrot.slane %v1249, 4
  %v1251 = vadd.f32 %v1249, %v1250
  %v1252 = vrot.slane %v1251, 2
  %v1253 = vadd.f32 %v1251, %v1252
  %v1254 = vrot.slane %v1253, 1
  %v1255 = vadd.f32 %v1253, %v1254
  %v1256 = vmul.f32 %v918, %v918
  %v1257 = vmul.f32 %v919, %v919
  %v1258 = vmul.f32 %v920, %v920
  %v1259 = vmul.f32 %v921, %v921
  %v1260 = vmul.f32 %v922, %v922
  %v1261 = vmul.f32 %v923, %v923
  %v1262 = vmul.f32 %v924, %v924
  %v1263 = vmul.f32 %v925, %v925
  %v1264 = vmul.f32 %v926, %v926
  %v1265 = vmul.f32 %v927, %v927
  %v1266 = vmul.f32 %v928, %v928
  %v1267 = vmul.f32 %v929, %v929
  %v1268 = vmul.f32 %v930, %v930
  %v1269 = vmul.f32 %v931, %v931
  %v1270 = vmul.f32 %v932, %v932
  %v1271 = vmul.f32 %v933, %v933
  %v1272 = vsel %vm1128, %v1256, 0.0
  %v1273 = vsel %vm1128, %v1257, 0.0
  %v1274 = vadd.f32 %v1272, %v1273
  %v1275 = vsel %vm1128, %v1258, 0.0
  %v1276 = vadd.f32 %v1274, %v1275
  %v1277 = vsel %vm1128, %v1259, 0.0
  %v1278 = vadd.f32 %v1276, %v1277
  %v1279 = vsel %vm1128, %v1260, 0.0
  %v1280 = vadd.f32 %v1278, %v1279
  %v1281 = vsel %vm1128, %v1261, 0.0
  %v1282 = vadd.f32 %v1280, %v1281
  %v1283 = vsel %vm1128, %v1262, 0.0
  %v1284 = vadd.f32 %v1282, %v1283
  %v1285 = vsel %vm1128, %v1263, 0.0
  %v1286 = vadd.f32 %v1284, %v1285
  %v1287 = vsel %vm1128, %v1264, 0.0
  %v1288 = vadd.f32 %v1286, %v1287
  %v1289 = vsel %vm1128, %v1265, 0.0
  %v1290 = vadd.f32 %v1288, %v1289
  %v1291 = vsel %vm1128, %v1266, 0.0
  %v1292 = vadd.f32 %v1290, %v1291
  %v1293 = vsel %vm1128, %v1267, 0.0
  %v1294 = vadd.f32 %v1292, %v1293
  %v1295 = vsel %vm1128, %v1268, 0.0
  %v1296 = vadd.f32 %v1294, %v1295
  %v1297 = vsel %vm1128, %v1269, 0.0
  %v1298 = vadd.f32 %v1296, %v1297
  %v1299 = vsel %vm1128, %v1270, 0.0
  %v1300 = vadd.f32 %v1298, %v1299
  %v1301 = vsel %vm1128, %v1271, 0.0
  %v1302 = vadd.f32 %v1300, %v1301
  %v1303 = vrot.slane %v1302, 4
  %v1304 = vadd.f32 %v1302, %v1303
  %v1305 = vrot.slane %v1304, 2
  %v1306 = vadd.f32 %v1304, %v1305
  %v1307 = vrot.slane %v1306, 1
  %v1308 = vadd.f32 %v1306, %v1307
  %vm1309 = vcmask 1040384
  %v1310 = vsel %vm1309, %v1165, %v1218
  %vm1311 = vcmask 1041408
  %v1312 = vsel %vm1311, %v1310, %v1255
  %vm1313 = vcmask 1042432
  %v1314 = vsel %vm1313, %v1312, %v1308
  %1315 = vst.msk [vmem:[%s6] sm:$0xf] %vm998, %v1314
  // Predicated region
  $region22: #{bottleneck_forward.6} parent=0 // pred_check
    _
  $region23: #{bottleneck_forward.6} parent=0 // pred_check_branch
    %1317 = sbr.rel (0) target = $region25
  $region24: #{bottleneck_forward.6} parent=0 // pred_region
    _
  $region25: #{bottleneck_forward.6} parent=0 // pred_fallthru
    _
  // Predicated region
  $region26: #{bottleneck_forward.6} parent=0 // pred_check
    _
  $region27: #{bottleneck_forward.6} parent=0 // pred_check_branch
    %1319 = sbr.rel (0) target = $region29
  $region28: #{bottleneck_forward.6} parent=0 // pred_region
    _
  $region29: #{bottleneck_forward.6} parent=0 // pred_fallthru
    _
  // Predicated region
  $region30: #{bottleneck_forward.6} parent=0 // pred_check
    _
  $region31: #{bottleneck_forward.6} parent=0 // pred_check_branch
    %1321 = sbr.rel (0) target = $region33
  $region32: #{bottleneck_forward.6} parent=0 // pred_region
    _
  $region33: #{bottleneck_forward.6} parent=0 // pred_fallthru
    _
  // Predicated region
  $region34: #{bottleneck_forward.6} parent=0 // pred_check
    _
  $region35: #{bottleneck_forward.6} parent=0 // pred_check_branch
    %1323 = sbr.rel (0) target = $region37
  $region36: #{bottleneck_forward.6} parent=0 // pred_region
    _
  $region37: #{bottleneck_forward.6} parent=0 // pred_fallthru
    _

// kernel: bottleneck_forward.7
$region0: #{bottleneck_forward.7}
  #allocation0 [shape = 'u32[]', space=smem, size = 0x4, offset = 0x4, fixed_abs, tag = 'smem constant byte address 0x4 - core index']
  #allocation1 [shape = 'u32[144,128]{1,0:T(1,128)}', space=vmem, size = 0x12000, scoped, tag = 'internal scratch']
  %s0 = inlined_call_operand.vmem [shape: bf16[128,64], index: 0, kind: input, shape index: {}]
  %s1 = inlined_call_operand.vmem [shape: f32[128,32], index: 1, kind: input, shape index: {}]
  %s2 = inlined_call_operand.vmem [shape: f32[128,32], index: 2, kind: input, shape index: {}]
  %s3 = inlined_call_operand.vmem [shape: f32[6,32], index: 3, kind: input, shape index: {}]
  %s4 = inlined_call_operand.hbm [shape: f32[128,32], index: 4, kind: output, shape index: {0}]
  %s5 = inlined_call_operand.hbm [shape: f32[128,32], index: 5, kind: output, shape index: {1}]
  %6 = xla_tuple %s4, %s5
  %s7 = sld [smem:[#allocation0]]
  $region34: #{bottleneck_forward.7} parent=0
    _
  %s9 = ssub.s32 1, %s7
  %s10 = scalar_select 0, %s9, %s7
  $region1: #{bottleneck_forward.7} parent=0
    #allocation2 [shape = 'u8[65536]{0}', space=vmem, size = 0x10000, scoped, tag = 'output window, operand 0, single buffered']
    #allocation3 [shape = 's32[1]{0}', space=sflag, size = 0x4, scoped, tag = 'scoped memory for bottleneck_forward.7']
    #allocation4 [shape = 'u8[65536]{0}', space=vmem, size = 0x10000, scoped, tag = 'output window, operand 1, single buffered']
    #allocation5 [shape = 's32[1]{0}', space=sflag, size = 0x4, scoped, tag = 'scoped memory for bottleneck_forward.7']
    %11 = vsyncpa [#allocation3], 0
    %12 = vsyncpa [#allocation5], 0
    // Predicated region
    $region2: #{bottleneck_forward.7} parent=1 // pred_check
      _
    $region3: #{bottleneck_forward.7} parent=1 // pred_check_branch
      %14 = sbr.rel (0) target = $region5
    $region4: #{bottleneck_forward.7} parent=1 // pred_region
      _
    $region5: #{bottleneck_forward.7} parent=1 // pred_fallthru
      _
    // Predicated region
    $region6: #{bottleneck_forward.7} parent=1 // pred_check
      _
    $region7: #{bottleneck_forward.7} parent=1 // pred_check_branch
      %16 = sbr.rel (0) target = $region9
    $region8: #{bottleneck_forward.7} parent=1 // pred_region
      _
    $region9: #{bottleneck_forward.7} parent=1 // pred_fallthru
      _
    // Predicated region
    $region10: #{bottleneck_forward.7} parent=1 // pred_check
      _
    $region11: #{bottleneck_forward.7} parent=1 // pred_check_branch
      %18 = sbr.rel (0) target = $region13
    $region12: #{bottleneck_forward.7} parent=1 // pred_region
      _
    $region13: #{bottleneck_forward.7} parent=1 // pred_fallthru
      _
    // Predicated region
    $region14: #{bottleneck_forward.7} parent=1 // pred_check
      _
    $region15: #{bottleneck_forward.7} parent=1 // pred_check_branch
      %20 = sbr.rel (0) target = $region17
    $region16: #{bottleneck_forward.7} parent=1 // pred_region
      _
    $region17: #{bottleneck_forward.7} parent=1 // pred_fallthru
      _
    %v21 = vld [vmem:[%s0] sm:$0xf]
    %v22 = vld [vmem:[%s0 + $0x4] sm:$0xf]
    %v23 = vld [vmem:[%s0 + $0x8] sm:$0xf]
    %v24 = vld [vmem:[%s0 + $0xc] sm:$0xf]
    %v25 = vld [vmem:[%s0 + $0x10] sm:$0xf]
    %v26 = vld [vmem:[%s0 + $0x14] sm:$0xf]
    %v27 = vld [vmem:[%s0 + $0x18] sm:$0xf]
    %v28 = vld [vmem:[%s0 + $0x1c] sm:$0xf]
    %v29 = vld [vmem:[%s0 + $0x20] sm:$0xf]
    %v30 = vld [vmem:[%s0 + $0x24] sm:$0xf]
    %v31 = vld [vmem:[%s0 + $0x28] sm:$0xf]
    %v32 = vld [vmem:[%s0 + $0x2c] sm:$0xf]
    %v33 = vld [vmem:[%s0 + $0x30] sm:$0xf]
    %v34 = vld [vmem:[%s0 + $0x34] sm:$0xf]
    %v35 = vld [vmem:[%s0 + $0x38] sm:$0xf]
    %v36 = vld [vmem:[%s0 + $0x3c] sm:$0xf]
    %v37 = vunpack.c.l.bf16 %v21
    %v38 = vunpack.c.l.bf16 %v22
    %v39 = vunpack.c.l.bf16 %v23
    %v40 = vunpack.c.l.bf16 %v24
    %v41 = vunpack.c.l.bf16 %v25
    %v42 = vunpack.c.l.bf16 %v26
    %v43 = vunpack.c.l.bf16 %v27
    %v44 = vunpack.c.l.bf16 %v28
    %v45 = vunpack.c.l.bf16 %v29
    %v46 = vunpack.c.l.bf16 %v30
    %v47 = vunpack.c.l.bf16 %v31
    %v48 = vunpack.c.l.bf16 %v32
    %v49 = vunpack.c.l.bf16 %v33
    %v50 = vunpack.c.l.bf16 %v34
    %v51 = vunpack.c.l.bf16 %v35
    %v52 = vunpack.c.l.bf16 %v36
    %v53 = vld [vmem:[%s3] sm:$0x1]
    %v54 = vlaneseq
    %v55 = vshrl.u32 %v54, 7
    %v56 = vsub.s32 0, %v55
    %v57 = vrot.slane %v53, %v56
    %v58 = vmul.f32 %v37, %v57
    %v59 = vmul.f32 %v38, %v57
    %v60 = vmul.f32 %v39, %v57
    %v61 = vmul.f32 %v40, %v57
    %v62 = vmul.f32 %v41, %v57
    %v63 = vmul.f32 %v42, %v57
    %v64 = vmul.f32 %v43, %v57
    %v65 = vmul.f32 %v44, %v57
    %v66 = vmul.f32 %v45, %v57
    %v67 = vmul.f32 %v46, %v57
    %v68 = vmul.f32 %v47, %v57
    %v69 = vmul.f32 %v48, %v57
    %v70 = vmul.f32 %v49, %v57
    %v71 = vmul.f32 %v50, %v57
    %v72 = vmul.f32 %v51, %v57
    %v73 = vmul.f32 %v52, %v57
    %v74 = vld [vmem:[%s3 + $0x1] sm:$0x1]
    %v75 = vlaneseq
    %v76 = vshrl.u32 %v75, 7
    %v77 = vsub.s32 0, %v76
    %v78 = vrot.slane %v74, %v77
    %v79 = vadd.f32 %v58, %v78
    %v80 = vadd.f32 %v59, %v78
    %v81 = vadd.f32 %v60, %v78
    %v82 = vadd.f32 %v61, %v78
    %v83 = vadd.f32 %v62, %v78
    %v84 = vadd.f32 %v63, %v78
    %v85 = vadd.f32 %v64, %v78
    %v86 = vadd.f32 %v65, %v78
    %v87 = vadd.f32 %v66, %v78
    %v88 = vadd.f32 %v67, %v78
    %v89 = vadd.f32 %v68, %v78
    %v90 = vadd.f32 %v69, %v78
    %v91 = vadd.f32 %v70, %v78
    %v92 = vadd.f32 %v71, %v78
    %v93 = vadd.f32 %v72, %v78
    %v94 = vadd.f32 %v73, %v78
    %v95 = vld [vmem:[%s1] sm:$0xff]
    %v96 = vld [vmem:[%s1 + $0x8] sm:$0xff]
    %v97 = vld [vmem:[%s1 + $0x10] sm:$0xff]
    %v98 = vld [vmem:[%s1 + $0x18] sm:$0xff]
    %v99 = vld [vmem:[%s1 + $0x20] sm:$0xff]
    %v100 = vld [vmem:[%s1 + $0x28] sm:$0xff]
    %v101 = vld [vmem:[%s1 + $0x30] sm:$0xff]
    %v102 = vld [vmem:[%s1 + $0x38] sm:$0xff]
    %v103 = vld [vmem:[%s1 + $0x40] sm:$0xff]
    %v104 = vld [vmem:[%s1 + $0x48] sm:$0xff]
    %v105 = vld [vmem:[%s1 + $0x50] sm:$0xff]
    %v106 = vld [vmem:[%s1 + $0x58] sm:$0xff]
    %v107 = vld [vmem:[%s1 + $0x60] sm:$0xff]
    %v108 = vld [vmem:[%s1 + $0x68] sm:$0xff]
    %v109 = vld [vmem:[%s1 + $0x70] sm:$0xff]
    %v110 = vld [vmem:[%s1 + $0x78] sm:$0xff]
    %v111 = vadd.f32 %v79, %v95
    %v112 = vadd.f32 %v80, %v96
    %v113 = vadd.f32 %v81, %v97
    %v114 = vadd.f32 %v82, %v98
    %v115 = vadd.f32 %v83, %v99
    %v116 = vadd.f32 %v84, %v100
    %v117 = vadd.f32 %v85, %v101
    %v118 = vadd.f32 %v86, %v102
    %v119 = vadd.f32 %v87, %v103
    %v120 = vadd.f32 %v88, %v104
    %v121 = vadd.f32 %v89, %v105
    %v122 = vadd.f32 %v90, %v106
    %v123 = vadd.f32 %v91, %v107
    %v124 = vadd.f32 %v92, %v108
    %v125 = vadd.f32 %v93, %v109
    %v126 = vadd.f32 %v94, %v110
    %v127 = vld [vmem:[%s3 + $0x3] sm:$0x1]
    %v128 = vlaneseq
    %v129 = vshrl.u32 %v128, 7
    %v130 = vsub.s32 0, %v129
    %v131 = vrot.slane %v127, %v130
    %133 = vrot.lane.b32.xlu0 %v131, 32
    %v134 = vpop.permute.xlu0 %133
    %v136 = vmul.f32 %v37, %v134
    %v137 = vmul.f32 %v38, %v134
    %v138 = vmul.f32 %v39, %v134
    %v139 = vmul.f32 %v40, %v134
    %v140 = vmul.f32 %v41, %v134
    %v141 = vmul.f32 %v42, %v134
    %v142 = vmul.f32 %v43, %v134
    %v143 = vmul.f32 %v44, %v134
    %v144 = vmul.f32 %v45, %v134
    %v145 = vmul.f32 %v46, %v134
    %v146 = vmul.f32 %v47, %v134
    %v147 = vmul.f32 %v48, %v134
    %v148 = vmul.f32 %v49, %v134
    %v149 = vmul.f32 %v50, %v134
    %v150 = vmul.f32 %v51, %v134
    %v151 = vmul.f32 %v52, %v134
    %v152 = vld [vmem:[%s3 + $0x4] sm:$0x1]
    %v153 = vlaneseq
    %v154 = vshrl.u32 %v153, 7
    %v155 = vsub.s32 0, %v154
    %v156 = vrot.slane %v152, %v155
    %158 = vrot.lane.b32.xlu0 %v156, 32
    %v159 = vpop.permute.xlu0 %158
    %v161 = vadd.f32 %v136, %v159
    %v162 = vadd.f32 %v137, %v159
    %v163 = vadd.f32 %v138, %v159
    %v164 = vadd.f32 %v139, %v159
    %v165 = vadd.f32 %v140, %v159
    %v166 = vadd.f32 %v141, %v159
    %v167 = vadd.f32 %v142, %v159
    %v168 = vadd.f32 %v143, %v159
    %v169 = vadd.f32 %v144, %v159
    %v170 = vadd.f32 %v145, %v159
    %v171 = vadd.f32 %v146, %v159
    %v172 = vadd.f32 %v147, %v159
    %v173 = vadd.f32 %v148, %v159
    %v174 = vadd.f32 %v149, %v159
    %v175 = vadd.f32 %v150, %v159
    %v176 = vadd.f32 %v151, %v159
    %v177 = vld [vmem:[%s2] sm:$0xff]
    %v178 = vld [vmem:[%s2 + $0x8] sm:$0xff]
    %v179 = vld [vmem:[%s2 + $0x10] sm:$0xff]
    %v180 = vld [vmem:[%s2 + $0x18] sm:$0xff]
    %v181 = vld [vmem:[%s2 + $0x20] sm:$0xff]
    %v182 = vld [vmem:[%s2 + $0x28] sm:$0xff]
    %v183 = vld [vmem:[%s2 + $0x30] sm:$0xff]
    %v184 = vld [vmem:[%s2 + $0x38] sm:$0xff]
    %v185 = vld [vmem:[%s2 + $0x40] sm:$0xff]
    %v186 = vld [vmem:[%s2 + $0x48] sm:$0xff]
    %v187 = vld [vmem:[%s2 + $0x50] sm:$0xff]
    %v188 = vld [vmem:[%s2 + $0x58] sm:$0xff]
    %v189 = vld [vmem:[%s2 + $0x60] sm:$0xff]
    %v190 = vld [vmem:[%s2 + $0x68] sm:$0xff]
    %v191 = vld [vmem:[%s2 + $0x70] sm:$0xff]
    %v192 = vld [vmem:[%s2 + $0x78] sm:$0xff]
    %209 = vrot.lane.b32.xlu0 %v177, 32
    %v210 = vpop.permute.xlu0 %209
    %211 = vrot.lane.b32.xlu0 %v178, 32
    %v212 = vpop.permute.xlu0 %211
    %213 = vrot.lane.b32.xlu0 %v179, 32
    %v214 = vpop.permute.xlu0 %213
    %215 = vrot.lane.b32.xlu0 %v180, 32
    %v216 = vpop.permute.xlu0 %215
    %217 = vrot.lane.b32.xlu0 %v181, 32
    %v218 = vpop.permute.xlu0 %217
    %219 = vrot.lane.b32.xlu0 %v182, 32
    %v220 = vpop.permute.xlu0 %219
    %221 = vrot.lane.b32.xlu0 %v183, 32
    %v222 = vpop.permute.xlu0 %221
    %223 = vrot.lane.b32.xlu0 %v184, 32
    %v224 = vpop.permute.xlu0 %223
    %225 = vrot.lane.b32.xlu0 %v185, 32
    %v226 = vpop.permute.xlu0 %225
    %227 = vrot.lane.b32.xlu0 %v186, 32
    %v228 = vpop.permute.xlu0 %227
    %229 = vrot.lane.b32.xlu0 %v187, 32
    %v230 = vpop.permute.xlu0 %229
    %231 = vrot.lane.b32.xlu0 %v188, 32
    %v232 = vpop.permute.xlu0 %231
    %233 = vrot.lane.b32.xlu0 %v189, 32
    %v234 = vpop.permute.xlu0 %233
    %235 = vrot.lane.b32.xlu0 %v190, 32
    %v236 = vpop.permute.xlu0 %235
    %237 = vrot.lane.b32.xlu0 %v191, 32
    %v238 = vpop.permute.xlu0 %237
    %239 = vrot.lane.b32.xlu0 %v192, 32
    %v240 = vpop.permute.xlu0 %239
    %v257 = vadd.f32 %v161, %v210
    %v258 = vadd.f32 %v162, %v212
    %v259 = vadd.f32 %v163, %v214
    %v260 = vadd.f32 %v164, %v216
    %v261 = vadd.f32 %v165, %v218
    %v262 = vadd.f32 %v166, %v220
    %v263 = vadd.f32 %v167, %v222
    %v264 = vadd.f32 %v168, %v224
    %v265 = vadd.f32 %v169, %v226
    %v266 = vadd.f32 %v170, %v228
    %v267 = vadd.f32 %v171, %v230
    %v268 = vadd.f32 %v172, %v232
    %v269 = vadd.f32 %v173, %v234
    %v270 = vadd.f32 %v174, %v236
    %v271 = vadd.f32 %v175, %v238
    %v272 = vadd.f32 %v176, %v240
    %vm273 = vcmp.ge.f32.partialorder %v111, 0.0
    %vm274 = vcmp.ge.f32.partialorder %v112, 0.0
    %vm275 = vcmp.ge.f32.partialorder %v113, 0.0
    %vm276 = vcmp.ge.f32.partialorder %v114, 0.0
    %vm277 = vcmp.ge.f32.partialorder %v115, 0.0
    %vm278 = vcmp.ge.f32.partialorder %v116, 0.0
    %vm279 = vcmp.ge.f32.partialorder %v117, 0.0
    %vm280 = vcmp.ge.f32.partialorder %v118, 0.0
    %vm281 = vcmp.ge.f32.partialorder %v119, 0.0
    %vm282 = vcmp.ge.f32.partialorder %v120, 0.0
    %vm283 = vcmp.ge.f32.partialorder %v121, 0.0
    %vm284 = vcmp.ge.f32.partialorder %v122, 0.0
    %vm285 = vcmp.ge.f32.partialorder %v123, 0.0
    %vm286 = vcmp.ge.f32.partialorder %v124, 0.0
    %vm287 = vcmp.ge.f32.partialorder %v125, 0.0
    %vm288 = vcmp.ge.f32.partialorder %v126, 0.0
    %v289 = vld [vmem:[%s3 + $0x2] sm:$0x1]
    %v290 = vlaneseq
    %v291 = vshrl.u32 %v290, 7
    %v292 = vsub.s32 0, %v291
    %v293 = vrot.slane %v289, %v292
    %v294 = vmul.f32 %v293, %v111
    %v295 = vmul.f32 %v293, %v112
    %v296 = vmul.f32 %v293, %v113
    %v297 = vmul.f32 %v293, %v114
    %v298 = vmul.f32 %v293, %v115
    %v299 = vmul.f32 %v293, %v116
    %v300 = vmul.f32 %v293, %v117
    %v301 = vmul.f32 %v293, %v118
    %v302 = vmul.f32 %v293, %v119
    %v303 = vmul.f32 %v293, %v120
    %v304 = vmul.f32 %v293, %v121
    %v305 = vmul.f32 %v293, %v122
    %v306 = vmul.f32 %v293, %v123
    %v307 = vmul.f32 %v293, %v124
    %v308 = vmul.f32 %v293, %v125
    %v309 = vmul.f32 %v293, %v126
    %v310 = vsel %vm273, %v111, %v294
    %v311 = vsel %vm274, %v112, %v295
    %v312 = vsel %vm275, %v113, %v296
    %v313 = vsel %vm276, %v114, %v297
    %v314 = vsel %vm277, %v115, %v298
    %v315 = vsel %vm278, %v116, %v299
    %v316 = vsel %vm279, %v117, %v300
    %v317 = vsel %vm280, %v118, %v301
    %v318 = vsel %vm281, %v119, %v302
    %v319 = vsel %vm282, %v120, %v303
    %v320 = vsel %vm283, %v121, %v304
    %v321 = vsel %vm284, %v122, %v305
    %v322 = vsel %vm285, %v123, %v306
    %v323 = vsel %vm286, %v124, %v307
    %v324 = vsel %vm287, %v125, %v308
    %v325 = vsel %vm288, %v126, %v309
    %vm326 = vcmask 261120
    %327 = vst.msk [vmem:[#allocation2] sm:$0xff] %vm326, %v310
    %328 = vst.msk [vmem:[#allocation2 + $0x8] sm:$0xff] %vm326, %v311
    %329 = vst.msk [vmem:[#allocation2 + $0x10] sm:$0xff] %vm326, %v312
    %330 = vst.msk [vmem:[#allocation2 + $0x18] sm:$0xff] %vm326, %v313
    %331 = vst.msk [vmem:[#allocation2 + $0x20] sm:$0xff] %vm326, %v314
    %332 = vst.msk [vmem:[#allocation2 + $0x28] sm:$0xff] %vm326, %v315
    %333 = vst.msk [vmem:[#allocation2 + $0x30] sm:$0xff] %vm326, %v316
    %334 = vst.msk [vmem:[#allocation2 + $0x38] sm:$0xff] %vm326, %v317
    %335 = vst.msk [vmem:[#allocation2 + $0x40] sm:$0xff] %vm326, %v318
    %336 = vst.msk [vmem:[#allocation2 + $0x48] sm:$0xff] %vm326, %v319
    %337 = vst.msk [vmem:[#allocation2 + $0x50] sm:$0xff] %vm326, %v320
    %338 = vst.msk [vmem:[#allocation2 + $0x58] sm:$0xff] %vm326, %v321
    %339 = vst.msk [vmem:[#allocation2 + $0x60] sm:$0xff] %vm326, %v322
    %340 = vst.msk [vmem:[#allocation2 + $0x68] sm:$0xff] %vm326, %v323
    %341 = vst.msk [vmem:[#allocation2 + $0x70] sm:$0xff] %vm326, %v324
    %342 = vst.msk [vmem:[#allocation2 + $0x78] sm:$0xff] %vm326, %v325
    %vm343 = vcmp.ge.f32.partialorder %v257, 0.0
    %vm344 = vcmp.ge.f32.partialorder %v258, 0.0
    %vm345 = vcmp.ge.f32.partialorder %v259, 0.0
    %vm346 = vcmp.ge.f32.partialorder %v260, 0.0
    %vm347 = vcmp.ge.f32.partialorder %v261, 0.0
    %vm348 = vcmp.ge.f32.partialorder %v262, 0.0
    %vm349 = vcmp.ge.f32.partialorder %v263, 0.0
    %vm350 = vcmp.ge.f32.partialorder %v264, 0.0
    %vm351 = vcmp.ge.f32.partialorder %v265, 0.0
    %vm352 = vcmp.ge.f32.partialorder %v266, 0.0
    %vm353 = vcmp.ge.f32.partialorder %v267, 0.0
    %vm354 = vcmp.ge.f32.partialorder %v268, 0.0
    %vm355 = vcmp.ge.f32.partialorder %v269, 0.0
    %vm356 = vcmp.ge.f32.partialorder %v270, 0.0
    %vm357 = vcmp.ge.f32.partialorder %v271, 0.0
    %vm358 = vcmp.ge.f32.partialorder %v272, 0.0
    %v359 = vld [vmem:[%s3 + $0x5] sm:$0x1]
    %v360 = vlaneseq
    %v361 = vshrl.u32 %v360, 7
    %v362 = vsub.s32 0, %v361
    %v363 = vrot.slane %v359, %v362
    %380 = vrot.lane.b32.xlu0 %v257, 96
    %v381 = vpop.permute.xlu0 %380
    %382 = vrot.lane.b32.xlu0 %v258, 96
    %v383 = vpop.permute.xlu0 %382
    %384 = vrot.lane.b32.xlu0 %v259, 96
    %v385 = vpop.permute.xlu0 %384
    %386 = vrot.lane.b32.xlu0 %v260, 96
    %v387 = vpop.permute.xlu0 %386
    %388 = vrot.lane.b32.xlu0 %v261, 96
    %v389 = vpop.permute.xlu0 %388
    %390 = vrot.lane.b32.xlu0 %v262, 96
    %v391 = vpop.permute.xlu0 %390
    %392 = vrot.lane.b32.xlu0 %v263, 96
    %v393 = vpop.permute.xlu0 %392
    %394 = vrot.lane.b32.xlu0 %v264, 96
    %v395 = vpop.permute.xlu0 %394
    %396 = vrot.lane.b32.xlu0 %v265, 96
    %v397 = vpop.permute.xlu0 %396
    %398 = vrot.lane.b32.xlu0 %v266, 96
    %v399 = vpop.permute.xlu0 %398
    %400 = vrot.lane.b32.xlu0 %v267, 96
    %v401 = vpop.permute.xlu0 %400
    %402 = vrot.lane.b32.xlu0 %v268, 96
    %v403 = vpop.permute.xlu0 %402
    %404 = vrot.lane.b32.xlu0 %v269, 96
    %v405 = vpop.permute.xlu0 %404
    %406 = vrot.lane.b32.xlu0 %v270, 96
    %v407 = vpop.permute.xlu0 %406
    %408 = vrot.lane.b32.xlu0 %v271, 96
    %v409 = vpop.permute.xlu0 %408
    %410 = vrot.lane.b32.xlu0 %v272, 96
    %v411 = vpop.permute.xlu0 %410
    %v428 = vmul.f32 %v363, %v381
    %v429 = vmul.f32 %v363, %v383
    %v430 = vmul.f32 %v363, %v385
    %v431 = vmul.f32 %v363, %v387
    %v432 = vmul.f32 %v363, %v389
    %v433 = vmul.f32 %v363, %v391
    %v434 = vmul.f32 %v363, %v393
    %v435 = vmul.f32 %v363, %v395
    %v436 = vmul.f32 %v363, %v397
    %v437 = vmul.f32 %v363, %v399
    %v438 = vmul.f32 %v363, %v401
    %v439 = vmul.f32 %v363, %v403
    %v440 = vmul.f32 %v363, %v405
    %v441 = vmul.f32 %v363, %v407
    %v442 = vmul.f32 %v363, %v409
    %v443 = vmul.f32 %v363, %v411
    %460 = vrot.lane.b32.xlu0 %v428, 32
    %v461 = vpop.permute.xlu0 %460
    %462 = vrot.lane.b32.xlu0 %v429, 32
    %v463 = vpop.permute.xlu0 %462
    %464 = vrot.lane.b32.xlu0 %v430, 32
    %v465 = vpop.permute.xlu0 %464
    %466 = vrot.lane.b32.xlu0 %v431, 32
    %v467 = vpop.permute.xlu0 %466
    %468 = vrot.lane.b32.xlu0 %v432, 32
    %v469 = vpop.permute.xlu0 %468
    %470 = vrot.lane.b32.xlu0 %v433, 32
    %v471 = vpop.permute.xlu0 %470
    %472 = vrot.lane.b32.xlu0 %v434, 32
    %v473 = vpop.permute.xlu0 %472
    %474 = vrot.lane.b32.xlu0 %v435, 32
    %v475 = vpop.permute.xlu0 %474
    %476 = vrot.lane.b32.xlu0 %v436, 32
    %v477 = vpop.permute.xlu0 %476
    %478 = vrot.lane.b32.xlu0 %v437, 32
    %v479 = vpop.permute.xlu0 %478
    %480 = vrot.lane.b32.xlu0 %v438, 32
    %v481 = vpop.permute.xlu0 %480
    %482 = vrot.lane.b32.xlu0 %v439, 32
    %v483 = vpop.permute.xlu0 %482
    %484 = vrot.lane.b32.xlu0 %v440, 32
    %v485 = vpop.permute.xlu0 %484
    %486 = vrot.lane.b32.xlu0 %v441, 32
    %v487 = vpop.permute.xlu0 %486
    %488 = vrot.lane.b32.xlu0 %v442, 32
    %v489 = vpop.permute.xlu0 %488
    %490 = vrot.lane.b32.xlu0 %v443, 32
    %v491 = vpop.permute.xlu0 %490
    %v508 = vsel %vm343, %v257, %v461
    %v509 = vsel %vm344, %v258, %v463
    %v510 = vsel %vm345, %v259, %v465
    %v511 = vsel %vm346, %v260, %v467
    %v512 = vsel %vm347, %v261, %v469
    %v513 = vsel %vm348, %v262, %v471
    %v514 = vsel %vm349, %v263, %v473
    %v515 = vsel %vm350, %v264, %v475
    %v516 = vsel %vm351, %v265, %v477
    %v517 = vsel %vm352, %v266, %v479
    %v518 = vsel %vm353, %v267, %v481
    %v519 = vsel %vm354, %v268, %v483
    %v520 = vsel %vm355, %v269, %v485
    %v521 = vsel %vm356, %v270, %v487
    %v522 = vsel %vm357, %v271, %v489
    %v523 = vsel %vm358, %v272, %v491
    %540 = vrot.lane.b32.xlu0 %v508, 96
    %v541 = vpop.permute.xlu0 %540
    %542 = vrot.lane.b32.xlu0 %v509, 96
    %v543 = vpop.permute.xlu0 %542
    %544 = vrot.lane.b32.xlu0 %v510, 96
    %v545 = vpop.permute.xlu0 %544
    %546 = vrot.lane.b32.xlu0 %v511, 96
    %v547 = vpop.permute.xlu0 %546
    %548 = vrot.lane.b32.xlu0 %v512, 96
    %v549 = vpop.permute.xlu0 %548
    %550 = vrot.lane.b32.xlu0 %v513, 96
    %v551 = vpop.permute.xlu0 %550
    %552 = vrot.lane.b32.xlu0 %v514, 96
    %v553 = vpop.permute.xlu0 %552
    %554 = vrot.lane.b32.xlu0 %v515, 96
    %v555 = vpop.permute.xlu0 %554
    %556 = vrot.lane.b32.xlu0 %v516, 96
    %v557 = vpop.permute.xlu0 %556
    %558 = vrot.lane.b32.xlu0 %v517, 96
    %v559 = vpop.permute.xlu0 %558
    %560 = vrot.lane.b32.xlu0 %v518, 96
    %v561 = vpop.permute.xlu0 %560
    %562 = vrot.lane.b32.xlu0 %v519, 96
    %v563 = vpop.permute.xlu0 %562
    %564 = vrot.lane.b32.xlu0 %v520, 96
    %v565 = vpop.permute.xlu0 %564
    %566 = vrot.lane.b32.xlu0 %v521, 96
    %v567 = vpop.permute.xlu0 %566
    %568 = vrot.lane.b32.xlu0 %v522, 96
    %v569 = vpop.permute.xlu0 %568
    %570 = vrot.lane.b32.xlu0 %v523, 96
    %v571 = vpop.permute.xlu0 %570
    %588 = vst.msk [vmem:[#allocation4] sm:$0xff] %vm326, %v541
    %589 = vst.msk [vmem:[#allocation4 + $0x8] sm:$0xff] %vm326, %v543
    %590 = vst.msk [vmem:[#allocation4 + $0x10] sm:$0xff] %vm326, %v545
    %591 = vst.msk [vmem:[#allocation4 + $0x18] sm:$0xff] %vm326, %v547
    %592 = vst.msk [vmem:[#allocation4 + $0x20] sm:$0xff] %vm326, %v549
    %593 = vst.msk [vmem:[#allocation4 + $0x28] sm:$0xff] %vm326, %v551
    %594 = vst.msk [vmem:[#allocation4 + $0x30] sm:$0xff] %vm326, %v553
    %595 = vst.msk [vmem:[#allocation4 + $0x38] sm:$0xff] %vm326, %v555
    %596 = vst.msk [vmem:[#allocation4 + $0x40] sm:$0xff] %vm326, %v557
    %597 = vst.msk [vmem:[#allocation4 + $0x48] sm:$0xff] %vm326, %v559
    %598 = vst.msk [vmem:[#allocation4 + $0x50] sm:$0xff] %vm326, %v561
    %599 = vst.msk [vmem:[#allocation4 + $0x58] sm:$0xff] %vm326, %v563
    %600 = vst.msk [vmem:[#allocation4 + $0x60] sm:$0xff] %vm326, %v565
    %601 = vst.msk [vmem:[#allocation4 + $0x68] sm:$0xff] %vm326, %v567
    %602 = vst.msk [vmem:[#allocation4 + $0x70] sm:$0xff] %vm326, %v569
    %603 = vst.msk [vmem:[#allocation4 + $0x78] sm:$0xff] %vm326, %v571
    // Predicated region
    $region18: #{bottleneck_forward.7} parent=1 // pred_check
      _
    $region19: #{bottleneck_forward.7} parent=1 // pred_check_branch
      %605 = sbr.rel (0) target = $region21
    $region20: #{bottleneck_forward.7} parent=1 // pred_region
      %s607 = ssub.s32 2048, 2048
      %608 = vsyncadd [#allocation3], %s607
      %s609 = sshll.u32 [#allocation2], 4
      %s610 = int_to_ptr.vmem [resolvable:$true] %s609
      %615 = dma.vmem_to_hbm [thread:$0]  %s610, 2048, %s4, [#allocation3], 128, 128, 8
    $region21: #{bottleneck_forward.7} parent=1 // pred_fallthru
      _
    // Predicated region
    $region22: #{bottleneck_forward.7} parent=1 // pred_check
      _
    $region23: #{bottleneck_forward.7} parent=1 // pred_check_branch
      %617 = sbr.rel (0) target = $region25
    $region24: #{bottleneck_forward.7} parent=1 // pred_region
      %s619 = ssub.s32 2048, 2048
      %620 = vsyncadd [#allocation5], %s619
      %s621 = sshll.u32 [#allocation4], 4
      %s622 = int_to_ptr.vmem [resolvable:$true] %s621
      %627 = dma.vmem_to_hbm [thread:$0]  %s622, 2048, %s5, [#allocation5], 128, 128, 8
    $region25: #{bottleneck_forward.7} parent=1 // pred_fallthru
      _
    // Predicated region
    $region26: #{bottleneck_forward.7} parent=1 // pred_check
      _
    $region27: #{bottleneck_forward.7} parent=1 // pred_check_branch
      %629 = sbr.rel (0) target = $region29
    $region28: #{bottleneck_forward.7} parent=1 // pred_region
      %630 = dma.done [#allocation3], 2048
    $region29: #{bottleneck_forward.7} parent=1 // pred_fallthru
      _
    // Predicated region
    $region30: #{bottleneck_forward.7} parent=1 // pred_check
      _
    $region31: #{bottleneck_forward.7} parent=1 // pred_check_branch
      %632 = sbr.rel (0) target = $region33
    $region32: #{bottleneck_forward.7} parent=1 // pred_region
      %633 = dma.done [#allocation5], 2048
    $region33: #{bottleneck_forward.7} parent=1 // pred_fallthru
      _
    %634 = vsyncpa [#allocation3], 1
    %635 = vsyncpa [#allocation5], 1

// kernel: bottleneck_forward.5
$region0: #{bottleneck_forward.5}
  #allocation0 [shape = 'u32[]', space=smem, size = 0x4, offset = 0x4, fixed_abs, tag = 'smem constant byte address 0x4 - core index']
  #allocation1 [shape = 'u32[144,128]{1,0:T(1,128)}', space=vmem, size = 0x12000, scoped, tag = 'internal scratch']
  %s0 = inlined_call_operand.vmem [shape: bf16[2,110,16], index: 0, kind: input, shape index: {}]
  %s1 = inlined_call_operand.vmem [shape: f32[6,8], index: 1, kind: input, shape index: {}]
  %s2 = inlined_call_operand.vmem [shape: f32[110,2], index: 2, kind: input, shape index: {}]
  %s3 = inlined_call_operand.vmem [shape: bf16[9,8,8], index: 3, kind: input, shape index: {}]
  %s4 = inlined_call_operand.vmem [shape: bf16[9,8,8], index: 4, kind: input, shape index: {}]
  %s5 = inlined_call_operand.vmem [shape: bf16[9,8,8], index: 5, kind: input, shape index: {}]
  %s6 = inlined_call_operand.vmem [shape: bf16[2,64,16], index: 6, kind: output, shape index: {0}]
  %s7 = inlined_call_operand.vmem [shape: f32[2,4,8], index: 7, kind: output, shape index: {1}]
  %8 = xla_tuple %s6, %s7
  %s9 = sld [smem:[#allocation0]]
  $region65: #{bottleneck_forward.5} parent=0
    _
  %s11 = ssub.s32 1, %s9
  %s12 = scalar_select 0, %s11, %s9
  loop: start=0, step=1, limit=4
  $region2: #{bottleneck_forward.5} parent=0 // loop_pre_header
    _
  $region3: #{bottleneck_forward.5} parent=0 // loop_header
    %s14 = sphi 0, %s18
    %p15 = scmp.ge.s32.totalorder %s14, 4
    %s24 = sphi 0, %s26
    %s27 = sphi 0, %s24
    %s28 = sphi 0, %s27
    %s44 = sphi 0, %s28
    %s48 = sphi 0, %s48
    %s50 = sphi 0, %s48
    %s51 = sphi 0, %s50
    %s65 = sphi 0, %s51
    %s69 = sphi 0, %s69
    %s71 = sphi 0, %s69
    %s72 = sphi 0, %s71
    %s86 = sphi 0, %s72
    %s90 = sphi 0, %s90
    %s92 = sphi 0, %s90
    %s93 = sphi 0, %s92
    %s107 = sphi 0, %s93
    %s111 = sphi 0, %s111
    %s113 = sphi 0, %s111
    %s114 = sphi 0, %s113
    %s128 = sphi 0, %s114
    %s132 = sphi 0, %s132
    %s134 = sphi 0, %s132
    %s135 = sphi 0, %s134
    %s149 = sphi 0, %s135
    %s155 = sphi 0, %s157
    %s158 = sphi 0, %s155
    %s159 = sphi 0, %s158
    %s175 = sphi 0, %s159
    %s181 = sphi 0, %s183
    %s184 = sphi 0, %s181
    %s185 = sphi 0, %s184
    %s201 = sphi 0, %s185
  $region4: #{bottleneck_forward.5} parent=0 // loop_header_branch
    %17 = sbr.rel (%p15) target = $region8
  $region5: #{bottleneck_forward.5} parent=0 // loop_body
    %s19 = ssub.s32 %s14, 1
    %s20 = ssub.s32 %s14, 2
    %s21 = sadd.s32 %s14, 1
    %s22 = ssub.s32 %s14, %s21
    %p23 = scmp.eq.s32.totalorder %s22, 0
    %s25 = sadd.s32 %s24, 1
    %s26 = scalar_select %p23, %s24, %s25
    %p29 = pneg %p23
    %p30 = scmp.eq.s32.totalorder %s14, 1
    %p31 = por %p29, %p30
    %p32 = scmp.ne.s32.totalorder %s24, %s27
    %p33 = scmp.eq.s32.totalorder %s14, 0
    %p34 = por %p32, %p33
    %p35 = scmp.ne.s32.totalorder %s24, %s27
    %p36 = scmp.eq.s32.totalorder %s19, 1
    %p37 = por %p35, %p36
    %p38 = scmp.ne.s32.totalorder %s27, %s28
    %p39 = scmp.eq.s32.totalorder %s19, 0
    %p40 = por %p38, %p39
    %p41 = scmp.ne.s32.totalorder %s27, %s28
    %p42 = scmp.eq.s32.totalorder %s20, 1
    %p43 = por %p41, %p42
    %p45 = scmp.ne.s32.totalorder %s28, %s44
    %p46 = scmp.eq.s32.totalorder %s20, 0
    %p47 = por %p45, %p46
    %s49 = sadd.s32 %s48, 1
    %p52 = scmp.eq.s32.totalorder %s14, 1
    %p53 = scmp.ne.s32.totalorder %s48, %s50
    %p54 = scmp.eq.s32.totalorder %s14, 0
    %p55 = por %p53, %p54
    %p56 = scmp.ne.s32.totalorder %s48, %s50
    %p57 = scmp.eq.s32.totalorder %s19, 1
    %p58 = por %p56, %p57
    %p59 = scmp.ne.s32.totalorder %s50, %s51
    %p60 = scmp.eq.s32.totalorder %s19, 0
    %p61 = por %p59, %p60
    %p62 = scmp.ne.s32.totalorder %s50, %s51
    %p63 = scmp.eq.s32.totalorder %s20, 1
    %p64 = por %p62, %p63
    %p66 = scmp.ne.s32.totalorder %s51, %s65
    %p67 = scmp.eq.s32.totalorder %s20, 0
    %p68 = por %p66, %p67
    %s70 = sadd.s32 %s69, 1
    %p73 = scmp.eq.s32.totalorder %s14, 1
    %p74 = scmp.ne.s32.totalorder %s69, %s71
    %p75 = scmp.eq.s32.totalorder %s14, 0
    %p76 = por %p74, %p75
    %p77 = scmp.ne.s32.totalorder %s69, %s71
    %p78 = scmp.eq.s32.totalorder %s19, 1
    %p79 = por %p77, %p78
    %p80 = scmp.ne.s32.totalorder %s71, %s72
    %p81 = scmp.eq.s32.totalorder %s19, 0
    %p82 = por %p80, %p81
    %p83 = scmp.ne.s32.totalorder %s71, %s72
    %p84 = scmp.eq.s32.totalorder %s20, 1
    %p85 = por %p83, %p84
    %p87 = scmp.ne.s32.totalorder %s72, %s86
    %p88 = scmp.eq.s32.totalorder %s20, 0
    %p89 = por %p87, %p88
    %s91 = sadd.s32 %s90, 1
    %p94 = scmp.eq.s32.totalorder %s14, 1
    %p95 = scmp.ne.s32.totalorder %s90, %s92
    %p96 = scmp.eq.s32.totalorder %s14, 0
    %p97 = por %p95, %p96
    %p98 = scmp.ne.s32.totalorder %s90, %s92
    %p99 = scmp.eq.s32.totalorder %s19, 1
    %p100 = por %p98, %p99
    %p101 = scmp.ne.s32.totalorder %s92, %s93
    %p102 = scmp.eq.s32.totalorder %s19, 0
    %p103 = por %p101, %p102
    %p104 = scmp.ne.s32.totalorder %s92, %s93
    %p105 = scmp.eq.s32.totalorder %s20, 1
    %p106 = por %p104, %p105
    %p108 = scmp.ne.s32.totalorder %s93, %s107
    %p109 = scmp.eq.s32.totalorder %s20, 0
    %p110 = por %p108, %p109
    %s112 = sadd.s32 %s111, 1
    %p115 = scmp.eq.s32.totalorder %s14, 1
    %p116 = scmp.ne.s32.totalorder %s111, %s113
    %p117 = scmp.eq.s32.totalorder %s14, 0
    %p118 = por %p116, %p117
    %p119 = scmp.ne.s32.totalorder %s111, %s113
    %p120 = scmp.eq.s32.totalorder %s19, 1
    %p121 = por %p119, %p120
    %p122 = scmp.ne.s32.totalorder %s113, %s114
    %p123 = scmp.eq.s32.totalorder %s19, 0
    %p124 = por %p122, %p123
    %p125 = scmp.ne.s32.totalorder %s113, %s114
    %p126 = scmp.eq.s32.totalorder %s20, 1
    %p127 = por %p125, %p126
    %p129 = scmp.ne.s32.totalorder %s114, %s128
    %p130 = scmp.eq.s32.totalorder %s20, 0
    %p131 = por %p129, %p130
    %s133 = sadd.s32 %s132, 1
    %p136 = scmp.eq.s32.totalorder %s14, 1
    %p137 = scmp.ne.s32.totalorder %s132, %s134
    %p138 = scmp.eq.s32.totalorder %s14, 0
    %p139 = por %p137, %p138
    %p140 = scmp.ne.s32.totalorder %s132, %s134
    %p141 = scmp.eq.s32.totalorder %s19, 1
    %p142 = por %p140, %p141
    %p143 = scmp.ne.s32.totalorder %s134, %s135
    %p144 = scmp.eq.s32.totalorder %s19, 0
    %p145 = por %p143, %p144
    %p146 = scmp.ne.s32.totalorder %s134, %s135
    %p147 = scmp.eq.s32.totalorder %s20, 1
    %p148 = por %p146, %p147
    %p150 = scmp.ne.s32.totalorder %s135, %s149
    %p151 = scmp.eq.s32.totalorder %s20, 0
    %p152 = por %p150, %p151
    %s153 = ssub.s32 %s14, %s21
    %p154 = scmp.eq.s32.totalorder %s153, 0
    %s156 = sadd.s32 %s155, 1
    %s157 = scalar_select %p154, %s155, %s156
    %p160 = pneg %p154
    %p161 = scmp.eq.s32.totalorder %s14, 1
    %p162 = por %p160, %p161
    %p163 = scmp.ne.s32.totalorder %s155, %s158
    %p164 = scmp.eq.s32.totalorder %s14, 0
    %p165 = por %p163, %p164
    %p166 = scmp.ne.s32.totalorder %s155, %s158
    %p167 = scmp.eq.s32.totalorder %s19, 1
    %p168 = por %p166, %p167
    %p169 = scmp.ne.s32.totalorder %s158, %s159
    %p170 = scmp.eq.s32.totalorder %s19, 0
    %p171 = por %p169, %p170
    %p172 = scmp.ne.s32.totalorder %s158, %s159
    %p173 = scmp.eq.s32.totalorder %s20, 1
    %p174 = por %p172, %p173
    %p176 = scmp.ne.s32.totalorder %s159, %s175
    %p177 = scmp.eq.s32.totalorder %s20, 0
    %p178 = por %p176, %p177
    %s179 = ssub.s32 %s14, %s21
    %p180 = scmp.eq.s32.totalorder %s179, 0
    %s182 = sadd.s32 %s181, 1
    %s183 = scalar_select %p180, %s181, %s182
    %p186 = pneg %p180
    %p187 = scmp.eq.s32.totalorder %s14, 1
    %p188 = por %p186, %p187
    %p189 = scmp.ne.s32.totalorder %s181, %s184
    %p190 = scmp.eq.s32.totalorder %s14, 0
    %p191 = por %p189, %p190
    %p192 = scmp.ne.s32.totalorder %s181, %s184
    %p193 = scmp.eq.s32.totalorder %s19, 1
    %p194 = por %p192, %p193
    %p195 = scmp.ne.s32.totalorder %s184, %s185
    %p196 = scmp.eq.s32.totalorder %s19, 0
    %p197 = por %p195, %p196
    %p198 = scmp.ne.s32.totalorder %s184, %s185
    %p199 = scmp.eq.s32.totalorder %s20, 1
    %p200 = por %p198, %p199
    %p202 = scmp.ne.s32.totalorder %s185, %s201
    %p203 = scmp.eq.s32.totalorder %s20, 0
    %p204 = por %p202, %p203
    %p205 = scmp.le.s32.totalorder 1, %s14
    %p206 = scmp.lt.s32.totalorder %s14, 3
    %p207 = pnand %p205, %p206
    %p208 = pneg %p207
    // Predicated region
    $region9: #{bottleneck_forward.5} parent=5 // pred_check
      _
    $region10: #{bottleneck_forward.5} parent=5 // pred_check_branch
      %210 = sbr.rel (%p207) target = $region12
    $region11: #{bottleneck_forward.5} parent=5 // pred_region
      %s211 = ssub.s32 %s14, 1
      // Predicated region
      $region13: #{bottleneck_forward.5} parent=11 // pred_check
        %p212 = pneg %p61
      $region14: #{bottleneck_forward.5} parent=11 // pred_check_branch
        %214 = sbr.rel (%p212) target = $region16
      $region15: #{bottleneck_forward.5} parent=11 // pred_region
        _
      $region16: #{bottleneck_forward.5} parent=11 // pred_fallthru
        _
      // Predicated region
      $region17: #{bottleneck_forward.5} parent=11 // pred_check
        %p215 = pneg %p82
      $region18: #{bottleneck_forward.5} parent=11 // pred_check_branch
        %217 = sbr.rel (%p215) target = $region20
      $region19: #{bottleneck_forward.5} parent=11 // pred_region
        _
      $region20: #{bottleneck_forward.5} parent=11 // pred_fallthru
        _
      // Predicated region
      $region21: #{bottleneck_forward.5} parent=11 // pred_check
        %p218 = pneg %p103
      $region22: #{bottleneck_forward.5} parent=11 // pred_check_branch
        %220 = sbr.rel (%p218) target = $region24
      $region23: #{bottleneck_forward.5} parent=11 // pred_region
        _
      $region24: #{bottleneck_forward.5} parent=11 // pred_fallthru
        _
      // Predicated region
      $region25: #{bottleneck_forward.5} parent=11 // pred_check
        %p221 = pneg %p124
      $region26: #{bottleneck_forward.5} parent=11 // pred_check_branch
        %223 = sbr.rel (%p221) target = $region28
      $region27: #{bottleneck_forward.5} parent=11 // pred_region
        _
      $region28: #{bottleneck_forward.5} parent=11 // pred_fallthru
        _
      // Predicated region
      $region29: #{bottleneck_forward.5} parent=11 // pred_check
        %p224 = pneg %p145
      $region30: #{bottleneck_forward.5} parent=11 // pred_check_branch
        %226 = sbr.rel (%p224) target = $region32
      $region31: #{bottleneck_forward.5} parent=11 // pred_region
        _
      $region32: #{bottleneck_forward.5} parent=11 // pred_fallthru
        _
    $region12: #{bottleneck_forward.5} parent=5 // pred_fallthru
      _
    %p227 = scmp.lt.s32.totalorder %s14, 2
    // Predicated region
    $region33: #{bottleneck_forward.5} parent=5 // pred_check
      %p228 = pneg %p227
    $region34: #{bottleneck_forward.5} parent=5 // pred_check_branch
      %230 = sbr.rel (%p228) target = $region36
    $region35: #{bottleneck_forward.5} parent=5 // pred_region
      // Predicated region
      $region37: #{bottleneck_forward.5} parent=35 // pred_check
        %p231 = pneg %p34
      $region38: #{bottleneck_forward.5} parent=35 // pred_check_branch
        %233 = sbr.rel (%p231) target = $region40
      $region39: #{bottleneck_forward.5} parent=35 // pred_region
        %p234 = scmp.lt.s32.totalorder %s14, 1
        %s235 = scalar_select %p234, %s14, 1
        %s236 = smul.addr %s235, 14
        %s237 = smul.addr %s236, 4
        %s238 = scalar_lea.vmem %s0, %s237
      $region40: #{bottleneck_forward.5} parent=35 // pred_fallthru
        _
    $region36: #{bottleneck_forward.5} parent=5 // pred_fallthru
      _
    %p239 = scmp.le.s32.totalorder 1, %s14
    %p240 = scmp.lt.s32.totalorder %s14, 3
    %p241 = pnand %p239, %p240
    %p242 = pneg %p241
    // Predicated region
    $region41: #{bottleneck_forward.5} parent=5 // pred_check
      _
    $region42: #{bottleneck_forward.5} parent=5 // pred_check_branch
      %244 = sbr.rel (%p241) target = $region44
    $region43: #{bottleneck_forward.5} parent=5 // pred_region
      %s245 = ssub.s32 %s14, 1
      %p246 = scmp.lt.s32.totalorder %s19, 1
      %s247 = scalar_select %p246, %s19, 1
      %s248 = smul.addr %s247, 14
      %s249 = smul.addr %s248, 4
      %s250 = scalar_lea.vmem %s0, %s249
      %p251 = pneg %p40
      %p252 = pneg %p37
      %p253 = pneg %p61
      %p254 = pneg %p58
      %p255 = pneg %p82
      %p256 = pneg %p79
      %p257 = pneg %p103
      %p258 = pneg %p100
      %p259 = pneg %p124
      %p260 = pneg %p121
      %p261 = pneg %p145
      %p262 = pneg %p142
      %p263 = pneg %p171
      %p264 = pneg %p168
      %p265 = scmp.lt.s32.totalorder %s19, 1
      %s266 = scalar_select %p265, %s19, 1
      %s267 = smul.addr %s266, 8
      %s268 = smul.addr %s267, 4
      %s269 = scalar_lea.vmem %s6, %s268
      %p270 = pneg %p197
      %p271 = pneg %p194
      %p272 = scmp.lt.s32.totalorder %s19, 1
      %s273 = scalar_select %p272, %s19, 1
      %s274 = smul.addr %s273, 4
      %s275 = scalar_lea.vmem %s7, %s274
      %p276 = scmp.lt.s32.totalorder %s19, 1
      %s277 = scalar_select %p276, %s19, 1
      %s278 = smul.addr %s277, 14
      %s279 = smul.addr %s278, 4
      %s280 = scalar_lea.vmem %s0, %s279
      %p281 = scmp.lt.s32.totalorder %s19, 1
      %s282 = scalar_select %p281, %s19, 1
      %s283 = smul.addr %s282, 8
      %s284 = smul.addr %s283, 4
      %s285 = scalar_lea.vmem %s6, %s284
      %p286 = scmp.lt.s32.totalorder %s19, 1
      %s287 = scalar_select %p286, %s19, 1
      %s288 = smul.addr %s287, 4
      %s289 = scalar_lea.vmem %s7, %s288
      %v291 = vld [vmem:[%s280] sm:$0xf]
      %v292 = vld [vmem:[%s280 + $0x4] sm:$0xf]
      %v293 = vld [vmem:[%s280 + $0x8] sm:$0xf]
      %v294 = vld [vmem:[%s280 + $0xc] sm:$0xf]
      %v295 = vld [vmem:[%s280 + $0x10] sm:$0xf]
      %v296 = vld [vmem:[%s280 + $0x14] sm:$0xf]
      %v297 = vld [vmem:[%s280 + $0x18] sm:$0xf]
      %v298 = vld [vmem:[%s280 + $0x1c] sm:$0xf]
      %v299 = vld [vmem:[%s280 + $0x20] sm:$0xf]
      %v300 = vld [vmem:[%s280 + $0x24] sm:$0xf]
      %v301 = vld [vmem:[%s280 + $0x28] sm:$0xf]
      %v302 = vld [vmem:[%s280 + $0x2c] sm:$0xf]
      %v303 = vld [vmem:[%s280 + $0x30] sm:$0xf]
      %v304 = vld [vmem:[%s280 + $0x34] sm:$0x7]
      %v305 = vunpack.c.l.bf16 %v291
      %v306 = vunpack.c.l.bf16 %v292
      %v307 = vunpack.c.l.bf16 %v293
      %v308 = vunpack.c.l.bf16 %v294
      %v309 = vunpack.c.l.bf16 %v295
      %v310 = vunpack.c.l.bf16 %v296
      %v311 = vunpack.c.l.bf16 %v297
      %v312 = vunpack.c.l.bf16 %v298
      %v313 = vunpack.c.l.bf16 %v299
      %v314 = vunpack.c.l.bf16 %v300
      %v315 = vunpack.c.l.bf16 %v301
      %v316 = vunpack.c.l.bf16 %v302
      %v317 = vunpack.c.l.bf16 %v303
      %v318 = vunpack.c.l.bf16 %v304
      %v319 = vld [vmem:[%s2] sm:$0xff]
      %v320 = vld [vmem:[%s2 + $0x8] sm:$0xff]
      %v321 = vld [vmem:[%s2 + $0x10] sm:$0xff]
      %v322 = vld [vmem:[%s2 + $0x18] sm:$0xff]
      %v323 = vld [vmem:[%s2 + $0x20] sm:$0xff]
      %v324 = vld [vmem:[%s2 + $0x28] sm:$0xff]
      %v325 = vld [vmem:[%s2 + $0x30] sm:$0xff]
      %v326 = vld [vmem:[%s2 + $0x38] sm:$0xff]
      %v327 = vld [vmem:[%s2 + $0x40] sm:$0xff]
      %v328 = vld [vmem:[%s2 + $0x48] sm:$0xff]
      %v329 = vld [vmem:[%s2 + $0x50] sm:$0xff]
      %v330 = vld [vmem:[%s2 + $0x58] sm:$0xff]
      %v331 = vld [vmem:[%s2 + $0x60] sm:$0xff]
      %v332 = vld [vmem:[%s2 + $0x68] sm:$0x3f]
      %v333 = vld [vmem:[%s1] sm:$0x1]
      %v334 = vlaneseq
      %v335 = vshrl.u32 %v334, 7
      %v336 = vsub.s32 0, %v335
      %v337 = vrot.slane %v333, %v336
      %v338 = vmul.f32 %v305, %v337
      %v339 = vmul.f32 %v306, %v337
      %v340 = vmul.f32 %v307, %v337
      %v341 = vmul.f32 %v308, %v337
      %v342 = vmul.f32 %v309, %v337
      %v343 = vmul.f32 %v310, %v337
      %v344 = vmul.f32 %v311, %v337
      %v345 = vmul.f32 %v312, %v337
      %v346 = vmul.f32 %v313, %v337
      %v347 = vmul.f32 %v314, %v337
      %v348 = vmul.f32 %v315, %v337
      %v349 = vmul.f32 %v316, %v337
      %v350 = vmul.f32 %v317, %v337
      %v351 = vmul.f32 %v318, %v337
      %v352 = vld [vmem:[%s1 + $0x1] sm:$0x1]
      %v353 = vlaneseq
      %v354 = vshrl.u32 %v353, 7
      %v355 = vsub.s32 0, %v354
      %v356 = vrot.slane %v352, %v355
      %v357 = vadd.f32 %v338, %v356
      %v358 = vadd.f32 %v339, %v356
      %v359 = vadd.f32 %v340, %v356
      %v360 = vadd.f32 %v341, %v356
      %v361 = vadd.f32 %v342, %v356
      %v362 = vadd.f32 %v343, %v356
      %v363 = vadd.f32 %v344, %v356
      %v364 = vadd.f32 %v345, %v356
      %v365 = vadd.f32 %v346, %v356
      %v366 = vadd.f32 %v347, %v356
      %v367 = vadd.f32 %v348, %v356
      %v368 = vadd.f32 %v349, %v356
      %v369 = vadd.f32 %v350, %v356
      %v370 = vadd.f32 %v351, %v356
      %v371 = vld [vmem:[%s1 + $0x3] sm:$0x1]
      %v372 = vlaneseq
      %v373 = vshrl.u32 %v372, 7
      %v374 = vsub.s32 0, %v373
      %v375 = vrot.slane %v371, %v374
      %377 = vrot.lane.b32.xlu0 %v375, 8
      %v378 = vpop.permute.xlu0 %377
      %v380 = vmul.f32 %v305, %v378
      %v381 = vmul.f32 %v306, %v378
      %v382 = vmul.f32 %v307, %v378
      %v383 = vmul.f32 %v308, %v378
      %v384 = vmul.f32 %v309, %v378
      %v385 = vmul.f32 %v310, %v378
      %v386 = vmul.f32 %v311, %v378
      %v387 = vmul.f32 %v312, %v378
      %v388 = vmul.f32 %v313, %v378
      %v389 = vmul.f32 %v314, %v378
      %v390 = vmul.f32 %v315, %v378
      %v391 = vmul.f32 %v316, %v378
      %v392 = vmul.f32 %v317, %v378
      %v393 = vmul.f32 %v318, %v378
      %v394 = vld [vmem:[%s1 + $0x4] sm:$0x1]
      %v395 = vlaneseq
      %v396 = vshrl.u32 %v395, 7
      %v397 = vsub.s32 0, %v396
      %v398 = vrot.slane %v394, %v397
      %400 = vrot.lane.b32.xlu0 %v398, 8
      %v401 = vpop.permute.xlu0 %400
      %v403 = vadd.f32 %v380, %v401
      %v404 = vadd.f32 %v381, %v401
      %v405 = vadd.f32 %v382, %v401
      %v406 = vadd.f32 %v383, %v401
      %v407 = vadd.f32 %v384, %v401
      %v408 = vadd.f32 %v385, %v401
      %v409 = vadd.f32 %v386, %v401
      %v410 = vadd.f32 %v387, %v401
      %v411 = vadd.f32 %v388, %v401
      %v412 = vadd.f32 %v389, %v401
      %v413 = vadd.f32 %v390, %v401
      %v414 = vadd.f32 %v391, %v401
      %v415 = vadd.f32 %v392, %v401
      %v416 = vadd.f32 %v393, %v401
      %vm417 = vcmp.ge.f32.partialorder %v357, 0.0
      %vm418 = vcmp.ge.f32.partialorder %v358, 0.0
      %vm419 = vcmp.ge.f32.partialorder %v359, 0.0
      %vm420 = vcmp.ge.f32.partialorder %v360, 0.0
      %vm421 = vcmp.ge.f32.partialorder %v361, 0.0
      %vm422 = vcmp.ge.f32.partialorder %v362, 0.0
      %vm423 = vcmp.ge.f32.partialorder %v363, 0.0
      %vm424 = vcmp.ge.f32.partialorder %v364, 0.0
      %vm425 = vcmp.ge.f32.partialorder %v365, 0.0
      %vm426 = vcmp.ge.f32.partialorder %v366, 0.0
      %vm427 = vcmp.ge.f32.partialorder %v367, 0.0
      %vm428 = vcmp.ge.f32.partialorder %v368, 0.0
      %vm429 = vcmp.ge.f32.partialorder %v369, 0.0
      %vm430 = vcmp.ge.f32.partialorder %v370, 0.0
      %v431 = vld [vmem:[%s1 + $0x2] sm:$0x1]
      %v432 = vlaneseq
      %v433 = vshrl.u32 %v432, 7
      %v434 = vsub.s32 0, %v433
      %v435 = vrot.slane %v431, %v434
      %v436 = vmul.f32 %v435, %v357
      %v437 = vmul.f32 %v435, %v358
      %v438 = vmul.f32 %v435, %v359
      %v439 = vmul.f32 %v435, %v360
      %v440 = vmul.f32 %v435, %v361
      %v441 = vmul.f32 %v435, %v362
      %v442 = vmul.f32 %v435, %v363
      %v443 = vmul.f32 %v435, %v364
      %v444 = vmul.f32 %v435, %v365
      %v445 = vmul.f32 %v435, %v366
      %v446 = vmul.f32 %v435, %v367
      %v447 = vmul.f32 %v435, %v368
      %v448 = vmul.f32 %v435, %v369
      %v449 = vmul.f32 %v435, %v370
      %v450 = vsel %vm417, %v357, %v436
      %v451 = vsel %vm418, %v358, %v437
      %v452 = vsel %vm419, %v359, %v438
      %v453 = vsel %vm420, %v360, %v439
      %v454 = vsel %vm421, %v361, %v440
      %v455 = vsel %vm422, %v362, %v441
      %v456 = vsel %vm423, %v363, %v442
      %v457 = vsel %vm424, %v364, %v443
      %v458 = vsel %vm425, %v365, %v444
      %v459 = vsel %vm426, %v366, %v445
      %v460 = vsel %vm427, %v367, %v446
      %v461 = vsel %vm428, %v368, %v447
      %v462 = vsel %vm429, %v369, %v448
      %v463 = vsel %vm430, %v370, %v449
      %465 = vset.pattern.permute.xlu0 0
      %466 = vperm.xlu0 %465, %v319
      %v467 = vpop.permute.xlu0 %466
      %470 = vset.pattern.permute.xlu0 0
      %471 = vperm.xlu0 %470, %v320
      %v472 = vpop.permute.xlu0 %471
      %475 = vset.pattern.permute.xlu0 0
      %476 = vperm.xlu0 %475, %v321
      %v477 = vpop.permute.xlu0 %476
      %480 = vset.pattern.permute.xlu0 0
      %481 = vperm.xlu0 %480, %v322
      %v482 = vpop.permute.xlu0 %481
      %485 = vset.pattern.permute.xlu0 0
      %486 = vperm.xlu0 %485, %v323
      %v487 = vpop.permute.xlu0 %486
      %490 = vset.pattern.permute.xlu0 0
      %491 = vperm.xlu0 %490, %v324
      %v492 = vpop.permute.xlu0 %491
      %495 = vset.pattern.permute.xlu0 0
      %496 = vperm.xlu0 %495, %v325
      %v497 = vpop.permute.xlu0 %496
      %500 = vset.pattern.permute.xlu0 0
      %501 = vperm.xlu0 %500, %v326
      %v502 = vpop.permute.xlu0 %501
      %505 = vset.pattern.permute.xlu0 0
      %506 = vperm.xlu0 %505, %v327
      %v507 = vpop.permute.xlu0 %506
      %510 = vset.pattern.permute.xlu0 0
      %511 = vperm.xlu0 %510, %v328
      %v512 = vpop.permute.xlu0 %511
      %515 = vset.pattern.permute.xlu0 0
      %516 = vperm.xlu0 %515, %v329
      %v517 = vpop.permute.xlu0 %516
      %520 = vset.pattern.permute.xlu0 0
      %521 = vperm.xlu0 %520, %v330
      %v522 = vpop.permute.xlu0 %521
      %525 = vset.pattern.permute.xlu0 0
      %526 = vperm.xlu0 %525, %v331
      %v527 = vpop.permute.xlu0 %526
      %530 = vset.pattern.permute.xlu0 0
      %531 = vperm.xlu0 %530, %v332
      %v532 = vpop.permute.xlu0 %531
      %v534 = vmul.f32 %v450, %v467
      %v535 = vmul.f32 %v451, %v472
      %v536 = vmul.f32 %v452, %v477
      %v537 = vmul.f32 %v453, %v482
      %v538 = vmul.f32 %v454, %v487
      %v539 = vmul.f32 %v455, %v492
      %v540 = vmul.f32 %v456, %v497
      %v541 = vmul.f32 %v457, %v502
      %v542 = vmul.f32 %v458, %v507
      %v543 = vmul.f32 %v459, %v512
      %v544 = vmul.f32 %v460, %v517
      %v545 = vmul.f32 %v461, %v522
      %v546 = vmul.f32 %v462, %v527
      %v547 = vmul.f32 %v463, %v532
      %vm548 = vcmp.ge.f32.partialorder %v403, 0.0
      %vm549 = vcmp.ge.f32.partialorder %v404, 0.0
      %vm550 = vcmp.ge.f32.partialorder %v405, 0.0
      %vm551 = vcmp.ge.f32.partialorder %v406, 0.0
      %vm552 = vcmp.ge.f32.partialorder %v407, 0.0
      %vm553 = vcmp.ge.f32.partialorder %v408, 0.0
      %vm554 = vcmp.ge.f32.partialorder %v409, 0.0
      %vm555 = vcmp.ge.f32.partialorder %v410, 0.0
      %vm556 = vcmp.ge.f32.partialorder %v411, 0.0
      %vm557 = vcmp.ge.f32.partialorder %v412, 0.0
      %vm558 = vcmp.ge.f32.partialorder %v413, 0.0
      %vm559 = vcmp.ge.f32.partialorder %v414, 0.0
      %vm560 = vcmp.ge.f32.partialorder %v415, 0.0
      %vm561 = vcmp.ge.f32.partialorder %v416, 0.0
      %v562 = vld [vmem:[%s1 + $0x5] sm:$0x1]
      %v563 = vlaneseq
      %v564 = vshrl.u32 %v563, 7
      %v565 = vsub.s32 0, %v564
      %v566 = vrot.slane %v562, %v565
      %581 = vrot.lane.b32.xlu0 %v403, 120
      %v582 = vpop.permute.xlu0 %581
      %583 = vrot.lane.b32.xlu0 %v404, 120
      %v584 = vpop.permute.xlu0 %583
      %585 = vrot.lane.b32.xlu0 %v405, 120
      %v586 = vpop.permute.xlu0 %585
      %587 = vrot.lane.b32.xlu0 %v406, 120
      %v588 = vpop.permute.xlu0 %587
      %589 = vrot.lane.b32.xlu0 %v407, 120
      %v590 = vpop.permute.xlu0 %589
      %591 = vrot.lane.b32.xlu0 %v408, 120
      %v592 = vpop.permute.xlu0 %591
      %593 = vrot.lane.b32.xlu0 %v409, 120
      %v594 = vpop.permute.xlu0 %593
      %595 = vrot.lane.b32.xlu0 %v410, 120
      %v596 = vpop.permute.xlu0 %595
      %597 = vrot.lane.b32.xlu0 %v411, 120
      %v598 = vpop.permute.xlu0 %597
      %599 = vrot.lane.b32.xlu0 %v412, 120
      %v600 = vpop.permute.xlu0 %599
      %601 = vrot.lane.b32.xlu0 %v413, 120
      %v602 = vpop.permute.xlu0 %601
      %603 = vrot.lane.b32.xlu0 %v414, 120
      %v604 = vpop.permute.xlu0 %603
      %605 = vrot.lane.b32.xlu0 %v415, 120
      %v606 = vpop.permute.xlu0 %605
      %607 = vrot.lane.b32.xlu0 %v416, 120
      %v608 = vpop.permute.xlu0 %607
      %v623 = vmul.f32 %v566, %v582
      %v624 = vmul.f32 %v566, %v584
      %v625 = vmul.f32 %v566, %v586
      %v626 = vmul.f32 %v566, %v588
      %v627 = vmul.f32 %v566, %v590
      %v628 = vmul.f32 %v566, %v592
      %v629 = vmul.f32 %v566, %v594
      %v630 = vmul.f32 %v566, %v596
      %v631 = vmul.f32 %v566, %v598
      %v632 = vmul.f32 %v566, %v600
      %v633 = vmul.f32 %v566, %v602
      %v634 = vmul.f32 %v566, %v604
      %v635 = vmul.f32 %v566, %v606
      %v636 = vmul.f32 %v566, %v608
      %651 = vrot.lane.b32.xlu0 %v623, 8
      %v652 = vpop.permute.xlu0 %651
      %653 = vrot.lane.b32.xlu0 %v624, 8
      %v654 = vpop.permute.xlu0 %653
      %655 = vrot.lane.b32.xlu0 %v625, 8
      %v656 = vpop.permute.xlu0 %655
      %657 = vrot.lane.b32.xlu0 %v626, 8
      %v658 = vpop.permute.xlu0 %657
      %659 = vrot.lane.b32.xlu0 %v627, 8
      %v660 = vpop.permute.xlu0 %659
      %661 = vrot.lane.b32.xlu0 %v628, 8
      %v662 = vpop.permute.xlu0 %661
      %663 = vrot.lane.b32.xlu0 %v629, 8
      %v664 = vpop.permute.xlu0 %663
      %665 = vrot.lane.b32.xlu0 %v630, 8
      %v666 = vpop.permute.xlu0 %665
      %667 = vrot.lane.b32.xlu0 %v631, 8
      %v668 = vpop.permute.xlu0 %667
      %669 = vrot.lane.b32.xlu0 %v632, 8
      %v670 = vpop.permute.xlu0 %669
      %671 = vrot.lane.b32.xlu0 %v633, 8
      %v672 = vpop.permute.xlu0 %671
      %673 = vrot.lane.b32.xlu0 %v634, 8
      %v674 = vpop.permute.xlu0 %673
      %675 = vrot.lane.b32.xlu0 %v635, 8
      %v676 = vpop.permute.xlu0 %675
      %677 = vrot.lane.b32.xlu0 %v636, 8
      %v678 = vpop.permute.xlu0 %677
      %v693 = vsel %vm548, %v403, %v652
      %v694 = vsel %vm549, %v404, %v654
      %v695 = vsel %vm550, %v405, %v656
      %v696 = vsel %vm551, %v406, %v658
      %v697 = vsel %vm552, %v407, %v660
      %v698 = vsel %vm553, %v408, %v662
      %v699 = vsel %vm554, %v409, %v664
      %v700 = vsel %vm555, %v410, %v666
      %v701 = vsel %vm556, %v411, %v668
      %v702 = vsel %vm557, %v412, %v670
      %v703 = vsel %vm558, %v413, %v672
      %v704 = vsel %vm559, %v414, %v674
      %v705 = vsel %vm560, %v415, %v676
      %v706 = vsel %vm561, %v416, %v678
      %v707 = vmul.f32 %v693, %v467
      %v708 = vmul.f32 %v694, %v472
      %v709 = vmul.f32 %v695, %v477
      %v710 = vmul.f32 %v696, %v482
      %v711 = vmul.f32 %v697, %v487
      %v712 = vmul.f32 %v698, %v492
      %v713 = vmul.f32 %v699, %v497
      %v714 = vmul.f32 %v700, %v502
      %v715 = vmul.f32 %v701, %v507
      %v716 = vmul.f32 %v702, %v512
      %v717 = vmul.f32 %v703, %v517
      %v718 = vmul.f32 %v704, %v522
      %v719 = vmul.f32 %v705, %v527
      %v720 = vmul.f32 %v706, %v532
      %v721 = vpack.c.bf16 %v535, %v534
      %v722 = vpack.c.bf16 %v537, %v536
      %v723 = vpack.c.bf16 %v539, %v538
      %v724 = vpack.c.bf16 %v541, %v540
      %v725 = vpack.c.bf16 %v543, %v542
      %v726 = vpack.c.bf16 %v545, %v544
      %v727 = vpack.c.bf16 %v547, %v546
      %v728 = vpack.c.bf16 %v708, %v707
      %v729 = vpack.c.bf16 %v710, %v709
      %v730 = vpack.c.bf16 %v712, %v711
      %v731 = vpack.c.bf16 %v714, %v713
      %v732 = vpack.c.bf16 %v716, %v715
      %v733 = vpack.c.bf16 %v718, %v717
      %v734 = vpack.c.bf16 %v720, %v719
      %749 = vrot.lane.b32.xlu0 %v707, 120
      %v750 = vpop.permute.xlu0 %749
      %751 = vrot.lane.b32.xlu0 %v708, 120
      %v752 = vpop.permute.xlu0 %751
      %753 = vrot.lane.b32.xlu0 %v709, 120
      %v754 = vpop.permute.xlu0 %753
      %755 = vrot.lane.b32.xlu0 %v710, 120
      %v756 = vpop.permute.xlu0 %755
      %757 = vrot.lane.b32.xlu0 %v711, 120
      %v758 = vpop.permute.xlu0 %757
      %759 = vrot.lane.b32.xlu0 %v712, 120
      %v760 = vpop.permute.xlu0 %759
      %761 = vrot.lane.b32.xlu0 %v713, 120
      %v762 = vpop.permute.xlu0 %761
      %763 = vrot.lane.b32.xlu0 %v714, 120
      %v764 = vpop.permute.xlu0 %763
      %765 = vrot.lane.b32.xlu0 %v715, 120
      %v766 = vpop.permute.xlu0 %765
      %767 = vrot.lane.b32.xlu0 %v716, 120
      %v768 = vpop.permute.xlu0 %767
      %769 = vrot.lane.b32.xlu0 %v717, 120
      %v770 = vpop.permute.xlu0 %769
      %771 = vrot.lane.b32.xlu0 %v718, 120
      %v772 = vpop.permute.xlu0 %771
      %773 = vrot.lane.b32.xlu0 %v719, 120
      %v774 = vpop.permute.xlu0 %773
      %775 = vrot.lane.b32.xlu0 %v720, 120
      %v776 = vpop.permute.xlu0 %775
      %v791 = vadd.f32 %v534, %v750
      %v792 = vadd.f32 %v535, %v752
      %v793 = vadd.f32 %v536, %v754
      %v794 = vadd.f32 %v537, %v756
      %v795 = vadd.f32 %v538, %v758
      %v796 = vadd.f32 %v539, %v760
      %v797 = vadd.f32 %v540, %v762
      %v798 = vadd.f32 %v541, %v764
      %v799 = vadd.f32 %v542, %v766
      %v800 = vadd.f32 %v543, %v768
      %v801 = vadd.f32 %v544, %v770
      %v802 = vadd.f32 %v545, %v772
      %v803 = vadd.f32 %v546, %v774
      %v804 = vadd.f32 %v547, %v776
      %v805 = vpack.c.bf16 %v792, %v791
      %v806 = vpack.c.bf16 %v794, %v793
      %v807 = vpack.c.bf16 %v796, %v795
      %v808 = vpack.c.bf16 %v798, %v797
      %v809 = vpack.c.bf16 %v800, %v799
      %v810 = vpack.c.bf16 %v802, %v801
      %v811 = vpack.c.bf16 %v804, %v803
      %v812 = vld [vmem:[%s3] sm:$0xf]
      %v813 = vld [vmem:[%s4] sm:$0xf]
      %v814 = vld [vmem:[%s5] sm:$0xf]
      %s815 = scalar_lea.vmem %s3, 4
      %v816 = vld [vmem:[%s815] sm:$0xf]
      %vm817 = vsmask.f32 7424
      %v819 = vshrl.u32 %v721, 16
      %v821 = vshll.u32 %v721, 16
      %v823 = vrot.slane %v821, 1
      %v824 = vor.u32 %v819, %v823
      %v826 = vshll.u32 %v722, 16
      %v828 = vrot.slane %v826, 1
      %v829 = vsel %vm817, %v824, %v828
      %v830 = vshrl.u32 %v722, 16
      %v832 = vor.u32 %v830, %v828
      %v834 = vshll.u32 %v723, 16
      %v836 = vrot.slane %v834, 1
      %v837 = vsel %vm817, %v832, %v836
      %v838 = vshrl.u32 %v723, 16
      %v840 = vor.u32 %v838, %v836
      %v842 = vshll.u32 %v724, 16
      %v844 = vrot.slane %v842, 1
      %v845 = vsel %vm817, %v840, %v844
      %v846 = vshrl.u32 %v724, 16
      %v848 = vor.u32 %v846, %v844
      %v850 = vshll.u32 %v725, 16
      %v852 = vrot.slane %v850, 1
      %v853 = vsel %vm817, %v848, %v852
      %v854 = vshrl.u32 %v725, 16
      %v856 = vor.u32 %v854, %v852
      %v858 = vshll.u32 %v726, 16
      %v860 = vrot.slane %v858, 1
      %v861 = vsel %vm817, %v856, %v860
      %vm862 = vcmask 64512
      %v864 = vsel %vm862, %v829, 0
      %v867 = vsel %vm862, %v837, 0
      %v870 = vsel %vm862, %v845, 0
      %v873 = vsel %vm862, %v853, 0
      %v876 = vsel %vm862, %v861, 0
      %vm878 = vcmask 1043456
      %v880 = vsel %vm878, %v816, 0
      %882 = vmatprep.subr.bf16.mxu0 0
      %883 = vmatpush1.bf16.msra.mxu0 %v880
      %884 = vmatprep.subr.bf16.mxu0 0
      %885 = vmatpush1.bf16.msra.mxu0 0
      %886 = vmatprep.subr.bf16.mxu0 0
      %887 = vmatpush1.bf16.msra.mxu0 0
      %888 = vmatprep.subr.bf16.mxu0 0
      %889 = vmatpush1.bf16.msra.mxu0 0
      %890 = vmatprep.subr.bf16.mxu0 0
      %891 = vmatpush1.bf16.msra.mxu0 0
      %892 = vmatprep.subr.bf16.mxu0 0
      %893 = vmatpush1.bf16.msra.mxu0 0
      %894 = vmatprep.subr.bf16.mxu0 0
      %895 = vmatpush1.bf16.msra.mxu0 0
      %896 = vmatprep.subr.bf16.mxu0 0
      %897 = vmatpush1.bf16.msra.mxu0 0
      %898 = vmatprep.subr.bf16.mxu0 0
      %899 = vmatpush1.bf16.msra.mxu0 0
      %900 = vmatprep.subr.bf16.mxu0 0
      %901 = vmatpush1.bf16.msra.mxu0 0
      %902 = vmatprep.subr.bf16.mxu0 0
      %903 = vmatpush1.bf16.msra.mxu0 0
      %904 = vmatprep.subr.bf16.mxu0 0
      %905 = vmatpush1.bf16.msra.mxu0 0
      %906 = vmatprep.subr.bf16.mxu0 0
      %907 = vmatpush1.bf16.msra.mxu0 0
      %908 = vmatprep.subr.bf16.mxu0 0
      %909 = vmatpush1.bf16.msra.mxu0 0
      %910 = vmatprep.subr.bf16.mxu0 0
      %911 = vmatpush1.bf16.msra.mxu0 0
      %912 = vmatprep.subr.bf16.mxu0 0
      %913 = vmatpush1.bf16.msra.mxu0 0
      %914 = vmatprep.mubr.bf16.mxu0 0
      %915 = vmatmul.mubr.bf16.gmra.mrb[0].mxu0 %v864
      %v916 = vpop.f32.mrb[0].mxu0
      %v917 = vadd.f32 0.0, %v916
      %v918 = vpop.f32.mrb[0].mxu0
      %v919 = vpop.f32.mrb[0].mxu0
      %v920 = vadd.f32 0.0, %v919
      %v921 = vpop.f32.mrb[0].mxu0
      %922 = vmatprep.mubr.bf16.mxu0 0
      %923 = vmatmul.mubr.bf16.gmra.mrb[0].mxu0 %v867
      %v924 = vpop.f32.mrb[0].mxu0
      %v925 = vadd.f32 0.0, %v924
      %v926 = vpop.f32.mrb[0].mxu0
      %v927 = vpop.f32.mrb[0].mxu0
      %v928 = vadd.f32 0.0, %v927
      %v929 = vpop.f32.mrb[0].mxu0
      %930 = vmatprep.mubr.bf16.mxu0 0
      %931 = vmatmul.mubr.bf16.gmra.mrb[0].mxu0 %v870
      %v932 = vpop.f32.mrb[0].mxu0
      %v933 = vadd.f32 0.0, %v932
      %v934 = vpop.f32.mrb[0].mxu0
      %v935 = vpop.f32.mrb[0].mxu0
      %v936 = vadd.f32 0.0, %v935
      %v937 = vpop.f32.mrb[0].mxu0
      %938 = vmatprep.mubr.bf16.mxu0 0
      %939 = vmatmul.mubr.bf16.gmra.mrb[0].mxu0 %v873
      %v940 = vpop.f32.mrb[0].mxu0
      %v941 = vadd.f32 0.0, %v940
      %v942 = vpop.f32.mrb[0].mxu0
      %v943 = vpop.f32.mrb[0].mxu0
      %v944 = vadd.f32 0.0, %v943
      %v945 = vpop.f32.mrb[0].mxu0
      %946 = vmatprep.mubr.bf16.mxu0 0
      %947 = vmatmul.mubr.bf16.gmra.mrb[0].mxu0 %v876
      %v948 = vpop.f32.mrb[0].mxu0
      %v949 = vadd.f32 0.0, %v948
      %v950 = vpop.f32.mrb[0].mxu0
      %v951 = vpop.f32.mrb[0].mxu0
      %v952 = vadd.f32 0.0, %v951
      %v953 = vpop.f32.mrb[0].mxu0
      %954 = vdwg.mxu0
      %v955 = vsel %vm862, %v721, 0
      %v957 = vsel %vm862, %v722, 0
      %v959 = vsel %vm862, %v723, 0
      %v961 = vsel %vm862, %v724, 0
      %v963 = vsel %vm862, %v725, 0
      %v966 = vsel %vm878, %v812, 0
      %968 = vmatprep.subr.bf16.mxu0 0
      %969 = vmatpush1.bf16.msra.mxu0 %v966
      %970 = vmatprep.subr.bf16.mxu0 0
      %971 = vmatpush1.bf16.msra.mxu0 0
      %972 = vmatprep.subr.bf16.mxu0 0
      %973 = vmatpush1.bf16.msra.mxu0 0
      %974 = vmatprep.subr.bf16.mxu0 0
      %975 = vmatpush1.bf16.msra.mxu0 0
      %976 = vmatprep.subr.bf16.mxu0 0
      %977 = vmatpush1.bf16.msra.mxu0 0
      %978 = vmatprep.subr.bf16.mxu0 0
      %979 = vmatpush1.bf16.msra.mxu0 0
      %980 = vmatprep.subr.bf16.mxu0 0
      %981 = vmatpush1.bf16.msra.mxu0 0
      %982 = vmatprep.subr.bf16.mxu0 0
      %983 = vmatpush1.bf16.msra.mxu0 0
      %984 = vmatprep.subr.bf16.mxu0 0
      %985 = vmatpush1.bf16.msra.mxu0 0
      %986 = vmatprep.subr.bf16.mxu0 0
      %987 = vmatpush1.bf16.msra.mxu0 0
      %988 = vmatprep.subr.bf16.mxu0 0
      %989 = vmatpush1.bf16.msra.mxu0 0
      %990 = vmatprep.subr.bf16.mxu0 0
      %991 = vmatpush1.bf16.msra.mxu0 0
      %992 = vmatprep.subr.bf16.mxu0 0
      %993 = vmatpush1.bf16.msra.mxu0 0
      %994 = vmatprep.subr.bf16.mxu0 0
      %995 = vmatpush1.bf16.msra.mxu0 0
      %996 = vmatprep.subr.bf16.mxu0 0
      %997 = vmatpush1.bf16.msra.mxu0 0
      %998 = vmatprep.subr.bf16.mxu0 0
      %999 = vmatpush1.bf16.msra.mxu0 0
      %1000 = vmatprep.mubr.bf16.mxu0 0
      %1001 = vmatmul.mubr.bf16.gmra.mrb[0].mxu0 %v955
      %v1002 = vpop.f32.mrb[0].mxu0
      %v1003 = vadd.f32 %v917, %v1002
      %v1004 = vpop.f32.mrb[0].mxu0
      %v1005 = vpop.f32.mrb[0].mxu0
      %v1006 = vadd.f32 %v920, %v1005
      %v1007 = vpop.f32.mrb[0].mxu0
      %1008 = vmatprep.mubr.bf16.mxu0 0
      %1009 = vmatmul.mubr.bf16.gmra.mrb[0].mxu0 %v957
      %v1010 = vpop.f32.mrb[0].mxu0
      %v1011 = vadd.f32 %v925, %v1010
      %v1012 = vpop.f32.mrb[0].mxu0
      %v1013 = vpop.f32.mrb[0].mxu0
      %v1014 = vadd.f32 %v928, %v1013
      %v1015 = vpop.f32.mrb[0].mxu0
      %1016 = vmatprep.mubr.bf16.mxu0 0
      %1017 = vmatmul.mubr.bf16.gmra.mrb[0].mxu0 %v959
      %v1018 = vpop.f32.mrb[0].mxu0
      %v1019 = vadd.f32 %v933, %v1018
      %v1020 = vpop.f32.mrb[0].mxu0
      %v1021 = vpop.f32.mrb[0].mxu0
      %v1022 = vadd.f32 %v936, %v1021
      %v1023 = vpop.f32.mrb[0].mxu0
      %1024 = vmatprep.mubr.bf16.mxu0 0
      %1025 = vmatmul.mubr.bf16.gmra.mrb[0].mxu0 %v961
      %v1026 = vpop.f32.mrb[0].mxu0
      %v1027 = vadd.f32 %v941, %v1026
      %v1028 = vpop.f32.mrb[0].mxu0
      %v1029 = vpop.f32.mrb[0].mxu0
      %v1030 = vadd.f32 %v944, %v1029
      %v1031 = vpop.f32.mrb[0].mxu0
      %1032 = vmatprep.mubr.bf16.mxu0 0
      %1033 = vmatmul.mubr.bf16.gmra.mrb[0].mxu0 %v963
      %v1034 = vpop.f32.mrb[0].mxu0
      %v1035 = vadd.f32 %v949, %v1034
      %v1036 = vpop.f32.mrb[0].mxu0
      %v1037 = vpop.f32.mrb[0].mxu0
      %v1038 = vadd.f32 %v952, %v1037
      %v1039 = vpop.f32.mrb[0].mxu0
      %1040 = vdwg.mxu0
      %s1041 = scalar_lea.vmem %s4, 4
      %v1042 = vld [vmem:[%s1041] sm:$0xf]
      %v1044 = vshrl.u32 %v728, 16
      %v1046 = vshll.u32 %v728, 16
      %v1048 = vrot.slane %v1046, 1
      %v1049 = vor.u32 %v1044, %v1048
      %v1051 = vshll.u32 %v729, 16
      %v1053 = vrot.slane %v1051, 1
      %v1054 = vsel %vm817, %v1049, %v1053
      %v1055 = vshrl.u32 %v729, 16
      %v1057 = vor.u32 %v1055, %v1053
      %v1059 = vshll.u32 %v730, 16
      %v1061 = vrot.slane %v1059, 1
      %v1062 = vsel %vm817, %v1057, %v1061
      %v1063 = vshrl.u32 %v730, 16
      %v1065 = vor.u32 %v1063, %v1061
      %v1067 = vshll.u32 %v731, 16
      %v1069 = vrot.slane %v1067, 1
      %v1070 = vsel %vm817, %v1065, %v1069
      %v1071 = vshrl.u32 %v731, 16
      %v1073 = vor.u32 %v1071, %v1069
      %v1075 = vshll.u32 %v732, 16
      %v1077 = vrot.slane %v1075, 1
      %v1078 = vsel %vm817, %v1073, %v1077
      %v1079 = vshrl.u32 %v732, 16
      %v1081 = vor.u32 %v1079, %v1077
      %v1083 = vshll.u32 %v733, 16
      %v1085 = vrot.slane %v1083, 1
      %v1086 = vsel %vm817, %v1081, %v1085
      %1087 = vrot.lane.b32.xlu0 %v1054, 120
      %v1088 = vpop.permute.xlu0 %1087
      %1089 = vrot.lane.b32.xlu0 %v1062, 120
      %v1090 = vpop.permute.xlu0 %1089
      %1091 = vrot.lane.b32.xlu0 %v1070, 120
      %v1092 = vpop.permute.xlu0 %1091
      %1093 = vrot.lane.b32.xlu0 %v1078, 120
      %v1094 = vpop.permute.xlu0 %1093
      %1095 = vrot.lane.b32.xlu0 %v1086, 120
      %v1096 = vpop.permute.xlu0 %1095
      %v1098 = vsel %vm862, %v1088, 0
      %v1101 = vsel %vm862, %v1090, 0
      %v1104 = vsel %vm862, %v1092, 0
      %v1107 = vsel %vm862, %v1094, 0
      %v1110 = vsel %vm862, %v1096, 0
      %v1113 = vsel %vm878, %v1042, 0
      %1115 = vmatprep.subr.bf16.mxu0 0
      %1116 = vmatpush1.bf16.msra.mxu0 %v1113
      %1117 = vmatprep.subr.bf16.mxu0 0
      %1118 = vmatpush1.bf16.msra.mxu0 0
      %1119 = vmatprep.subr.bf16.mxu0 0
      %1120 = vmatpush1.bf16.msra.mxu0 0
      %1121 = vmatprep.subr.bf16.mxu0 0
      %1122 = vmatpush1.bf16.msra.mxu0 0
      %1123 = vmatprep.subr.bf16.mxu0 0
      %1124 = vmatpush1.bf16.msra.mxu0 0
      %1125 = vmatprep.subr.bf16.mxu0 0
      %1126 = vmatpush1.bf16.msra.mxu0 0
      %1127 = vmatprep.subr.bf16.mxu0 0
      %1128 = vmatpush1.bf16.msra.mxu0 0
      %1129 = vmatprep.subr.bf16.mxu0 0
      %1130 = vmatpush1.bf16.msra.mxu0 0
      %1131 = vmatprep.subr.bf16.mxu0 0
      %1132 = vmatpush1.bf16.msra.mxu0 0
      %1133 = vmatprep.subr.bf16.mxu0 0
      %1134 = vmatpush1.bf16.msra.mxu0 0
      %1135 = vmatprep.subr.bf16.mxu0 0
      %1136 = vmatpush1.bf16.msra.mxu0 0
      %1137 = vmatprep.subr.bf16.mxu0 0
      %1138 = vmatpush1.bf16.msra.mxu0 0
      %1139 = vmatprep.subr.bf16.mxu0 0
      %1140 = vmatpush1.bf16.msra.mxu0 0
      %1141 = vmatprep.subr.bf16.mxu0 0
      %1142 = vmatpush1.bf16.msra.mxu0 0
      %1143 = vmatprep.subr.bf16.mxu0 0
      %1144 = vmatpush1.bf16.msra.mxu0 0
      %1145 = vmatprep.subr.bf16.mxu0 0
      %1146 = vmatpush1.bf16.msra.mxu0 0
      %1147 = vmatprep.mubr.bf16.mxu0 0
      %1148 = vmatmul.mubr.bf16.gmra.mrb[0].mxu0 %v1098
      %v1149 = vpop.f32.mrb[0].mxu0
      %v1150 = vadd.f32 0.0, %v1149
      %v1151 = vpop.f32.mrb[0].mxu0
      %v1152 = vpop.f32.mrb[0].mxu0
      %v1153 = vadd.f32 0.0, %v1152
      %v1154 = vpop.f32.mrb[0].mxu0
      %1155 = vmatprep.mubr.bf16.mxu0 0
      %1156 = vmatmul.mubr.bf16.gmra.mrb[0].mxu0 %v1101
      %v1157 = vpop.f32.mrb[0].mxu0
      %v1158 = vadd.f32 0.0, %v1157
      %v1159 = vpop.f32.mrb[0].mxu0
      %v1160 = vpop.f32.mrb[0].mxu0
      %v1161 = vadd.f32 0.0, %v1160
      %v1162 = vpop.f32.mrb[0].mxu0
      %1163 = vmatprep.mubr.bf16.mxu0 0
      %1164 = vmatmul.mubr.bf16.gmra.mrb[0].mxu0 %v1104
      %v1165 = vpop.f32.mrb[0].mxu0
      %v1166 = vadd.f32 0.0, %v1165
      %v1167 = vpop.f32.mrb[0].mxu0
      %v1168 = vpop.f32.mrb[0].mxu0
      %v1169 = vadd.f32 0.0, %v1168
      %v1170 = vpop.f32.mrb[0].mxu0
      %1171 = vmatprep.mubr.bf16.mxu0 0
      %1172 = vmatmul.mubr.bf16.gmra.mrb[0].mxu0 %v1107
      %v1173 = vpop.f32.mrb[0].mxu0
      %v1174 = vadd.f32 0.0, %v1173
      %v1175 = vpop.f32.mrb[0].mxu0
      %v1176 = vpop.f32.mrb[0].mxu0
      %v1177 = vadd.f32 0.0, %v1176
      %v1178 = vpop.f32.mrb[0].mxu0
      %1179 = vmatprep.mubr.bf16.mxu0 0
      %1180 = vmatmul.mubr.bf16.gmra.mrb[0].mxu0 %v1110
      %v1181 = vpop.f32.mrb[0].mxu0
      %v1182 = vadd.f32 0.0, %v1181
      %v1183 = vpop.f32.mrb[0].mxu0
      %v1184 = vpop.f32.mrb[0].mxu0
      %v1185 = vadd.f32 0.0, %v1184
      %v1186 = vpop.f32.mrb[0].mxu0
      %1187 = vdwg.mxu0
      %1193 = vrot.lane.b32.xlu0 %v728, 120
      %v1194 = vpop.permute.xlu0 %1193
      %1195 = vrot.lane.b32.xlu0 %v729, 120
      %v1196 = vpop.permute.xlu0 %1195
      %1197 = vrot.lane.b32.xlu0 %v730, 120
      %v1198 = vpop.permute.xlu0 %1197
      %1199 = vrot.lane.b32.xlu0 %v731, 120
      %v1200 = vpop.permute.xlu0 %1199
      %1201 = vrot.lane.b32.xlu0 %v732, 120
      %v1202 = vpop.permute.xlu0 %1201
      %v1204 = vsel %vm862, %v1194, 0
      %v1207 = vsel %vm862, %v1196, 0
      %v1210 = vsel %vm862, %v1198, 0
      %v1213 = vsel %vm862, %v1200, 0
      %v1216 = vsel %vm862, %v1202, 0
      %v1219 = vsel %vm878, %v813, 0
      %1221 = vmatprep.subr.bf16.mxu0 0
      %1222 = vmatpush1.bf16.msra.mxu0 %v1219
      %1223 = vmatprep.subr.bf16.mxu0 0
      %1224 = vmatpush1.bf16.msra.mxu0 0
      %1225 = vmatprep.subr.bf16.mxu0 0
      %1226 = vmatpush1.bf16.msra.mxu0 0
      %1227 = vmatprep.subr.bf16.mxu0 0
      %1228 = vmatpush1.bf16.msra.mxu0 0
      %1229 = vmatprep.subr.bf16.mxu0 0
      %1230 = vmatpush1.bf16.msra.mxu0 0
      %1231 = vmatprep.subr.bf16.mxu0 0
      %1232 = vmatpush1.bf16.msra.mxu0 0
      %1233 = vmatprep.subr.bf16.mxu0 0
      %1234 = vmatpush1.bf16.msra.mxu0 0
      %1235 = vmatprep.subr.bf16.mxu0 0
      %1236 = vmatpush1.bf16.msra.mxu0 0
      %1237 = vmatprep.subr.bf16.mxu0 0
      %1238 = vmatpush1.bf16.msra.mxu0 0
      %1239 = vmatprep.subr.bf16.mxu0 0
      %1240 = vmatpush1.bf16.msra.mxu0 0
      %1241 = vmatprep.subr.bf16.mxu0 0
      %1242 = vmatpush1.bf16.msra.mxu0 0
      %1243 = vmatprep.subr.bf16.mxu0 0
      %1244 = vmatpush1.bf16.msra.mxu0 0
      %1245 = vmatprep.subr.bf16.mxu0 0
      %1246 = vmatpush1.bf16.msra.mxu0 0
      %1247 = vmatprep.subr.bf16.mxu0 0
      %1248 = vmatpush1.bf16.msra.mxu0 0
      %1249 = vmatprep.subr.bf16.mxu0 0
      %1250 = vmatpush1.bf16.msra.mxu0 0
      %1251 = vmatprep.subr.bf16.mxu0 0
      %1252 = vmatpush1.bf16.msra.mxu0 0
      %1253 = vmatprep.mubr.bf16.mxu0 0
      %1254 = vmatmul.mubr.bf16.gmra.mrb[0].mxu0 %v1204
      %v1255 = vpop.f32.mrb[0].mxu0
      %v1256 = vadd.f32 %v1150, %v1255
      %v1257 = vpop.f32.mrb[0].mxu0
      %v1258 = vpop.f32.mrb[0].mxu0
      %v1259 = vadd.f32 %v1153, %v1258
      %v1260 = vpop.f32.mrb[0].mxu0
      %1261 = vmatprep.mubr.bf16.mxu0 0
      %1262 = vmatmul.mubr.bf16.gmra.mrb[0].mxu0 %v1207
      %v1263 = vpop.f32.mrb[0].mxu0
      %v1264 = vadd.f32 %v1158, %v1263
      %v1265 = vpop.f32.mrb[0].mxu0
      %v1266 = vpop.f32.mrb[0].mxu0
      %v1267 = vadd.f32 %v1161, %v1266
      %v1268 = vpop.f32.mrb[0].mxu0
      %1269 = vmatprep.mubr.bf16.mxu0 0
      %1270 = vmatmul.mubr.bf16.gmra.mrb[0].mxu0 %v1210
      %v1271 = vpop.f32.mrb[0].mxu0
      %v1272 = vadd.f32 %v1166, %v1271
      %v1273 = vpop.f32.mrb[0].mxu0
      %v1274 = vpop.f32.mrb[0].mxu0
      %v1275 = vadd.f32 %v1169, %v1274
      %v1276 = vpop.f32.mrb[0].mxu0
      %1277 = vmatprep.mubr.bf16.mxu0 0
      %1278 = vmatmul.mubr.bf16.gmra.mrb[0].mxu0 %v1213
      %v1279 = vpop.f32.mrb[0].mxu0
      %v1280 = vadd.f32 %v1174, %v1279
      %v1281 = vpop.f32.mrb[0].mxu0
      %v1282 = vpop.f32.mrb[0].mxu0
      %v1283 = vadd.f32 %v1177, %v1282
      %v1284 = vpop.f32.mrb[0].mxu0
      %1285 = vmatprep.mubr.bf16.mxu0 0
      %1286 = vmatmul.mubr.bf16.gmra.mrb[0].mxu0 %v1216
      %v1287 = vpop.f32.mrb[0].mxu0
      %v1288 = vadd.f32 %v1182, %v1287
      %v1289 = vpop.f32.mrb[0].mxu0
      %v1290 = vpop.f32.mrb[0].mxu0
      %v1291 = vadd.f32 %v1185, %v1290
      %v1292 = vpop.f32.mrb[0].mxu0
      %1293 = vdwg.mxu0
      %s1294 = scalar_lea.vmem %s5, 4
      %v1295 = vld [vmem:[%s1294] sm:$0xf]
      %v1297 = vshrl.u32 %v805, 16
      %v1299 = vshll.u32 %v805, 16
      %v1301 = vrot.slane %v1299, 1
      %v1302 = vor.u32 %v1297, %v1301
      %v1304 = vshll.u32 %v806, 16
      %v1306 = vrot.slane %v1304, 1
      %v1307 = vsel %vm817, %v1302, %v1306
      %v1308 = vshrl.u32 %v806, 16
      %v1310 = vor.u32 %v1308, %v1306
      %v1312 = vshll.u32 %v807, 16
      %v1314 = vrot.slane %v1312, 1
      %v1315 = vsel %vm817, %v1310, %v1314
      %v1316 = vshrl.u32 %v807, 16
      %v1318 = vor.u32 %v1316, %v1314
      %v1320 = vshll.u32 %v808, 16
      %v1322 = vrot.slane %v1320, 1
      %v1323 = vsel %vm817, %v1318, %v1322
      %v1324 = vshrl.u32 %v808, 16
      %v1326 = vor.u32 %v1324, %v1322
      %v1328 = vshll.u32 %v809, 16
      %v1330 = vrot.slane %v1328, 1
      %v1331 = vsel %vm817, %v1326, %v1330
      %v1332 = vshrl.u32 %v809, 16
      %v1334 = vor.u32 %v1332, %v1330
      %v1336 = vshll.u32 %v810, 16
      %v1338 = vrot.slane %v1336, 1
      %v1339 = vsel %vm817, %v1334, %v1338
      %v1341 = vsel %vm862, %v1307, 0
      %v1344 = vsel %vm862, %v1315, 0
      %v1347 = vsel %vm862, %v1323, 0
      %v1350 = vsel %vm862, %v1331, 0
      %v1353 = vsel %vm862, %v1339, 0
      %v1356 = vsel %vm878, %v1295, 0
      %1358 = vmatprep.subr.bf16.mxu0 0
      %1359 = vmatpush1.bf16.msra.mxu0 %v1356
      %1360 = vmatprep.subr.bf16.mxu0 0
      %1361 = vmatpush1.bf16.msra.mxu0 0
      %1362 = vmatprep.subr.bf16.mxu0 0
      %1363 = vmatpush1.bf16.msra.mxu0 0
      %1364 = vmatprep.subr.bf16.mxu0 0
      %1365 = vmatpush1.bf16.msra.mxu0 0
      %1366 = vmatprep.subr.bf16.mxu0 0
      %1367 = vmatpush1.bf16.msra.mxu0 0
      %1368 = vmatprep.subr.bf16.mxu0 0
      %1369 = vmatpush1.bf16.msra.mxu0 0
      %1370 = vmatprep.subr.bf16.mxu0 0
      %1371 = vmatpush1.bf16.msra.mxu0 0
      %1372 = vmatprep.subr.bf16.mxu0 0
      %1373 = vmatpush1.bf16.msra.mxu0 0
      %1374 = vmatprep.subr.bf16.mxu0 0
      %1375 = vmatpush1.bf16.msra.mxu0 0
      %1376 = vmatprep.subr.bf16.mxu0 0
      %1377 = vmatpush1.bf16.msra.mxu0 0
      %1378 = vmatprep.subr.bf16.mxu0 0
      %1379 = vmatpush1.bf16.msra.mxu0 0
      %1380 = vmatprep.subr.bf16.mxu0 0
      %1381 = vmatpush1.bf16.msra.mxu0 0
      %1382 = vmatprep.subr.bf16.mxu0 0
      %1383 = vmatpush1.bf16.msra.mxu0 0
      %1384 = vmatprep.subr.bf16.mxu0 0
      %1385 = vmatpush1.bf16.msra.mxu0 0
      %1386 = vmatprep.subr.bf16.mxu0 0
      %1387 = vmatpush1.bf16.msra.mxu0 0
      %1388 = vmatprep.subr.bf16.mxu0 0
      %1389 = vmatpush1.bf16.msra.mxu0 0
      %1390 = vmatprep.mubr.bf16.mxu0 0
      %1391 = vmatmul.mubr.bf16.gmra.mrb[0].mxu0 %v1341
      %v1392 = vpop.f32.mrb[0].mxu0
      %v1393 = vadd.f32 0.0, %v1392
      %v1394 = vpop.f32.mrb[0].mxu0
      %v1395 = vpop.f32.mrb[0].mxu0
      %v1396 = vadd.f32 0.0, %v1395
      %v1397 = vpop.f32.mrb[0].mxu0
      %1398 = vmatprep.mubr.bf16.mxu0 0
      %1399 = vmatmul.mubr.bf16.gmra.mrb[0].mxu0 %v1344
      %v1400 = vpop.f32.mrb[0].mxu0
      %v1401 = vadd.f32 0.0, %v1400
      %v1402 = vpop.f32.mrb[0].mxu0
      %v1403 = vpop.f32.mrb[0].mxu0
      %v1404 = vadd.f32 0.0, %v1403
      %v1405 = vpop.f32.mrb[0].mxu0
      %1406 = vmatprep.mubr.bf16.mxu0 0
      %1407 = vmatmul.mubr.bf16.gmra.mrb[0].mxu0 %v1347
      %v1408 = vpop.f32.mrb[0].mxu0
      %v1409 = vadd.f32 0.0, %v1408
      %v1410 = vpop.f32.mrb[0].mxu0
      %v1411 = vpop.f32.mrb[0].mxu0
      %v1412 = vadd.f32 0.0, %v1411
      %v1413 = vpop.f32.mrb[0].mxu0
      %1414 = vmatprep.mubr.bf16.mxu0 0
      %1415 = vmatmul.mubr.bf16.gmra.mrb[0].mxu0 %v1350
      %v1416 = vpop.f32.mrb[0].mxu0
      %v1417 = vadd.f32 0.0, %v1416
      %v1418 = vpop.f32.mrb[0].mxu0
      %v1419 = vpop.f32.mrb[0].mxu0
      %v1420 = vadd.f32 0.0, %v1419
      %v1421 = vpop.f32.mrb[0].mxu0
      %1422 = vmatprep.mubr.bf16.mxu0 0
      %1423 = vmatmul.mubr.bf16.gmra.mrb[0].mxu0 %v1353
      %v1424 = vpop.f32.mrb[0].mxu0
      %v1425 = vadd.f32 0.0, %v1424
      %v1426 = vpop.f32.mrb[0].mxu0
      %v1427 = vpop.f32.mrb[0].mxu0
      %v1428 = vadd.f32 0.0, %v1427
      %v1429 = vpop.f32.mrb[0].mxu0
      %1430 = vdwg.mxu0
      %v1431 = vsel %vm862, %v805, 0
      %v1433 = vsel %vm862, %v806, 0
      %v1435 = vsel %vm862, %v807, 0
      %v1437 = vsel %vm862, %v808, 0
      %v1439 = vsel %vm862, %v809, 0
      %v1442 = vsel %vm878, %v814, 0
      %1444 = vmatprep.subr.bf16.mxu0 0
      %1445 = vmatpush1.bf16.msra.mxu0 %v1442
      %1446 = vmatprep.subr.bf16.mxu0 0
      %1447 = vmatpush1.bf16.msra.mxu0 0
      %1448 = vmatprep.subr.bf16.mxu0 0
      %1449 = vmatpush1.bf16.msra.mxu0 0
      %1450 = vmatprep.subr.bf16.mxu0 0
      %1451 = vmatpush1.bf16.msra.mxu0 0
      %1452 = vmatprep.subr.bf16.mxu0 0
      %1453 = vmatpush1.bf16.msra.mxu0 0
      %1454 = vmatprep.subr.bf16.mxu0 0
      %1455 = vmatpush1.bf16.msra.mxu0 0
      %1456 = vmatprep.subr.bf16.mxu0 0
      %1457 = vmatpush1.bf16.msra.mxu0 0
      %1458 = vmatprep.subr.bf16.mxu0 0
      %1459 = vmatpush1.bf16.msra.mxu0 0
      %1460 = vmatprep.subr.bf16.mxu0 0
      %1461 = vmatpush1.bf16.msra.mxu0 0
      %1462 = vmatprep.subr.bf16.mxu0 0
      %1463 = vmatpush1.bf16.msra.mxu0 0
      %1464 = vmatprep.subr.bf16.mxu0 0
      %1465 = vmatpush1.bf16.msra.mxu0 0
      %1466 = vmatprep.subr.bf16.mxu0 0
      %1467 = vmatpush1.bf16.msra.mxu0 0
      %1468 = vmatprep.subr.bf16.mxu0 0
      %1469 = vmatpush1.bf16.msra.mxu0 0
      %1470 = vmatprep.subr.bf16.mxu0 0
      %1471 = vmatpush1.bf16.msra.mxu0 0
      %1472 = vmatprep.subr.bf16.mxu0 0
      %1473 = vmatpush1.bf16.msra.mxu0 0
      %1474 = vmatprep.subr.bf16.mxu0 0
      %1475 = vmatpush1.bf16.msra.mxu0 0
      %1476 = vmatprep.mubr.bf16.mxu0 0
      %1477 = vmatmul.mubr.bf16.gmra.mrb[0].mxu0 %v1431
      %v1478 = vpop.f32.mrb[0].mxu0
      %v1479 = vadd.f32 %v1393, %v1478
      %v1480 = vpop.f32.mrb[0].mxu0
      %v1481 = vpop.f32.mrb[0].mxu0
      %v1482 = vadd.f32 %v1396, %v1481
      %v1483 = vpop.f32.mrb[0].mxu0
      %1484 = vmatprep.mubr.bf16.mxu0 0
      %1485 = vmatmul.mubr.bf16.gmra.mrb[0].mxu0 %v1433
      %v1486 = vpop.f32.mrb[0].mxu0
      %v1487 = vadd.f32 %v1401, %v1486
      %v1488 = vpop.f32.mrb[0].mxu0
      %v1489 = vpop.f32.mrb[0].mxu0
      %v1490 = vadd.f32 %v1404, %v1489
      %v1491 = vpop.f32.mrb[0].mxu0
      %1492 = vmatprep.mubr.bf16.mxu0 0
      %1493 = vmatmul.mubr.bf16.gmra.mrb[0].mxu0 %v1435
      %v1494 = vpop.f32.mrb[0].mxu0
      %v1495 = vadd.f32 %v1409, %v1494
      %v1496 = vpop.f32.mrb[0].mxu0
      %v1497 = vpop.f32.mrb[0].mxu0
      %v1498 = vadd.f32 %v1412, %v1497
      %v1499 = vpop.f32.mrb[0].mxu0
      %1500 = vmatprep.mubr.bf16.mxu0 0
      %1501 = vmatmul.mubr.bf16.gmra.mrb[0].mxu0 %v1437
      %v1502 = vpop.f32.mrb[0].mxu0
      %v1503 = vadd.f32 %v1417, %v1502
      %v1504 = vpop.f32.mrb[0].mxu0
      %v1505 = vpop.f32.mrb[0].mxu0
      %v1506 = vadd.f32 %v1420, %v1505
      %v1507 = vpop.f32.mrb[0].mxu0
      %1508 = vmatprep.mubr.bf16.mxu0 0
      %1509 = vmatmul.mubr.bf16.gmra.mrb[0].mxu0 %v1439
      %v1510 = vpop.f32.mrb[0].mxu0
      %v1511 = vadd.f32 %v1425, %v1510
      %v1512 = vpop.f32.mrb[0].mxu0
      %v1513 = vpop.f32.mrb[0].mxu0
      %v1514 = vadd.f32 %v1428, %v1513
      %v1515 = vpop.f32.mrb[0].mxu0
      %1516 = vdwg.mxu0
      %s1517 = scalar_lea.vmem %s3, 8
      %v1518 = vld [vmem:[%s1517] sm:$0xf]
      %vm1525 = vcmask 1046528
      %v1526 = vrot.slane %v721, 1
      %v1527 = vrot.slane %v722, 1
      %v1528 = vsel %vm1525, %v1526, %v1527
      %v1529 = vrot.slane %v723, 1
      %v1530 = vsel %vm1525, %v1527, %v1529
      %v1531 = vrot.slane %v724, 1
      %v1532 = vsel %vm1525, %v1529, %v1531
      %v1533 = vrot.slane %v725, 1
      %v1534 = vsel %vm1525, %v1531, %v1533
      %v1535 = vrot.slane %v726, 1
      %v1536 = vsel %vm1525, %v1533, %v1535
      %v1538 = vsel %vm862, %v1528, 0
      %v1541 = vsel %vm862, %v1530, 0
      %v1544 = vsel %vm862, %v1532, 0
      %v1547 = vsel %vm862, %v1534, 0
      %v1550 = vsel %vm862, %v1536, 0
      %v1553 = vsel %vm878, %v1518, 0
      %1555 = vmatprep.subr.bf16.mxu0 0
      %1556 = vmatpush1.bf16.msra.mxu0 %v1553
      %1557 = vmatprep.subr.bf16.mxu0 0
      %1558 = vmatpush1.bf16.msra.mxu0 0
      %1559 = vmatprep.subr.bf16.mxu0 0
      %1560 = vmatpush1.bf16.msra.mxu0 0
      %1561 = vmatprep.subr.bf16.mxu0 0
      %1562 = vmatpush1.bf16.msra.mxu0 0
      %1563 = vmatprep.subr.bf16.mxu0 0
      %1564 = vmatpush1.bf16.msra.mxu0 0
      %1565 = vmatprep.subr.bf16.mxu0 0
      %1566 = vmatpush1.bf16.msra.mxu0 0
      %1567 = vmatprep.subr.bf16.mxu0 0
      %1568 = vmatpush1.bf16.msra.mxu0 0
      %1569 = vmatprep.subr.bf16.mxu0 0
      %1570 = vmatpush1.bf16.msra.mxu0 0
      %1571 = vmatprep.subr.bf16.mxu0 0
      %1572 = vmatpush1.bf16.msra.mxu0 0
      %1573 = vmatprep.subr.bf16.mxu0 0
      %1574 = vmatpush1.bf16.msra.mxu0 0
      %1575 = vmatprep.subr.bf16.mxu0 0
      %1576 = vmatpush1.bf16.msra.mxu0 0
      %1577 = vmatprep.subr.bf16.mxu0 0
      %1578 = vmatpush1.bf16.msra.mxu0 0
      %1579 = vmatprep.subr.bf16.mxu0 0
      %1580 = vmatpush1.bf16.msra.mxu0 0
      %1581 = vmatprep.subr.bf16.mxu0 0
      %1582 = vmatpush1.bf16.msra.mxu0 0
      %1583 = vmatprep.subr.bf16.mxu0 0
      %1584 = vmatpush1.bf16.msra.mxu0 0
      %1585 = vmatprep.subr.bf16.mxu0 0
      %1586 = vmatpush1.bf16.msra.mxu0 0
      %1587 = vmatprep.mubr.bf16.mxu0 0
      %1588 = vmatmul.mubr.bf16.gmra.mrb[0].mxu0 %v1538
      %v1589 = vpop.f32.mrb[0].mxu0
      %v1590 = vadd.f32 0.0, %v1589
      %v1591 = vpop.f32.mrb[0].mxu0
      %v1592 = vpop.f32.mrb[0].mxu0
      %v1593 = vadd.f32 0.0, %v1592
      %v1594 = vpop.f32.mrb[0].mxu0
      %1595 = vmatprep.mubr.bf16.mxu0 0
      %1596 = vmatmul.mubr.bf16.gmra.mrb[0].mxu0 %v1541
      %v1597 = vpop.f32.mrb[0].mxu0
      %v1598 = vadd.f32 0.0, %v1597
      %v1599 = vpop.f32.mrb[0].mxu0
      %v1600 = vpop.f32.mrb[0].mxu0
      %v1601 = vadd.f32 0.0, %v1600
      %v1602 = vpop.f32.mrb[0].mxu0
      %1603 = vmatprep.mubr.bf16.mxu0 0
      %1604 = vmatmul.mubr.bf16.gmra.mrb[0].mxu0 %v1544
      %v1605 = vpop.f32.mrb[0].mxu0
      %v1606 = vadd.f32 0.0, %v1605
      %v1607 = vpop.f32.mrb[0].mxu0
      %v1608 = vpop.f32.mrb[0].mxu0
      %v1609 = vadd.f32 0.0, %v1608
      %v1610 = vpop.f32.mrb[0].mxu0
      %1611 = vmatprep.mubr.bf16.mxu0 0
      %1612 = vmatmul.mubr.bf16.gmra.mrb[0].mxu0 %v1547
      %v1613 = vpop.f32.mrb[0].mxu0
      %v1614 = vadd.f32 0.0, %v1613
      %v1615 = vpop.f32.mrb[0].mxu0
      %v1616 = vpop.f32.mrb[0].mxu0
      %v1617 = vadd.f32 0.0, %v1616
      %v1618 = vpop.f32.mrb[0].mxu0
      %1619 = vmatprep.mubr.bf16.mxu0 0
      %1620 = vmatmul.mubr.bf16.gmra.mrb[0].mxu0 %v1550
      %v1621 = vpop.f32.mrb[0].mxu0
      %v1622 = vadd.f32 0.0, %v1621
      %v1623 = vpop.f32.mrb[0].mxu0
      %v1624 = vpop.f32.mrb[0].mxu0
      %v1625 = vadd.f32 0.0, %v1624
      %v1626 = vpop.f32.mrb[0].mxu0
      %1627 = vdwg.mxu0
      %v1628 = vadd.f32 %v1003, %v1590
      %v1629 = vadd.f32 %v1006, %v1593
      %v1630 = vadd.f32 %v1011, %v1598
      %v1631 = vadd.f32 %v1014, %v1601
      %v1632 = vadd.f32 %v1019, %v1606
      %v1633 = vadd.f32 %v1022, %v1609
      %v1634 = vadd.f32 %v1027, %v1614
      %v1635 = vadd.f32 %v1030, %v1617
      %v1636 = vadd.f32 %v1035, %v1622
      %v1637 = vadd.f32 %v1038, %v1625
      %s1638 = scalar_lea.vmem %s4, 8
      %v1639 = vld [vmem:[%s1638] sm:$0xf]
      %v1641 = vrot.slane %v728, 1
      %v1642 = vrot.slane %v729, 1
      %v1643 = vsel %vm1525, %v1641, %v1642
      %v1644 = vrot.slane %v730, 1
      %v1645 = vsel %vm1525, %v1642, %v1644
      %v1646 = vrot.slane %v731, 1
      %v1647 = vsel %vm1525, %v1644, %v1646
      %v1648 = vrot.slane %v732, 1
      %v1649 = vsel %vm1525, %v1646, %v1648
      %v1650 = vrot.slane %v733, 1
      %v1651 = vsel %vm1525, %v1648, %v1650
      %1652 = vrot.lane.b32.xlu0 %v1643, 120
      %v1653 = vpop.permute.xlu0 %1652
      %1654 = vrot.lane.b32.xlu0 %v1645, 120
      %v1655 = vpop.permute.xlu0 %1654
      %1656 = vrot.lane.b32.xlu0 %v1647, 120
      %v1657 = vpop.permute.xlu0 %1656
      %1658 = vrot.lane.b32.xlu0 %v1649, 120
      %v1659 = vpop.permute.xlu0 %1658
      %1660 = vrot.lane.b32.xlu0 %v1651, 120
      %v1661 = vpop.permute.xlu0 %1660
      %v1663 = vsel %vm862, %v1653, 0
      %v1666 = vsel %vm862, %v1655, 0
      %v1669 = vsel %vm862, %v1657, 0
      %v1672 = vsel %vm862, %v1659, 0
      %v1675 = vsel %vm862, %v1661, 0
      %v1678 = vsel %vm878, %v1639, 0
      %1680 = vmatprep.subr.bf16.mxu0 0
      %1681 = vmatpush1.bf16.msra.mxu0 %v1678
      %1682 = vmatprep.subr.bf16.mxu0 0
      %1683 = vmatpush1.bf16.msra.mxu0 0
      %1684 = vmatprep.subr.bf16.mxu0 0
      %1685 = vmatpush1.bf16.msra.mxu0 0
      %1686 = vmatprep.subr.bf16.mxu0 0
      %1687 = vmatpush1.bf16.msra.mxu0 0
      %1688 = vmatprep.subr.bf16.mxu0 0
      %1689 = vmatpush1.bf16.msra.mxu0 0
      %1690 = vmatprep.subr.bf16.mxu0 0
      %1691 = vmatpush1.bf16.msra.mxu0 0
      %1692 = vmatprep.subr.bf16.mxu0 0
      %1693 = vmatpush1.bf16.msra.mxu0 0
      %1694 = vmatprep.subr.bf16.mxu0 0
      %1695 = vmatpush1.bf16.msra.mxu0 0
      %1696 = vmatprep.subr.bf16.mxu0 0
      %1697 = vmatpush1.bf16.msra.mxu0 0
      %1698 = vmatprep.subr.bf16.mxu0 0
      %1699 = vmatpush1.bf16.msra.mxu0 0
      %1700 = vmatprep.subr.bf16.mxu0 0
      %1701 = vmatpush1.bf16.msra.mxu0 0
      %1702 = vmatprep.subr.bf16.mxu0 0
      %1703 = vmatpush1.bf16.msra.mxu0 0
      %1704 = vmatprep.subr.bf16.mxu0 0
      %1705 = vmatpush1.bf16.msra.mxu0 0
      %1706 = vmatprep.subr.bf16.mxu0 0
      %1707 = vmatpush1.bf16.msra.mxu0 0
      %1708 = vmatprep.subr.bf16.mxu0 0
      %1709 = vmatpush1.bf16.msra.mxu0 0
      %1710 = vmatprep.subr.bf16.mxu0 0
      %1711 = vmatpush1.bf16.msra.mxu0 0
      %1712 = vmatprep.mubr.bf16.mxu0 0
      %1713 = vmatmul.mubr.bf16.gmra.mrb[0].mxu0 %v1663
      %v1714 = vpop.f32.mrb[0].mxu0
      %v1715 = vadd.f32 0.0, %v1714
      %v1716 = vpop.f32.mrb[0].mxu0
      %v1717 = vpop.f32.mrb[0].mxu0
      %v1718 = vadd.f32 0.0, %v1717
      %v1719 = vpop.f32.mrb[0].mxu0
      %1720 = vmatprep.mubr.bf16.mxu0 0
      %1721 = vmatmul.mubr.bf16.gmra.mrb[0].mxu0 %v1666
      %v1722 = vpop.f32.mrb[0].mxu0
      %v1723 = vadd.f32 0.0, %v1722
      %v1724 = vpop.f32.mrb[0].mxu0
      %v1725 = vpop.f32.mrb[0].mxu0
      %v1726 = vadd.f32 0.0, %v1725
      %v1727 = vpop.f32.mrb[0].mxu0
      %1728 = vmatprep.mubr.bf16.mxu0 0
      %1729 = vmatmul.mubr.bf16.gmra.mrb[0].mxu0 %v1669
      %v1730 = vpop.f32.mrb[0].mxu0
      %v1731 = vadd.f32 0.0, %v1730
      %v1732 = vpop.f32.mrb[0].mxu0
      %v1733 = vpop.f32.mrb[0].mxu0
      %v1734 = vadd.f32 0.0, %v1733
      %v1735 = vpop.f32.mrb[0].mxu0
      %1736 = vmatprep.mubr.bf16.mxu0 0
      %1737 = vmatmul.mubr.bf16.gmra.mrb[0].mxu0 %v1672
      %v1738 = vpop.f32.mrb[0].mxu0
      %v1739 = vadd.f32 0.0, %v1738
      %v1740 = vpop.f32.mrb[0].mxu0
      %v1741 = vpop.f32.mrb[0].mxu0
      %v1742 = vadd.f32 0.0, %v1741
      %v1743 = vpop.f32.mrb[0].mxu0
      %1744 = vmatprep.mubr.bf16.mxu0 0
      %1745 = vmatmul.mubr.bf16.gmra.mrb[0].mxu0 %v1675
      %v1746 = vpop.f32.mrb[0].mxu0
      %v1747 = vadd.f32 0.0, %v1746
      %v1748 = vpop.f32.mrb[0].mxu0
      %v1749 = vpop.f32.mrb[0].mxu0
      %v1750 = vadd.f32 0.0, %v1749
      %v1751 = vpop.f32.mrb[0].mxu0
      %1752 = vdwg.mxu0
      %v1753 = vadd.f32 %v1256, %v1715
      %v1754 = vadd.f32 %v1259, %v1718
      %v1755 = vadd.f32 %v1264, %v1723
      %v1756 = vadd.f32 %v1267, %v1726
      %v1757 = vadd.f32 %v1272, %v1731
      %v1758 = vadd.f32 %v1275, %v1734
      %v1759 = vadd.f32 %v1280, %v1739
      %v1760 = vadd.f32 %v1283, %v1742
      %v1761 = vadd.f32 %v1288, %v1747
      %v1762 = vadd.f32 %v1291, %v1750
      %s1763 = scalar_lea.vmem %s5, 8
      %v1764 = vld [vmem:[%s1763] sm:$0xf]
      %v1771 = vrot.slane %v805, 1
      %v1772 = vrot.slane %v806, 1
      %v1773 = vsel %vm1525, %v1771, %v1772
      %v1774 = vrot.slane %v807, 1
      %v1775 = vsel %vm1525, %v1772, %v1774
      %v1776 = vrot.slane %v808, 1
      %v1777 = vsel %vm1525, %v1774, %v1776
      %v1778 = vrot.slane %v809, 1
      %v1779 = vsel %vm1525, %v1776, %v1778
      %v1780 = vrot.slane %v810, 1
      %v1781 = vsel %vm1525, %v1778, %v1780
      %v1783 = vsel %vm862, %v1773, 0
      %v1786 = vsel %vm862, %v1775, 0
      %v1789 = vsel %vm862, %v1777, 0
      %v1792 = vsel %vm862, %v1779, 0
      %v1795 = vsel %vm862, %v1781, 0
      %v1798 = vsel %vm878, %v1764, 0
      %1800 = vmatprep.subr.bf16.mxu0 0
      %1801 = vmatpush1.bf16.msra.mxu0 %v1798
      %1802 = vmatprep.subr.bf16.mxu0 0
      %1803 = vmatpush1.bf16.msra.mxu0 0
      %1804 = vmatprep.subr.bf16.mxu0 0
      %1805 = vmatpush1.bf16.msra.mxu0 0
      %1806 = vmatprep.subr.bf16.mxu0 0
      %1807 = vmatpush1.bf16.msra.mxu0 0
      %1808 = vmatprep.subr.bf16.mxu0 0
      %1809 = vmatpush1.bf16.msra.mxu0 0
      %1810 = vmatprep.subr.bf16.mxu0 0
      %1811 = vmatpush1.bf16.msra.mxu0 0
      %1812 = vmatprep.subr.bf16.mxu0 0
      %1813 = vmatpush1.bf16.msra.mxu0 0
      %1814 = vmatprep.subr.bf16.mxu0 0
      %1815 = vmatpush1.bf16.msra.mxu0 0
      %1816 = vmatprep.subr.bf16.mxu0 0
      %1817 = vmatpush1.bf16.msra.mxu0 0
      %1818 = vmatprep.subr.bf16.mxu0 0
      %1819 = vmatpush1.bf16.msra.mxu0 0
      %1820 = vmatprep.subr.bf16.mxu0 0
      %1821 = vmatpush1.bf16.msra.mxu0 0
      %1822 = vmatprep.subr.bf16.mxu0 0
      %1823 = vmatpush1.bf16.msra.mxu0 0
      %1824 = vmatprep.subr.bf16.mxu0 0
      %1825 = vmatpush1.bf16.msra.mxu0 0
      %1826 = vmatprep.subr.bf16.mxu0 0
      %1827 = vmatpush1.bf16.msra.mxu0 0
      %1828 = vmatprep.subr.bf16.mxu0 0
      %1829 = vmatpush1.bf16.msra.mxu0 0
      %1830 = vmatprep.subr.bf16.mxu0 0
      %1831 = vmatpush1.bf16.msra.mxu0 0
      %1832 = vmatprep.mubr.bf16.mxu0 0
      %1833 = vmatmul.mubr.bf16.gmra.mrb[0].mxu0 %v1783
      %v1834 = vpop.f32.mrb[0].mxu0
      %v1835 = vadd.f32 0.0, %v1834
      %v1836 = vpop.f32.mrb[0].mxu0
      %v1837 = vpop.f32.mrb[0].mxu0
      %v1838 = vadd.f32 0.0, %v1837
      %v1839 = vpop.f32.mrb[0].mxu0
      %1840 = vmatprep.mubr.bf16.mxu0 0
      %1841 = vmatmul.mubr.bf16.gmra.mrb[0].mxu0 %v1786
      %v1842 = vpop.f32.mrb[0].mxu0
      %v1843 = vadd.f32 0.0, %v1842
      %v1844 = vpop.f32.mrb[0].mxu0
      %v1845 = vpop.f32.mrb[0].mxu0
      %v1846 = vadd.f32 0.0, %v1845
      %v1847 = vpop.f32.mrb[0].mxu0
      %1848 = vmatprep.mubr.bf16.mxu0 0
      %1849 = vmatmul.mubr.bf16.gmra.mrb[0].mxu0 %v1789
      %v1850 = vpop.f32.mrb[0].mxu0
      %v1851 = vadd.f32 0.0, %v1850
      %v1852 = vpop.f32.mrb[0].mxu0
      %v1853 = vpop.f32.mrb[0].mxu0
      %v1854 = vadd.f32 0.0, %v1853
      %v1855 = vpop.f32.mrb[0].mxu0
      %1856 = vmatprep.mubr.bf16.mxu0 0
      %1857 = vmatmul.mubr.bf16.gmra.mrb[0].mxu0 %v1792
      %v1858 = vpop.f32.mrb[0].mxu0
      %v1859 = vadd.f32 0.0, %v1858
      %v1860 = vpop.f32.mrb[0].mxu0
      %v1861 = vpop.f32.mrb[0].mxu0
      %v1862 = vadd.f32 0.0, %v1861
      %v1863 = vpop.f32.mrb[0].mxu0
      %1864 = vmatprep.mubr.bf16.mxu0 0
      %1865 = vmatmul.mubr.bf16.gmra.mrb[0].mxu0 %v1795
      %v1866 = vpop.f32.mrb[0].mxu0
      %v1867 = vadd.f32 0.0, %v1866
      %v1868 = vpop.f32.mrb[0].mxu0
      %v1869 = vpop.f32.mrb[0].mxu0
      %v1870 = vadd.f32 0.0, %v1869
      %v1871 = vpop.f32.mrb[0].mxu0
      %1872 = vdwg.mxu0
      %v1873 = vadd.f32 %v1479, %v1835
      %v1874 = vadd.f32 %v1482, %v1838
      %v1875 = vadd.f32 %v1487, %v1843
      %v1876 = vadd.f32 %v1490, %v1846
      %v1877 = vadd.f32 %v1495, %v1851
      %v1878 = vadd.f32 %v1498, %v1854
      %v1879 = vadd.f32 %v1503, %v1859
      %v1880 = vadd.f32 %v1506, %v1862
      %v1881 = vadd.f32 %v1511, %v1867
      %v1882 = vadd.f32 %v1514, %v1870
      %s1883 = scalar_lea.vmem %s3, 12
      %v1884 = vld [vmem:[%s1883] sm:$0xf]
      %vm1885 = vcmask 1042432
      %v1886 = vrot.slane %v721, 5
      %v1887 = vrot.slane %v722, 5
      %v1888 = vsel %vm1885, %v1886, %v1887
      %v1889 = vrot.slane %v723, 5
      %v1890 = vsel %vm1885, %v1887, %v1889
      %v1891 = vrot.slane %v724, 5
      %v1892 = vsel %vm1885, %v1889, %v1891
      %v1893 = vrot.slane %v725, 5
      %v1894 = vsel %vm1885, %v1891, %v1893
      %v1895 = vrot.slane %v726, 5
      %v1896 = vsel %vm1885, %v1893, %v1895
      %v1898 = vsel %vm862, %v1888, 0
      %v1901 = vsel %vm862, %v1890, 0
      %v1904 = vsel %vm862, %v1892, 0
      %v1907 = vsel %vm862, %v1894, 0
      %v1910 = vsel %vm862, %v1896, 0
      %v1913 = vsel %vm878, %v1884, 0
      %1915 = vmatprep.subr.bf16.mxu0 0
      %1916 = vmatpush1.bf16.msra.mxu0 %v1913
      %1917 = vmatprep.subr.bf16.mxu0 0
      %1918 = vmatpush1.bf16.msra.mxu0 0
      %1919 = vmatprep.subr.bf16.mxu0 0
      %1920 = vmatpush1.bf16.msra.mxu0 0
      %1921 = vmatprep.subr.bf16.mxu0 0
      %1922 = vmatpush1.bf16.msra.mxu0 0
      %1923 = vmatprep.subr.bf16.mxu0 0
      %1924 = vmatpush1.bf16.msra.mxu0 0
      %1925 = vmatprep.subr.bf16.mxu0 0
      %1926 = vmatpush1.bf16.msra.mxu0 0
      %1927 = vmatprep.subr.bf16.mxu0 0
      %1928 = vmatpush1.bf16.msra.mxu0 0
      %1929 = vmatprep.subr.bf16.mxu0 0
      %1930 = vmatpush1.bf16.msra.mxu0 0
      %1931 = vmatprep.subr.bf16.mxu0 0
      %1932 = vmatpush1.bf16.msra.mxu0 0
      %1933 = vmatprep.subr.bf16.mxu0 0
      %1934 = vmatpush1.bf16.msra.mxu0 0
      %1935 = vmatprep.subr.bf16.mxu0 0
      %1936 = vmatpush1.bf16.msra.mxu0 0
      %1937 = vmatprep.subr.bf16.mxu0 0
      %1938 = vmatpush1.bf16.msra.mxu0 0
      %1939 = vmatprep.subr.bf16.mxu0 0
      %1940 = vmatpush1.bf16.msra.mxu0 0
      %1941 = vmatprep.subr.bf16.mxu0 0
      %1942 = vmatpush1.bf16.msra.mxu0 0
      %1943 = vmatprep.subr.bf16.mxu0 0
      %1944 = vmatpush1.bf16.msra.mxu0 0
      %1945 = vmatprep.subr.bf16.mxu0 0
      %1946 = vmatpush1.bf16.msra.mxu0 0
      %1947 = vmatprep.mubr.bf16.mxu0 0
      %1948 = vmatmul.mubr.bf16.gmra.mrb[0].mxu0 %v1898
      %v1949 = vpop.f32.mrb[0].mxu0
      %v1950 = vadd.f32 0.0, %v1949
      %v1951 = vpop.f32.mrb[0].mxu0
      %v1952 = vpop.f32.mrb[0].mxu0
      %v1953 = vadd.f32 0.0, %v1952
      %v1954 = vpop.f32.mrb[0].mxu0
      %1955 = vmatprep.mubr.bf16.mxu0 0
      %1956 = vmatmul.mubr.bf16.gmra.mrb[0].mxu0 %v1901
      %v1957 = vpop.f32.mrb[0].mxu0
      %v1958 = vadd.f32 0.0, %v1957
      %v1959 = vpop.f32.mrb[0].mxu0
      %v1960 = vpop.f32.mrb[0].mxu0
      %v1961 = vadd.f32 0.0, %v1960
      %v1962 = vpop.f32.mrb[0].mxu0
      %1963 = vmatprep.mubr.bf16.mxu0 0
      %1964 = vmatmul.mubr.bf16.gmra.mrb[0].mxu0 %v1904
      %v1965 = vpop.f32.mrb[0].mxu0
      %v1966 = vadd.f32 0.0, %v1965
      %v1967 = vpop.f32.mrb[0].mxu0
      %v1968 = vpop.f32.mrb[0].mxu0
      %v1969 = vadd.f32 0.0, %v1968
      %v1970 = vpop.f32.mrb[0].mxu0
      %1971 = vmatprep.mubr.bf16.mxu0 0
      %1972 = vmatmul.mubr.bf16.gmra.mrb[0].mxu0 %v1907
      %v1973 = vpop.f32.mrb[0].mxu0
      %v1974 = vadd.f32 0.0, %v1973
      %v1975 = vpop.f32.mrb[0].mxu0
      %v1976 = vpop.f32.mrb[0].mxu0
      %v1977 = vadd.f32 0.0, %v1976
      %v1978 = vpop.f32.mrb[0].mxu0
      %1979 = vmatprep.mubr.bf16.mxu0 0
      %1980 = vmatmul.mubr.bf16.gmra.mrb[0].mxu0 %v1910
      %v1981 = vpop.f32.mrb[0].mxu0
      %v1982 = vadd.f32 0.0, %v1981
      %v1983 = vpop.f32.mrb[0].mxu0
      %v1984 = vpop.f32.mrb[0].mxu0
      %v1985 = vadd.f32 0.0, %v1984
      %v1986 = vpop.f32.mrb[0].mxu0
      %1987 = vdwg.mxu0
      %v1988 = vadd.f32 %v1628, %v1950
      %v1989 = vadd.f32 %v1629, %v1953
      %v1990 = vadd.f32 %v1630, %v1958
      %v1991 = vadd.f32 %v1631, %v1961
      %v1992 = vadd.f32 %v1632, %v1966
      %v1993 = vadd.f32 %v1633, %v1969
      %v1994 = vadd.f32 %v1634, %v1974
      %v1995 = vadd.f32 %v1635, %v1977
      %v1996 = vadd.f32 %v1636, %v1982
      %v1997 = vadd.f32 %v1637, %v1985
      %s1998 = scalar_lea.vmem %s4, 12
      %v1999 = vld [vmem:[%s1998] sm:$0xf]
      %v2000 = vrot.slane %v728, 5
      %v2001 = vrot.slane %v729, 5
      %v2002 = vsel %vm1885, %v2000, %v2001
      %v2003 = vrot.slane %v730, 5
      %v2004 = vsel %vm1885, %v2001, %v2003
      %v2005 = vrot.slane %v731, 5
      %v2006 = vsel %vm1885, %v2003, %v2005
      %v2007 = vrot.slane %v732, 5
      %v2008 = vsel %vm1885, %v2005, %v2007
      %v2009 = vrot.slane %v733, 5
      %v2010 = vsel %vm1885, %v2007, %v2009
      %2011 = vrot.lane.b32.xlu0 %v2002, 120
      %v2012 = vpop.permute.xlu0 %2011
      %2013 = vrot.lane.b32.xlu0 %v2004, 120
      %v2014 = vpop.permute.xlu0 %2013
      %2015 = vrot.lane.b32.xlu0 %v2006, 120
      %v2016 = vpop.permute.xlu0 %2015
      %2017 = vrot.lane.b32.xlu0 %v2008, 120
      %v2018 = vpop.permute.xlu0 %2017
      %2019 = vrot.lane.b32.xlu0 %v2010, 120
      %v2020 = vpop.permute.xlu0 %2019
      %v2022 = vsel %vm862, %v2012, 0
      %v2025 = vsel %vm862, %v2014, 0
      %v2028 = vsel %vm862, %v2016, 0
      %v2031 = vsel %vm862, %v2018, 0
      %v2034 = vsel %vm862, %v2020, 0
      %v2037 = vsel %vm878, %v1999, 0
      %2039 = vmatprep.subr.bf16.mxu0 0
      %2040 = vmatpush1.bf16.msra.mxu0 %v2037
      %2041 = vmatprep.subr.bf16.mxu0 0
      %2042 = vmatpush1.bf16.msra.mxu0 0
      %2043 = vmatprep.subr.bf16.mxu0 0
      %2044 = vmatpush1.bf16.msra.mxu0 0
      %2045 = vmatprep.subr.bf16.mxu0 0
      %2046 = vmatpush1.bf16.msra.mxu0 0
      %2047 = vmatprep.subr.bf16.mxu0 0
      %2048 = vmatpush1.bf16.msra.mxu0 0
      %2049 = vmatprep.subr.bf16.mxu0 0
      %2050 = vmatpush1.bf16.msra.mxu0 0
      %2051 = vmatprep.subr.bf16.mxu0 0
      %2052 = vmatpush1.bf16.msra.mxu0 0
      %2053 = vmatprep.subr.bf16.mxu0 0
      %2054 = vmatpush1.bf16.msra.mxu0 0
      %2055 = vmatprep.subr.bf16.mxu0 0
      %2056 = vmatpush1.bf16.msra.mxu0 0
      %2057 = vmatprep.subr.bf16.mxu0 0
      %2058 = vmatpush1.bf16.msra.mxu0 0
      %2059 = vmatprep.subr.bf16.mxu0 0
      %2060 = vmatpush1.bf16.msra.mxu0 0
      %2061 = vmatprep.subr.bf16.mxu0 0
      %2062 = vmatpush1.bf16.msra.mxu0 0
      %2063 = vmatprep.subr.bf16.mxu0 0
      %2064 = vmatpush1.bf16.msra.mxu0 0
      %2065 = vmatprep.subr.bf16.mxu0 0
      %2066 = vmatpush1.bf16.msra.mxu0 0
      %2067 = vmatprep.subr.bf16.mxu0 0
      %2068 = vmatpush1.bf16.msra.mxu0 0
      %2069 = vmatprep.subr.bf16.mxu0 0
      %2070 = vmatpush1.bf16.msra.mxu0 0
      %2071 = vmatprep.mubr.bf16.mxu0 0
      %2072 = vmatmul.mubr.bf16.gmra.mrb[0].mxu0 %v2022
      %v2073 = vpop.f32.mrb[0].mxu0
      %v2074 = vadd.f32 0.0, %v2073
      %v2075 = vpop.f32.mrb[0].mxu0
      %v2076 = vpop.f32.mrb[0].mxu0
      %v2077 = vadd.f32 0.0, %v2076
      %v2078 = vpop.f32.mrb[0].mxu0
      %2079 = vmatprep.mubr.bf16.mxu0 0
      %2080 = vmatmul.mubr.bf16.gmra.mrb[0].mxu0 %v2025
      %v2081 = vpop.f32.mrb[0].mxu0
      %v2082 = vadd.f32 0.0, %v2081
      %v2083 = vpop.f32.mrb[0].mxu0
      %v2084 = vpop.f32.mrb[0].mxu0
      %v2085 = vadd.f32 0.0, %v2084
      %v2086 = vpop.f32.mrb[0].mxu0
      %2087 = vmatprep.mubr.bf16.mxu0 0
      %2088 = vmatmul.mubr.bf16.gmra.mrb[0].mxu0 %v2028
      %v2089 = vpop.f32.mrb[0].mxu0
      %v2090 = vadd.f32 0.0, %v2089
      %v2091 = vpop.f32.mrb[0].mxu0
      %v2092 = vpop.f32.mrb[0].mxu0
      %v2093 = vadd.f32 0.0, %v2092
      %v2094 = vpop.f32.mrb[0].mxu0
      %2095 = vmatprep.mubr.bf16.mxu0 0
      %2096 = vmatmul.mubr.bf16.gmra.mrb[0].mxu0 %v2031
      %v2097 = vpop.f32.mrb[0].mxu0
      %v2098 = vadd.f32 0.0, %v2097
      %v2099 = vpop.f32.mrb[0].mxu0
      %v2100 = vpop.f32.mrb[0].mxu0
      %v2101 = vadd.f32 0.0, %v2100
      %v2102 = vpop.f32.mrb[0].mxu0
      %2103 = vmatprep.mubr.bf16.mxu0 0
      %2104 = vmatmul.mubr.bf16.gmra.mrb[0].mxu0 %v2034
      %v2105 = vpop.f32.mrb[0].mxu0
      %v2106 = vadd.f32 0.0, %v2105
      %v2107 = vpop.f32.mrb[0].mxu0
      %v2108 = vpop.f32.mrb[0].mxu0
      %v2109 = vadd.f32 0.0, %v2108
      %v2110 = vpop.f32.mrb[0].mxu0
      %2111 = vdwg.mxu0
      %v2112 = vadd.f32 %v1753, %v2074
      %v2113 = vadd.f32 %v1754, %v2077
      %v2114 = vadd.f32 %v1755, %v2082
      %v2115 = vadd.f32 %v1756, %v2085
      %v2116 = vadd.f32 %v1757, %v2090
      %v2117 = vadd.f32 %v1758, %v2093
      %v2118 = vadd.f32 %v1759, %v2098
      %v2119 = vadd.f32 %v1760, %v2101
      %v2120 = vadd.f32 %v1761, %v2106
      %v2121 = vadd.f32 %v1762, %v2109
      %s2122 = scalar_lea.vmem %s5, 12
      %v2123 = vld [vmem:[%s2122] sm:$0xf]
      %v2124 = vrot.slane %v805, 5
      %v2125 = vrot.slane %v806, 5
      %v2126 = vsel %vm1885, %v2124, %v2125
      %v2127 = vrot.slane %v807, 5
      %v2128 = vsel %vm1885, %v2125, %v2127
      %v2129 = vrot.slane %v808, 5
      %v2130 = vsel %vm1885, %v2127, %v2129
      %v2131 = vrot.slane %v809, 5
      %v2132 = vsel %vm1885, %v2129, %v2131
      %v2133 = vrot.slane %v810, 5
      %v2134 = vsel %vm1885, %v2131, %v2133
      %v2136 = vsel %vm862, %v2126, 0
      %v2139 = vsel %vm862, %v2128, 0
      %v2142 = vsel %vm862, %v2130, 0
      %v2145 = vsel %vm862, %v2132, 0
      %v2148 = vsel %vm862, %v2134, 0
      %v2151 = vsel %vm878, %v2123, 0
      %2153 = vmatprep.subr.bf16.mxu0 0
      %2154 = vmatpush1.bf16.msra.mxu0 %v2151
      %2155 = vmatprep.subr.bf16.mxu0 0
      %2156 = vmatpush1.bf16.msra.mxu0 0
      %2157 = vmatprep.subr.bf16.mxu0 0
      %2158 = vmatpush1.bf16.msra.mxu0 0
      %2159 = vmatprep.subr.bf16.mxu0 0
      %2160 = vmatpush1.bf16.msra.mxu0 0
      %2161 = vmatprep.subr.bf16.mxu0 0
      %2162 = vmatpush1.bf16.msra.mxu0 0
      %2163 = vmatprep.subr.bf16.mxu0 0
      %2164 = vmatpush1.bf16.msra.mxu0 0
      %2165 = vmatprep.subr.bf16.mxu0 0
      %2166 = vmatpush1.bf16.msra.mxu0 0
      %2167 = vmatprep.subr.bf16.mxu0 0
      %2168 = vmatpush1.bf16.msra.mxu0 0
      %2169 = vmatprep.subr.bf16.mxu0 0
      %2170 = vmatpush1.bf16.msra.mxu0 0
      %2171 = vmatprep.subr.bf16.mxu0 0
      %2172 = vmatpush1.bf16.msra.mxu0 0
      %2173 = vmatprep.subr.bf16.mxu0 0
      %2174 = vmatpush1.bf16.msra.mxu0 0
      %2175 = vmatprep.subr.bf16.mxu0 0
      %2176 = vmatpush1.bf16.msra.mxu0 0
      %2177 = vmatprep.subr.bf16.mxu0 0
      %2178 = vmatpush1.bf16.msra.mxu0 0
      %2179 = vmatprep.subr.bf16.mxu0 0
      %2180 = vmatpush1.bf16.msra.mxu0 0
      %2181 = vmatprep.subr.bf16.mxu0 0
      %2182 = vmatpush1.bf16.msra.mxu0 0
      %2183 = vmatprep.subr.bf16.mxu0 0
      %2184 = vmatpush1.bf16.msra.mxu0 0
      %2185 = vmatprep.mubr.bf16.mxu0 0
      %2186 = vmatmul.mubr.bf16.gmra.mrb[0].mxu0 %v2136
      %v2187 = vpop.f32.mrb[0].mxu0
      %v2188 = vadd.f32 0.0, %v2187
      %v2189 = vpop.f32.mrb[0].mxu0
      %v2190 = vpop.f32.mrb[0].mxu0
      %v2191 = vadd.f32 0.0, %v2190
      %v2192 = vpop.f32.mrb[0].mxu0
      %2193 = vmatprep.mubr.bf16.mxu0 0
      %2194 = vmatmul.mubr.bf16.gmra.mrb[0].mxu0 %v2139
      %v2195 = vpop.f32.mrb[0].mxu0
      %v2196 = vadd.f32 0.0, %v2195
      %v2197 = vpop.f32.mrb[0].mxu0
      %v2198 = vpop.f32.mrb[0].mxu0
      %v2199 = vadd.f32 0.0, %v2198
      %v2200 = vpop.f32.mrb[0].mxu0
      %2201 = vmatprep.mubr.bf16.mxu0 0
      %2202 = vmatmul.mubr.bf16.gmra.mrb[0].mxu0 %v2142
      %v2203 = vpop.f32.mrb[0].mxu0
      %v2204 = vadd.f32 0.0, %v2203
      %v2205 = vpop.f32.mrb[0].mxu0
      %v2206 = vpop.f32.mrb[0].mxu0
      %v2207 = vadd.f32 0.0, %v2206
      %v2208 = vpop.f32.mrb[0].mxu0
      %2209 = vmatprep.mubr.bf16.mxu0 0
      %2210 = vmatmul.mubr.bf16.gmra.mrb[0].mxu0 %v2145
      %v2211 = vpop.f32.mrb[0].mxu0
      %v2212 = vadd.f32 0.0, %v2211
      %v2213 = vpop.f32.mrb[0].mxu0
      %v2214 = vpop.f32.mrb[0].mxu0
      %v2215 = vadd.f32 0.0, %v2214
      %v2216 = vpop.f32.mrb[0].mxu0
      %2217 = vmatprep.mubr.bf16.mxu0 0
      %2218 = vmatmul.mubr.bf16.gmra.mrb[0].mxu0 %v2148
      %v2219 = vpop.f32.mrb[0].mxu0
      %v2220 = vadd.f32 0.0, %v2219
      %v2221 = vpop.f32.mrb[0].mxu0
      %v2222 = vpop.f32.mrb[0].mxu0
      %v2223 = vadd.f32 0.0, %v2222
      %v2224 = vpop.f32.mrb[0].mxu0
      %2225 = vdwg.mxu0
      %v2226 = vadd.f32 %v1873, %v2188
      %v2227 = vadd.f32 %v1874, %v2191
      %v2228 = vadd.f32 %v1875, %v2196
      %v2229 = vadd.f32 %v1876, %v2199
      %v2230 = vadd.f32 %v1877, %v2204
      %v2231 = vadd.f32 %v1878, %v2207
      %v2232 = vadd.f32 %v1879, %v2212
      %v2233 = vadd.f32 %v1880, %v2215
      %v2234 = vadd.f32 %v1881, %v2220
      %v2235 = vadd.f32 %v1882, %v2223
      %s2236 = scalar_lea.vmem %s3, 16
      %v2237 = vld [vmem:[%s2236] sm:$0xf]
      %vm2238 = vsmask.f32 2304
      %v2239 = vrot.slane %v819, 5
      %v2240 = vrot.slane %v821, 6
      %v2241 = vor.u32 %v2239, %v2240
      %v2242 = vrot.slane %v830, 5
      %v2243 = vrot.slane %v826, 6
      %v2244 = vor.u32 %v2242, %v2243
      %v2245 = vsel %vm2238, %v2241, %v2244
      %v2246 = vrot.slane %v838, 5
      %v2247 = vrot.slane %v834, 6
      %v2248 = vor.u32 %v2246, %v2247
      %v2249 = vsel %vm2238, %v2244, %v2248
      %v2250 = vrot.slane %v846, 5
      %v2251 = vrot.slane %v842, 6
      %v2252 = vor.u32 %v2250, %v2251
      %v2253 = vsel %vm2238, %v2248, %v2252
      %v2254 = vrot.slane %v854, 5
      %v2255 = vrot.slane %v850, 6
      %v2256 = vor.u32 %v2254, %v2255
      %v2257 = vsel %vm2238, %v2252, %v2256
      %v2258 = vshrl.u32 %v726, 16
      %v2260 = vrot.slane %v2258, 5
      %v2261 = vrot.slane %v858, 6
      %v2262 = vor.u32 %v2260, %v2261
      %v2263 = vsel %vm2238, %v2256, %v2262
      %v2265 = vsel %vm862, %v2245, 0
      %v2268 = vsel %vm862, %v2249, 0
      %v2271 = vsel %vm862, %v2253, 0
      %v2274 = vsel %vm862, %v2257, 0
      %v2277 = vsel %vm862, %v2263, 0
      %v2280 = vsel %vm878, %v2237, 0
      %2282 = vmatprep.subr.bf16.mxu0 0
      %2283 = vmatpush1.bf16.msra.mxu0 %v2280
      %2284 = vmatprep.subr.bf16.mxu0 0
      %2285 = vmatpush1.bf16.msra.mxu0 0
      %2286 = vmatprep.subr.bf16.mxu0 0
      %2287 = vmatpush1.bf16.msra.mxu0 0
      %2288 = vmatprep.subr.bf16.mxu0 0
      %2289 = vmatpush1.bf16.msra.mxu0 0
      %2290 = vmatprep.subr.bf16.mxu0 0
      %2291 = vmatpush1.bf16.msra.mxu0 0
      %2292 = vmatprep.subr.bf16.mxu0 0
      %2293 = vmatpush1.bf16.msra.mxu0 0
      %2294 = vmatprep.subr.bf16.mxu0 0
      %2295 = vmatpush1.bf16.msra.mxu0 0
      %2296 = vmatprep.subr.bf16.mxu0 0
      %2297 = vmatpush1.bf16.msra.mxu0 0
      %2298 = vmatprep.subr.bf16.mxu0 0
      %2299 = vmatpush1.bf16.msra.mxu0 0
      %2300 = vmatprep.subr.bf16.mxu0 0
      %2301 = vmatpush1.bf16.msra.mxu0 0
      %2302 = vmatprep.subr.bf16.mxu0 0
      %2303 = vmatpush1.bf16.msra.mxu0 0
      %2304 = vmatprep.subr.bf16.mxu0 0
      %2305 = vmatpush1.bf16.msra.mxu0 0
      %2306 = vmatprep.subr.bf16.mxu0 0
      %2307 = vmatpush1.bf16.msra.mxu0 0
      %2308 = vmatprep.subr.bf16.mxu0 0
      %2309 = vmatpush1.bf16.msra.mxu0 0
      %2310 = vmatprep.subr.bf16.mxu0 0
      %2311 = vmatpush1.bf16.msra.mxu0 0
      %2312 = vmatprep.subr.bf16.mxu0 0
      %2313 = vmatpush1.bf16.msra.mxu0 0
      %2314 = vmatprep.mubr.bf16.mxu0 0
      %2315 = vmatmul.mubr.bf16.gmra.mrb[0].mxu0 %v2265
      %v2316 = vpop.f32.mrb[0].mxu0
      %v2317 = vadd.f32 0.0, %v2316
      %v2318 = vpop.f32.mrb[0].mxu0
      %v2319 = vpop.f32.mrb[0].mxu0
      %v2320 = vadd.f32 0.0, %v2319
      %v2321 = vpop.f32.mrb[0].mxu0
      %2322 = vmatprep.mubr.bf16.mxu0 0
      %2323 = vmatmul.mubr.bf16.gmra.mrb[0].mxu0 %v2268
      %v2324 = vpop.f32.mrb[0].mxu0
      %v2325 = vadd.f32 0.0, %v2324
      %v2326 = vpop.f32.mrb[0].mxu0
      %v2327 = vpop.f32.mrb[0].mxu0
      %v2328 = vadd.f32 0.0, %v2327
      %v2329 = vpop.f32.mrb[0].mxu0
      %2330 = vmatprep.mubr.bf16.mxu0 0
      %2331 = vmatmul.mubr.bf16.gmra.mrb[0].mxu0 %v2271
      %v2332 = vpop.f32.mrb[0].mxu0
      %v2333 = vadd.f32 0.0, %v2332
      %v2334 = vpop.f32.mrb[0].mxu0
      %v2335 = vpop.f32.mrb[0].mxu0
      %v2336 = vadd.f32 0.0, %v2335
      %v2337 = vpop.f32.mrb[0].mxu0
      %2338 = vmatprep.mubr.bf16.mxu0 0
      %2339 = vmatmul.mubr.bf16.gmra.mrb[0].mxu0 %v2274
      %v2340 = vpop.f32.mrb[0].mxu0
      %v2341 = vadd.f32 0.0, %v2340
      %v2342 = vpop.f32.mrb[0].mxu0
      %v2343 = vpop.f32.mrb[0].mxu0
      %v2344 = vadd.f32 0.0, %v2343
      %v2345 = vpop.f32.mrb[0].mxu0
      %2346 = vmatprep.mubr.bf16.mxu0 0
      %2347 = vmatmul.mubr.bf16.gmra.mrb[0].mxu0 %v2277
      %v2348 = vpop.f32.mrb[0].mxu0
      %v2349 = vadd.f32 0.0, %v2348
      %v2350 = vpop.f32.mrb[0].mxu0
      %v2351 = vpop.f32.mrb[0].mxu0
      %v2352 = vadd.f32 0.0, %v2351
      %v2353 = vpop.f32.mrb[0].mxu0
      %2354 = vdwg.mxu0
      %v2355 = vadd.f32 %v1988, %v2317
      %v2356 = vadd.f32 %v1989, %v2320
      %v2357 = vadd.f32 %v1990, %v2325
      %v2358 = vadd.f32 %v1991, %v2328
      %v2359 = vadd.f32 %v1992, %v2333
      %v2360 = vadd.f32 %v1993, %v2336
      %v2361 = vadd.f32 %v1994, %v2341
      %v2362 = vadd.f32 %v1995, %v2344
      %v2363 = vadd.f32 %v1996, %v2349
      %v2364 = vadd.f32 %v1997, %v2352
      %s2365 = scalar_lea.vmem %s4, 16
      %v2366 = vld [vmem:[%s2365] sm:$0xf]
      %v2367 = vrot.slane %v1044, 5
      %v2368 = vrot.slane %v1046, 6
      %v2369 = vor.u32 %v2367, %v2368
      %v2370 = vrot.slane %v1055, 5
      %v2371 = vrot.slane %v1051, 6
      %v2372 = vor.u32 %v2370, %v2371
      %v2373 = vsel %vm2238, %v2369, %v2372
      %v2374 = vrot.slane %v1063, 5
      %v2375 = vrot.slane %v1059, 6
      %v2376 = vor.u32 %v2374, %v2375
      %v2377 = vsel %vm2238, %v2372, %v2376
      %v2378 = vrot.slane %v1071, 5
      %v2379 = vrot.slane %v1067, 6
      %v2380 = vor.u32 %v2378, %v2379
      %v2381 = vsel %vm2238, %v2376, %v2380
      %v2382 = vrot.slane %v1079, 5
      %v2383 = vrot.slane %v1075, 6
      %v2384 = vor.u32 %v2382, %v2383
      %v2385 = vsel %vm2238, %v2380, %v2384
      %v2386 = vshrl.u32 %v733, 16
      %v2388 = vrot.slane %v2386, 5
      %v2389 = vrot.slane %v1083, 6
      %v2390 = vor.u32 %v2388, %v2389
      %v2391 = vsel %vm2238, %v2384, %v2390
      %2392 = vrot.lane.b32.xlu0 %v2373, 120
      %v2393 = vpop.permute.xlu0 %2392
      %2394 = vrot.lane.b32.xlu0 %v2377, 120
      %v2395 = vpop.permute.xlu0 %2394
      %2396 = vrot.lane.b32.xlu0 %v2381, 120
      %v2397 = vpop.permute.xlu0 %2396
      %2398 = vrot.lane.b32.xlu0 %v2385, 120
      %v2399 = vpop.permute.xlu0 %2398
      %2400 = vrot.lane.b32.xlu0 %v2391, 120
      %v2401 = vpop.permute.xlu0 %2400
      %v2403 = vsel %vm862, %v2393, 0
      %v2406 = vsel %vm862, %v2395, 0
      %v2409 = vsel %vm862, %v2397, 0
      %v2412 = vsel %vm862, %v2399, 0
      %v2415 = vsel %vm862, %v2401, 0
      %v2418 = vsel %vm878, %v2366, 0
      %2420 = vmatprep.subr.bf16.mxu0 0
      %2421 = vmatpush1.bf16.msra.mxu0 %v2418
      %2422 = vmatprep.subr.bf16.mxu0 0
      %2423 = vmatpush1.bf16.msra.mxu0 0
      %2424 = vmatprep.subr.bf16.mxu0 0
      %2425 = vmatpush1.bf16.msra.mxu0 0
      %2426 = vmatprep.subr.bf16.mxu0 0
      %2427 = vmatpush1.bf16.msra.mxu0 0
      %2428 = vmatprep.subr.bf16.mxu0 0
      %2429 = vmatpush1.bf16.msra.mxu0 0
      %2430 = vmatprep.subr.bf16.mxu0 0
      %2431 = vmatpush1.bf16.msra.mxu0 0
      %2432 = vmatprep.subr.bf16.mxu0 0
      %2433 = vmatpush1.bf16.msra.mxu0 0
      %2434 = vmatprep.subr.bf16.mxu0 0
      %2435 = vmatpush1.bf16.msra.mxu0 0
      %2436 = vmatprep.subr.bf16.mxu0 0
      %2437 = vmatpush1.bf16.msra.mxu0 0
      %2438 = vmatprep.subr.bf16.mxu0 0
      %2439 = vmatpush1.bf16.msra.mxu0 0
      %2440 = vmatprep.subr.bf16.mxu0 0
      %2441 = vmatpush1.bf16.msra.mxu0 0
      %2442 = vmatprep.subr.bf16.mxu0 0
      %2443 = vmatpush1.bf16.msra.mxu0 0
      %2444 = vmatprep.subr.bf16.mxu0 0
      %2445 = vmatpush1.bf16.msra.mxu0 0
      %2446 = vmatprep.subr.bf16.mxu0 0
      %2447 = vmatpush1.bf16.msra.mxu0 0
      %2448 = vmatprep.subr.bf16.mxu0 0
      %2449 = vmatpush1.bf16.msra.mxu0 0
      %2450 = vmatprep.subr.bf16.mxu0 0
      %2451 = vmatpush1.bf16.msra.mxu0 0
      %2452 = vmatprep.mubr.bf16.mxu0 0
      %2453 = vmatmul.mubr.bf16.gmra.mrb[0].mxu0 %v2403
      %v2454 = vpop.f32.mrb[0].mxu0
      %v2455 = vadd.f32 0.0, %v2454
      %v2456 = vpop.f32.mrb[0].mxu0
      %v2457 = vpop.f32.mrb[0].mxu0
      %v2458 = vadd.f32 0.0, %v2457
      %v2459 = vpop.f32.mrb[0].mxu0
      %2460 = vmatprep.mubr.bf16.mxu0 0
      %2461 = vmatmul.mubr.bf16.gmra.mrb[0].mxu0 %v2406
      %v2462 = vpop.f32.mrb[0].mxu0
      %v2463 = vadd.f32 0.0, %v2462
      %v2464 = vpop.f32.mrb[0].mxu0
      %v2465 = vpop.f32.mrb[0].mxu0
      %v2466 = vadd.f32 0.0, %v2465
      %v2467 = vpop.f32.mrb[0].mxu0
      %2468 = vmatprep.mubr.bf16.mxu0 0
      %2469 = vmatmul.mubr.bf16.gmra.mrb[0].mxu0 %v2409
      %v2470 = vpop.f32.mrb[0].mxu0
      %v2471 = vadd.f32 0.0, %v2470
      %v2472 = vpop.f32.mrb[0].mxu0
      %v2473 = vpop.f32.mrb[0].mxu0
      %v2474 = vadd.f32 0.0, %v2473
      %v2475 = vpop.f32.mrb[0].mxu0
      %2476 = vmatprep.mubr.bf16.mxu0 0
      %2477 = vmatmul.mubr.bf16.gmra.mrb[0].mxu0 %v2412
      %v2478 = vpop.f32.mrb[0].mxu0
      %v2479 = vadd.f32 0.0, %v2478
      %v2480 = vpop.f32.mrb[0].mxu0
      %v2481 = vpop.f32.mrb[0].mxu0
      %v2482 = vadd.f32 0.0, %v2481
      %v2483 = vpop.f32.mrb[0].mxu0
      %2484 = vmatprep.mubr.bf16.mxu0 0
      %2485 = vmatmul.mubr.bf16.gmra.mrb[0].mxu0 %v2415
      %v2486 = vpop.f32.mrb[0].mxu0
      %v2487 = vadd.f32 0.0, %v2486
      %v2488 = vpop.f32.mrb[0].mxu0
      %v2489 = vpop.f32.mrb[0].mxu0
      %v2490 = vadd.f32 0.0, %v2489
      %v2491 = vpop.f32.mrb[0].mxu0
      %2492 = vdwg.mxu0
      %v2493 = vadd.f32 %v2112, %v2455
      %v2494 = vadd.f32 %v2113, %v2458
      %v2495 = vadd.f32 %v2114, %v2463
      %v2496 = vadd.f32 %v2115, %v2466
      %v2497 = vadd.f32 %v2116, %v2471
      %v2498 = vadd.f32 %v2117, %v2474
      %v2499 = vadd.f32 %v2118, %v2479
      %v2500 = vadd.f32 %v2119, %v2482
      %v2501 = vadd.f32 %v2120, %v2487
      %v2502 = vadd.f32 %v2121, %v2490
      %s2503 = scalar_lea.vmem %s5, 16
      %v2504 = vld [vmem:[%s2503] sm:$0xf]
      %v2505 = vrot.slane %v1297, 5
      %v2506 = vrot.slane %v1299, 6
      %v2507 = vor.u32 %v2505, %v2506
      %v2508 = vrot.slane %v1308, 5
      %v2509 = vrot.slane %v1304, 6
      %v2510 = vor.u32 %v2508, %v2509
      %v2511 = vsel %vm2238, %v2507, %v2510
      %v2512 = vrot.slane %v1316, 5
      %v2513 = vrot.slane %v1312, 6
      %v2514 = vor.u32 %v2512, %v2513
      %v2515 = vsel %vm2238, %v2510, %v2514
      %v2516 = vrot.slane %v1324, 5
      %v2517 = vrot.slane %v1320, 6
      %v2518 = vor.u32 %v2516, %v2517
      %v2519 = vsel %vm2238, %v2514, %v2518
      %v2520 = vrot.slane %v1332, 5
      %v2521 = vrot.slane %v1328, 6
      %v2522 = vor.u32 %v2520, %v2521
      %v2523 = vsel %vm2238, %v2518, %v2522
      %v2524 = vshrl.u32 %v810, 16
      %v2526 = vrot.slane %v2524, 5
      %v2527 = vrot.slane %v1336, 6
      %v2528 = vor.u32 %v2526, %v2527
      %v2529 = vsel %vm2238, %v2522, %v2528
      %v2531 = vsel %vm862, %v2511, 0
      %v2534 = vsel %vm862, %v2515, 0
      %v2537 = vsel %vm862, %v2519, 0
      %v2540 = vsel %vm862, %v2523, 0
      %v2543 = vsel %vm862, %v2529, 0
      %v2546 = vsel %vm878, %v2504, 0
      %2548 = vmatprep.subr.bf16.mxu0 0
      %2549 = vmatpush1.bf16.msra.mxu0 %v2546
      %2550 = vmatprep.subr.bf16.mxu0 0
      %2551 = vmatpush1.bf16.msra.mxu0 0
      %2552 = vmatprep.subr.bf16.mxu0 0
      %2553 = vmatpush1.bf16.msra.mxu0 0
      %2554 = vmatprep.subr.bf16.mxu0 0
      %2555 = vmatpush1.bf16.msra.mxu0 0
      %2556 = vmatprep.subr.bf16.mxu0 0
      %2557 = vmatpush1.bf16.msra.mxu0 0
      %2558 = vmatprep.subr.bf16.mxu0 0
      %2559 = vmatpush1.bf16.msra.mxu0 0
      %2560 = vmatprep.subr.bf16.mxu0 0
      %2561 = vmatpush1.bf16.msra.mxu0 0
      %2562 = vmatprep.subr.bf16.mxu0 0
      %2563 = vmatpush1.bf16.msra.mxu0 0
      %2564 = vmatprep.subr.bf16.mxu0 0
      %2565 = vmatpush1.bf16.msra.mxu0 0
      %2566 = vmatprep.subr.bf16.mxu0 0
      %2567 = vmatpush1.bf16.msra.mxu0 0
      %2568 = vmatprep.subr.bf16.mxu0 0
      %2569 = vmatpush1.bf16.msra.mxu0 0
      %2570 = vmatprep.subr.bf16.mxu0 0
      %2571 = vmatpush1.bf16.msra.mxu0 0
      %2572 = vmatprep.subr.bf16.mxu0 0
      %2573 = vmatpush1.bf16.msra.mxu0 0
      %2574 = vmatprep.subr.bf16.mxu0 0
      %2575 = vmatpush1.bf16.msra.mxu0 0
      %2576 = vmatprep.subr.bf16.mxu0 0
      %2577 = vmatpush1.bf16.msra.mxu0 0
      %2578 = vmatprep.subr.bf16.mxu0 0
      %2579 = vmatpush1.bf16.msra.mxu0 0
      %2580 = vmatprep.mubr.bf16.mxu0 0
      %2581 = vmatmul.mubr.bf16.gmra.mrb[0].mxu0 %v2531
      %v2582 = vpop.f32.mrb[0].mxu0
      %v2583 = vadd.f32 0.0, %v2582
      %v2584 = vpop.f32.mrb[0].mxu0
      %v2585 = vpop.f32.mrb[0].mxu0
      %v2586 = vadd.f32 0.0, %v2585
      %v2587 = vpop.f32.mrb[0].mxu0
      %2588 = vmatprep.mubr.bf16.mxu0 0
      %2589 = vmatmul.mubr.bf16.gmra.mrb[0].mxu0 %v2534
      %v2590 = vpop.f32.mrb[0].mxu0
      %v2591 = vadd.f32 0.0, %v2590
      %v2592 = vpop.f32.mrb[0].mxu0
      %v2593 = vpop.f32.mrb[0].mxu0
      %v2594 = vadd.f32 0.0, %v2593
      %v2595 = vpop.f32.mrb[0].mxu0
      %2596 = vmatprep.mubr.bf16.mxu0 0
      %2597 = vmatmul.mubr.bf16.gmra.mrb[0].mxu0 %v2537
      %v2598 = vpop.f32.mrb[0].mxu0
      %v2599 = vadd.f32 0.0, %v2598
      %v2600 = vpop.f32.mrb[0].mxu0
      %v2601 = vpop.f32.mrb[0].mxu0
      %v2602 = vadd.f32 0.0, %v2601
      %v2603 = vpop.f32.mrb[0].mxu0
      %2604 = vmatprep.mubr.bf16.mxu0 0
      %2605 = vmatmul.mubr.bf16.gmra.mrb[0].mxu0 %v2540
      %v2606 = vpop.f32.mrb[0].mxu0
      %v2607 = vadd.f32 0.0, %v2606
      %v2608 = vpop.f32.mrb[0].mxu0
      %v2609 = vpop.f32.mrb[0].mxu0
      %v2610 = vadd.f32 0.0, %v2609
      %v2611 = vpop.f32.mrb[0].mxu0
      %2612 = vmatprep.mubr.bf16.mxu0 0
      %2613 = vmatmul.mubr.bf16.gmra.mrb[0].mxu0 %v2543
      %v2614 = vpop.f32.mrb[0].mxu0
      %v2615 = vadd.f32 0.0, %v2614
      %v2616 = vpop.f32.mrb[0].mxu0
      %v2617 = vpop.f32.mrb[0].mxu0
      %v2618 = vadd.f32 0.0, %v2617
      %v2619 = vpop.f32.mrb[0].mxu0
      %2620 = vdwg.mxu0
      %v2621 = vadd.f32 %v2226, %v2583
      %v2622 = vadd.f32 %v2227, %v2586
      %v2623 = vadd.f32 %v2228, %v2591
      %v2624 = vadd.f32 %v2229, %v2594
      %v2625 = vadd.f32 %v2230, %v2599
      %v2626 = vadd.f32 %v2231, %v2602
      %v2627 = vadd.f32 %v2232, %v2607
      %v2628 = vadd.f32 %v2233, %v2610
      %v2629 = vadd.f32 %v2234, %v2615
      %v2630 = vadd.f32 %v2235, %v2618
      %s2631 = scalar_lea.vmem %s3, 20
      %v2632 = vld [vmem:[%s2631] sm:$0xf]
      %vm2633 = vcmask 1041408
      %v2634 = vrot.slane %v721, 6
      %v2635 = vrot.slane %v722, 6
      %v2636 = vsel %vm2633, %v2634, %v2635
      %v2637 = vrot.slane %v723, 6
      %v2638 = vsel %vm2633, %v2635, %v2637
      %v2639 = vrot.slane %v724, 6
      %v2640 = vsel %vm2633, %v2637, %v2639
      %v2641 = vrot.slane %v725, 6
      %v2642 = vsel %vm2633, %v2639, %v2641
      %v2643 = vrot.slane %v726, 6
      %v2644 = vsel %vm2633, %v2641, %v2643
      %v2646 = vsel %vm862, %v2636, 0
      %v2649 = vsel %vm862, %v2638, 0
      %v2652 = vsel %vm862, %v2640, 0
      %v2655 = vsel %vm862, %v2642, 0
      %v2658 = vsel %vm862, %v2644, 0
      %v2661 = vsel %vm878, %v2632, 0
      %2663 = vmatprep.subr.bf16.mxu0 0
      %2664 = vmatpush1.bf16.msra.mxu0 %v2661
      %2665 = vmatprep.subr.bf16.mxu0 0
      %2666 = vmatpush1.bf16.msra.mxu0 0
      %2667 = vmatprep.subr.bf16.mxu0 0
      %2668 = vmatpush1.bf16.msra.mxu0 0
      %2669 = vmatprep.subr.bf16.mxu0 0
      %2670 = vmatpush1.bf16.msra.mxu0 0
      %2671 = vmatprep.subr.bf16.mxu0 0
      %2672 = vmatpush1.bf16.msra.mxu0 0
      %2673 = vmatprep.subr.bf16.mxu0 0
      %2674 = vmatpush1.bf16.msra.mxu0 0
      %2675 = vmatprep.subr.bf16.mxu0 0
      %2676 = vmatpush1.bf16.msra.mxu0 0
      %2677 = vmatprep.subr.bf16.mxu0 0
      %2678 = vmatpush1.bf16.msra.mxu0 0
      %2679 = vmatprep.subr.bf16.mxu0 0
      %2680 = vmatpush1.bf16.msra.mxu0 0
      %2681 = vmatprep.subr.bf16.mxu0 0
      %2682 = vmatpush1.bf16.msra.mxu0 0
      %2683 = vmatprep.subr.bf16.mxu0 0
      %2684 = vmatpush1.bf16.msra.mxu0 0
      %2685 = vmatprep.subr.bf16.mxu0 0
      %2686 = vmatpush1.bf16.msra.mxu0 0
      %2687 = vmatprep.subr.bf16.mxu0 0
      %2688 = vmatpush1.bf16.msra.mxu0 0
      %2689 = vmatprep.subr.bf16.mxu0 0
      %2690 = vmatpush1.bf16.msra.mxu0 0
      %2691 = vmatprep.subr.bf16.mxu0 0
      %2692 = vmatpush1.bf16.msra.mxu0 0
      %2693 = vmatprep.subr.bf16.mxu0 0
      %2694 = vmatpush1.bf16.msra.mxu0 0
      %2695 = vmatprep.mubr.bf16.mxu0 0
      %2696 = vmatmul.mubr.bf16.gmra.mrb[0].mxu0 %v2646
      %v2697 = vpop.f32.mrb[0].mxu0
      %v2698 = vadd.f32 0.0, %v2697
      %v2699 = vpop.f32.mrb[0].mxu0
      %v2700 = vpop.f32.mrb[0].mxu0
      %v2701 = vadd.f32 0.0, %v2700
      %v2702 = vpop.f32.mrb[0].mxu0
      %2703 = vmatprep.mubr.bf16.mxu0 0
      %2704 = vmatmul.mubr.bf16.gmra.mrb[0].mxu0 %v2649
      %v2705 = vpop.f32.mrb[0].mxu0
      %v2706 = vadd.f32 0.0, %v2705
      %v2707 = vpop.f32.mrb[0].mxu0
      %v2708 = vpop.f32.mrb[0].mxu0
      %v2709 = vadd.f32 0.0, %v2708
      %v2710 = vpop.f32.mrb[0].mxu0
      %2711 = vmatprep.mubr.bf16.mxu0 0
      %2712 = vmatmul.mubr.bf16.gmra.mrb[0].mxu0 %v2652
      %v2713 = vpop.f32.mrb[0].mxu0
      %v2714 = vadd.f32 0.0, %v2713
      %v2715 = vpop.f32.mrb[0].mxu0
      %v2716 = vpop.f32.mrb[0].mxu0
      %v2717 = vadd.f32 0.0, %v2716
      %v2718 = vpop.f32.mrb[0].mxu0
      %2719 = vmatprep.mubr.bf16.mxu0 0
      %2720 = vmatmul.mubr.bf16.gmra.mrb[0].mxu0 %v2655
      %v2721 = vpop.f32.mrb[0].mxu0
      %v2722 = vadd.f32 0.0, %v2721
      %v2723 = vpop.f32.mrb[0].mxu0
      %v2724 = vpop.f32.mrb[0].mxu0
      %v2725 = vadd.f32 0.0, %v2724
      %v2726 = vpop.f32.mrb[0].mxu0
      %2727 = vmatprep.mubr.bf16.mxu0 0
      %2728 = vmatmul.mubr.bf16.gmra.mrb[0].mxu0 %v2658
      %v2729 = vpop.f32.mrb[0].mxu0
      %v2730 = vadd.f32 0.0, %v2729
      %v2731 = vpop.f32.mrb[0].mxu0
      %v2732 = vpop.f32.mrb[0].mxu0
      %v2733 = vadd.f32 0.0, %v2732
      %v2734 = vpop.f32.mrb[0].mxu0
      %2735 = vdwg.mxu0
      %v2736 = vadd.f32 %v2355, %v2698
      %v2737 = vadd.f32 %v2356, %v2701
      %v2738 = vadd.f32 %v2357, %v2706
      %v2739 = vadd.f32 %v2358, %v2709
      %v2740 = vadd.f32 %v2359, %v2714
      %v2741 = vadd.f32 %v2360, %v2717
      %v2742 = vadd.f32 %v2361, %v2722
      %v2743 = vadd.f32 %v2362, %v2725
      %v2744 = vadd.f32 %v2363, %v2730
      %v2745 = vadd.f32 %v2364, %v2733
      %s2746 = scalar_lea.vmem %s4, 20
      %v2747 = vld [vmem:[%s2746] sm:$0xf]
      %v2748 = vrot.slane %v728, 6
      %v2749 = vrot.slane %v729, 6
      %v2750 = vsel %vm2633, %v2748, %v2749
      %v2751 = vrot.slane %v730, 6
      %v2752 = vsel %vm2633, %v2749, %v2751
      %v2753 = vrot.slane %v731, 6
      %v2754 = vsel %vm2633, %v2751, %v2753
      %v2755 = vrot.slane %v732, 6
      %v2756 = vsel %vm2633, %v2753, %v2755
      %v2757 = vrot.slane %v733, 6
      %v2758 = vsel %vm2633, %v2755, %v2757
      %2759 = vrot.lane.b32.xlu0 %v2750, 120
      %v2760 = vpop.permute.xlu0 %2759
      %2761 = vrot.lane.b32.xlu0 %v2752, 120
      %v2762 = vpop.permute.xlu0 %2761
      %2763 = vrot.lane.b32.xlu0 %v2754, 120
      %v2764 = vpop.permute.xlu0 %2763
      %2765 = vrot.lane.b32.xlu0 %v2756, 120
      %v2766 = vpop.permute.xlu0 %2765
      %2767 = vrot.lane.b32.xlu0 %v2758, 120
      %v2768 = vpop.permute.xlu0 %2767
      %v2770 = vsel %vm862, %v2760, 0
      %v2773 = vsel %vm862, %v2762, 0
      %v2776 = vsel %vm862, %v2764, 0
      %v2779 = vsel %vm862, %v2766, 0
      %v2782 = vsel %vm862, %v2768, 0
      %v2785 = vsel %vm878, %v2747, 0
      %2787 = vmatprep.subr.bf16.mxu0 0
      %2788 = vmatpush1.bf16.msra.mxu0 %v2785
      %2789 = vmatprep.subr.bf16.mxu0 0
      %2790 = vmatpush1.bf16.msra.mxu0 0
      %2791 = vmatprep.subr.bf16.mxu0 0
      %2792 = vmatpush1.bf16.msra.mxu0 0
      %2793 = vmatprep.subr.bf16.mxu0 0
      %2794 = vmatpush1.bf16.msra.mxu0 0
      %2795 = vmatprep.subr.bf16.mxu0 0
      %2796 = vmatpush1.bf16.msra.mxu0 0
      %2797 = vmatprep.subr.bf16.mxu0 0
      %2798 = vmatpush1.bf16.msra.mxu0 0
      %2799 = vmatprep.subr.bf16.mxu0 0
      %2800 = vmatpush1.bf16.msra.mxu0 0
      %2801 = vmatprep.subr.bf16.mxu0 0
      %2802 = vmatpush1.bf16.msra.mxu0 0
      %2803 = vmatprep.subr.bf16.mxu0 0
      %2804 = vmatpush1.bf16.msra.mxu0 0
      %2805 = vmatprep.subr.bf16.mxu0 0
      %2806 = vmatpush1.bf16.msra.mxu0 0
      %2807 = vmatprep.subr.bf16.mxu0 0
      %2808 = vmatpush1.bf16.msra.mxu0 0
      %2809 = vmatprep.subr.bf16.mxu0 0
      %2810 = vmatpush1.bf16.msra.mxu0 0
      %2811 = vmatprep.subr.bf16.mxu0 0
      %2812 = vmatpush1.bf16.msra.mxu0 0
      %2813 = vmatprep.subr.bf16.mxu0 0
      %2814 = vmatpush1.bf16.msra.mxu0 0
      %2815 = vmatprep.subr.bf16.mxu0 0
      %2816 = vmatpush1.bf16.msra.mxu0 0
      %2817 = vmatprep.subr.bf16.mxu0 0
      %2818 = vmatpush1.bf16.msra.mxu0 0
      %2819 = vmatprep.mubr.bf16.mxu0 0
      %2820 = vmatmul.mubr.bf16.gmra.mrb[0].mxu0 %v2770
      %v2821 = vpop.f32.mrb[0].mxu0
      %v2822 = vadd.f32 0.0, %v2821
      %v2823 = vpop.f32.mrb[0].mxu0
      %v2824 = vpop.f32.mrb[0].mxu0
      %v2825 = vadd.f32 0.0, %v2824
      %v2826 = vpop.f32.mrb[0].mxu0
      %2827 = vmatprep.mubr.bf16.mxu0 0
      %2828 = vmatmul.mubr.bf16.gmra.mrb[0].mxu0 %v2773
      %v2829 = vpop.f32.mrb[0].mxu0
      %v2830 = vadd.f32 0.0, %v2829
      %v2831 = vpop.f32.mrb[0].mxu0
      %v2832 = vpop.f32.mrb[0].mxu0
      %v2833 = vadd.f32 0.0, %v2832
      %v2834 = vpop.f32.mrb[0].mxu0
      %2835 = vmatprep.mubr.bf16.mxu0 0
      %2836 = vmatmul.mubr.bf16.gmra.mrb[0].mxu0 %v2776
      %v2837 = vpop.f32.mrb[0].mxu0
      %v2838 = vadd.f32 0.0, %v2837
      %v2839 = vpop.f32.mrb[0].mxu0
      %v2840 = vpop.f32.mrb[0].mxu0
      %v2841 = vadd.f32 0.0, %v2840
      %v2842 = vpop.f32.mrb[0].mxu0
      %2843 = vmatprep.mubr.bf16.mxu0 0
      %2844 = vmatmul.mubr.bf16.gmra.mrb[0].mxu0 %v2779
      %v2845 = vpop.f32.mrb[0].mxu0
      %v2846 = vadd.f32 0.0, %v2845
      %v2847 = vpop.f32.mrb[0].mxu0
      %v2848 = vpop.f32.mrb[0].mxu0
      %v2849 = vadd.f32 0.0, %v2848
      %v2850 = vpop.f32.mrb[0].mxu0
      %2851 = vmatprep.mubr.bf16.mxu0 0
      %2852 = vmatmul.mubr.bf16.gmra.mrb[0].mxu0 %v2782
      %v2853 = vpop.f32.mrb[0].mxu0
      %v2854 = vadd.f32 0.0, %v2853
      %v2855 = vpop.f32.mrb[0].mxu0
      %v2856 = vpop.f32.mrb[0].mxu0
      %v2857 = vadd.f32 0.0, %v2856
      %v2858 = vpop.f32.mrb[0].mxu0
      %2859 = vdwg.mxu0
      %v2860 = vadd.f32 %v2493, %v2822
      %v2861 = vadd.f32 %v2494, %v2825
      %v2862 = vadd.f32 %v2495, %v2830
      %v2863 = vadd.f32 %v2496, %v2833
      %v2864 = vadd.f32 %v2497, %v2838
      %v2865 = vadd.f32 %v2498, %v2841
      %v2866 = vadd.f32 %v2499, %v2846
      %v2867 = vadd.f32 %v2500, %v2849
      %v2868 = vadd.f32 %v2501, %v2854
      %v2869 = vadd.f32 %v2502, %v2857
      %s2870 = scalar_lea.vmem %s5, 20
      %v2871 = vld [vmem:[%s2870] sm:$0xf]
      %v2872 = vrot.slane %v805, 6
      %v2873 = vrot.slane %v806, 6
      %v2874 = vsel %vm2633, %v2872, %v2873
      %v2875 = vrot.slane %v807, 6
      %v2876 = vsel %vm2633, %v2873, %v2875
      %v2877 = vrot.slane %v808, 6
      %v2878 = vsel %vm2633, %v2875, %v2877
      %v2879 = vrot.slane %v809, 6
      %v2880 = vsel %vm2633, %v2877, %v2879
      %v2881 = vrot.slane %v810, 6
      %v2882 = vsel %vm2633, %v2879, %v2881
      %v2884 = vsel %vm862, %v2874, 0
      %v2887 = vsel %vm862, %v2876, 0
      %v2890 = vsel %vm862, %v2878, 0
      %v2893 = vsel %vm862, %v2880, 0
      %v2896 = vsel %vm862, %v2882, 0
      %v2899 = vsel %vm878, %v2871, 0
      %2901 = vmatprep.subr.bf16.mxu0 0
      %2902 = vmatpush1.bf16.msra.mxu0 %v2899
      %2903 = vmatprep.subr.bf16.mxu0 0
      %2904 = vmatpush1.bf16.msra.mxu0 0
      %2905 = vmatprep.subr.bf16.mxu0 0
      %2906 = vmatpush1.bf16.msra.mxu0 0
      %2907 = vmatprep.subr.bf16.mxu0 0
      %2908 = vmatpush1.bf16.msra.mxu0 0
      %2909 = vmatprep.subr.bf16.mxu0 0
      %2910 = vmatpush1.bf16.msra.mxu0 0
      %2911 = vmatprep.subr.bf16.mxu0 0
      %2912 = vmatpush1.bf16.msra.mxu0 0
      %2913 = vmatprep.subr.bf16.mxu0 0
      %2914 = vmatpush1.bf16.msra.mxu0 0
      %2915 = vmatprep.subr.bf16.mxu0 0
      %2916 = vmatpush1.bf16.msra.mxu0 0
      %2917 = vmatprep.subr.bf16.mxu0 0
      %2918 = vmatpush1.bf16.msra.mxu0 0
      %2919 = vmatprep.subr.bf16.mxu0 0
      %2920 = vmatpush1.bf16.msra.mxu0 0
      %2921 = vmatprep.subr.bf16.mxu0 0
      %2922 = vmatpush1.bf16.msra.mxu0 0
      %2923 = vmatprep.subr.bf16.mxu0 0
      %2924 = vmatpush1.bf16.msra.mxu0 0
      %2925 = vmatprep.subr.bf16.mxu0 0
      %2926 = vmatpush1.bf16.msra.mxu0 0
      %2927 = vmatprep.subr.bf16.mxu0 0
      %2928 = vmatpush1.bf16.msra.mxu0 0
      %2929 = vmatprep.subr.bf16.mxu0 0
      %2930 = vmatpush1.bf16.msra.mxu0 0
      %2931 = vmatprep.subr.bf16.mxu0 0
      %2932 = vmatpush1.bf16.msra.mxu0 0
      %2933 = vmatprep.mubr.bf16.mxu0 0
      %2934 = vmatmul.mubr.bf16.gmra.mrb[0].mxu0 %v2884
      %v2935 = vpop.f32.mrb[0].mxu0
      %v2936 = vadd.f32 0.0, %v2935
      %v2937 = vpop.f32.mrb[0].mxu0
      %v2938 = vpop.f32.mrb[0].mxu0
      %v2939 = vadd.f32 0.0, %v2938
      %v2940 = vpop.f32.mrb[0].mxu0
      %2941 = vmatprep.mubr.bf16.mxu0 0
      %2942 = vmatmul.mubr.bf16.gmra.mrb[0].mxu0 %v2887
      %v2943 = vpop.f32.mrb[0].mxu0
      %v2944 = vadd.f32 0.0, %v2943
      %v2945 = vpop.f32.mrb[0].mxu0
      %v2946 = vpop.f32.mrb[0].mxu0
      %v2947 = vadd.f32 0.0, %v2946
      %v2948 = vpop.f32.mrb[0].mxu0
      %2949 = vmatprep.mubr.bf16.mxu0 0
      %2950 = vmatmul.mubr.bf16.gmra.mrb[0].mxu0 %v2890
      %v2951 = vpop.f32.mrb[0].mxu0
      %v2952 = vadd.f32 0.0, %v2951
      %v2953 = vpop.f32.mrb[0].mxu0
      %v2954 = vpop.f32.mrb[0].mxu0
      %v2955 = vadd.f32 0.0, %v2954
      %v2956 = vpop.f32.mrb[0].mxu0
      %2957 = vmatprep.mubr.bf16.mxu0 0
      %2958 = vmatmul.mubr.bf16.gmra.mrb[0].mxu0 %v2893
      %v2959 = vpop.f32.mrb[0].mxu0
      %v2960 = vadd.f32 0.0, %v2959
      %v2961 = vpop.f32.mrb[0].mxu0
      %v2962 = vpop.f32.mrb[0].mxu0
      %v2963 = vadd.f32 0.0, %v2962
      %v2964 = vpop.f32.mrb[0].mxu0
      %2965 = vmatprep.mubr.bf16.mxu0 0
      %2966 = vmatmul.mubr.bf16.gmra.mrb[0].mxu0 %v2896
      %v2967 = vpop.f32.mrb[0].mxu0
      %v2968 = vadd.f32 0.0, %v2967
      %v2969 = vpop.f32.mrb[0].mxu0
      %v2970 = vpop.f32.mrb[0].mxu0
      %v2971 = vadd.f32 0.0, %v2970
      %v2972 = vpop.f32.mrb[0].mxu0
      %2973 = vdwg.mxu0
      %v2974 = vadd.f32 %v2621, %v2936
      %v2975 = vadd.f32 %v2622, %v2939
      %v2976 = vadd.f32 %v2623, %v2944
      %v2977 = vadd.f32 %v2624, %v2947
      %v2978 = vadd.f32 %v2625, %v2952
      %v2979 = vadd.f32 %v2626, %v2955
      %v2980 = vadd.f32 %v2627, %v2960
      %v2981 = vadd.f32 %v2628, %v2963
      %v2982 = vadd.f32 %v2629, %v2968
      %v2983 = vadd.f32 %v2630, %v2971
      %s2984 = scalar_lea.vmem %s3, 24
      %v2985 = vld [vmem:[%s2984] sm:$0xf]
      %vm2987 = vcmask 1045504
      %v2988 = vrot.slane %v722, 2
      %v2989 = vrot.slane %v723, 2
      %v2990 = vsel %vm2987, %v2988, %v2989
      %v2991 = vrot.slane %v724, 2
      %v2992 = vsel %vm2987, %v2989, %v2991
      %v2993 = vrot.slane %v725, 2
      %v2994 = vsel %vm2987, %v2991, %v2993
      %v2995 = vrot.slane %v726, 2
      %v2996 = vsel %vm2987, %v2993, %v2995
      %v2997 = vrot.slane %v727, 2
      %v2998 = vsel %vm2987, %v2995, %v2997
      %v3000 = vsel %vm862, %v2990, 0
      %v3003 = vsel %vm862, %v2992, 0
      %v3006 = vsel %vm862, %v2994, 0
      %v3009 = vsel %vm862, %v2996, 0
      %v3012 = vsel %vm862, %v2998, 0
      %v3015 = vsel %vm878, %v2985, 0
      %3017 = vmatprep.subr.bf16.mxu0 0
      %3018 = vmatpush1.bf16.msra.mxu0 %v3015
      %3019 = vmatprep.subr.bf16.mxu0 0
      %3020 = vmatpush1.bf16.msra.mxu0 0
      %3021 = vmatprep.subr.bf16.mxu0 0
      %3022 = vmatpush1.bf16.msra.mxu0 0
      %3023 = vmatprep.subr.bf16.mxu0 0
      %3024 = vmatpush1.bf16.msra.mxu0 0
      %3025 = vmatprep.subr.bf16.mxu0 0
      %3026 = vmatpush1.bf16.msra.mxu0 0
      %3027 = vmatprep.subr.bf16.mxu0 0
      %3028 = vmatpush1.bf16.msra.mxu0 0
      %3029 = vmatprep.subr.bf16.mxu0 0
      %3030 = vmatpush1.bf16.msra.mxu0 0
      %3031 = vmatprep.subr.bf16.mxu0 0
      %3032 = vmatpush1.bf16.msra.mxu0 0
      %3033 = vmatprep.subr.bf16.mxu0 0
      %3034 = vmatpush1.bf16.msra.mxu0 0
      %3035 = vmatprep.subr.bf16.mxu0 0
      %3036 = vmatpush1.bf16.msra.mxu0 0
      %3037 = vmatprep.subr.bf16.mxu0 0
      %3038 = vmatpush1.bf16.msra.mxu0 0
      %3039 = vmatprep.subr.bf16.mxu0 0
      %3040 = vmatpush1.bf16.msra.mxu0 0
      %3041 = vmatprep.subr.bf16.mxu0 0
      %3042 = vmatpush1.bf16.msra.mxu0 0
      %3043 = vmatprep.subr.bf16.mxu0 0
      %3044 = vmatpush1.bf16.msra.mxu0 0
      %3045 = vmatprep.subr.bf16.mxu0 0
      %3046 = vmatpush1.bf16.msra.mxu0 0
      %3047 = vmatprep.subr.bf16.mxu0 0
      %3048 = vmatpush1.bf16.msra.mxu0 0
      %3049 = vmatprep.mubr.bf16.mxu0 0
      %3050 = vmatmul.mubr.bf16.gmra.mrb[0].mxu0 %v3000
      %v3051 = vpop.f32.mrb[0].mxu0
      %v3052 = vadd.f32 0.0, %v3051
      %v3053 = vpop.f32.mrb[0].mxu0
      %v3054 = vpop.f32.mrb[0].mxu0
      %v3055 = vadd.f32 0.0, %v3054
      %v3056 = vpop.f32.mrb[0].mxu0
      %3057 = vmatprep.mubr.bf16.mxu0 0
      %3058 = vmatmul.mubr.bf16.gmra.mrb[0].mxu0 %v3003
      %v3059 = vpop.f32.mrb[0].mxu0
      %v3060 = vadd.f32 0.0, %v3059
      %v3061 = vpop.f32.mrb[0].mxu0
      %v3062 = vpop.f32.mrb[0].mxu0
      %v3063 = vadd.f32 0.0, %v3062
      %v3064 = vpop.f32.mrb[0].mxu0
      %3065 = vmatprep.mubr.bf16.mxu0 0
      %3066 = vmatmul.mubr.bf16.gmra.mrb[0].mxu0 %v3006
      %v3067 = vpop.f32.mrb[0].mxu0
      %v3068 = vadd.f32 0.0, %v3067
      %v3069 = vpop.f32.mrb[0].mxu0
      %v3070 = vpop.f32.mrb[0].mxu0
      %v3071 = vadd.f32 0.0, %v3070
      %v3072 = vpop.f32.mrb[0].mxu0
      %3073 = vmatprep.mubr.bf16.mxu0 0
      %3074 = vmatmul.mubr.bf16.gmra.mrb[0].mxu0 %v3009
      %v3075 = vpop.f32.mrb[0].mxu0
      %v3076 = vadd.f32 0.0, %v3075
      %v3077 = vpop.f32.mrb[0].mxu0
      %v3078 = vpop.f32.mrb[0].mxu0
      %v3079 = vadd.f32 0.0, %v3078
      %v3080 = vpop.f32.mrb[0].mxu0
      %3081 = vmatprep.mubr.bf16.mxu0 0
      %3082 = vmatmul.mubr.bf16.gmra.mrb[0].mxu0 %v3012
      %v3083 = vpop.f32.mrb[0].mxu0
      %v3084 = vadd.f32 0.0, %v3083
      %v3085 = vpop.f32.mrb[0].mxu0
      %v3086 = vpop.f32.mrb[0].mxu0
      %v3087 = vadd.f32 0.0, %v3086
      %v3088 = vpop.f32.mrb[0].mxu0
      %3089 = vdwg.mxu0
      %v3090 = vadd.f32 %v2736, %v3052
      %v3091 = vadd.f32 %v2737, %v3055
      %v3092 = vadd.f32 %v2738, %v3060
      %v3093 = vadd.f32 %v2739, %v3063
      %v3094 = vadd.f32 %v2740, %v3068
      %v3095 = vadd.f32 %v2741, %v3071
      %v3096 = vadd.f32 %v2742, %v3076
      %v3097 = vadd.f32 %v2743, %v3079
      %v3098 = vadd.f32 %v2744, %v3084
      %v3099 = vadd.f32 %v2745, %v3087
      %s3100 = scalar_lea.vmem %s4, 24
      %v3101 = vld [vmem:[%s3100] sm:$0xf]
      %v3103 = vrot.slane %v729, 2
      %v3104 = vrot.slane %v730, 2
      %v3105 = vsel %vm2987, %v3103, %v3104
      %v3106 = vrot.slane %v731, 2
      %v3107 = vsel %vm2987, %v3104, %v3106
      %v3108 = vrot.slane %v732, 2
      %v3109 = vsel %vm2987, %v3106, %v3108
      %v3110 = vrot.slane %v733, 2
      %v3111 = vsel %vm2987, %v3108, %v3110
      %v3112 = vrot.slane %v734, 2
      %v3113 = vsel %vm2987, %v3110, %v3112
      %3114 = vrot.lane.b32.xlu0 %v3105, 120
      %v3115 = vpop.permute.xlu0 %3114
      %3116 = vrot.lane.b32.xlu0 %v3107, 120
      %v3117 = vpop.permute.xlu0 %3116
      %3118 = vrot.lane.b32.xlu0 %v3109, 120
      %v3119 = vpop.permute.xlu0 %3118
      %3120 = vrot.lane.b32.xlu0 %v3111, 120
      %v3121 = vpop.permute.xlu0 %3120
      %3122 = vrot.lane.b32.xlu0 %v3113, 120
      %v3123 = vpop.permute.xlu0 %3122
      %v3125 = vsel %vm862, %v3115, 0
      %v3128 = vsel %vm862, %v3117, 0
      %v3131 = vsel %vm862, %v3119, 0
      %v3134 = vsel %vm862, %v3121, 0
      %v3137 = vsel %vm862, %v3123, 0
      %v3140 = vsel %vm878, %v3101, 0
      %3142 = vmatprep.subr.bf16.mxu0 0
      %3143 = vmatpush1.bf16.msra.mxu0 %v3140
      %3144 = vmatprep.subr.bf16.mxu0 0
      %3145 = vmatpush1.bf16.msra.mxu0 0
      %3146 = vmatprep.subr.bf16.mxu0 0
      %3147 = vmatpush1.bf16.msra.mxu0 0
      %3148 = vmatprep.subr.bf16.mxu0 0
      %3149 = vmatpush1.bf16.msra.mxu0 0
      %3150 = vmatprep.subr.bf16.mxu0 0
      %3151 = vmatpush1.bf16.msra.mxu0 0
      %3152 = vmatprep.subr.bf16.mxu0 0
      %3153 = vmatpush1.bf16.msra.mxu0 0
      %3154 = vmatprep.subr.bf16.mxu0 0
      %3155 = vmatpush1.bf16.msra.mxu0 0
      %3156 = vmatprep.subr.bf16.mxu0 0
      %3157 = vmatpush1.bf16.msra.mxu0 0
      %3158 = vmatprep.subr.bf16.mxu0 0
      %3159 = vmatpush1.bf16.msra.mxu0 0
      %3160 = vmatprep.subr.bf16.mxu0 0
      %3161 = vmatpush1.bf16.msra.mxu0 0
      %3162 = vmatprep.subr.bf16.mxu0 0
      %3163 = vmatpush1.bf16.msra.mxu0 0
      %3164 = vmatprep.subr.bf16.mxu0 0
      %3165 = vmatpush1.bf16.msra.mxu0 0
      %3166 = vmatprep.subr.bf16.mxu0 0
      %3167 = vmatpush1.bf16.msra.mxu0 0
      %3168 = vmatprep.subr.bf16.mxu0 0
      %3169 = vmatpush1.bf16.msra.mxu0 0
      %3170 = vmatprep.subr.bf16.mxu0 0
      %3171 = vmatpush1.bf16.msra.mxu0 0
      %3172 = vmatprep.subr.bf16.mxu0 0
      %3173 = vmatpush1.bf16.msra.mxu0 0
      %3174 = vmatprep.mubr.bf16.mxu0 0
      %3175 = vmatmul.mubr.bf16.gmra.mrb[0].mxu0 %v3125
      %v3176 = vpop.f32.mrb[0].mxu0
      %v3177 = vadd.f32 0.0, %v3176
      %v3178 = vpop.f32.mrb[0].mxu0
      %v3179 = vpop.f32.mrb[0].mxu0
      %v3180 = vadd.f32 0.0, %v3179
      %v3181 = vpop.f32.mrb[0].mxu0
      %3182 = vmatprep.mubr.bf16.mxu0 0
      %3183 = vmatmul.mubr.bf16.gmra.mrb[0].mxu0 %v3128
      %v3184 = vpop.f32.mrb[0].mxu0
      %v3185 = vadd.f32 0.0, %v3184
      %v3186 = vpop.f32.mrb[0].mxu0
      %v3187 = vpop.f32.mrb[0].mxu0
      %v3188 = vadd.f32 0.0, %v3187
      %v3189 = vpop.f32.mrb[0].mxu0
      %3190 = vmatprep.mubr.bf16.mxu0 0
      %3191 = vmatmul.mubr.bf16.gmra.mrb[0].mxu0 %v3131
      %v3192 = vpop.f32.mrb[0].mxu0
      %v3193 = vadd.f32 0.0, %v3192
      %v3194 = vpop.f32.mrb[0].mxu0
      %v3195 = vpop.f32.mrb[0].mxu0
      %v3196 = vadd.f32 0.0, %v3195
      %v3197 = vpop.f32.mrb[0].mxu0
      %3198 = vmatprep.mubr.bf16.mxu0 0
      %3199 = vmatmul.mubr.bf16.gmra.mrb[0].mxu0 %v3134
      %v3200 = vpop.f32.mrb[0].mxu0
      %v3201 = vadd.f32 0.0, %v3200
      %v3202 = vpop.f32.mrb[0].mxu0
      %v3203 = vpop.f32.mrb[0].mxu0
      %v3204 = vadd.f32 0.0, %v3203
      %v3205 = vpop.f32.mrb[0].mxu0
      %3206 = vmatprep.mubr.bf16.mxu0 0
      %3207 = vmatmul.mubr.bf16.gmra.mrb[0].mxu0 %v3137
      %v3208 = vpop.f32.mrb[0].mxu0
      %v3209 = vadd.f32 0.0, %v3208
      %v3210 = vpop.f32.mrb[0].mxu0
      %v3211 = vpop.f32.mrb[0].mxu0
      %v3212 = vadd.f32 0.0, %v3211
      %v3213 = vpop.f32.mrb[0].mxu0
      %3214 = vdwg.mxu0
      %v3215 = vadd.f32 %v2860, %v3177
      %v3216 = vadd.f32 %v2861, %v3180
      %v3217 = vadd.f32 %v2862, %v3185
      %v3218 = vadd.f32 %v2863, %v3188
      %v3219 = vadd.f32 %v2864, %v3193
      %v3220 = vadd.f32 %v2865, %v3196
      %v3221 = vadd.f32 %v2866, %v3201
      %v3222 = vadd.f32 %v2867, %v3204
      %v3223 = vadd.f32 %v2868, %v3209
      %v3224 = vadd.f32 %v2869, %v3212
      %s3225 = scalar_lea.vmem %s5, 24
      %v3226 = vld [vmem:[%s3225] sm:$0xf]
      %v3228 = vrot.slane %v806, 2
      %v3229 = vrot.slane %v807, 2
      %v3230 = vsel %vm2987, %v3228, %v3229
      %v3231 = vrot.slane %v808, 2
      %v3232 = vsel %vm2987, %v3229, %v3231
      %v3233 = vrot.slane %v809, 2
      %v3234 = vsel %vm2987, %v3231, %v3233
      %v3235 = vrot.slane %v810, 2
      %v3236 = vsel %vm2987, %v3233, %v3235
      %v3237 = vrot.slane %v811, 2
      %v3238 = vsel %vm2987, %v3235, %v3237
      %v3240 = vsel %vm862, %v3230, 0
      %v3243 = vsel %vm862, %v3232, 0
      %v3246 = vsel %vm862, %v3234, 0
      %v3249 = vsel %vm862, %v3236, 0
      %v3252 = vsel %vm862, %v3238, 0
      %v3255 = vsel %vm878, %v3226, 0
      %3257 = vmatprep.subr.bf16.mxu0 0
      %3258 = vmatpush1.bf16.msra.mxu0 %v3255
      %3259 = vmatprep.subr.bf16.mxu0 0
      %3260 = vmatpush1.bf16.msra.mxu0 0
      %3261 = vmatprep.subr.bf16.mxu0 0
      %3262 = vmatpush1.bf16.msra.mxu0 0
      %3263 = vmatprep.subr.bf16.mxu0 0
      %3264 = vmatpush1.bf16.msra.mxu0 0
      %3265 = vmatprep.subr.bf16.mxu0 0
      %3266 = vmatpush1.bf16.msra.mxu0 0
      %3267 = vmatprep.subr.bf16.mxu0 0
      %3268 = vmatpush1.bf16.msra.mxu0 0
      %3269 = vmatprep.subr.bf16.mxu0 0
      %3270 = vmatpush1.bf16.msra.mxu0 0
      %3271 = vmatprep.subr.bf16.mxu0 0
      %3272 = vmatpush1.bf16.msra.mxu0 0
      %3273 = vmatprep.subr.bf16.mxu0 0
      %3274 = vmatpush1.bf16.msra.mxu0 0
      %3275 = vmatprep.subr.bf16.mxu0 0
      %3276 = vmatpush1.bf16.msra.mxu0 0
      %3277 = vmatprep.subr.bf16.mxu0 0
      %3278 = vmatpush1.bf16.msra.mxu0 0
      %3279 = vmatprep.subr.bf16.mxu0 0
      %3280 = vmatpush1.bf16.msra.mxu0 0
      %3281 = vmatprep.subr.bf16.mxu0 0
      %3282 = vmatpush1.bf16.msra.mxu0 0
      %3283 = vmatprep.subr.bf16.mxu0 0
      %3284 = vmatpush1.bf16.msra.mxu0 0
      %3285 = vmatprep.subr.bf16.mxu0 0
      %3286 = vmatpush1.bf16.msra.mxu0 0
      %3287 = vmatprep.subr.bf16.mxu0 0
      %3288 = vmatpush1.bf16.msra.mxu0 0
      %3289 = vmatprep.mubr.bf16.mxu0 0
      %3290 = vmatmul.mubr.bf16.gmra.mrb[0].mxu0 %v3240
      %v3291 = vpop.f32.mrb[0].mxu0
      %v3292 = vadd.f32 0.0, %v3291
      %v3293 = vpop.f32.mrb[0].mxu0
      %v3294 = vpop.f32.mrb[0].mxu0
      %v3295 = vadd.f32 0.0, %v3294
      %v3296 = vpop.f32.mrb[0].mxu0
      %3297 = vmatprep.mubr.bf16.mxu0 0
      %3298 = vmatmul.mubr.bf16.gmra.mrb[0].mxu0 %v3243
      %v3299 = vpop.f32.mrb[0].mxu0
      %v3300 = vadd.f32 0.0, %v3299
      %v3301 = vpop.f32.mrb[0].mxu0
      %v3302 = vpop.f32.mrb[0].mxu0
      %v3303 = vadd.f32 0.0, %v3302
      %v3304 = vpop.f32.mrb[0].mxu0
      %3305 = vmatprep.mubr.bf16.mxu0 0
      %3306 = vmatmul.mubr.bf16.gmra.mrb[0].mxu0 %v3246
      %v3307 = vpop.f32.mrb[0].mxu0
      %v3308 = vadd.f32 0.0, %v3307
      %v3309 = vpop.f32.mrb[0].mxu0
      %v3310 = vpop.f32.mrb[0].mxu0
      %v3311 = vadd.f32 0.0, %v3310
      %v3312 = vpop.f32.mrb[0].mxu0
      %3313 = vmatprep.mubr.bf16.mxu0 0
      %3314 = vmatmul.mubr.bf16.gmra.mrb[0].mxu0 %v3249
      %v3315 = vpop.f32.mrb[0].mxu0
      %v3316 = vadd.f32 0.0, %v3315
      %v3317 = vpop.f32.mrb[0].mxu0
      %v3318 = vpop.f32.mrb[0].mxu0
      %v3319 = vadd.f32 0.0, %v3318
      %v3320 = vpop.f32.mrb[0].mxu0
      %3321 = vmatprep.mubr.bf16.mxu0 0
      %3322 = vmatmul.mubr.bf16.gmra.mrb[0].mxu0 %v3252
      %v3323 = vpop.f32.mrb[0].mxu0
      %v3324 = vadd.f32 0.0, %v3323
      %v3325 = vpop.f32.mrb[0].mxu0
      %v3326 = vpop.f32.mrb[0].mxu0
      %v3327 = vadd.f32 0.0, %v3326
      %v3328 = vpop.f32.mrb[0].mxu0
      %3329 = vdwg.mxu0
      %v3330 = vadd.f32 %v2974, %v3292
      %v3331 = vadd.f32 %v2975, %v3295
      %v3332 = vadd.f32 %v2976, %v3300
      %v3333 = vadd.f32 %v2977, %v3303
      %v3334 = vadd.f32 %v2978, %v3308
      %v3335 = vadd.f32 %v2979, %v3311
      %v3336 = vadd.f32 %v2980, %v3316
      %v3337 = vadd.f32 %v2981, %v3319
      %v3338 = vadd.f32 %v2982, %v3324
      %v3339 = vadd.f32 %v2983, %v3327
      %s3340 = scalar_lea.vmem %s3, 28
      %v3341 = vld [vmem:[%s3340] sm:$0xf]
      %vm3342 = vsmask.f32 5376
      %v3343 = vrot.slane %v830, 2
      %v3344 = vrot.slane %v826, 3
      %v3345 = vor.u32 %v3343, %v3344
      %v3346 = vrot.slane %v838, 2
      %v3347 = vrot.slane %v834, 3
      %v3348 = vor.u32 %v3346, %v3347
      %v3349 = vsel %vm3342, %v3345, %v3348
      %v3350 = vrot.slane %v846, 2
      %v3351 = vrot.slane %v842, 3
      %v3352 = vor.u32 %v3350, %v3351
      %v3353 = vsel %vm3342, %v3348, %v3352
      %v3354 = vrot.slane %v854, 2
      %v3355 = vrot.slane %v850, 3
      %v3356 = vor.u32 %v3354, %v3355
      %v3357 = vsel %vm3342, %v3352, %v3356
      %v3358 = vrot.slane %v2258, 2
      %v3359 = vrot.slane %v858, 3
      %v3360 = vor.u32 %v3358, %v3359
      %v3361 = vsel %vm3342, %v3356, %v3360
      %v3363 = vshrl.u32 %v727, 16
      %v3365 = vrot.slane %v3363, 2
      %v3366 = vshll.u32 %v727, 16
      %v3368 = vrot.slane %v3366, 3
      %v3369 = vor.u32 %v3365, %v3368
      %v3370 = vsel %vm3342, %v3360, %v3369
      %v3372 = vsel %vm862, %v3349, 0
      %v3375 = vsel %vm862, %v3353, 0
      %v3378 = vsel %vm862, %v3357, 0
      %v3381 = vsel %vm862, %v3361, 0
      %v3384 = vsel %vm862, %v3370, 0
      %v3387 = vsel %vm878, %v3341, 0
      %3389 = vmatprep.subr.bf16.mxu0 0
      %3390 = vmatpush1.bf16.msra.mxu0 %v3387
      %3391 = vmatprep.subr.bf16.mxu0 0
      %3392 = vmatpush1.bf16.msra.mxu0 0
      %3393 = vmatprep.subr.bf16.mxu0 0
      %3394 = vmatpush1.bf16.msra.mxu0 0
      %3395 = vmatprep.subr.bf16.mxu0 0
      %3396 = vmatpush1.bf16.msra.mxu0 0
      %3397 = vmatprep.subr.bf16.mxu0 0
      %3398 = vmatpush1.bf16.msra.mxu0 0
      %3399 = vmatprep.subr.bf16.mxu0 0
      %3400 = vmatpush1.bf16.msra.mxu0 0
      %3401 = vmatprep.subr.bf16.mxu0 0
      %3402 = vmatpush1.bf16.msra.mxu0 0
      %3403 = vmatprep.subr.bf16.mxu0 0
      %3404 = vmatpush1.bf16.msra.mxu0 0
      %3405 = vmatprep.subr.bf16.mxu0 0
      %3406 = vmatpush1.bf16.msra.mxu0 0
      %3407 = vmatprep.subr.bf16.mxu0 0
      %3408 = vmatpush1.bf16.msra.mxu0 0
      %3409 = vmatprep.subr.bf16.mxu0 0
      %3410 = vmatpush1.bf16.msra.mxu0 0
      %3411 = vmatprep.subr.bf16.mxu0 0
      %3412 = vmatpush1.bf16.msra.mxu0 0
      %3413 = vmatprep.subr.bf16.mxu0 0
      %3414 = vmatpush1.bf16.msra.mxu0 0
      %3415 = vmatprep.subr.bf16.mxu0 0
      %3416 = vmatpush1.bf16.msra.mxu0 0
      %3417 = vmatprep.subr.bf16.mxu0 0
      %3418 = vmatpush1.bf16.msra.mxu0 0
      %3419 = vmatprep.subr.bf16.mxu0 0
      %3420 = vmatpush1.bf16.msra.mxu0 0
      %3421 = vmatprep.mubr.bf16.mxu0 0
      %3422 = vmatmul.mubr.bf16.gmra.mrb[0].mxu0 %v3372
      %v3423 = vpop.f32.mrb[0].mxu0
      %v3424 = vadd.f32 0.0, %v3423
      %v3425 = vpop.f32.mrb[0].mxu0
      %v3426 = vpop.f32.mrb[0].mxu0
      %v3427 = vadd.f32 0.0, %v3426
      %v3428 = vpop.f32.mrb[0].mxu0
      %3429 = vmatprep.mubr.bf16.mxu0 0
      %3430 = vmatmul.mubr.bf16.gmra.mrb[0].mxu0 %v3375
      %v3431 = vpop.f32.mrb[0].mxu0
      %v3432 = vadd.f32 0.0, %v3431
      %v3433 = vpop.f32.mrb[0].mxu0
      %v3434 = vpop.f32.mrb[0].mxu0
      %v3435 = vadd.f32 0.0, %v3434
      %v3436 = vpop.f32.mrb[0].mxu0
      %3437 = vmatprep.mubr.bf16.mxu0 0
      %3438 = vmatmul.mubr.bf16.gmra.mrb[0].mxu0 %v3378
      %v3439 = vpop.f32.mrb[0].mxu0
      %v3440 = vadd.f32 0.0, %v3439
      %v3441 = vpop.f32.mrb[0].mxu0
      %v3442 = vpop.f32.mrb[0].mxu0
      %v3443 = vadd.f32 0.0, %v3442
      %v3444 = vpop.f32.mrb[0].mxu0
      %3445 = vmatprep.mubr.bf16.mxu0 0
      %3446 = vmatmul.mubr.bf16.gmra.mrb[0].mxu0 %v3381
      %v3447 = vpop.f32.mrb[0].mxu0
      %v3448 = vadd.f32 0.0, %v3447
      %v3449 = vpop.f32.mrb[0].mxu0
      %v3450 = vpop.f32.mrb[0].mxu0
      %v3451 = vadd.f32 0.0, %v3450
      %v3452 = vpop.f32.mrb[0].mxu0
      %3453 = vmatprep.mubr.bf16.mxu0 0
      %3454 = vmatmul.mubr.bf16.gmra.mrb[0].mxu0 %v3384
      %v3455 = vpop.f32.mrb[0].mxu0
      %v3456 = vadd.f32 0.0, %v3455
      %v3457 = vpop.f32.mrb[0].mxu0
      %v3458 = vpop.f32.mrb[0].mxu0
      %v3459 = vadd.f32 0.0, %v3458
      %v3460 = vpop.f32.mrb[0].mxu0
      %3461 = vdwg.mxu0
      %v3462 = vadd.f32 %v3090, %v3424
      %v3463 = vadd.f32 %v3091, %v3427
      %v3464 = vadd.f32 %v3092, %v3432
      %v3465 = vadd.f32 %v3093, %v3435
      %v3466 = vadd.f32 %v3094, %v3440
      %v3467 = vadd.f32 %v3095, %v3443
      %v3468 = vadd.f32 %v3096, %v3448
      %v3469 = vadd.f32 %v3097, %v3451
      %v3470 = vadd.f32 %v3098, %v3456
      %v3471 = vadd.f32 %v3099, %v3459
      %s3472 = scalar_lea.vmem %s4, 28
      %v3473 = vld [vmem:[%s3472] sm:$0xf]
      %v3474 = vrot.slane %v1055, 2
      %v3475 = vrot.slane %v1051, 3
      %v3476 = vor.u32 %v3474, %v3475
      %v3477 = vrot.slane %v1063, 2
      %v3478 = vrot.slane %v1059, 3
      %v3479 = vor.u32 %v3477, %v3478
      %v3480 = vsel %vm3342, %v3476, %v3479
      %v3481 = vrot.slane %v1071, 2
      %v3482 = vrot.slane %v1067, 3
      %v3483 = vor.u32 %v3481, %v3482
      %v3484 = vsel %vm3342, %v3479, %v3483
      %v3485 = vrot.slane %v1079, 2
      %v3486 = vrot.slane %v1075, 3
      %v3487 = vor.u32 %v3485, %v3486
      %v3488 = vsel %vm3342, %v3483, %v3487
      %v3489 = vrot.slane %v2386, 2
      %v3490 = vrot.slane %v1083, 3
      %v3491 = vor.u32 %v3489, %v3490
      %v3492 = vsel %vm3342, %v3487, %v3491
      %v3494 = vshrl.u32 %v734, 16
      %v3496 = vrot.slane %v3494, 2
      %v3497 = vshll.u32 %v734, 16
      %v3499 = vrot.slane %v3497, 3
      %v3500 = vor.u32 %v3496, %v3499
      %v3501 = vsel %vm3342, %v3491, %v3500
      %3502 = vrot.lane.b32.xlu0 %v3480, 120
      %v3503 = vpop.permute.xlu0 %3502
      %3504 = vrot.lane.b32.xlu0 %v3484, 120
      %v3505 = vpop.permute.xlu0 %3504
      %3506 = vrot.lane.b32.xlu0 %v3488, 120
      %v3507 = vpop.permute.xlu0 %3506
      %3508 = vrot.lane.b32.xlu0 %v3492, 120
      %v3509 = vpop.permute.xlu0 %3508
      %3510 = vrot.lane.b32.xlu0 %v3501, 120
      %v3511 = vpop.permute.xlu0 %3510
      %v3513 = vsel %vm862, %v3503, 0
      %v3516 = vsel %vm862, %v3505, 0
      %v3519 = vsel %vm862, %v3507, 0
      %v3522 = vsel %vm862, %v3509, 0
      %v3525 = vsel %vm862, %v3511, 0
      %v3528 = vsel %vm878, %v3473, 0
      %3530 = vmatprep.subr.bf16.mxu0 0
      %3531 = vmatpush1.bf16.msra.mxu0 %v3528
      %3532 = vmatprep.subr.bf16.mxu0 0
      %3533 = vmatpush1.bf16.msra.mxu0 0
      %3534 = vmatprep.subr.bf16.mxu0 0
      %3535 = vmatpush1.bf16.msra.mxu0 0
      %3536 = vmatprep.subr.bf16.mxu0 0
      %3537 = vmatpush1.bf16.msra.mxu0 0
      %3538 = vmatprep.subr.bf16.mxu0 0
      %3539 = vmatpush1.bf16.msra.mxu0 0
      %3540 = vmatprep.subr.bf16.mxu0 0
      %3541 = vmatpush1.bf16.msra.mxu0 0
      %3542 = vmatprep.subr.bf16.mxu0 0
      %3543 = vmatpush1.bf16.msra.mxu0 0
      %3544 = vmatprep.subr.bf16.mxu0 0
      %3545 = vmatpush1.bf16.msra.mxu0 0
      %3546 = vmatprep.subr.bf16.mxu0 0
      %3547 = vmatpush1.bf16.msra.mxu0 0
      %3548 = vmatprep.subr.bf16.mxu0 0
      %3549 = vmatpush1.bf16.msra.mxu0 0
      %3550 = vmatprep.subr.bf16.mxu0 0
      %3551 = vmatpush1.bf16.msra.mxu0 0
      %3552 = vmatprep.subr.bf16.mxu0 0
      %3553 = vmatpush1.bf16.msra.mxu0 0
      %3554 = vmatprep.subr.bf16.mxu0 0
      %3555 = vmatpush1.bf16.msra.mxu0 0
      %3556 = vmatprep.subr.bf16.mxu0 0
      %3557 = vmatpush1.bf16.msra.mxu0 0
      %3558 = vmatprep.subr.bf16.mxu0 0
      %3559 = vmatpush1.bf16.msra.mxu0 0
      %3560 = vmatprep.subr.bf16.mxu0 0
      %3561 = vmatpush1.bf16.msra.mxu0 0
      %3562 = vmatprep.mubr.bf16.mxu0 0
      %3563 = vmatmul.mubr.bf16.gmra.mrb[0].mxu0 %v3513
      %v3564 = vpop.f32.mrb[0].mxu0
      %v3565 = vadd.f32 0.0, %v3564
      %v3566 = vpop.f32.mrb[0].mxu0
      %v3567 = vpop.f32.mrb[0].mxu0
      %v3568 = vadd.f32 0.0, %v3567
      %v3569 = vpop.f32.mrb[0].mxu0
      %3570 = vmatprep.mubr.bf16.mxu0 0
      %3571 = vmatmul.mubr.bf16.gmra.mrb[0].mxu0 %v3516
      %v3572 = vpop.f32.mrb[0].mxu0
      %v3573 = vadd.f32 0.0, %v3572
      %v3574 = vpop.f32.mrb[0].mxu0
      %v3575 = vpop.f32.mrb[0].mxu0
      %v3576 = vadd.f32 0.0, %v3575
      %v3577 = vpop.f32.mrb[0].mxu0
      %3578 = vmatprep.mubr.bf16.mxu0 0
      %3579 = vmatmul.mubr.bf16.gmra.mrb[0].mxu0 %v3519
      %v3580 = vpop.f32.mrb[0].mxu0
      %v3581 = vadd.f32 0.0, %v3580
      %v3582 = vpop.f32.mrb[0].mxu0
      %v3583 = vpop.f32.mrb[0].mxu0
      %v3584 = vadd.f32 0.0, %v3583
      %v3585 = vpop.f32.mrb[0].mxu0
      %3586 = vmatprep.mubr.bf16.mxu0 0
      %3587 = vmatmul.mubr.bf16.gmra.mrb[0].mxu0 %v3522
      %v3588 = vpop.f32.mrb[0].mxu0
      %v3589 = vadd.f32 0.0, %v3588
      %v3590 = vpop.f32.mrb[0].mxu0
      %v3591 = vpop.f32.mrb[0].mxu0
      %v3592 = vadd.f32 0.0, %v3591
      %v3593 = vpop.f32.mrb[0].mxu0
      %3594 = vmatprep.mubr.bf16.mxu0 0
      %3595 = vmatmul.mubr.bf16.gmra.mrb[0].mxu0 %v3525
      %v3596 = vpop.f32.mrb[0].mxu0
      %v3597 = vadd.f32 0.0, %v3596
      %v3598 = vpop.f32.mrb[0].mxu0
      %v3599 = vpop.f32.mrb[0].mxu0
      %v3600 = vadd.f32 0.0, %v3599
      %v3601 = vpop.f32.mrb[0].mxu0
      %3602 = vdwg.mxu0
      %v3603 = vadd.f32 %v3215, %v3565
      %v3604 = vadd.f32 %v3216, %v3568
      %v3605 = vadd.f32 %v3217, %v3573
      %v3606 = vadd.f32 %v3218, %v3576
      %v3607 = vadd.f32 %v3219, %v3581
      %v3608 = vadd.f32 %v3220, %v3584
      %v3609 = vadd.f32 %v3221, %v3589
      %v3610 = vadd.f32 %v3222, %v3592
      %v3611 = vadd.f32 %v3223, %v3597
      %v3612 = vadd.f32 %v3224, %v3600
      %s3613 = scalar_lea.vmem %s5, 28
      %v3614 = vld [vmem:[%s3613] sm:$0xf]
      %v3615 = vrot.slane %v1308, 2
      %v3616 = vrot.slane %v1304, 3
      %v3617 = vor.u32 %v3615, %v3616
      %v3618 = vrot.slane %v1316, 2
      %v3619 = vrot.slane %v1312, 3
      %v3620 = vor.u32 %v3618, %v3619
      %v3621 = vsel %vm3342, %v3617, %v3620
      %v3622 = vrot.slane %v1324, 2
      %v3623 = vrot.slane %v1320, 3
      %v3624 = vor.u32 %v3622, %v3623
      %v3625 = vsel %vm3342, %v3620, %v3624
      %v3626 = vrot.slane %v1332, 2
      %v3627 = vrot.slane %v1328, 3
      %v3628 = vor.u32 %v3626, %v3627
      %v3629 = vsel %vm3342, %v3624, %v3628
      %v3630 = vrot.slane %v2524, 2
      %v3631 = vrot.slane %v1336, 3
      %v3632 = vor.u32 %v3630, %v3631
      %v3633 = vsel %vm3342, %v3628, %v3632
      %v3635 = vshrl.u32 %v811, 16
      %v3637 = vrot.slane %v3635, 2
      %v3638 = vshll.u32 %v811, 16
      %v3640 = vrot.slane %v3638, 3
      %v3641 = vor.u32 %v3637, %v3640
      %v3642 = vsel %vm3342, %v3632, %v3641
      %v3644 = vsel %vm862, %v3621, 0
      %v3647 = vsel %vm862, %v3625, 0
      %v3650 = vsel %vm862, %v3629, 0
      %v3653 = vsel %vm862, %v3633, 0
      %v3656 = vsel %vm862, %v3642, 0
      %v3659 = vsel %vm878, %v3614, 0
      %3661 = vmatprep.subr.bf16.mxu0 0
      %3662 = vmatpush1.bf16.msra.mxu0 %v3659
      %3663 = vmatprep.subr.bf16.mxu0 0
      %3664 = vmatpush1.bf16.msra.mxu0 0
      %3665 = vmatprep.subr.bf16.mxu0 0
      %3666 = vmatpush1.bf16.msra.mxu0 0
      %3667 = vmatprep.subr.bf16.mxu0 0
      %3668 = vmatpush1.bf16.msra.mxu0 0
      %3669 = vmatprep.subr.bf16.mxu0 0
      %3670 = vmatpush1.bf16.msra.mxu0 0
      %3671 = vmatprep.subr.bf16.mxu0 0
      %3672 = vmatpush1.bf16.msra.mxu0 0
      %3673 = vmatprep.subr.bf16.mxu0 0
      %3674 = vmatpush1.bf16.msra.mxu0 0
      %3675 = vmatprep.subr.bf16.mxu0 0
      %3676 = vmatpush1.bf16.msra.mxu0 0
      %3677 = vmatprep.subr.bf16.mxu0 0
      %3678 = vmatpush1.bf16.msra.mxu0 0
      %3679 = vmatprep.subr.bf16.mxu0 0
      %3680 = vmatpush1.bf16.msra.mxu0 0
      %3681 = vmatprep.subr.bf16.mxu0 0
      %3682 = vmatpush1.bf16.msra.mxu0 0
      %3683 = vmatprep.subr.bf16.mxu0 0
      %3684 = vmatpush1.bf16.msra.mxu0 0
      %3685 = vmatprep.subr.bf16.mxu0 0
      %3686 = vmatpush1.bf16.msra.mxu0 0
      %3687 = vmatprep.subr.bf16.mxu0 0
      %3688 = vmatpush1.bf16.msra.mxu0 0
      %3689 = vmatprep.subr.bf16.mxu0 0
      %3690 = vmatpush1.bf16.msra.mxu0 0
      %3691 = vmatprep.subr.bf16.mxu0 0
      %3692 = vmatpush1.bf16.msra.mxu0 0
      %3693 = vmatprep.mubr.bf16.mxu0 0
      %3694 = vmatmul.mubr.bf16.gmra.mrb[0].mxu0 %v3644
      %v3695 = vpop.f32.mrb[0].mxu0
      %v3696 = vadd.f32 0.0, %v3695
      %v3697 = vpop.f32.mrb[0].mxu0
      %v3698 = vpop.f32.mrb[0].mxu0
      %v3699 = vadd.f32 0.0, %v3698
      %v3700 = vpop.f32.mrb[0].mxu0
      %3701 = vmatprep.mubr.bf16.mxu0 0
      %3702 = vmatmul.mubr.bf16.gmra.mrb[0].mxu0 %v3647
      %v3703 = vpop.f32.mrb[0].mxu0
      %v3704 = vadd.f32 0.0, %v3703
      %v3705 = vpop.f32.mrb[0].mxu0
      %v3706 = vpop.f32.mrb[0].mxu0
      %v3707 = vadd.f32 0.0, %v3706
      %v3708 = vpop.f32.mrb[0].mxu0
      %3709 = vmatprep.mubr.bf16.mxu0 0
      %3710 = vmatmul.mubr.bf16.gmra.mrb[0].mxu0 %v3650
      %v3711 = vpop.f32.mrb[0].mxu0
      %v3712 = vadd.f32 0.0, %v3711
      %v3713 = vpop.f32.mrb[0].mxu0
      %v3714 = vpop.f32.mrb[0].mxu0
      %v3715 = vadd.f32 0.0, %v3714
      %v3716 = vpop.f32.mrb[0].mxu0
      %3717 = vmatprep.mubr.bf16.mxu0 0
      %3718 = vmatmul.mubr.bf16.gmra.mrb[0].mxu0 %v3653
      %v3719 = vpop.f32.mrb[0].mxu0
      %v3720 = vadd.f32 0.0, %v3719
      %v3721 = vpop.f32.mrb[0].mxu0
      %v3722 = vpop.f32.mrb[0].mxu0
      %v3723 = vadd.f32 0.0, %v3722
      %v3724 = vpop.f32.mrb[0].mxu0
      %3725 = vmatprep.mubr.bf16.mxu0 0
      %3726 = vmatmul.mubr.bf16.gmra.mrb[0].mxu0 %v3656
      %v3727 = vpop.f32.mrb[0].mxu0
      %v3728 = vadd.f32 0.0, %v3727
      %v3729 = vpop.f32.mrb[0].mxu0
      %v3730 = vpop.f32.mrb[0].mxu0
      %v3731 = vadd.f32 0.0, %v3730
      %v3732 = vpop.f32.mrb[0].mxu0
      %3733 = vdwg.mxu0
      %v3734 = vadd.f32 %v3330, %v3696
      %v3735 = vadd.f32 %v3331, %v3699
      %v3736 = vadd.f32 %v3332, %v3704
      %v3737 = vadd.f32 %v3333, %v3707
      %v3738 = vadd.f32 %v3334, %v3712
      %v3739 = vadd.f32 %v3335, %v3715
      %v3740 = vadd.f32 %v3336, %v3720
      %v3741 = vadd.f32 %v3337, %v3723
      %v3742 = vadd.f32 %v3338, %v3728
      %v3743 = vadd.f32 %v3339, %v3731
      %s3744 = scalar_lea.vmem %s3, 32
      %v3745 = vld [vmem:[%s3744] sm:$0xf]
      %vm3746 = vcmask 1044480
      %v3747 = vrot.slane %v722, 3
      %v3748 = vrot.slane %v723, 3
      %v3749 = vsel %vm3746, %v3747, %v3748
      %v3750 = vrot.slane %v724, 3
      %v3751 = vsel %vm3746, %v3748, %v3750
      %v3752 = vrot.slane %v725, 3
      %v3753 = vsel %vm3746, %v3750, %v3752
      %v3754 = vrot.slane %v726, 3
      %v3755 = vsel %vm3746, %v3752, %v3754
      %v3756 = vrot.slane %v727, 3
      %v3757 = vsel %vm3746, %v3754, %v3756
      %v3759 = vsel %vm862, %v3749, 0
      %v3762 = vsel %vm862, %v3751, 0
      %v3765 = vsel %vm862, %v3753, 0
      %v3768 = vsel %vm862, %v3755, 0
      %v3771 = vsel %vm862, %v3757, 0
      %v3774 = vsel %vm878, %v3745, 0
      %3776 = vmatprep.subr.bf16.mxu0 0
      %3777 = vmatpush1.bf16.msra.mxu0 %v3774
      %3778 = vmatprep.subr.bf16.mxu0 0
      %3779 = vmatpush1.bf16.msra.mxu0 0
      %3780 = vmatprep.subr.bf16.mxu0 0
      %3781 = vmatpush1.bf16.msra.mxu0 0
      %3782 = vmatprep.subr.bf16.mxu0 0
      %3783 = vmatpush1.bf16.msra.mxu0 0
      %3784 = vmatprep.subr.bf16.mxu0 0
      %3785 = vmatpush1.bf16.msra.mxu0 0
      %3786 = vmatprep.subr.bf16.mxu0 0
      %3787 = vmatpush1.bf16.msra.mxu0 0
      %3788 = vmatprep.subr.bf16.mxu0 0
      %3789 = vmatpush1.bf16.msra.mxu0 0
      %3790 = vmatprep.subr.bf16.mxu0 0
      %3791 = vmatpush1.bf16.msra.mxu0 0
      %3792 = vmatprep.subr.bf16.mxu0 0
      %3793 = vmatpush1.bf16.msra.mxu0 0
      %3794 = vmatprep.subr.bf16.mxu0 0
      %3795 = vmatpush1.bf16.msra.mxu0 0
      %3796 = vmatprep.subr.bf16.mxu0 0
      %3797 = vmatpush1.bf16.msra.mxu0 0
      %3798 = vmatprep.subr.bf16.mxu0 0
      %3799 = vmatpush1.bf16.msra.mxu0 0
      %3800 = vmatprep.subr.bf16.mxu0 0
      %3801 = vmatpush1.bf16.msra.mxu0 0
      %3802 = vmatprep.subr.bf16.mxu0 0
      %3803 = vmatpush1.bf16.msra.mxu0 0
      %3804 = vmatprep.subr.bf16.mxu0 0
      %3805 = vmatpush1.bf16.msra.mxu0 0
      %3806 = vmatprep.subr.bf16.mxu0 0
      %3807 = vmatpush1.bf16.msra.mxu0 0
      %3808 = vmatprep.mubr.bf16.mxu0 0
      %3809 = vmatmul.mubr.bf16.gmra.mrb[0].mxu0 %v3759
      %v3810 = vpop.f32.mrb[0].mxu0
      %v3811 = vadd.f32 0.0, %v3810
      %v3812 = vpop.f32.mrb[0].mxu0
      %v3813 = vpop.f32.mrb[0].mxu0
      %v3814 = vadd.f32 0.0, %v3813
      %v3815 = vpop.f32.mrb[0].mxu0
      %3816 = vmatprep.mubr.bf16.mxu0 0
      %3817 = vmatmul.mubr.bf16.gmra.mrb[0].mxu0 %v3762
      %v3818 = vpop.f32.mrb[0].mxu0
      %v3819 = vadd.f32 0.0, %v3818
      %v3820 = vpop.f32.mrb[0].mxu0
      %v3821 = vpop.f32.mrb[0].mxu0
      %v3822 = vadd.f32 0.0, %v3821
      %v3823 = vpop.f32.mrb[0].mxu0
      %3824 = vmatprep.mubr.bf16.mxu0 0
      %3825 = vmatmul.mubr.bf16.gmra.mrb[0].mxu0 %v3765
      %v3826 = vpop.f32.mrb[0].mxu0
      %v3827 = vadd.f32 0.0, %v3826
      %v3828 = vpop.f32.mrb[0].mxu0
      %v3829 = vpop.f32.mrb[0].mxu0
      %v3830 = vadd.f32 0.0, %v3829
      %v3831 = vpop.f32.mrb[0].mxu0
      %3832 = vmatprep.mubr.bf16.mxu0 0
      %3833 = vmatmul.mubr.bf16.gmra.mrb[0].mxu0 %v3768
      %v3834 = vpop.f32.mrb[0].mxu0
      %v3835 = vadd.f32 0.0, %v3834
      %v3836 = vpop.f32.mrb[0].mxu0
      %v3837 = vpop.f32.mrb[0].mxu0
      %v3838 = vadd.f32 0.0, %v3837
      %v3839 = vpop.f32.mrb[0].mxu0
      %3840 = vmatprep.mubr.bf16.mxu0 0
      %3841 = vmatmul.mubr.bf16.gmra.mrb[0].mxu0 %v3771
      %v3842 = vpop.f32.mrb[0].mxu0
      %v3843 = vadd.f32 0.0, %v3842
      %v3844 = vpop.f32.mrb[0].mxu0
      %v3845 = vpop.f32.mrb[0].mxu0
      %v3846 = vadd.f32 0.0, %v3845
      %v3847 = vpop.f32.mrb[0].mxu0
      %3848 = vdwg.mxu0
      %v3849 = vadd.f32 %v3462, %v3811
      %v3850 = vadd.f32 %v3463, %v3814
      %v3851 = vadd.f32 %v3464, %v3819
      %v3852 = vadd.f32 %v3465, %v3822
      %v3853 = vadd.f32 %v3466, %v3827
      %v3854 = vadd.f32 %v3467, %v3830
      %v3855 = vadd.f32 %v3468, %v3835
      %v3856 = vadd.f32 %v3469, %v3838
      %v3857 = vadd.f32 %v3470, %v3843
      %v3858 = vadd.f32 %v3471, %v3846
      %s3859 = scalar_lea.vmem %s4, 32
      %v3860 = vld [vmem:[%s3859] sm:$0xf]
      %v3861 = vrot.slane %v729, 3
      %v3862 = vrot.slane %v730, 3
      %v3863 = vsel %vm3746, %v3861, %v3862
      %v3864 = vrot.slane %v731, 3
      %v3865 = vsel %vm3746, %v3862, %v3864
      %v3866 = vrot.slane %v732, 3
      %v3867 = vsel %vm3746, %v3864, %v3866
      %v3868 = vrot.slane %v733, 3
      %v3869 = vsel %vm3746, %v3866, %v3868
      %v3870 = vrot.slane %v734, 3
      %v3871 = vsel %vm3746, %v3868, %v3870
      %3872 = vrot.lane.b32.xlu0 %v3863, 120
      %v3873 = vpop.permute.xlu0 %3872
      %3874 = vrot.lane.b32.xlu0 %v3865, 120
      %v3875 = vpop.permute.xlu0 %3874
      %3876 = vrot.lane.b32.xlu0 %v3867, 120
      %v3877 = vpop.permute.xlu0 %3876
      %3878 = vrot.lane.b32.xlu0 %v3869, 120
      %v3879 = vpop.permute.xlu0 %3878
      %3880 = vrot.lane.b32.xlu0 %v3871, 120
      %v3881 = vpop.permute.xlu0 %3880
      %v3883 = vsel %vm862, %v3873, 0
      %v3886 = vsel %vm862, %v3875, 0
      %v3889 = vsel %vm862, %v3877, 0
      %v3892 = vsel %vm862, %v3879, 0
      %v3895 = vsel %vm862, %v3881, 0
      %v3898 = vsel %vm878, %v3860, 0
      %3900 = vmatprep.subr.bf16.mxu0 0
      %3901 = vmatpush1.bf16.msra.mxu0 %v3898
      %3902 = vmatprep.subr.bf16.mxu0 0
      %3903 = vmatpush1.bf16.msra.mxu0 0
      %3904 = vmatprep.subr.bf16.mxu0 0
      %3905 = vmatpush1.bf16.msra.mxu0 0
      %3906 = vmatprep.subr.bf16.mxu0 0
      %3907 = vmatpush1.bf16.msra.mxu0 0
      %3908 = vmatprep.subr.bf16.mxu0 0
      %3909 = vmatpush1.bf16.msra.mxu0 0
      %3910 = vmatprep.subr.bf16.mxu0 0
      %3911 = vmatpush1.bf16.msra.mxu0 0
      %3912 = vmatprep.subr.bf16.mxu0 0
      %3913 = vmatpush1.bf16.msra.mxu0 0
      %3914 = vmatprep.subr.bf16.mxu0 0
      %3915 = vmatpush1.bf16.msra.mxu0 0
      %3916 = vmatprep.subr.bf16.mxu0 0
      %3917 = vmatpush1.bf16.msra.mxu0 0
      %3918 = vmatprep.subr.bf16.mxu0 0
      %3919 = vmatpush1.bf16.msra.mxu0 0
      %3920 = vmatprep.subr.bf16.mxu0 0
      %3921 = vmatpush1.bf16.msra.mxu0 0
      %3922 = vmatprep.subr.bf16.mxu0 0
      %3923 = vmatpush1.bf16.msra.mxu0 0
      %3924 = vmatprep.subr.bf16.mxu0 0
      %3925 = vmatpush1.bf16.msra.mxu0 0
      %3926 = vmatprep.subr.bf16.mxu0 0
      %3927 = vmatpush1.bf16.msra.mxu0 0
      %3928 = vmatprep.subr.bf16.mxu0 0
      %3929 = vmatpush1.bf16.msra.mxu0 0
      %3930 = vmatprep.subr.bf16.mxu0 0
      %3931 = vmatpush1.bf16.msra.mxu0 0
      %3932 = vmatprep.mubr.bf16.mxu0 0
      %3933 = vmatmul.mubr.bf16.gmra.mrb[0].mxu0 %v3883
      %v3934 = vpop.f32.mrb[0].mxu0
      %v3935 = vadd.f32 0.0, %v3934
      %v3936 = vpop.f32.mrb[0].mxu0
      %v3937 = vpop.f32.mrb[0].mxu0
      %v3938 = vadd.f32 0.0, %v3937
      %v3939 = vpop.f32.mrb[0].mxu0
      %3940 = vmatprep.mubr.bf16.mxu0 0
      %3941 = vmatmul.mubr.bf16.gmra.mrb[0].mxu0 %v3886
      %v3942 = vpop.f32.mrb[0].mxu0
      %v3943 = vadd.f32 0.0, %v3942
      %v3944 = vpop.f32.mrb[0].mxu0
      %v3945 = vpop.f32.mrb[0].mxu0
      %v3946 = vadd.f32 0.0, %v3945
      %v3947 = vpop.f32.mrb[0].mxu0
      %3948 = vmatprep.mubr.bf16.mxu0 0
      %3949 = vmatmul.mubr.bf16.gmra.mrb[0].mxu0 %v3889
      %v3950 = vpop.f32.mrb[0].mxu0
      %v3951 = vadd.f32 0.0, %v3950
      %v3952 = vpop.f32.mrb[0].mxu0
      %v3953 = vpop.f32.mrb[0].mxu0
      %v3954 = vadd.f32 0.0, %v3953
      %v3955 = vpop.f32.mrb[0].mxu0
      %3956 = vmatprep.mubr.bf16.mxu0 0
      %3957 = vmatmul.mubr.bf16.gmra.mrb[0].mxu0 %v3892
      %v3958 = vpop.f32.mrb[0].mxu0
      %v3959 = vadd.f32 0.0, %v3958
      %v3960 = vpop.f32.mrb[0].mxu0
      %v3961 = vpop.f32.mrb[0].mxu0
      %v3962 = vadd.f32 0.0, %v3961
      %v3963 = vpop.f32.mrb[0].mxu0
      %3964 = vmatprep.mubr.bf16.mxu0 0
      %3965 = vmatmul.mubr.bf16.gmra.mrb[0].mxu0 %v3895
      %v3966 = vpop.f32.mrb[0].mxu0
      %v3967 = vadd.f32 0.0, %v3966
      %v3968 = vpop.f32.mrb[0].mxu0
      %v3969 = vpop.f32.mrb[0].mxu0
      %v3970 = vadd.f32 0.0, %v3969
      %v3971 = vpop.f32.mrb[0].mxu0
      %3972 = vdwg.mxu0
      %v3973 = vadd.f32 %v3603, %v3935
      %v3974 = vadd.f32 %v3604, %v3938
      %v3975 = vadd.f32 %v3605, %v3943
      %v3976 = vadd.f32 %v3606, %v3946
      %v3977 = vadd.f32 %v3607, %v3951
      %v3978 = vadd.f32 %v3608, %v3954
      %v3979 = vadd.f32 %v3609, %v3959
      %v3980 = vadd.f32 %v3610, %v3962
      %v3981 = vadd.f32 %v3611, %v3967
      %v3982 = vadd.f32 %v3612, %v3970
      %s3983 = scalar_lea.vmem %s5, 32
      %v3984 = vld [vmem:[%s3983] sm:$0xf]
      %v3985 = vrot.slane %v806, 3
      %v3986 = vrot.slane %v807, 3
      %v3987 = vsel %vm3746, %v3985, %v3986
      %v3988 = vrot.slane %v808, 3
      %v3989 = vsel %vm3746, %v3986, %v3988
      %v3990 = vrot.slane %v809, 3
      %v3991 = vsel %vm3746, %v3988, %v3990
      %v3992 = vrot.slane %v810, 3
      %v3993 = vsel %vm3746, %v3990, %v3992
      %v3994 = vrot.slane %v811, 3
      %v3995 = vsel %vm3746, %v3992, %v3994
      %v3997 = vsel %vm862, %v3987, 0
      %v4000 = vsel %vm862, %v3989, 0
      %v4003 = vsel %vm862, %v3991, 0
      %v4006 = vsel %vm862, %v3993, 0
      %v4009 = vsel %vm862, %v3995, 0
      %v4012 = vsel %vm878, %v3984, 0
      %4014 = vmatprep.subr.bf16.mxu0 0
      %4015 = vmatpush1.bf16.msra.mxu0 %v4012
      %4016 = vmatprep.subr.bf16.mxu0 0
      %4017 = vmatpush1.bf16.msra.mxu0 0
      %4018 = vmatprep.subr.bf16.mxu0 0
      %4019 = vmatpush1.bf16.msra.mxu0 0
      %4020 = vmatprep.subr.bf16.mxu0 0
      %4021 = vmatpush1.bf16.msra.mxu0 0
      %4022 = vmatprep.subr.bf16.mxu0 0
      %4023 = vmatpush1.bf16.msra.mxu0 0
      %4024 = vmatprep.subr.bf16.mxu0 0
      %4025 = vmatpush1.bf16.msra.mxu0 0
      %4026 = vmatprep.subr.bf16.mxu0 0
      %4027 = vmatpush1.bf16.msra.mxu0 0
      %4028 = vmatprep.subr.bf16.mxu0 0
      %4029 = vmatpush1.bf16.msra.mxu0 0
      %4030 = vmatprep.subr.bf16.mxu0 0
      %4031 = vmatpush1.bf16.msra.mxu0 0
      %4032 = vmatprep.subr.bf16.mxu0 0
      %4033 = vmatpush1.bf16.msra.mxu0 0
      %4034 = vmatprep.subr.bf16.mxu0 0
      %4035 = vmatpush1.bf16.msra.mxu0 0
      %4036 = vmatprep.subr.bf16.mxu0 0
      %4037 = vmatpush1.bf16.msra.mxu0 0
      %4038 = vmatprep.subr.bf16.mxu0 0
      %4039 = vmatpush1.bf16.msra.mxu0 0
      %4040 = vmatprep.subr.bf16.mxu0 0
      %4041 = vmatpush1.bf16.msra.mxu0 0
      %4042 = vmatprep.subr.bf16.mxu0 0
      %4043 = vmatpush1.bf16.msra.mxu0 0
      %4044 = vmatprep.subr.bf16.mxu0 0
      %4045 = vmatpush1.bf16.msra.mxu0 0
      %4046 = vmatprep.mubr.bf16.mxu0 0
      %4047 = vmatmul.mubr.bf16.gmra.mrb[0].mxu0 %v3997
      %v4048 = vpop.f32.mrb[0].mxu0
      %v4049 = vadd.f32 0.0, %v4048
      %v4050 = vpop.f32.mrb[0].mxu0
      %v4051 = vpop.f32.mrb[0].mxu0
      %v4052 = vadd.f32 0.0, %v4051
      %v4053 = vpop.f32.mrb[0].mxu0
      %4054 = vmatprep.mubr.bf16.mxu0 0
      %4055 = vmatmul.mubr.bf16.gmra.mrb[0].mxu0 %v4000
      %v4056 = vpop.f32.mrb[0].mxu0
      %v4057 = vadd.f32 0.0, %v4056
      %v4058 = vpop.f32.mrb[0].mxu0
      %v4059 = vpop.f32.mrb[0].mxu0
      %v4060 = vadd.f32 0.0, %v4059
      %v4061 = vpop.f32.mrb[0].mxu0
      %4062 = vmatprep.mubr.bf16.mxu0 0
      %4063 = vmatmul.mubr.bf16.gmra.mrb[0].mxu0 %v4003
      %v4064 = vpop.f32.mrb[0].mxu0
      %v4065 = vadd.f32 0.0, %v4064
      %v4066 = vpop.f32.mrb[0].mxu0
      %v4067 = vpop.f32.mrb[0].mxu0
      %v4068 = vadd.f32 0.0, %v4067
      %v4069 = vpop.f32.mrb[0].mxu0
      %4070 = vmatprep.mubr.bf16.mxu0 0
      %4071 = vmatmul.mubr.bf16.gmra.mrb[0].mxu0 %v4006
      %v4072 = vpop.f32.mrb[0].mxu0
      %v4073 = vadd.f32 0.0, %v4072
      %v4074 = vpop.f32.mrb[0].mxu0
      %v4075 = vpop.f32.mrb[0].mxu0
      %v4076 = vadd.f32 0.0, %v4075
      %v4077 = vpop.f32.mrb[0].mxu0
      %4078 = vmatprep.mubr.bf16.mxu0 0
      %4079 = vmatmul.mubr.bf16.gmra.mrb[0].mxu0 %v4009
      %v4080 = vpop.f32.mrb[0].mxu0
      %v4081 = vadd.f32 0.0, %v4080
      %v4082 = vpop.f32.mrb[0].mxu0
      %v4083 = vpop.f32.mrb[0].mxu0
      %v4084 = vadd.f32 0.0, %v4083
      %v4085 = vpop.f32.mrb[0].mxu0
      %4086 = vdwg.mxu0
      %v4087 = vadd.f32 %v3734, %v4049
      %v4088 = vadd.f32 %v3735, %v4052
      %v4089 = vadd.f32 %v3736, %v4057
      %v4090 = vadd.f32 %v3737, %v4060
      %v4091 = vadd.f32 %v3738, %v4065
      %v4092 = vadd.f32 %v3739, %v4068
      %v4093 = vadd.f32 %v3740, %v4073
      %v4094 = vadd.f32 %v3741, %v4076
      %v4095 = vadd.f32 %v3742, %v4081
      %v4096 = vadd.f32 %v3743, %v4084
      %v4097 = vsub.f32 %v3849, %v3973
      %v4098 = vsub.f32 %v3850, %v3974
      %v4099 = vsub.f32 %v3851, %v3975
      %v4100 = vsub.f32 %v3852, %v3976
      %v4101 = vsub.f32 %v3853, %v3977
      %v4102 = vsub.f32 %v3854, %v3978
      %v4103 = vsub.f32 %v3855, %v3979
      %v4104 = vsub.f32 %v3856, %v3980
      %v4105 = vsub.f32 %v3857, %v3981
      %v4106 = vsub.f32 %v3858, %v3982
      %v4107 = vsub.f32 %v4087, %v3849
      %v4108 = vsub.f32 %v4088, %v3850
      %v4109 = vsub.f32 %v4089, %v3851
      %v4110 = vsub.f32 %v4090, %v3852
      %v4111 = vsub.f32 %v4091, %v3853
      %v4112 = vsub.f32 %v4092, %v3854
      %v4113 = vsub.f32 %v4093, %v3855
      %v4114 = vsub.f32 %v4094, %v3856
      %v4115 = vsub.f32 %v4095, %v3857
      %v4116 = vsub.f32 %v4096, %v3858
      %v4117 = vsub.f32 %v4107, %v3973
      %v4118 = vsub.f32 %v4108, %v3974
      %v4119 = vsub.f32 %v4109, %v3975
      %v4120 = vsub.f32 %v4110, %v3976
      %v4121 = vsub.f32 %v4111, %v3977
      %v4122 = vsub.f32 %v4112, %v3978
      %v4123 = vsub.f32 %v4113, %v3979
      %v4124 = vsub.f32 %v4114, %v3980
      %v4125 = vsub.f32 %v4115, %v3981
      %v4126 = vsub.f32 %v4116, %v3982
      %4127 = vset.pattern.permute.xlu0 1
      %4128 = vperm.xlu0 %4127, %v319
      %v4129 = vpop.permute.xlu0 %4128
      %4131 = vset.pattern.permute.xlu0 1
      %4132 = vperm.xlu0 %4131, %v320
      %v4133 = vpop.permute.xlu0 %4132
      %4135 = vset.pattern.permute.xlu0 1
      %4136 = vperm.xlu0 %4135, %v321
      %v4137 = vpop.permute.xlu0 %4136
      %4139 = vset.pattern.permute.xlu0 1
      %4140 = vperm.xlu0 %4139, %v322
      %v4141 = vpop.permute.xlu0 %4140
      %4143 = vset.pattern.permute.xlu0 1
      %4144 = vperm.xlu0 %4143, %v323
      %v4145 = vpop.permute.xlu0 %4144
      %4147 = vset.pattern.permute.xlu0 1
      %4148 = vperm.xlu0 %4147, %v324
      %v4149 = vpop.permute.xlu0 %4148
      %4151 = vset.pattern.permute.xlu0 1
      %4152 = vperm.xlu0 %4151, %v325
      %v4153 = vpop.permute.xlu0 %4152
      %4155 = vset.pattern.permute.xlu0 1
      %4156 = vperm.xlu0 %4155, %v326
      %v4157 = vpop.permute.xlu0 %4156
      %4159 = vset.pattern.permute.xlu0 1
      %4160 = vperm.xlu0 %4159, %v327
      %v4161 = vpop.permute.xlu0 %4160
      %4163 = vset.pattern.permute.xlu0 1
      %4164 = vperm.xlu0 %4163, %v328
      %v4165 = vpop.permute.xlu0 %4164
      %v4167 = vmul.f32 %v4097, %v4129
      %v4168 = vmul.f32 %v4098, %v4133
      %v4169 = vmul.f32 %v4099, %v4137
      %v4170 = vmul.f32 %v4100, %v4141
      %v4171 = vmul.f32 %v4101, %v4145
      %v4172 = vmul.f32 %v4102, %v4149
      %v4173 = vmul.f32 %v4103, %v4153
      %v4174 = vmul.f32 %v4104, %v4157
      %v4175 = vmul.f32 %v4105, %v4161
      %v4176 = vmul.f32 %v4106, %v4165
      %v4177 = vmul.f32 %v4117, %v4129
      %v4178 = vmul.f32 %v4118, %v4133
      %v4179 = vmul.f32 %v4119, %v4137
      %v4180 = vmul.f32 %v4120, %v4141
      %v4181 = vmul.f32 %v4121, %v4145
      %v4182 = vmul.f32 %v4122, %v4149
      %v4183 = vmul.f32 %v4123, %v4153
      %v4184 = vmul.f32 %v4124, %v4157
      %v4185 = vmul.f32 %v4125, %v4161
      %v4186 = vmul.f32 %v4126, %v4165
      %v4187 = vsel %vm862, %v4167, 0.0
      %v4188 = vsel %vm862, %v4168, 0.0
      %v4189 = vadd.f32 %v4187, %v4188
      %v4190 = vsel %vm862, %v4169, 0.0
      %v4191 = vadd.f32 %v4189, %v4190
      %v4192 = vsel %vm862, %v4170, 0.0
      %v4193 = vadd.f32 %v4191, %v4192
      %v4194 = vsel %vm862, %v4171, 0.0
      %v4195 = vadd.f32 %v4193, %v4194
      %v4196 = vsel %vm862, %v4172, 0.0
      %v4197 = vadd.f32 %v4195, %v4196
      %v4198 = vsel %vm862, %v4173, 0.0
      %v4199 = vadd.f32 %v4197, %v4198
      %v4200 = vsel %vm862, %v4174, 0.0
      %v4201 = vadd.f32 %v4199, %v4200
      %v4202 = vsel %vm862, %v4175, 0.0
      %v4203 = vadd.f32 %v4201, %v4202
      %v4204 = vsel %vm862, %v4176, 0.0
      %v4205 = vadd.f32 %v4203, %v4204
      %v4206 = vrot.slane %v4205, 4
      %v4207 = vadd.f32 %v4205, %v4206
      %v4208 = vrot.slane %v4207, 2
      %v4209 = vadd.f32 %v4207, %v4208
      %v4210 = vrot.slane %v4209, 1
      %v4211 = vadd.f32 %v4209, %v4210
      %v4212 = vmul.f32 %v4167, %v4097
      %v4213 = vmul.f32 %v4168, %v4098
      %v4214 = vmul.f32 %v4169, %v4099
      %v4215 = vmul.f32 %v4170, %v4100
      %v4216 = vmul.f32 %v4171, %v4101
      %v4217 = vmul.f32 %v4172, %v4102
      %v4218 = vmul.f32 %v4173, %v4103
      %v4219 = vmul.f32 %v4174, %v4104
      %v4220 = vmul.f32 %v4175, %v4105
      %v4221 = vmul.f32 %v4176, %v4106
      %v4222 = vsel %vm862, %v4212, 0.0
      %v4223 = vsel %vm862, %v4213, 0.0
      %v4224 = vadd.f32 %v4222, %v4223
      %v4225 = vsel %vm862, %v4214, 0.0
      %v4226 = vadd.f32 %v4224, %v4225
      %v4227 = vsel %vm862, %v4215, 0.0
      %v4228 = vadd.f32 %v4226, %v4227
      %v4229 = vsel %vm862, %v4216, 0.0
      %v4230 = vadd.f32 %v4228, %v4229
      %v4231 = vsel %vm862, %v4217, 0.0
      %v4232 = vadd.f32 %v4230, %v4231
      %v4233 = vsel %vm862, %v4218, 0.0
      %v4234 = vadd.f32 %v4232, %v4233
      %v4235 = vsel %vm862, %v4219, 0.0
      %v4236 = vadd.f32 %v4234, %v4235
      %v4237 = vsel %vm862, %v4220, 0.0
      %v4238 = vadd.f32 %v4236, %v4237
      %v4239 = vsel %vm862, %v4221, 0.0
      %v4240 = vadd.f32 %v4238, %v4239
      %v4241 = vrot.slane %v4240, 4
      %v4242 = vadd.f32 %v4240, %v4241
      %v4243 = vrot.slane %v4242, 2
      %v4244 = vadd.f32 %v4242, %v4243
      %v4245 = vrot.slane %v4244, 1
      %v4246 = vadd.f32 %v4244, %v4245
      %v4247 = vsel %vm862, %v4177, 0.0
      %v4248 = vsel %vm862, %v4178, 0.0
      %v4249 = vadd.f32 %v4247, %v4248
      %v4250 = vsel %vm862, %v4179, 0.0
      %v4251 = vadd.f32 %v4249, %v4250
      %v4252 = vsel %vm862, %v4180, 0.0
      %v4253 = vadd.f32 %v4251, %v4252
      %v4254 = vsel %vm862, %v4181, 0.0
      %v4255 = vadd.f32 %v4253, %v4254
      %v4256 = vsel %vm862, %v4182, 0.0
      %v4257 = vadd.f32 %v4255, %v4256
      %v4258 = vsel %vm862, %v4183, 0.0
      %v4259 = vadd.f32 %v4257, %v4258
      %v4260 = vsel %vm862, %v4184, 0.0
      %v4261 = vadd.f32 %v4259, %v4260
      %v4262 = vsel %vm862, %v4185, 0.0
      %v4263 = vadd.f32 %v4261, %v4262
      %v4264 = vsel %vm862, %v4186, 0.0
      %v4265 = vadd.f32 %v4263, %v4264
      %v4266 = vrot.slane %v4265, 4
      %v4267 = vadd.f32 %v4265, %v4266
      %v4268 = vrot.slane %v4267, 2
      %v4269 = vadd.f32 %v4267, %v4268
      %v4270 = vrot.slane %v4269, 1
      %v4271 = vadd.f32 %v4269, %v4270
      %v4272 = vmul.f32 %v4177, %v4117
      %v4273 = vmul.f32 %v4178, %v4118
      %v4274 = vmul.f32 %v4179, %v4119
      %v4275 = vmul.f32 %v4180, %v4120
      %v4276 = vmul.f32 %v4181, %v4121
      %v4277 = vmul.f32 %v4182, %v4122
      %v4278 = vmul.f32 %v4183, %v4123
      %v4279 = vmul.f32 %v4184, %v4124
      %v4280 = vmul.f32 %v4185, %v4125
      %v4281 = vmul.f32 %v4186, %v4126
      %v4282 = vsel %vm862, %v4272, 0.0
      %v4283 = vsel %vm862, %v4273, 0.0
      %v4284 = vadd.f32 %v4282, %v4283
      %v4285 = vsel %vm862, %v4274, 0.0
      %v4286 = vadd.f32 %v4284, %v4285
      %v4287 = vsel %vm862, %v4275, 0.0
      %v4288 = vadd.f32 %v4286, %v4287
      %v4289 = vsel %vm862, %v4276, 0.0
      %v4290 = vadd.f32 %v4288, %v4289
      %v4291 = vsel %vm862, %v4277, 0.0
      %v4292 = vadd.f32 %v4290, %v4291
      %v4293 = vsel %vm862, %v4278, 0.0
      %v4294 = vadd.f32 %v4292, %v4293
      %v4295 = vsel %vm862, %v4279, 0.0
      %v4296 = vadd.f32 %v4294, %v4295
      %v4297 = vsel %vm862, %v4280, 0.0
      %v4298 = vadd.f32 %v4296, %v4297
      %v4299 = vsel %vm862, %v4281, 0.0
      %v4300 = vadd.f32 %v4298, %v4299
      %v4301 = vrot.slane %v4300, 4
      %v4302 = vadd.f32 %v4300, %v4301
      %v4303 = vrot.slane %v4302, 2
      %v4304 = vadd.f32 %v4302, %v4303
      %v4305 = vrot.slane %v4304, 1
      %v4306 = vadd.f32 %v4304, %v4305
      %vm4307 = vcmask 1040384
      %v4308 = vsel %vm4307, %v4211, %v4246
      %vm4309 = vcmask 1041408
      %v4310 = vsel %vm4309, %v4308, %v4271
      %vm4311 = vcmask 1042432
      %v4312 = vsel %vm4311, %v4310, %v4306
      %vm4313 = vcmask 60416
      %4314 = vst.msk [vmem:[%s289] sm:$0xf] %vm4313, %v4312
      %v4315 = vpack.c.bf16 %v4097, %v4097
      %4316 = vst.msk [vmem:[%s285] sm:$0xf] %vm4313, %v4315
      %v4317 = vpack.c.bf16 %v4117, %v4117
      %v4319 = vunpack.c.l.b16 %v4317
      %v4320 = vpack.c.b16 %v4319, %v4319
      %4321 = vrot.lane.b32.xlu0 %v4320, 8
      %v4322 = vpop.permute.xlu0 %4321
      %vm4324 = vcmask 126016
      %4325 = vst.msk [vmem:[%s285] sm:$0xf] %vm4324, %v4322
      %v4326 = vpack.c.bf16 %v4099, %v4098
      %v4328 = vunpack.c.l.b16 %v4326
      %v4329 = vunpack.c.h.b16 %v4326
      %v4330 = vpack.c.b16 %v4328, %v4328
      %v4331 = vpack.c.b16 %v4329, %v4329
      %vm4332 = vcmask 1046532
      %vm4333 = vmor %vm1885, %vm4332
      %v4334 = vrot.slane %v4330, 5
      %v4335 = vrot.slane %v4334, 4
      %v4336 = vrot.slane %v4331, 5
      %v4337 = vsel %vm4333, %v4335, %v4336
      %4339 = vst.msk [vmem:[%s285 + $0x4] sm:$0xf] %vm4313, %v4337
      %v4340 = vpack.c.bf16 %v4119, %v4118
      %v4342 = vunpack.c.l.b16 %v4340
      %v4343 = vunpack.c.h.b16 %v4340
      %v4344 = vpack.c.b16 %v4342, %v4342
      %v4345 = vpack.c.b16 %v4343, %v4343
      %v4346 = vrot.slane %v4344, 5
      %v4347 = vrot.slane %v4346, 4
      %v4348 = vrot.slane %v4345, 5
      %v4349 = vsel %vm4333, %v4347, %v4348
      %4350 = vrot.lane.b32.xlu0 %v4349, 8
      %v4351 = vpop.permute.xlu0 %4350
      %4353 = vst.msk [vmem:[%s285 + $0x4] sm:$0xf] %vm4324, %v4351
      %v4354 = vpack.c.bf16 %v4100, %v4099
      %v4356 = vunpack.c.l.b16 %v4354
      %v4357 = vunpack.c.h.b16 %v4354
      %v4358 = vpack.c.b16 %v4356, %v4356
      %v4359 = vpack.c.b16 %v4357, %v4357
      %vm4360 = vcmask 1045508
      %vm4361 = vmor %vm2633, %vm4360
      %v4362 = vrot.slane %v4358, 6
      %v4363 = vrot.slane %v4362, 4
      %v4364 = vrot.slane %v4359, 6
      %v4365 = vsel %vm4361, %v4363, %v4364
      %4367 = vst.msk [vmem:[%s285 + $0x8] sm:$0xf] %vm4313, %v4365
      %v4368 = vpack.c.bf16 %v4120, %v4119
      %v4370 = vunpack.c.l.b16 %v4368
      %v4371 = vunpack.c.h.b16 %v4368
      %v4372 = vpack.c.b16 %v4370, %v4370
      %v4373 = vpack.c.b16 %v4371, %v4371
      %v4374 = vrot.slane %v4372, 6
      %v4375 = vrot.slane %v4374, 4
      %v4376 = vrot.slane %v4373, 6
      %v4377 = vsel %vm4361, %v4375, %v4376
      %4378 = vrot.lane.b32.xlu0 %v4377, 8
      %v4379 = vpop.permute.xlu0 %4378
      %4381 = vst.msk [vmem:[%s285 + $0x8] sm:$0xf] %vm4324, %v4379
      %v4382 = vpack.c.bf16 %v4101, %v4100
      %v4384 = vunpack.c.l.b16 %v4382
      %v4385 = vunpack.c.h.b16 %v4382
      %v4386 = vpack.c.b16 %v4384, %v4384
      %v4387 = vpack.c.b16 %v4385, %v4385
      %vm4388 = vcmask 1040384
      %vm4389 = vcmask 1044484
      %vm4390 = vmor %vm4388, %vm4389
      %v4391 = vrot.slane %v4386, 7
      %v4392 = vrot.slane %v4391, 4
      %v4393 = vrot.slane %v4387, 7
      %v4394 = vsel %vm4390, %v4392, %v4393
      %4396 = vst.msk [vmem:[%s285 + $0xc] sm:$0xf] %vm4313, %v4394
      %v4397 = vpack.c.bf16 %v4121, %v4120
      %v4399 = vunpack.c.l.b16 %v4397
      %v4400 = vunpack.c.h.b16 %v4397
      %v4401 = vpack.c.b16 %v4399, %v4399
      %v4402 = vpack.c.b16 %v4400, %v4400
      %v4403 = vrot.slane %v4401, 7
      %v4404 = vrot.slane %v4403, 4
      %v4405 = vrot.slane %v4402, 7
      %v4406 = vsel %vm4390, %v4404, %v4405
      %4407 = vrot.lane.b32.xlu0 %v4406, 8
      %v4408 = vpop.permute.xlu0 %4407
      %4410 = vst.msk [vmem:[%s285 + $0xc] sm:$0xf] %vm4324, %v4408
      %v4411 = vpack.c.bf16 %v4102, %v4102
      %4412 = vst.msk [vmem:[%s285 + $0x10] sm:$0xf] %vm4313, %v4411
      %v4413 = vpack.c.bf16 %v4122, %v4122
      %v4415 = vunpack.c.l.b16 %v4413
      %v4416 = vpack.c.b16 %v4415, %v4415
      %4417 = vrot.lane.b32.xlu0 %v4416, 8
      %v4418 = vpop.permute.xlu0 %4417
      %4420 = vst.msk [vmem:[%s285 + $0x10] sm:$0xf] %vm4324, %v4418
      %v4421 = vpack.c.bf16 %v4104, %v4103
      %v4423 = vunpack.c.l.b16 %v4421
      %v4424 = vunpack.c.h.b16 %v4421
      %v4425 = vpack.c.b16 %v4423, %v4423
      %v4426 = vpack.c.b16 %v4424, %v4424
      %v4427 = vrot.slane %v4425, 5
      %v4428 = vrot.slane %v4427, 4
      %v4429 = vrot.slane %v4426, 5
      %v4430 = vsel %vm4333, %v4428, %v4429
      %4432 = vst.msk [vmem:[%s285 + $0x14] sm:$0xf] %vm4313, %v4430
      %v4433 = vpack.c.bf16 %v4124, %v4123
      %v4435 = vunpack.c.l.b16 %v4433
      %v4436 = vunpack.c.h.b16 %v4433
      %v4437 = vpack.c.b16 %v4435, %v4435
      %v4438 = vpack.c.b16 %v4436, %v4436
      %v4439 = vrot.slane %v4437, 5
      %v4440 = vrot.slane %v4439, 4
      %v4441 = vrot.slane %v4438, 5
      %v4442 = vsel %vm4333, %v4440, %v4441
      %4443 = vrot.lane.b32.xlu0 %v4442, 8
      %v4444 = vpop.permute.xlu0 %4443
      %4446 = vst.msk [vmem:[%s285 + $0x14] sm:$0xf] %vm4324, %v4444
      %v4447 = vpack.c.bf16 %v4105, %v4104
      %v4449 = vunpack.c.l.b16 %v4447
      %v4450 = vunpack.c.h.b16 %v4447
      %v4451 = vpack.c.b16 %v4449, %v4449
      %v4452 = vpack.c.b16 %v4450, %v4450
      %v4453 = vrot.slane %v4451, 6
      %v4454 = vrot.slane %v4453, 4
      %v4455 = vrot.slane %v4452, 6
      %v4456 = vsel %vm4361, %v4454, %v4455
      %4458 = vst.msk [vmem:[%s285 + $0x18] sm:$0xf] %vm4313, %v4456
      %v4459 = vpack.c.bf16 %v4125, %v4124
      %v4461 = vunpack.c.l.b16 %v4459
      %v4462 = vunpack.c.h.b16 %v4459
      %v4463 = vpack.c.b16 %v4461, %v4461
      %v4464 = vpack.c.b16 %v4462, %v4462
      %v4465 = vrot.slane %v4463, 6
      %v4466 = vrot.slane %v4465, 4
      %v4467 = vrot.slane %v4464, 6
      %v4468 = vsel %vm4361, %v4466, %v4467
      %4469 = vrot.lane.b32.xlu0 %v4468, 8
      %v4470 = vpop.permute.xlu0 %4469
      %4472 = vst.msk [vmem:[%s285 + $0x18] sm:$0xf] %vm4324, %v4470
      %v4473 = vpack.c.bf16 %v4106, %v4105
      %v4475 = vunpack.c.l.b16 %v4473
      %v4476 = vunpack.c.h.b16 %v4473
      %v4477 = vpack.c.b16 %v4475, %v4475
      %v4478 = vpack.c.b16 %v4476, %v4476
      %v4479 = vrot.slane %v4477, 7
      %v4480 = vrot.slane %v4479, 4
      %v4481 = vrot.slane %v4478, 7
      %v4482 = vsel %vm4390, %v4480, %v4481
      %4484 = vst.msk [vmem:[%s285 + $0x1c] sm:$0xf] %vm4313, %v4482
      %v4485 = vpack.c.bf16 %v4126, %v4125
      %v4487 = vunpack.c.l.b16 %v4485
      %v4488 = vunpack.c.h.b16 %v4485
      %v4489 = vpack.c.b16 %v4487, %v4487
      %v4490 = vpack.c.b16 %v4488, %v4488
      %v4491 = vrot.slane %v4489, 7
      %v4492 = vrot.slane %v4491, 4
      %v4493 = vrot.slane %v4490, 7
      %v4494 = vsel %vm4390, %v4492, %v4493
      %4495 = vrot.lane.b32.xlu0 %v4494, 8
      %v4496 = vpop.permute.xlu0 %4495
      %4498 = vst.msk [vmem:[%s285 + $0x1c] sm:$0xf] %vm4324, %v4496
      %p4499 = scmp.lt.s32.totalorder %s19, 1
      %s4500 = scalar_select %p4499, %s19, 1
      %s4501 = smul.addr %s4500, 8
      %s4502 = smul.addr %s4501, 4
      %s4503 = scalar_lea.vmem %s6, %s4502
      %p4504 = scmp.lt.s32.totalorder %s19, 1
      %s4505 = scalar_select %p4504, %s19, 1
      %s4506 = smul.addr %s4505, 4
      %s4507 = scalar_lea.vmem %s7, %s4506
      // Predicated region
      $region45: #{bottleneck_forward.5} parent=43 // pred_check
        %p4508 = pneg %p168
      $region46: #{bottleneck_forward.5} parent=43 // pred_check_branch
        %4510 = sbr.rel (%p4508) target = $region48
      $region47: #{bottleneck_forward.5} parent=43 // pred_region
        _
      $region48: #{bottleneck_forward.5} parent=43 // pred_fallthru
        _
      // Predicated region
      $region49: #{bottleneck_forward.5} parent=43 // pred_check
        %p4511 = pneg %p194
      $region50: #{bottleneck_forward.5} parent=43 // pred_check_branch
        %4513 = sbr.rel (%p4511) target = $region52
      $region51: #{bottleneck_forward.5} parent=43 // pred_region
        _
      $region52: #{bottleneck_forward.5} parent=43 // pred_fallthru
        _
    $region44: #{bottleneck_forward.5} parent=5 // pred_fallthru
      _
    %p4514 = scmp.le.s32.totalorder 2, %s14
    // Predicated region
    $region53: #{bottleneck_forward.5} parent=5 // pred_check
      %p4515 = pneg %p4514
    $region54: #{bottleneck_forward.5} parent=5 // pred_check_branch
      %4517 = sbr.rel (%p4515) target = $region56
    $region55: #{bottleneck_forward.5} parent=5 // pred_region
      %s4518 = ssub.s32 %s14, 2
      // Predicated region
      $region57: #{bottleneck_forward.5} parent=55 // pred_check
        %p4519 = pneg %p174
      $region58: #{bottleneck_forward.5} parent=55 // pred_check_branch
        %4521 = sbr.rel (%p4519) target = $region60
      $region59: #{bottleneck_forward.5} parent=55 // pred_region
        %p4522 = scmp.lt.s32.totalorder %s20, 1
        %s4523 = scalar_select %p4522, %s20, 1
        %s4524 = smul.addr %s4523, 8
        %s4525 = smul.addr %s4524, 4
        %s4526 = scalar_lea.vmem %s6, %s4525
      $region60: #{bottleneck_forward.5} parent=55 // pred_fallthru
        _
      // Predicated region
      $region61: #{bottleneck_forward.5} parent=55 // pred_check
        %p4527 = pneg %p200
      $region62: #{bottleneck_forward.5} parent=55 // pred_check_branch
        %4529 = sbr.rel (%p4527) target = $region64
      $region63: #{bottleneck_forward.5} parent=55 // pred_region
        %p4530 = scmp.lt.s32.totalorder %s20, 1
        %s4531 = scalar_select %p4530, %s20, 1
        %s4532 = smul.addr %s4531, 4
        %s4533 = scalar_lea.vmem %s7, %s4532
      $region64: #{bottleneck_forward.5} parent=55 // pred_fallthru
        _
    $region56: #{bottleneck_forward.5} parent=5 // pred_fallthru
      _
  $region6: #{bottleneck_forward.5} parent=0 // loop_footer
    %s18 = sadd.s32 1, %s14
  $region7: #{bottleneck_forward.5} parent=0 // loop_footer_branch
    %13 = sbr.rel target = $region3
  $region8: #{bottleneck_forward.5} parent=0 // loop_exit
    _

</llo_original>
